<compile_context>
chip_gen: v7x
topology: tpu7x:2x2x1
jax: 0.10.0
libtpu: 0.0.40
codegen_flags: <defaults>
</compile_context>

<pallas_src>
import functools

import jax
import jax.numpy as jnp
from jax import lax
from jax.experimental import pallas as pl
from jax.experimental.pallas import tpu as pltpu

# ----- synthetic, small config consistent with the module's __init__ ---------
N_CHAR_VOCAB = 16   # V  (vocabulary size; N_CHAR_VOCAB global in the repo)
N_HIDDENS    = 32   # H  (GRU hidden size; module default is 50)
N_LATENTS    = 8    # L  (latent size; module default is 20)
SEQ_LEN      = 8    # T  (encoder input sequence length)
MAX_LENGTH   = 8    # decoder unroll length (MAX_LENGTH global in the repo)
SOS          = 1    # start-of-sequence token id
BATCH        = 16   # total formulas processed by one call
BLOCK_B      = 8    # batch rows per grid step (fills the 8 sublanes)

GATES = ("r", "z", "n")


# --------------------------- packed-parameter layout --------------------------
def _build_layout():
    """Row/col ranges of every (gate-fused, pre-transposed) parameter inside the
    single packed f32 slab.

    Row block 0 (rows 0..H-1):   weight panels with H input rows; GRU gate
                                 panels are fused along lanes as [r|z|n].
    Row block 1 (rows H..H+V-1): embeddings (V rows), latent-input panels
                                 (L rows) and bias rows at row H+L.
    Columns are allocated strictly increasing inside each row block, so nothing
    overlaps; the two row blocks are disjoint by construction.
    """
    H, V, L = N_HIDDENS, N_CHAR_VOCAB, N_LATENTS
    lay = {}
    col = 0

    def put(name, r0, nrows, ncols):
        nonlocal col
        lay[name] = (r0, r0 + nrows, col, col + ncols)
        col += ncols

    # --- row block 0: (H, *) weight panels, gates fused -> (H, 3H) -----------
    for name in ("e_wih_f", "e_whh_f", "e_wih_b",
                 "d0_wih_x", "d0_whh", "d1_wih", "d1_whh"):
        put(name, 0, H, 3 * H)
    put("w_h2p", 0, H, 2 * L)
    put("w_h2o_h", 0, H, V)
    w0 = col

    # --- row block 1: embeddings, latent-input panels, bias rows -------------
    col = 0
    put("e_emb", H, V, H)
    put("d_emb", H, V, H)
    put("w_z2h", H, L, H)
    put("d0_wih_z", H, L, 3 * H)
    put("w_h2o_z", H, L, V)
    for name, ncols in (
        ("b_ef_rzi", 3 * H), ("b_ef_hn", H),
        ("b_eb_rzi", 3 * H), ("b_eb_hn", H),
        ("b_d0_rzi", 3 * H), ("b_d0_hn", H),
        ("b_d1_rzi", 3 * H), ("b_d1_hn", H),
        ("b_h2p", 2 * L), ("b_z2h", H), ("b_h2o", V),
    ):
        put(name, H + L, 1, ncols)
    w1 = col
    return lay, (H + V, max(w0, w1))


_LAYOUT, _SLAB_SHAPE = _build_layout()   # (48, 784) f32 ≈ 147 KB, one resident DMA


# ------------------------------ parameters ------------------------------------
def init_params(key):
    """Deterministic synthetic per-gate parameters (weights pre-transposed to
    (in_features, out_features); PyTorch's concatenated [r|z|n] weights are the
    per-gate blocks stacked, so per-gate generation is equivalent)."""
    V, H, L = N_CHAR_VOCAB, N_HIDDENS, N_LATENTS
    specs = {
        "e_emb": (V, H), "d_emb": (V, H),
        "w_h2p": (H, 2 * L), "b_h2p": (2 * L,),
        "w_z2h": (L, H), "b_z2h": (H,),
        "w_h2o_h": (H, V), "w_h2o_z": (L, V), "b_h2o": (V,),
    }
    for g in GATES:
        specs[f"e_wih_f_{g}"] = (H, H); specs[f"e_whh_f_{g}"] = (H, H)
        specs[f"e_bih_f_{g}"] = (H,);   specs[f"e_bhh_f_{g}"] = (H,)
        specs[f"e_wih_b_{g}"] = (H, H); specs[f"e_whh_b_{g}"] = (H, H)
        specs[f"e_bih_b_{g}"] = (H,);   specs[f"e_bhh_b_{g}"] = (H,)
        specs[f"d0_wih_x_{g}"] = (H, H); specs[f"d0_wih_z_{g}"] = (L, H)
        specs[f"d0_whh_{g}"] = (H, H)
        specs[f"d0_bih_{g}"] = (H,); specs[f"d0_bhh_{g}"] = (H,)
        specs[f"d1_wih_{g}"] = (H, H); specs[f"d1_whh_{g}"] = (H, H)
        specs[f"d1_bih_{g}"] = (H,); specs[f"d1_bhh_{g}"] = (H,)
    names = sorted(specs)
    keys = jax.random.split(key, len(names))
    return {n: jax.random.uniform(k, specs[n], jnp.float32, -0.1, 0.1)
            for n, k in zip(names, keys)}


def pack_params(params):
    """One-time host-side packing into one f32 slab, with gates fused along the
    lane axis ([r|z|n]).  GRU biases are pre-combined per gate (b_ih + b_hh for
    the r/z gates; b_ih_n and b_hh_n stay separate because b_hh_n sits inside
    r*(.))."""
    row = lambda v: v.reshape(1, -1)
    cat = lambda names: jnp.concatenate([params[n] for n in names], axis=-1)
    vals = {
        "e_emb": params["e_emb"], "d_emb": params["d_emb"],
        "w_z2h": params["w_z2h"], "w_h2p": params["w_h2p"],
        "w_h2o_h": params["w_h2o_h"], "w_h2o_z": params["w_h2o_z"],
        "b_h2p": row(params["b_h2p"]), "b_z2h": row(params["b_z2h"]),
        "b_h2o": row(params["b_h2o"]),
    }
    for base in ("e_wih_f", "e_whh_f", "e_wih_b",
                 "d0_wih_x", "d0_wih_z", "d0_whh", "d1_wih", "d1_whh"):
        vals[base] = cat([f"{base}_{g}" for g in GATES])
    for tag, ih, hh in (("ef", "e_bih_f", "e_bhh_f"),
                        ("eb", "e_bih_b", "e_bhh_b"),
                        ("d0", "d0_bih", "d0_bhh"),
                        ("d1", "d1_bih", "d1_bhh")):
        vals[f"b_{tag}_rzi"] = row(jnp.concatenate(
            [params[f"{ih}_r"] + params[f"{hh}_r"],
             params[f"{ih}_z"] + params[f"{hh}_z"],
             params[f"{ih}_n"]], axis=-1))
        vals[f"b_{tag}_hn"] = row(params[f"{hh}_n"])
    slab = jnp.zeros(_SLAB_SHAPE, jnp.float32)
    for name, (r0, r1, c0, c1) in _LAYOUT.items():
        slab = slab.at[r0:r1, c0:c1].set(vals[name])
    return slab


# --------------------------------- kernel -------------------------------------
def _formula_vae_kernel(x_ref, slab_ref, eps_ref, words_ref, p_ref,
                        *, B, T, V, H, L, ML, sos, training):
    f32 = jnp.float32

    def P(name):                               # static window into the packed slab
        r0, r1, c0, c1 = _LAYOUT[name]
        return slab_ref[r0:r1, c0:c1]

    def dot(a, b):
        return jnp.dot(a, b, preferred_element_type=f32)

    x_ids = x_ref[...]                                        # (B, T) int32
    iota_v = lax.broadcasted_iota(jnp.int32, (B, V), 1)       # (B, V)

    # --------------------------- FormulaEncoder -------------------------------
    e_emb = P("e_emb")                                        # (V, H)
    # Fused [r|z|n] token table (V, 3H); input-side biases folded in (one-hot
    # rows sum to exactly 1, so a per-row bias add is exact).
    tab = dot(e_emb, P("e_wih_f")) + P("b_ef_rzi")
    whh_f = P("e_whh_f")                                      # (H, 3H)
    bb_ef_hn = jnp.broadcast_to(P("b_ef_hn"), (B, H))         # hoisted broadcast

    # All input-side work collapsed to ONE matmul before the serial h loop.
    ohs = [(iota_v == x_ids[:, t:t + 1]).astype(f32) for t in range(T)]
    gi_all = dot(jnp.concatenate(ohs, axis=0), tab)           # (T*B, 3H)
    gi_r = [gi_all[t * B:(t + 1) * B, 0 * H:1 * H] for t in range(T)]
    gi_z = [gi_all[t * B:(t + 1) * B, 1 * H:2 * H] for t in range(T)]
    gi_n = [gi_all[t * B:(t + 1) * B, 2 * H:3 * H] for t in range(T)]

    h = jnp.zeros((B, H), f32)
    for t in range(T):          # serial chain: one fused (B,H)@(H,3H) dot / step
        gh = dot(h, whh_f)                                    # (B, 3H)
        r = jax.nn.sigmoid(gi_r[t] + gh[:, :H])
        u = jax.nn.sigmoid(gi_z[t] + gh[:, H:2 * H])
        n = jnp.tanh(gi_n[t] + r * (gh[:, 2 * H:] + bb_ef_hn))
        h = (1.0 - u) * n + u * h
    h_f = h

    # Bidirectional GRU: the model consumes output[-1]; its backward half is
    # exactly one reverse step over the last token from a zero state, so the
    # h @ W_hh terms are identically zero and dropped.
    emb_last = dot(ohs[T - 1], e_emb)                         # (B, H)
    gb = dot(emb_last, P("e_wih_b")) + P("b_eb_rzi")          # (B, 3H)
    rb = jax.nn.sigmoid(gb[:, :H])
    ub = jax.nn.sigmoid(gb[:, H:2 * H])
    nb = jnp.tanh(gb[:, 2 * H:] + rb * P("b_eb_hn"))
    h_b = (1.0 - ub) * nb

    s = h_f + h_b                                             # out[:, :H] + out[:, H:]
    p = dot(s, P("w_h2p")) + P("b_h2p")                       # (B, 2L) = [mu || logvar]
    p_ref[...] = p                                            # single lane-dense store

    # ---------------------------- reparametrize --------------------------------
    mu = p[:, :L]
    if training:
        z = mu + eps_ref[...] * jnp.exp(0.5 * p[:, L:])
    else:
        z = mu

    # --------------------------- FormulaDecoder --------------------------------
    d_emb = P("d_emb")
    demb_sw = d_emb * jax.nn.sigmoid(d_emb)                   # swish(embed), all tokens once
    dtab = dot(demb_sw, P("d0_wih_x"))                        # (V, 3H) token table
    whh0 = P("d0_whh")                                        # (H, 3H)
    w1i = P("d1_wih")
    w1h = P("d1_whh")
    w_h2o_h = P("w_h2o_h")

    # Hoisted z-dependent terms (biases folded) + pre-broadcast recurrent biases.
    gz0 = dot(z, P("d0_wih_z")) + P("b_d0_rzi")               # (B, 3H)
    z_logits = dot(z, P("w_h2o_z")) + P("b_h2o")              # (B, V)
    bb_d0_hn = jnp.broadcast_to(P("b_d0_hn"), (B, H))
    bb_d1_rzi = jnp.broadcast_to(P("b_d1_rzi"), (B, 3 * H))
    bb_d1_hn = jnp.broadcast_to(P("b_d1_hn"), (B, H))

    h0 = dot(z, P("w_z2h")) + P("b_z2h")                      # h.repeat(2,1,1)
    h_l0 = h0
    h_l1 = h0

    c_oh = (iota_v == sos).astype(f32)                        # one-hot SOS input
    logps = []
    for _ in range(ML):
        # layer 0: fused gates -> 2 dots; chained dot+dot accumulates (MRB on v7x)
        gx0 = dot(c_oh, dtab) + gz0
        gh0 = dot(h_l0, whh0)
        r0 = jax.nn.sigmoid(gx0[:, :H] + gh0[:, :H])
        u0 = jax.nn.sigmoid(gx0[:, H:2 * H] + gh0[:, H:2 * H])
        n0 = jnp.tanh(gx0[:, 2 * H:] + r0 * (gh0[:, 2 * H:] + bb_d0_hn))
        h_l0 = (1.0 - u0) * n0 + u0 * h_l0
        # TODO(synk): nn.GRU inter-layer dropout (p=0.1, train mode only) omitted (eval-equivalent).
        # layer 1: fused gates -> 2 dots
        gx1 = dot(h_l0, w1i) + bb_d1_rzi
        gh1 = dot(h_l1, w1h)
        r1 = jax.nn.sigmoid(gx1[:, :H] + gh1[:, :H])
        u1 = jax.nn.sigmoid(gx1[:, H:2 * H] + gh1[:, H:2 * H])
        n1 = jnp.tanh(gx1[:, 2 * H:] + r1 * (gh1[:, 2 * H:] + bb_d1_hn))
        h_l1 = (1.0 - u1) * n1 + u1 * h_l1
        # h2o on cat(c_out, z)
        logits = dot(h_l1, w_h2o_h) + z_logits
        # Greedy feedback straight from logits (log_softmax is monotone, ties
        # preserved; torch.max picks the first maximal index).
        mx = jnp.max(logits, axis=-1, keepdims=True)
        idx = jnp.min(jnp.where(logits == mx, iota_v, V), axis=-1, keepdims=True)
        c_oh = (iota_v == idx).astype(f32)
        # log_softmax only feeds the words output (off the feedback chain).
        sh = logits - mx
        logps.append(sh - jnp.log(jnp.sum(jnp.exp(sh), axis=-1, keepdims=True)))

    # one lane-dense (B, ML*V) = (8, 128) store; wrapper reshapes to (B, ML, V)
    words_ref[...] = jnp.concatenate(logps, axis=-1)


# ------------------------------ glue / wrapper ---------------------------------
def formula_vae_forward(x_ids, slab, eps=None, training=False, block_b=BLOCK_B):
    B, T = x_ids.shape
    V, H, L, ML = N_CHAR_VOCAB, N_HIDDENS, N_LATENTS, MAX_LENGTH
    block_b = min(block_b, B)
    assert B % block_b == 0, "batch must be a multiple of the batch block"
    grid = (B // block_b,)
    common = dict(B=block_b, T=T, V=V, H=H, L=L, ML=ML, sos=SOS, training=training)

    in_specs = [
        pl.BlockSpec((block_b, T), lambda i: (i, 0)),         # per-chunk tokens
        pl.BlockSpec(_SLAB_SHAPE, lambda i: (0, 0)),          # slab: VMEM-resident (constant index)
    ]
    if training:
        kern = functools.partial(_formula_vae_kernel, **common)
        in_specs.append(pl.BlockSpec((block_b, L), lambda i: (i, 0)))
        args = (x_ids.astype(jnp.int32), slab, eps.astype(jnp.float32))
    else:
        def kern(x_ref, slab_ref, words_ref, p_ref):          # no eps DMA in eval
            _formula_vae_kernel(x_ref, slab_ref, None, words_ref, p_ref, **common)
        args = (x_ids.astype(jnp.int32), slab)

    words_flat, p = pl.pallas_call(
        kern,
        grid=grid,
        out_shape=(
            jax.ShapeDtypeStruct((B, ML * V), jnp.float32),   # log-probs, lane-dense
            jax.ShapeDtypeStruct((B, 2 * L), jnp.float32),    # [mu || logvar]
        ),
        in_specs=in_specs,
        out_specs=(
            pl.BlockSpec((block_b, ML * V), lambda i: (i, 0)),
            pl.BlockSpec((block_b, 2 * L), lambda i: (i, 0)),
        ),
        compiler_params=pltpu.CompilerParams(
            dimension_semantics=("parallel",)),  # shards batch grid over 2 TCs on v7x
    )(*args)
    words = words_flat.reshape(B, ML, V)
    return words, p[:, :L], p[:, L:]


# ------------------------ pure-JAX reference (for checking) --------------------
def reference_forward(x_ids, P, eps, training):
    H, L, V, ML = N_HIDDENS, N_LATENTS, N_CHAR_VOCAB, MAX_LENGTH
    B, T = x_ids.shape

    def cell(gr, gz, gn, h, wr, wz, wn, br, bz, bn):
        r = jax.nn.sigmoid(gr + h @ wr + br)
        u = jax.nn.sigmoid(gz + h @ wz + bz)
        n = jnp.tanh(gn + r * (h @ wn + bn))
        return (1.0 - u) * n + u * h

    emb = P["e_emb"][x_ids]                                   # (B, T, H)
    h = jnp.zeros((B, H), jnp.float32)
    for t in range(T):
        e = emb[:, t]
        h = cell(e @ P["e_wih_f_r"] + P["e_bih_f_r"],
                 e @ P["e_wih_f_z"] + P["e_bih_f_z"],
                 e @ P["e_wih_f_n"] + P["e_bih_f_n"],
                 h, P["e_whh_f_r"], P["e_whh_f_z"], P["e_whh_f_n"],
                 P["e_bhh_f_r"], P["e_bhh_f_z"], P["e_bhh_f_n"])
    e = emb[:, T - 1]
    h_b = cell(e @ P["e_wih_b_r"] + P["e_bih_b_r"],
               e @ P["e_wih_b_z"] + P["e_bih_b_z"],
               e @ P["e_wih_b_n"] + P["e_bih_b_n"],
               jnp.zeros((B, H), jnp.float32),
               P["e_whh_b_r"], P["e_whh_b_z"], P["e_whh_b_n"],
               P["e_bhh_b_r"], P["e_bhh_b_z"], P["e_bhh_b_n"])
    s = h + h_b
    pv = s @ P["w_h2p"] + P["b_h2p"]
    mu, logvar = pv[:, :L], pv[:, L:]
    z = mu + eps * jnp.exp(0.5 * logvar) if training else mu

    h0 = z @ P["w_z2h"] + P["b_z2h"]
    h_l0, h_l1 = h0, h0
    c = jnp.full((B,), SOS, jnp.int32)
    words = []
    for _ in range(ML):
        e = P["d_emb"][c]
        e = e * jax.nn.sigmoid(e)
        h_l0 = cell(e @ P["d0_wih_x_r"] + z @ P["d0_wih_z_r"] + P["d0_bih_r"],
                    e @ P["d0_wih_x_z"] + z @ P["d0_wih_z_z"] + P["d0_bih_z"],
                    e @ P["d0_wih_x_n"] + z @ P["d0_wih_z_n"] + P["d0_bih_n"],
                    h_l0, P["d0_whh_r"], P["d0_whh_z"], P["d0_whh_n"],
                    P["d0_bhh_r"], P["d0_bhh_z"], P["d0_bhh_n"])
        h_l1 = cell(h_l0 @ P["d1_wih_r"] + P["d1_bih_r"],
                    h_l0 @ P["d1_wih_z"] + P["d1_bih_z"],
                    h_l0 @ P["d1_wih_n"] + P["d1_bih_n"],
                    h_l1, P["d1_whh_r"], P["d1_whh_z"], P["d1_whh_n"],
                    P["d1_bhh_r"], P["d1_bhh_z"], P["d1_bhh_n"])
        logits = h_l1 @ P["w_h2o_h"] + z @ P["w_h2o_z"] + P["b_h2o"]
        logp = jax.nn.log_softmax(logits, axis=-1)
        words.append(logp)
        c = jnp.argmax(logp, axis=-1).astype(jnp.int32)
    return jnp.stack(words, axis=1), mu, logvar


# ---------------------------------- main ---------------------------------------
if __name__ == "__main__":
    key = jax.random.PRNGKey(0)
    k_params, k_x = jax.random.split(key)
    params = init_params(k_params)
    slab = pack_params(params)                 # one-time host-side packing (1 DMA)
    x = jax.random.randint(k_x, (BATCH, SEQ_LEN), 0, N_CHAR_VOCAB, dtype=jnp.int32)

    # eval-mode forward (reparametrize returns mu); training mode is supported
    # via formula_vae_forward(..., eps=<normal sample>, training=True).
    words, mu, logvar = jax.block_until_ready(
        formula_vae_forward(x, slab, training=False)
    )

    words_r, mu_r, logvar_r = reference_forward(
        x, params, jnp.zeros((BATCH, N_LATENTS), jnp.float32), False
    )
    assert words.shape == (BATCH, MAX_LENGTH, N_CHAR_VOCAB)
    assert mu.shape == (BATCH, N_LATENTS) and logvar.shape == (BATCH, N_LATENTS)
    assert jnp.allclose(mu, mu_r, atol=2e-4, rtol=2e-4)
    assert jnp.allclose(logvar, logvar_r, atol=2e-4, rtol=2e-4)
    assert jnp.allclose(words, words_r, atol=2e-4, rtol=2e-4)

    print("KERNEL_OK")
</pallas_src>

<mosaic_0001>
module attributes {stable_mosaic.version = 11 : i64} {
  func.func @kern(%arg0: i32, %arg1: memref<8x8xi32, #tpu.memory_space<vmem>>, %arg2: memref<48x784xf32, #tpu.memory_space<vmem>>, %arg3: memref<8x128xf32, #tpu.memory_space<vmem>>, %arg4: memref<8x16xf32, #tpu.memory_space<vmem>>) attributes {dimension_semantics = [#tpu.dimension_semantics<parallel>], iteration_bounds = array<i64: 2>, scalar_prefetch = 0 : i64, scratch_operands = 0 : i64, tpu.core_type = #tpu.core_type<tc>, window_params = [{transform_indices = @transform_0, window_bounds = array<i64: 8, 8>}, {pipeline_mode = #tpu.pipeline_mode<synchronous>, transform_indices = @transform_1, window_bounds = array<i64: 48, 784>}, {transform_indices = @transform_2, window_bounds = array<i64: 8, 128>}, {transform_indices = @transform_3, window_bounds = array<i64: 8, 16>}]} {
    %c0 = arith.constant 0 : index
    %c0_0 = arith.constant 0 : index
    %0 = vector.load %arg1[%c0, %c0_0] : memref<8x8xi32, #tpu.memory_space<vmem>>, vector<8x8xi32>
    %1 = tpu.iota {dimensions = array<i32: 1>} : vector<8x16xi32>
    %c32 = arith.constant 32 : index
    %c0_1 = arith.constant 0 : index
    %2 = vector.load %arg2[%c32, %c0_1] : memref<48x784xf32, #tpu.memory_space<vmem>>, vector<16x32xf32>
    %c0_2 = arith.constant 0 : index
    %c0_3 = arith.constant 0 : index
    %3 = vector.load %arg2[%c0_2, %c0_3] : memref<48x784xf32, #tpu.memory_space<vmem>>, vector<32x96xf32>
    %cst = arith.constant dense<0.000000e+00> : vector<16x96xf32>
    %4 = tpu.matmul %2, %3, %cst {dimension_numbers = #tpu.dot_dimension_numbers<[1], [0], [0], [1], [0, 0, 1, 1], [], []>} : vector<16x32xf32>, vector<32x96xf32>, vector<16x96xf32> -> vector<16x96xf32>
    %c40 = arith.constant 40 : index
    %c208 = arith.constant 208 : index
    %5 = vector.load %arg2[%c40, %c208] : memref<48x784xf32, #tpu.memory_space<vmem>>, vector<1x96xf32>
    %6 = vector.broadcast %5 : vector<1x96xf32> to vector<16x96xf32>
    %7 = arith.addf %4, %6 : vector<16x96xf32>
    %c0_4 = arith.constant 0 : index
    %c96 = arith.constant 96 : index
    %8 = vector.load %arg2[%c0_4, %c96] : memref<48x784xf32, #tpu.memory_space<vmem>>, vector<32x96xf32>
    %c40_5 = arith.constant 40 : index
    %c304 = arith.constant 304 : index
    %9 = vector.load %arg2[%c40_5, %c304] : memref<48x784xf32, #tpu.memory_space<vmem>>, vector<1x32xf32>
    %10 = vector.shape_cast %9 : vector<1x32xf32> to vector<1x32xf32>
    %11 = vector.broadcast %10 : vector<1x32xf32> to vector<8x32xf32>
    %12 = vector.extract_strided_slice %0 {offsets = [0, 0], sizes = [8, 1], strides = [1, 1]} : vector<8x8xi32> to vector<8x1xi32>
    %13 = vector.broadcast %12 : vector<8x1xi32> to vector<8x16xi32>
    %14 = arith.cmpi eq, %1, %13 : vector<8x16xi32>
    %15 = arith.extui %14 : vector<8x16xi1> to vector<8x16xi32>
    %16 = arith.sitofp %15 : vector<8x16xi32> to vector<8x16xf32>
    %17 = vector.extract_strided_slice %0 {offsets = [0, 1], sizes = [8, 1], strides = [1, 1]} : vector<8x8xi32> to vector<8x1xi32>
    %18 = vector.broadcast %17 : vector<8x1xi32> to vector<8x16xi32>
    %19 = arith.cmpi eq, %1, %18 : vector<8x16xi32>
    %20 = arith.extui %19 : vector<8x16xi1> to vector<8x16xi32>
    %21 = arith.sitofp %20 : vector<8x16xi32> to vector<8x16xf32>
    %22 = vector.extract_strided_slice %0 {offsets = [0, 2], sizes = [8, 1], strides = [1, 1]} : vector<8x8xi32> to vector<8x1xi32>
    %23 = vector.broadcast %22 : vector<8x1xi32> to vector<8x16xi32>
    %24 = arith.cmpi eq, %1, %23 : vector<8x16xi32>
    %25 = arith.extui %24 : vector<8x16xi1> to vector<8x16xi32>
    %26 = arith.sitofp %25 : vector<8x16xi32> to vector<8x16xf32>
    %27 = vector.extract_strided_slice %0 {offsets = [0, 3], sizes = [8, 1], strides = [1, 1]} : vector<8x8xi32> to vector<8x1xi32>
    %28 = vector.broadcast %27 : vector<8x1xi32> to vector<8x16xi32>
    %29 = arith.cmpi eq, %1, %28 : vector<8x16xi32>
    %30 = arith.extui %29 : vector<8x16xi1> to vector<8x16xi32>
    %31 = arith.sitofp %30 : vector<8x16xi32> to vector<8x16xf32>
    %32 = vector.extract_strided_slice %0 {offsets = [0, 4], sizes = [8, 1], strides = [1, 1]} : vector<8x8xi32> to vector<8x1xi32>
    %33 = vector.broadcast %32 : vector<8x1xi32> to vector<8x16xi32>
    %34 = arith.cmpi eq, %1, %33 : vector<8x16xi32>
    %35 = arith.extui %34 : vector<8x16xi1> to vector<8x16xi32>
    %36 = arith.sitofp %35 : vector<8x16xi32> to vector<8x16xf32>
    %37 = vector.extract_strided_slice %0 {offsets = [0, 5], sizes = [8, 1], strides = [1, 1]} : vector<8x8xi32> to vector<8x1xi32>
    %38 = vector.broadcast %37 : vector<8x1xi32> to vector<8x16xi32>
    %39 = arith.cmpi eq, %1, %38 : vector<8x16xi32>
    %40 = arith.extui %39 : vector<8x16xi1> to vector<8x16xi32>
    %41 = arith.sitofp %40 : vector<8x16xi32> to vector<8x16xf32>
    %42 = vector.extract_strided_slice %0 {offsets = [0, 6], sizes = [8, 1], strides = [1, 1]} : vector<8x8xi32> to vector<8x1xi32>
    %43 = vector.broadcast %42 : vector<8x1xi32> to vector<8x16xi32>
    %44 = arith.cmpi eq, %1, %43 : vector<8x16xi32>
    %45 = arith.extui %44 : vector<8x16xi1> to vector<8x16xi32>
    %46 = arith.sitofp %45 : vector<8x16xi32> to vector<8x16xf32>
    %47 = vector.extract_strided_slice %0 {offsets = [0, 7], sizes = [8, 1], strides = [1, 1]} : vector<8x8xi32> to vector<8x1xi32>
    %48 = vector.broadcast %47 : vector<8x1xi32> to vector<8x16xi32>
    %49 = arith.cmpi eq, %1, %48 : vector<8x16xi32>
    %50 = arith.extui %49 : vector<8x16xi1> to vector<8x16xi32>
    %51 = arith.sitofp %50 : vector<8x16xi32> to vector<8x16xf32>
    %52 = tpu.concatenate %16, %21, %26, %31, %36, %41, %46, %51 in 0 : vector<8x16xf32>, vector<8x16xf32>, vector<8x16xf32>, vector<8x16xf32>, vector<8x16xf32>, vector<8x16xf32>, vector<8x16xf32>, vector<8x16xf32> -> vector<64x16xf32>
    %cst_6 = arith.constant dense<0.000000e+00> : vector<64x96xf32>
    %53 = tpu.matmul %52, %7, %cst_6 {dimension_numbers = #tpu.dot_dimension_numbers<[1], [0], [0], [1], [0, 0, 1, 1], [], []>} : vector<64x16xf32>, vector<16x96xf32>, vector<64x96xf32> -> vector<64x96xf32>
    %54 = vector.extract_strided_slice %53 {offsets = [0, 0], sizes = [8, 32], strides = [1, 1]} : vector<64x96xf32> to vector<8x32xf32>
    %55 = vector.extract_strided_slice %53 {offsets = [8, 0], sizes = [8, 32], strides = [1, 1]} : vector<64x96xf32> to vector<8x32xf32>
    %56 = vector.extract_strided_slice %53 {offsets = [16, 0], sizes = [8, 32], strides = [1, 1]} : vector<64x96xf32> to vector<8x32xf32>
    %57 = vector.extract_strided_slice %53 {offsets = [24, 0], sizes = [8, 32], strides = [1, 1]} : vector<64x96xf32> to vector<8x32xf32>
    %58 = vector.extract_strided_slice %53 {offsets = [32, 0], sizes = [8, 32], strides = [1, 1]} : vector<64x96xf32> to vector<8x32xf32>
    %59 = vector.extract_strided_slice %53 {offsets = [40, 0], sizes = [8, 32], strides = [1, 1]} : vector<64x96xf32> to vector<8x32xf32>
    %60 = vector.extract_strided_slice %53 {offsets = [48, 0], sizes = [8, 32], strides = [1, 1]} : vector<64x96xf32> to vector<8x32xf32>
    %61 = vector.extract_strided_slice %53 {offsets = [56, 0], sizes = [8, 32], strides = [1, 1]} : vector<64x96xf32> to vector<8x32xf32>
    %62 = vector.extract_strided_slice %53 {offsets = [0, 32], sizes = [8, 32], strides = [1, 1]} : vector<64x96xf32> to vector<8x32xf32>
    %63 = vector.extract_strided_slice %53 {offsets = [8, 32], sizes = [8, 32], strides = [1, 1]} : vector<64x96xf32> to vector<8x32xf32>
    %64 = vector.extract_strided_slice %53 {offsets = [16, 32], sizes = [8, 32], strides = [1, 1]} : vector<64x96xf32> to vector<8x32xf32>
    %65 = vector.extract_strided_slice %53 {offsets = [24, 32], sizes = [8, 32], strides = [1, 1]} : vector<64x96xf32> to vector<8x32xf32>
    %66 = vector.extract_strided_slice %53 {offsets = [32, 32], sizes = [8, 32], strides = [1, 1]} : vector<64x96xf32> to vector<8x32xf32>
    %67 = vector.extract_strided_slice %53 {offsets = [40, 32], sizes = [8, 32], strides = [1, 1]} : vector<64x96xf32> to vector<8x32xf32>
    %68 = vector.extract_strided_slice %53 {offsets = [48, 32], sizes = [8, 32], strides = [1, 1]} : vector<64x96xf32> to vector<8x32xf32>
    %69 = vector.extract_strided_slice %53 {offsets = [56, 32], sizes = [8, 32], strides = [1, 1]} : vector<64x96xf32> to vector<8x32xf32>
    %70 = vector.extract_strided_slice %53 {offsets = [0, 64], sizes = [8, 32], strides = [1, 1]} : vector<64x96xf32> to vector<8x32xf32>
    %71 = vector.extract_strided_slice %53 {offsets = [8, 64], sizes = [8, 32], strides = [1, 1]} : vector<64x96xf32> to vector<8x32xf32>
    %72 = vector.extract_strided_slice %53 {offsets = [16, 64], sizes = [8, 32], strides = [1, 1]} : vector<64x96xf32> to vector<8x32xf32>
    %73 = vector.extract_strided_slice %53 {offsets = [24, 64], sizes = [8, 32], strides = [1, 1]} : vector<64x96xf32> to vector<8x32xf32>
    %74 = vector.extract_strided_slice %53 {offsets = [32, 64], sizes = [8, 32], strides = [1, 1]} : vector<64x96xf32> to vector<8x32xf32>
    %75 = vector.extract_strided_slice %53 {offsets = [40, 64], sizes = [8, 32], strides = [1, 1]} : vector<64x96xf32> to vector<8x32xf32>
    %76 = vector.extract_strided_slice %53 {offsets = [48, 64], sizes = [8, 32], strides = [1, 1]} : vector<64x96xf32> to vector<8x32xf32>
    %77 = vector.extract_strided_slice %53 {offsets = [56, 64], sizes = [8, 32], strides = [1, 1]} : vector<64x96xf32> to vector<8x32xf32>
    %cst_7 = arith.constant 0.000000e+00 : f32
    %78 = vector.broadcast %cst_7 : f32 to vector<8x32xf32>
    %cst_8 = arith.constant dense<0.000000e+00> : vector<8x96xf32>
    %79 = tpu.matmul %78, %8, %cst_8 {dimension_numbers = #tpu.dot_dimension_numbers<[1], [0], [0], [1], [0, 0, 1, 1], [], []>} : vector<8x32xf32>, vector<32x96xf32>, vector<8x96xf32> -> vector<8x96xf32>
    %80 = vector.extract_strided_slice %79 {offsets = [0, 0], sizes = [8, 32], strides = [1, 1]} : vector<8x96xf32> to vector<8x32xf32>
    %81 = arith.addf %54, %80 : vector<8x32xf32>
    %82 = arith.negf %81 : vector<8x32xf32>
    %83 = math.exp %82 : vector<8x32xf32>
    %cst_9 = arith.constant 1.000000e+00 : f32
    %84 = vector.broadcast %cst_9 : f32 to vector<8x32xf32>
    %85 = arith.addf %84, %83 : vector<8x32xf32>
    %86 = arith.divf %84, %85 : vector<8x32xf32>
    %87 = vector.extract_strided_slice %79 {offsets = [0, 32], sizes = [8, 32], strides = [1, 1]} : vector<8x96xf32> to vector<8x32xf32>
    %88 = arith.addf %62, %87 : vector<8x32xf32>
    %89 = arith.negf %88 : vector<8x32xf32>
    %90 = math.exp %89 : vector<8x32xf32>
    %cst_10 = arith.constant 1.000000e+00 : f32
    %91 = vector.broadcast %cst_10 : f32 to vector<8x32xf32>
    %92 = arith.addf %91, %90 : vector<8x32xf32>
    %93 = arith.divf %91, %92 : vector<8x32xf32>
    %94 = vector.extract_strided_slice %79 {offsets = [0, 64], sizes = [8, 32], strides = [1, 1]} : vector<8x96xf32> to vector<8x32xf32>
    %95 = arith.addf %94, %11 : vector<8x32xf32>
    %96 = arith.mulf %86, %95 : vector<8x32xf32>
    %97 = arith.addf %70, %96 : vector<8x32xf32>
    %98 = math.tanh %97 : vector<8x32xf32>
    %cst_11 = arith.constant 1.000000e+00 : f32
    %99 = vector.broadcast %cst_11 : f32 to vector<8x32xf32>
    %100 = arith.subf %99, %93 : vector<8x32xf32>
    %101 = arith.mulf %100, %98 : vector<8x32xf32>
    %102 = arith.mulf %93, %78 : vector<8x32xf32>
    %103 = arith.addf %101, %102 : vector<8x32xf32>
    %cst_12 = arith.constant dense<0.000000e+00> : vector<8x96xf32>
    %104 = tpu.matmul %103, %8, %cst_12 {dimension_numbers = #tpu.dot_dimension_numbers<[1], [0], [0], [1], [0, 0, 1, 1], [], []>} : vector<8x32xf32>, vector<32x96xf32>, vector<8x96xf32> -> vector<8x96xf32>
    %105 = vector.extract_strided_slice %104 {offsets = [0, 0], sizes = [8, 32], strides = [1, 1]} : vector<8x96xf32> to vector<8x32xf32>
    %106 = arith.addf %55, %105 : vector<8x32xf32>
    %107 = arith.negf %106 : vector<8x32xf32>
    %108 = math.exp %107 : vector<8x32xf32>
    %cst_13 = arith.constant 1.000000e+00 : f32
    %109 = vector.broadcast %cst_13 : f32 to vector<8x32xf32>
    %110 = arith.addf %109, %108 : vector<8x32xf32>
    %111 = arith.divf %109, %110 : vector<8x32xf32>
    %112 = vector.extract_strided_slice %104 {offsets = [0, 32], sizes = [8, 32], strides = [1, 1]} : vector<8x96xf32> to vector<8x32xf32>
    %113 = arith.addf %63, %112 : vector<8x32xf32>
    %114 = arith.negf %113 : vector<8x32xf32>
    %115 = math.exp %114 : vector<8x32xf32>
    %cst_14 = arith.constant 1.000000e+00 : f32
    %116 = vector.broadcast %cst_14 : f32 to vector<8x32xf32>
    %117 = arith.addf %116, %115 : vector<8x32xf32>
    %118 = arith.divf %116, %117 : vector<8x32xf32>
    %119 = vector.extract_strided_slice %104 {offsets = [0, 64], sizes = [8, 32], strides = [1, 1]} : vector<8x96xf32> to vector<8x32xf32>
    %120 = arith.addf %119, %11 : vector<8x32xf32>
    %121 = arith.mulf %111, %120 : vector<8x32xf32>
    %122 = arith.addf %71, %121 : vector<8x32xf32>
    %123 = math.tanh %122 : vector<8x32xf32>
    %cst_15 = arith.constant 1.000000e+00 : f32
    %124 = vector.broadcast %cst_15 : f32 to vector<8x32xf32>
    %125 = arith.subf %124, %118 : vector<8x32xf32>
    %126 = arith.mulf %125, %123 : vector<8x32xf32>
    %127 = arith.mulf %118, %103 : vector<8x32xf32>
    %128 = arith.addf %126, %127 : vector<8x32xf32>
    %cst_16 = arith.constant dense<0.000000e+00> : vector<8x96xf32>
    %129 = tpu.matmul %128, %8, %cst_16 {dimension_numbers = #tpu.dot_dimension_numbers<[1], [0], [0], [1], [0, 0, 1, 1], [], []>} : vector<8x32xf32>, vector<32x96xf32>, vector<8x96xf32> -> vector<8x96xf32>
    %130 = vector.extract_strided_slice %129 {offsets = [0, 0], sizes = [8, 32], strides = [1, 1]} : vector<8x96xf32> to vector<8x32xf32>
    %131 = arith.addf %56, %130 : vector<8x32xf32>
    %132 = arith.negf %131 : vector<8x32xf32>
    %133 = math.exp %132 : vector<8x32xf32>
    %cst_17 = arith.constant 1.000000e+00 : f32
    %134 = vector.broadcast %cst_17 : f32 to vector<8x32xf32>
    %135 = arith.addf %134, %133 : vector<8x32xf32>
    %136 = arith.divf %134, %135 : vector<8x32xf32>
    %137 = vector.extract_strided_slice %129 {offsets = [0, 32], sizes = [8, 32], strides = [1, 1]} : vector<8x96xf32> to vector<8x32xf32>
    %138 = arith.addf %64, %137 : vector<8x32xf32>
    %139 = arith.negf %138 : vector<8x32xf32>
    %140 = math.exp %139 : vector<8x32xf32>
    %cst_18 = arith.constant 1.000000e+00 : f32
    %141 = vector.broadcast %cst_18 : f32 to vector<8x32xf32>
    %142 = arith.addf %141, %140 : vector<8x32xf32>
    %143 = arith.divf %141, %142 : vector<8x32xf32>
    %144 = vector.extract_strided_slice %129 {offsets = [0, 64], sizes = [8, 32], strides = [1, 1]} : vector<8x96xf32> to vector<8x32xf32>
    %145 = arith.addf %144, %11 : vector<8x32xf32>
    %146 = arith.mulf %136, %145 : vector<8x32xf32>
    %147 = arith.addf %72, %146 : vector<8x32xf32>
    %148 = math.tanh %147 : vector<8x32xf32>
    %cst_19 = arith.constant 1.000000e+00 : f32
    %149 = vector.broadcast %cst_19 : f32 to vector<8x32xf32>
    %150 = arith.subf %149, %143 : vector<8x32xf32>
    %151 = arith.mulf %150, %148 : vector<8x32xf32>
    %152 = arith.mulf %143, %128 : vector<8x32xf32>
    %153 = arith.addf %151, %152 : vector<8x32xf32>
    %cst_20 = arith.constant dense<0.000000e+00> : vector<8x96xf32>
    %154 = tpu.matmul %153, %8, %cst_20 {dimension_numbers = #tpu.dot_dimension_numbers<[1], [0], [0], [1], [0, 0, 1, 1], [], []>} : vector<8x32xf32>, vector<32x96xf32>, vector<8x96xf32> -> vector<8x96xf32>
    %155 = vector.extract_strided_slice %154 {offsets = [0, 0], sizes = [8, 32], strides = [1, 1]} : vector<8x96xf32> to vector<8x32xf32>
    %156 = arith.addf %57, %155 : vector<8x32xf32>
    %157 = arith.negf %156 : vector<8x32xf32>
    %158 = math.exp %157 : vector<8x32xf32>
    %cst_21 = arith.constant 1.000000e+00 : f32
    %159 = vector.broadcast %cst_21 : f32 to vector<8x32xf32>
    %160 = arith.addf %159, %158 : vector<8x32xf32>
    %161 = arith.divf %159, %160 : vector<8x32xf32>
    %162 = vector.extract_strided_slice %154 {offsets = [0, 32], sizes = [8, 32], strides = [1, 1]} : vector<8x96xf32> to vector<8x32xf32>
    %163 = arith.addf %65, %162 : vector<8x32xf32>
    %164 = arith.negf %163 : vector<8x32xf32>
    %165 = math.exp %164 : vector<8x32xf32>
    %cst_22 = arith.constant 1.000000e+00 : f32
    %166 = vector.broadcast %cst_22 : f32 to vector<8x32xf32>
    %167 = arith.addf %166, %165 : vector<8x32xf32>
    %168 = arith.divf %166, %167 : vector<8x32xf32>
    %169 = vector.extract_strided_slice %154 {offsets = [0, 64], sizes = [8, 32], strides = [1, 1]} : vector<8x96xf32> to vector<8x32xf32>
    %170 = arith.addf %169, %11 : vector<8x32xf32>
    %171 = arith.mulf %161, %170 : vector<8x32xf32>
    %172 = arith.addf %73, %171 : vector<8x32xf32>
    %173 = math.tanh %172 : vector<8x32xf32>
    %cst_23 = arith.constant 1.000000e+00 : f32
    %174 = vector.broadcast %cst_23 : f32 to vector<8x32xf32>
    %175 = arith.subf %174, %168 : vector<8x32xf32>
    %176 = arith.mulf %175, %173 : vector<8x32xf32>
    %177 = arith.mulf %168, %153 : vector<8x32xf32>
    %178 = arith.addf %176, %177 : vector<8x32xf32>
    %cst_24 = arith.constant dense<0.000000e+00> : vector<8x96xf32>
    %179 = tpu.matmul %178, %8, %cst_24 {dimension_numbers = #tpu.dot_dimension_numbers<[1], [0], [0], [1], [0, 0, 1, 1], [], []>} : vector<8x32xf32>, vector<32x96xf32>, vector<8x96xf32> -> vector<8x96xf32>
    %180 = vector.extract_strided_slice %179 {offsets = [0, 0], sizes = [8, 32], strides = [1, 1]} : vector<8x96xf32> to vector<8x32xf32>
    %181 = arith.addf %58, %180 : vector<8x32xf32>
    %182 = arith.negf %181 : vector<8x32xf32>
    %183 = math.exp %182 : vector<8x32xf32>
    %cst_25 = arith.constant 1.000000e+00 : f32
    %184 = vector.broadcast %cst_25 : f32 to vector<8x32xf32>
    %185 = arith.addf %184, %183 : vector<8x32xf32>
    %186 = arith.divf %184, %185 : vector<8x32xf32>
    %187 = vector.extract_strided_slice %179 {offsets = [0, 32], sizes = [8, 32], strides = [1, 1]} : vector<8x96xf32> to vector<8x32xf32>
    %188 = arith.addf %66, %187 : vector<8x32xf32>
    %189 = arith.negf %188 : vector<8x32xf32>
    %190 = math.exp %189 : vector<8x32xf32>
    %cst_26 = arith.constant 1.000000e+00 : f32
    %191 = vector.broadcast %cst_26 : f32 to vector<8x32xf32>
    %192 = arith.addf %191, %190 : vector<8x32xf32>
    %193 = arith.divf %191, %192 : vector<8x32xf32>
    %194 = vector.extract_strided_slice %179 {offsets = [0, 64], sizes = [8, 32], strides = [1, 1]} : vector<8x96xf32> to vector<8x32xf32>
    %195 = arith.addf %194, %11 : vector<8x32xf32>
    %196 = arith.mulf %186, %195 : vector<8x32xf32>
    %197 = arith.addf %74, %196 : vector<8x32xf32>
    %198 = math.tanh %197 : vector<8x32xf32>
    %cst_27 = arith.constant 1.000000e+00 : f32
    %199 = vector.broadcast %cst_27 : f32 to vector<8x32xf32>
    %200 = arith.subf %199, %193 : vector<8x32xf32>
    %201 = arith.mulf %200, %198 : vector<8x32xf32>
    %202 = arith.mulf %193, %178 : vector<8x32xf32>
    %203 = arith.addf %201, %202 : vector<8x32xf32>
    %cst_28 = arith.constant dense<0.000000e+00> : vector<8x96xf32>
    %204 = tpu.matmul %203, %8, %cst_28 {dimension_numbers = #tpu.dot_dimension_numbers<[1], [0], [0], [1], [0, 0, 1, 1], [], []>} : vector<8x32xf32>, vector<32x96xf32>, vector<8x96xf32> -> vector<8x96xf32>
    %205 = vector.extract_strided_slice %204 {offsets = [0, 0], sizes = [8, 32], strides = [1, 1]} : vector<8x96xf32> to vector<8x32xf32>
    %206 = arith.addf %59, %205 : vector<8x32xf32>
    %207 = arith.negf %206 : vector<8x32xf32>
    %208 = math.exp %207 : vector<8x32xf32>
    %cst_29 = arith.constant 1.000000e+00 : f32
    %209 = vector.broadcast %cst_29 : f32 to vector<8x32xf32>
    %210 = arith.addf %209, %208 : vector<8x32xf32>
    %211 = arith.divf %209, %210 : vector<8x32xf32>
    %212 = vector.extract_strided_slice %204 {offsets = [0, 32], sizes = [8, 32], strides = [1, 1]} : vector<8x96xf32> to vector<8x32xf32>
    %213 = arith.addf %67, %212 : vector<8x32xf32>
    %214 = arith.negf %213 : vector<8x32xf32>
    %215 = math.exp %214 : vector<8x32xf32>
    %cst_30 = arith.constant 1.000000e+00 : f32
    %216 = vector.broadcast %cst_30 : f32 to vector<8x32xf32>
    %217 = arith.addf %216, %215 : vector<8x32xf32>
    %218 = arith.divf %216, %217 : vector<8x32xf32>
    %219 = vector.extract_strided_slice %204 {offsets = [0, 64], sizes = [8, 32], strides = [1, 1]} : vector<8x96xf32> to vector<8x32xf32>
    %220 = arith.addf %219, %11 : vector<8x32xf32>
    %221 = arith.mulf %211, %220 : vector<8x32xf32>
    %222 = arith.addf %75, %221 : vector<8x32xf32>
    %223 = math.tanh %222 : vector<8x32xf32>
    %cst_31 = arith.constant 1.000000e+00 : f32
    %224 = vector.broadcast %cst_31 : f32 to vector<8x32xf32>
    %225 = arith.subf %224, %218 : vector<8x32xf32>
    %226 = arith.mulf %225, %223 : vector<8x32xf32>
    %227 = arith.mulf %218, %203 : vector<8x32xf32>
    %228 = arith.addf %226, %227 : vector<8x32xf32>
    %cst_32 = arith.constant dense<0.000000e+00> : vector<8x96xf32>
    %229 = tpu.matmul %228, %8, %cst_32 {dimension_numbers = #tpu.dot_dimension_numbers<[1], [0], [0], [1], [0, 0, 1, 1], [], []>} : vector<8x32xf32>, vector<32x96xf32>, vector<8x96xf32> -> vector<8x96xf32>
    %230 = vector.extract_strided_slice %229 {offsets = [0, 0], sizes = [8, 32], strides = [1, 1]} : vector<8x96xf32> to vector<8x32xf32>
    %231 = arith.addf %60, %230 : vector<8x32xf32>
    %232 = arith.negf %231 : vector<8x32xf32>
    %233 = math.exp %232 : vector<8x32xf32>
    %cst_33 = arith.constant 1.000000e+00 : f32
    %234 = vector.broadcast %cst_33 : f32 to vector<8x32xf32>
    %235 = arith.addf %234, %233 : vector<8x32xf32>
    %236 = arith.divf %234, %235 : vector<8x32xf32>
    %237 = vector.extract_strided_slice %229 {offsets = [0, 32], sizes = [8, 32], strides = [1, 1]} : vector<8x96xf32> to vector<8x32xf32>
    %238 = arith.addf %68, %237 : vector<8x32xf32>
    %239 = arith.negf %238 : vector<8x32xf32>
    %240 = math.exp %239 : vector<8x32xf32>
    %cst_34 = arith.constant 1.000000e+00 : f32
    %241 = vector.broadcast %cst_34 : f32 to vector<8x32xf32>
    %242 = arith.addf %241, %240 : vector<8x32xf32>
    %243 = arith.divf %241, %242 : vector<8x32xf32>
    %244 = vector.extract_strided_slice %229 {offsets = [0, 64], sizes = [8, 32], strides = [1, 1]} : vector<8x96xf32> to vector<8x32xf32>
    %245 = arith.addf %244, %11 : vector<8x32xf32>
    %246 = arith.mulf %236, %245 : vector<8x32xf32>
    %247 = arith.addf %76, %246 : vector<8x32xf32>
    %248 = math.tanh %247 : vector<8x32xf32>
    %cst_35 = arith.constant 1.000000e+00 : f32
    %249 = vector.broadcast %cst_35 : f32 to vector<8x32xf32>
    %250 = arith.subf %249, %243 : vector<8x32xf32>
    %251 = arith.mulf %250, %248 : vector<8x32xf32>
    %252 = arith.mulf %243, %228 : vector<8x32xf32>
    %253 = arith.addf %251, %252 : vector<8x32xf32>
    %cst_36 = arith.constant dense<0.000000e+00> : vector<8x96xf32>
    %254 = tpu.matmul %253, %8, %cst_36 {dimension_numbers = #tpu.dot_dimension_numbers<[1], [0], [0], [1], [0, 0, 1, 1], [], []>} : vector<8x32xf32>, vector<32x96xf32>, vector<8x96xf32> -> vector<8x96xf32>
    %255 = vector.extract_strided_slice %254 {offsets = [0, 0], sizes = [8, 32], strides = [1, 1]} : vector<8x96xf32> to vector<8x32xf32>
    %256 = arith.addf %61, %255 : vector<8x32xf32>
    %257 = arith.negf %256 : vector<8x32xf32>
    %258 = math.exp %257 : vector<8x32xf32>
    %cst_37 = arith.constant 1.000000e+00 : f32
    %259 = vector.broadcast %cst_37 : f32 to vector<8x32xf32>
    %260 = arith.addf %259, %258 : vector<8x32xf32>
    %261 = arith.divf %259, %260 : vector<8x32xf32>
    %262 = vector.extract_strided_slice %254 {offsets = [0, 32], sizes = [8, 32], strides = [1, 1]} : vector<8x96xf32> to vector<8x32xf32>
    %263 = arith.addf %69, %262 : vector<8x32xf32>
    %264 = arith.negf %263 : vector<8x32xf32>
    %265 = math.exp %264 : vector<8x32xf32>
    %cst_38 = arith.constant 1.000000e+00 : f32
    %266 = vector.broadcast %cst_38 : f32 to vector<8x32xf32>
    %267 = arith.addf %266, %265 : vector<8x32xf32>
    %268 = arith.divf %266, %267 : vector<8x32xf32>
    %269 = vector.extract_strided_slice %254 {offsets = [0, 64], sizes = [8, 32], strides = [1, 1]} : vector<8x96xf32> to vector<8x32xf32>
    %270 = arith.addf %269, %11 : vector<8x32xf32>
    %271 = arith.mulf %261, %270 : vector<8x32xf32>
    %272 = arith.addf %77, %271 : vector<8x32xf32>
    %273 = math.tanh %272 : vector<8x32xf32>
    %cst_39 = arith.constant 1.000000e+00 : f32
    %274 = vector.broadcast %cst_39 : f32 to vector<8x32xf32>
    %275 = arith.subf %274, %268 : vector<8x32xf32>
    %276 = arith.mulf %275, %273 : vector<8x32xf32>
    %277 = arith.mulf %268, %253 : vector<8x32xf32>
    %278 = arith.addf %276, %277 : vector<8x32xf32>
    %cst_40 = arith.constant dense<0.000000e+00> : vector<8x32xf32>
    %279 = tpu.matmul %51, %2, %cst_40 {dimension_numbers = #tpu.dot_dimension_numbers<[1], [0], [0], [1], [0, 0, 1, 1], [], []>} : vector<8x16xf32>, vector<16x32xf32>, vector<8x32xf32> -> vector<8x32xf32>
    %c0_41 = arith.constant 0 : index
    %c192 = arith.constant 192 : index
    %280 = vector.load %arg2[%c0_41, %c192] : memref<48x784xf32, #tpu.memory_space<vmem>>, vector<32x96xf32>
    %cst_42 = arith.constant dense<0.000000e+00> : vector<8x96xf32>
    %281 = tpu.matmul %279, %280, %cst_42 {dimension_numbers = #tpu.dot_dimension_numbers<[1], [0], [0], [1], [0, 0, 1, 1], [], []>} : vector<8x32xf32>, vector<32x96xf32>, vector<8x96xf32> -> vector<8x96xf32>
    %c40_43 = arith.constant 40 : index
    %c336 = arith.constant 336 : index
    %282 = vector.load %arg2[%c40_43, %c336] : memref<48x784xf32, #tpu.memory_space<vmem>>, vector<1x96xf32>
    %283 = vector.broadcast %282 : vector<1x96xf32> to vector<8x96xf32>
    %284 = arith.addf %281, %283 : vector<8x96xf32>
    %285 = vector.extract_strided_slice %284 {offsets = [0, 0], sizes = [8, 32], strides = [1, 1]} : vector<8x96xf32> to vector<8x32xf32>
    %286 = arith.negf %285 : vector<8x32xf32>
    %287 = math.exp %286 : vector<8x32xf32>
    %cst_44 = arith.constant 1.000000e+00 : f32
    %288 = vector.broadcast %cst_44 : f32 to vector<8x32xf32>
    %289 = arith.addf %288, %287 : vector<8x32xf32>
    %290 = arith.divf %288, %289 : vector<8x32xf32>
    %291 = vector.extract_strided_slice %284 {offsets = [0, 32], sizes = [8, 32], strides = [1, 1]} : vector<8x96xf32> to vector<8x32xf32>
    %292 = arith.negf %291 : vector<8x32xf32>
    %293 = math.exp %292 : vector<8x32xf32>
    %cst_45 = arith.constant 1.000000e+00 : f32
    %294 = vector.broadcast %cst_45 : f32 to vector<8x32xf32>
    %295 = arith.addf %294, %293 : vector<8x32xf32>
    %296 = arith.divf %294, %295 : vector<8x32xf32>
    %297 = vector.extract_strided_slice %284 {offsets = [0, 64], sizes = [8, 32], strides = [1, 1]} : vector<8x96xf32> to vector<8x32xf32>
    %c40_46 = arith.constant 40 : index
    %c432 = arith.constant 432 : index
    %298 = vector.load %arg2[%c40_46, %c432] : memref<48x784xf32, #tpu.memory_space<vmem>>, vector<1x32xf32>
    %299 = vector.broadcast %298 : vector<1x32xf32> to vector<8x32xf32>
    %300 = arith.mulf %290, %299 : vector<8x32xf32>
    %301 = arith.addf %297, %300 : vector<8x32xf32>
    %302 = math.tanh %301 : vector<8x32xf32>
    %cst_47 = arith.constant 1.000000e+00 : f32
    %303 = vector.broadcast %cst_47 : f32 to vector<8x32xf32>
    %304 = arith.subf %303, %296 : vector<8x32xf32>
    %305 = arith.mulf %304, %302 : vector<8x32xf32>
    %306 = arith.addf %278, %305 : vector<8x32xf32>
    %c0_48 = arith.constant 0 : index
    %c672 = arith.constant 672 : index
    %307 = vector.load %arg2[%c0_48, %c672] : memref<48x784xf32, #tpu.memory_space<vmem>>, vector<32x16xf32>
    %cst_49 = arith.constant dense<0.000000e+00> : vector<8x16xf32>
    %308 = tpu.matmul %306, %307, %cst_49 {dimension_numbers = #tpu.dot_dimension_numbers<[1], [0], [0], [1], [0, 0, 1, 1], [], []>} : vector<8x32xf32>, vector<32x16xf32>, vector<8x16xf32> -> vector<8x16xf32>
    %c40_50 = arith.constant 40 : index
    %c720 = arith.constant 720 : index
    %309 = vector.load %arg2[%c40_50, %c720] : memref<48x784xf32, #tpu.memory_space<vmem>>, vector<1x16xf32>
    %310 = vector.broadcast %309 : vector<1x16xf32> to vector<8x16xf32>
    %311 = arith.addf %308, %310 : vector<8x16xf32>
    %c0_51 = arith.constant 0 : index
    %c0_52 = arith.constant 0 : index
    %312 = vector.load %arg4[%c0_51, %c0_52] : memref<8x16xf32, #tpu.memory_space<vmem>>, vector<8x16xf32>
    tpu.vector_store %arg4[%c0_51, %c0_52], %311 {strides = array<i32>} : memref<8x16xf32, #tpu.memory_space<vmem>>, vector<8x16xf32>,
    %313 = vector.extract_strided_slice %311 {offsets = [0, 0], sizes = [8, 8], strides = [1, 1]} : vector<8x16xf32> to vector<8x8xf32>
    %c32_53 = arith.constant 32 : index
    %c32_54 = arith.constant 32 : index
    %314 = vector.load %arg2[%c32_53, %c32_54] : memref<48x784xf32, #tpu.memory_space<vmem>>, vector<16x32xf32>
    %315 = arith.negf %314 : vector<16x32xf32>
    %316 = math.exp %315 : vector<16x32xf32>
    %cst_55 = arith.constant 1.000000e+00 : f32
    %317 = vector.broadcast %cst_55 : f32 to vector<16x32xf32>
    %318 = arith.addf %317, %316 : vector<16x32xf32>
    %319 = arith.divf %317, %318 : vector<16x32xf32>
    %320 = arith.mulf %314, %319 : vector<16x32xf32>
    %c0_56 = arith.constant 0 : index
    %c288 = arith.constant 288 : index
    %321 = vector.load %arg2[%c0_56, %c288] : memref<48x784xf32, #tpu.memory_space<vmem>>, vector<32x96xf32>
    %cst_57 = arith.constant dense<0.000000e+00> : vector<16x96xf32>
    %322 = tpu.matmul %320, %321, %cst_57 {dimension_numbers = #tpu.dot_dimension_numbers<[1], [0], [0], [1], [0, 0, 1, 1], [], []>} : vector<16x32xf32>, vector<32x96xf32>, vector<16x96xf32> -> vector<16x96xf32>
    %c0_58 = arith.constant 0 : index
    %c384 = arith.constant 384 : index
    %323 = vector.load %arg2[%c0_58, %c384] : memref<48x784xf32, #tpu.memory_space<vmem>>, vector<32x96xf32>
    %c0_59 = arith.constant 0 : index
    %c480 = arith.constant 480 : index
    %324 = vector.load %arg2[%c0_59, %c480] : memref<48x784xf32, #tpu.memory_space<vmem>>, vector<32x96xf32>
    %c0_60 = arith.constant 0 : index
    %c576 = arith.constant 576 : index
    %325 = vector.load %arg2[%c0_60, %c576] : memref<48x784xf32, #tpu.memory_space<vmem>>, vector<32x96xf32>
    %c0_61 = arith.constant 0 : index
    %c688 = arith.constant 688 : index
    %326 = vector.load %arg2[%c0_61, %c688] : memref<48x784xf32, #tpu.memory_space<vmem>>, vector<32x16xf32>
    %c32_62 = arith.constant 32 : index
    %c96_63 = arith.constant 96 : index
    %327 = vector.load %arg2[%c32_62, %c96_63] : memref<48x784xf32, #tpu.memory_space<vmem>>, vector<8x96xf32>
    %cst_64 = arith.constant dense<0.000000e+00> : vector<8x96xf32>
    %328 = tpu.matmul %313, %327, %cst_64 {dimension_numbers = #tpu.dot_dimension_numbers<[1], [0], [0], [1], [0, 0, 1, 1], [], []>} : vector<8x8xf32>, vector<8x96xf32>, vector<8x96xf32> -> vector<8x96xf32>
    %c40_65 = arith.constant 40 : index
    %c464 = arith.constant 464 : index
    %329 = vector.load %arg2[%c40_65, %c464] : memref<48x784xf32, #tpu.memory_space<vmem>>, vector<1x96xf32>
    %330 = vector.broadcast %329 : vector<1x96xf32> to vector<8x96xf32>
    %331 = arith.addf %328, %330 : vector<8x96xf32>
    %c32_66 = arith.constant 32 : index
    %c192_67 = arith.constant 192 : index
    %332 = vector.load %arg2[%c32_66, %c192_67] : memref<48x784xf32, #tpu.memory_space<vmem>>, vector<8x16xf32>
    %cst_68 = arith.constant dense<0.000000e+00> : vector<8x16xf32>
    %333 = tpu.matmul %313, %332, %cst_68 {dimension_numbers = #tpu.dot_dimension_numbers<[1], [0], [0], [1], [0, 0, 1, 1], [], []>} : vector<8x8xf32>, vector<8x16xf32>, vector<8x16xf32> -> vector<8x16xf32>
    %c40_69 = arith.constant 40 : index
    %c768 = arith.constant 768 : index
    %334 = vector.load %arg2[%c40_69, %c768] : memref<48x784xf32, #tpu.memory_space<vmem>>, vector<1x16xf32>
    %335 = vector.broadcast %334 : vector<1x16xf32> to vector<8x16xf32>
    %336 = arith.addf %333, %335 : vector<8x16xf32>
    %c40_70 = arith.constant 40 : index
    %c560 = arith.constant 560 : index
    %337 = vector.load %arg2[%c40_70, %c560] : memref<48x784xf32, #tpu.memory_space<vmem>>, vector<1x32xf32>
    %338 = vector.shape_cast %337 : vector<1x32xf32> to vector<1x32xf32>
    %339 = vector.broadcast %338 : vector<1x32xf32> to vector<8x32xf32>
    %c40_71 = arith.constant 40 : index
    %c592 = arith.constant 592 : index
    %340 = vector.load %arg2[%c40_71, %c592] : memref<48x784xf32, #tpu.memory_space<vmem>>, vector<1x96xf32>
    %341 = vector.shape_cast %340 : vector<1x96xf32> to vector<1x96xf32>
    %342 = vector.broadcast %341 : vector<1x96xf32> to vector<8x96xf32>
    %c40_72 = arith.constant 40 : index
    %c688_73 = arith.constant 688 : index
    %343 = vector.load %arg2[%c40_72, %c688_73] : memref<48x784xf32, #tpu.memory_space<vmem>>, vector<1x32xf32>
    %344 = vector.shape_cast %343 : vector<1x32xf32> to vector<1x32xf32>
    %345 = vector.broadcast %344 : vector<1x32xf32> to vector<8x32xf32>
    %c32_74 = arith.constant 32 : index
    %c64 = arith.constant 64 : index
    %346 = vector.load %arg2[%c32_74, %c64] : memref<48x784xf32, #tpu.memory_space<vmem>>, vector<8x32xf32>
    %cst_75 = arith.constant dense<0.000000e+00> : vector<8x32xf32>
    %347 = tpu.matmul %313, %346, %cst_75 {dimension_numbers = #tpu.dot_dimension_numbers<[1], [0], [0], [1], [0, 0, 1, 1], [], []>} : vector<8x8xf32>, vector<8x32xf32>, vector<8x32xf32> -> vector<8x32xf32>
    %c40_76 = arith.constant 40 : index
    %c736 = arith.constant 736 : index
    %348 = vector.load %arg2[%c40_76, %c736] : memref<48x784xf32, #tpu.memory_space<vmem>>, vector<1x32xf32>
    %349 = vector.broadcast %348 : vector<1x32xf32> to vector<8x32xf32>
    %350 = arith.addf %347, %349 : vector<8x32xf32>
    %c1_i32 = arith.constant 1 : i32
    %351 = vector.broadcast %c1_i32 : i32 to vector<8x16xi32>
    %352 = arith.cmpi eq, %1, %351 : vector<8x16xi32>
    %353 = arith.extui %352 : vector<8x16xi1> to vector<8x16xi32>
    %354 = arith.sitofp %353 : vector<8x16xi32> to vector<8x16xf32>
    %cst_77 = arith.constant dense<0.000000e+00> : vector<8x96xf32>
    %355 = tpu.matmul %354, %322, %cst_77 {dimension_numbers = #tpu.dot_dimension_numbers<[1], [0], [0], [1], [0, 0, 1, 1], [], []>} : vector<8x16xf32>, vector<16x96xf32>, vector<8x96xf32> -> vector<8x96xf32>
    %356 = arith.addf %355, %331 : vector<8x96xf32>
    %cst_78 = arith.constant dense<0.000000e+00> : vector<8x96xf32>
    %357 = tpu.matmul %350, %323, %cst_78 {dimension_numbers = #tpu.dot_dimension_numbers<[1], [0], [0], [1], [0, 0, 1, 1], [], []>} : vector<8x32xf32>, vector<32x96xf32>, vector<8x96xf32> -> vector<8x96xf32>
    %358 = vector.extract_strided_slice %356 {offsets = [0, 0], sizes = [8, 32], strides = [1, 1]} : vector<8x96xf32> to vector<8x32xf32>
    %359 = vector.extract_strided_slice %357 {offsets = [0, 0], sizes = [8, 32], strides = [1, 1]} : vector<8x96xf32> to vector<8x32xf32>
    %360 = arith.addf %358, %359 : vector<8x32xf32>
    %361 = arith.negf %360 : vector<8x32xf32>
    %362 = math.exp %361 : vector<8x32xf32>
    %cst_79 = arith.constant 1.000000e+00 : f32
    %363 = vector.broadcast %cst_79 : f32 to vector<8x32xf32>
    %364 = arith.addf %363, %362 : vector<8x32xf32>
    %365 = arith.divf %363, %364 : vector<8x32xf32>
    %366 = vector.extract_strided_slice %356 {offsets = [0, 32], sizes = [8, 32], strides = [1, 1]} : vector<8x96xf32> to vector<8x32xf32>
    %367 = vector.extract_strided_slice %357 {offsets = [0, 32], sizes = [8, 32], strides = [1, 1]} : vector<8x96xf32> to vector<8x32xf32>
    %368 = arith.addf %366, %367 : vector<8x32xf32>
    %369 = arith.negf %368 : vector<8x32xf32>
    %370 = math.exp %369 : vector<8x32xf32>
    %cst_80 = arith.constant 1.000000e+00 : f32
    %371 = vector.broadcast %cst_80 : f32 to vector<8x32xf32>
    %372 = arith.addf %371, %370 : vector<8x32xf32>
    %373 = arith.divf %371, %372 : vector<8x32xf32>
    %374 = vector.extract_strided_slice %356 {offsets = [0, 64], sizes = [8, 32], strides = [1, 1]} : vector<8x96xf32> to vector<8x32xf32>
    %375 = vector.extract_strided_slice %357 {offsets = [0, 64], sizes = [8, 32], strides = [1, 1]} : vector<8x96xf32> to vector<8x32xf32>
    %376 = arith.addf %375, %339 : vector<8x32xf32>
    %377 = arith.mulf %365, %376 : vector<8x32xf32>
    %378 = arith.addf %374, %377 : vector<8x32xf32>
    %379 = math.tanh %378 : vector<8x32xf32>
    %cst_81 = arith.constant 1.000000e+00 : f32
    %380 = vector.broadcast %cst_81 : f32 to vector<8x32xf32>
    %381 = arith.subf %380, %373 : vector<8x32xf32>
    %382 = arith.mulf %381, %379 : vector<8x32xf32>
    %383 = arith.mulf %373, %350 : vector<8x32xf32>
    %384 = arith.addf %382, %383 : vector<8x32xf32>
    %cst_82 = arith.constant dense<0.000000e+00> : vector<8x96xf32>
    %385 = tpu.matmul %384, %324, %cst_82 {dimension_numbers = #tpu.dot_dimension_numbers<[1], [0], [0], [1], [0, 0, 1, 1], [], []>} : vector<8x32xf32>, vector<32x96xf32>, vector<8x96xf32> -> vector<8x96xf32>
    %386 = arith.addf %385, %342 : vector<8x96xf32>
    %cst_83 = arith.constant dense<0.000000e+00> : vector<8x96xf32>
    %387 = tpu.matmul %350, %325, %cst_83 {dimension_numbers = #tpu.dot_dimension_numbers<[1], [0], [0], [1], [0, 0, 1, 1], [], []>} : vector<8x32xf32>, vector<32x96xf32>, vector<8x96xf32> -> vector<8x96xf32>
    %388 = vector.extract_strided_slice %386 {offsets = [0, 0], sizes = [8, 32], strides = [1, 1]} : vector<8x96xf32> to vector<8x32xf32>
    %389 = vector.extract_strided_slice %387 {offsets = [0, 0], sizes = [8, 32], strides = [1, 1]} : vector<8x96xf32> to vector<8x32xf32>
    %390 = arith.addf %388, %389 : vector<8x32xf32>
    %391 = arith.negf %390 : vector<8x32xf32>
    %392 = math.exp %391 : vector<8x32xf32>
    %cst_84 = arith.constant 1.000000e+00 : f32
    %393 = vector.broadcast %cst_84 : f32 to vector<8x32xf32>
    %394 = arith.addf %393, %392 : vector<8x32xf32>
    %395 = arith.divf %393, %394 : vector<8x32xf32>
    %396 = vector.extract_strided_slice %386 {offsets = [0, 32], sizes = [8, 32], strides = [1, 1]} : vector<8x96xf32> to vector<8x32xf32>
    %397 = vector.extract_strided_slice %387 {offsets = [0, 32], sizes = [8, 32], strides = [1, 1]} : vector<8x96xf32> to vector<8x32xf32>
    %398 = arith.addf %396, %397 : vector<8x32xf32>
    %399 = arith.negf %398 : vector<8x32xf32>
    %400 = math.exp %399 : vector<8x32xf32>
    %cst_85 = arith.constant 1.000000e+00 : f32
    %401 = vector.broadcast %cst_85 : f32 to vector<8x32xf32>
    %402 = arith.addf %401, %400 : vector<8x32xf32>
    %403 = arith.divf %401, %402 : vector<8x32xf32>
    %404 = vector.extract_strided_slice %386 {offsets = [0, 64], sizes = [8, 32], strides = [1, 1]} : vector<8x96xf32> to vector<8x32xf32>
    %405 = vector.extract_strided_slice %387 {offsets = [0, 64], sizes = [8, 32], strides = [1, 1]} : vector<8x96xf32> to vector<8x32xf32>
    %406 = arith.addf %405, %345 : vector<8x32xf32>
    %407 = arith.mulf %395, %406 : vector<8x32xf32>
    %408 = arith.addf %404, %407 : vector<8x32xf32>
    %409 = math.tanh %408 : vector<8x32xf32>
    %cst_86 = arith.constant 1.000000e+00 : f32
    %410 = vector.broadcast %cst_86 : f32 to vector<8x32xf32>
    %411 = arith.subf %410, %403 : vector<8x32xf32>
    %412 = arith.mulf %411, %409 : vector<8x32xf32>
    %413 = arith.mulf %403, %350 : vector<8x32xf32>
    %414 = arith.addf %412, %413 : vector<8x32xf32>
    %cst_87 = arith.constant dense<0.000000e+00> : vector<8x16xf32>
    %415 = tpu.matmul %414, %326, %cst_87 {dimension_numbers = #tpu.dot_dimension_numbers<[1], [0], [0], [1], [0, 0, 1, 1], [], []>} : vector<8x32xf32>, vector<32x16xf32>, vector<8x16xf32> -> vector<8x16xf32>
    %416 = arith.addf %415, %336 : vector<8x16xf32>
    %cst_88 = arith.constant dense<0xFF800000> : vector<8xf32>
    %417 = vector.multi_reduction <maximumf>, %416, %cst_88 [1] : vector<8x16xf32> to vector<8xf32>
    %418 = vector.shape_cast %417 : vector<8xf32> to vector<8x1xf32>
    %419 = vector.broadcast %418 : vector<8x1xf32> to vector<8x16xf32>
    %420 = arith.cmpf oeq, %416, %419 : vector<8x16xf32>
    %c16_i32 = arith.constant 16 : i32
    %421 = vector.broadcast %c16_i32 : i32 to vector<8x16xi32>
    %422 = arith.select %420, %1, %421 : vector<8x16xi1>, vector<8x16xi32>
    %cst_89 = arith.constant dense<2147483647> : vector<8xi32>
    %423 = vector.multi_reduction <minsi>, %422, %cst_89 [1] : vector<8x16xi32> to vector<8xi32>
    %424 = vector.shape_cast %423 : vector<8xi32> to vector<8x1xi32>
    %425 = vector.broadcast %424 : vector<8x1xi32> to vector<8x16xi32>
    %426 = arith.cmpi eq, %1, %425 : vector<8x16xi32>
    %427 = arith.extui %426 : vector<8x16xi1> to vector<8x16xi32>
    %428 = arith.sitofp %427 : vector<8x16xi32> to vector<8x16xf32>
    %429 = vector.broadcast %418 : vector<8x1xf32> to vector<8x16xf32>
    %430 = arith.subf %416, %429 : vector<8x16xf32>
    %431 = math.exp %430 : vector<8x16xf32>
    %cst_90 = arith.constant dense<0.000000e+00> : vector<8xf32>
    %432 = vector.multi_reduction <add>, %431, %cst_90 [1] : vector<8x16xf32> to vector<8xf32>
    %433 = vector.shape_cast %432 : vector<8xf32> to vector<8x1xf32>
    %434 = math.log %433 : vector<8x1xf32>
    %435 = vector.broadcast %434 : vector<8x1xf32> to vector<8x16xf32>
    %436 = arith.subf %430, %435 : vector<8x16xf32>
    %cst_91 = arith.constant dense<0.000000e+00> : vector<8x96xf32>
    %437 = tpu.matmul %428, %322, %cst_91 {dimension_numbers = #tpu.dot_dimension_numbers<[1], [0], [0], [1], [0, 0, 1, 1], [], []>} : vector<8x16xf32>, vector<16x96xf32>, vector<8x96xf32> -> vector<8x96xf32>
    %438 = arith.addf %437, %331 : vector<8x96xf32>
    %cst_92 = arith.constant dense<0.000000e+00> : vector<8x96xf32>
    %439 = tpu.matmul %384, %323, %cst_92 {dimension_numbers = #tpu.dot_dimension_numbers<[1], [0], [0], [1], [0, 0, 1, 1], [], []>} : vector<8x32xf32>, vector<32x96xf32>, vector<8x96xf32> -> vector<8x96xf32>
    %440 = vector.extract_strided_slice %438 {offsets = [0, 0], sizes = [8, 32], strides = [1, 1]} : vector<8x96xf32> to vector<8x32xf32>
    %441 = vector.extract_strided_slice %439 {offsets = [0, 0], sizes = [8, 32], strides = [1, 1]} : vector<8x96xf32> to vector<8x32xf32>
    %442 = arith.addf %440, %441 : vector<8x32xf32>
    %443 = arith.negf %442 : vector<8x32xf32>
    %444 = math.exp %443 : vector<8x32xf32>
    %cst_93 = arith.constant 1.000000e+00 : f32
    %445 = vector.broadcast %cst_93 : f32 to vector<8x32xf32>
    %446 = arith.addf %445, %444 : vector<8x32xf32>
    %447 = arith.divf %445, %446 : vector<8x32xf32>
    %448 = vector.extract_strided_slice %438 {offsets = [0, 32], sizes = [8, 32], strides = [1, 1]} : vector<8x96xf32> to vector<8x32xf32>
    %449 = vector.extract_strided_slice %439 {offsets = [0, 32], sizes = [8, 32], strides = [1, 1]} : vector<8x96xf32> to vector<8x32xf32>
    %450 = arith.addf %448, %449 : vector<8x32xf32>
    %451 = arith.negf %450 : vector<8x32xf32>
    %452 = math.exp %451 : vector<8x32xf32>
    %cst_94 = arith.constant 1.000000e+00 : f32
    %453 = vector.broadcast %cst_94 : f32 to vector<8x32xf32>
    %454 = arith.addf %453, %452 : vector<8x32xf32>
    %455 = arith.divf %453, %454 : vector<8x32xf32>
    %456 = vector.extract_strided_slice %438 {offsets = [0, 64], sizes = [8, 32], strides = [1, 1]} : vector<8x96xf32> to vector<8x32xf32>
    %457 = vector.extract_strided_slice %439 {offsets = [0, 64], sizes = [8, 32], strides = [1, 1]} : vector<8x96xf32> to vector<8x32xf32>
    %458 = arith.addf %457, %339 : vector<8x32xf32>
    %459 = arith.mulf %447, %458 : vector<8x32xf32>
    %460 = arith.addf %456, %459 : vector<8x32xf32>
    %461 = math.tanh %460 : vector<8x32xf32>
    %cst_95 = arith.constant 1.000000e+00 : f32
    %462 = vector.broadcast %cst_95 : f32 to vector<8x32xf32>
    %463 = arith.subf %462, %455 : vector<8x32xf32>
    %464 = arith.mulf %463, %461 : vector<8x32xf32>
    %465 = arith.mulf %455, %384 : vector<8x32xf32>
    %466 = arith.addf %464, %465 : vector<8x32xf32>
    %cst_96 = arith.constant dense<0.000000e+00> : vector<8x96xf32>
    %467 = tpu.matmul %466, %324, %cst_96 {dimension_numbers = #tpu.dot_dimension_numbers<[1], [0], [0], [1], [0, 0, 1, 1], [], []>} : vector<8x32xf32>, vector<32x96xf32>, vector<8x96xf32> -> vector<8x96xf32>
    %468 = arith.addf %467, %342 : vector<8x96xf32>
    %cst_97 = arith.constant dense<0.000000e+00> : vector<8x96xf32>
    %469 = tpu.matmul %414, %325, %cst_97 {dimension_numbers = #tpu.dot_dimension_numbers<[1], [0], [0], [1], [0, 0, 1, 1], [], []>} : vector<8x32xf32>, vector<32x96xf32>, vector<8x96xf32> -> vector<8x96xf32>
    %470 = vector.extract_strided_slice %468 {offsets = [0, 0], sizes = [8, 32], strides = [1, 1]} : vector<8x96xf32> to vector<8x32xf32>
    %471 = vector.extract_strided_slice %469 {offsets = [0, 0], sizes = [8, 32], strides = [1, 1]} : vector<8x96xf32> to vector<8x32xf32>
    %472 = arith.addf %470, %471 : vector<8x32xf32>
    %473 = arith.negf %472 : vector<8x32xf32>
    %474 = math.exp %473 : vector<8x32xf32>
    %cst_98 = arith.constant 1.000000e+00 : f32
    %475 = vector.broadcast %cst_98 : f32 to vector<8x32xf32>
    %476 = arith.addf %475, %474 : vector<8x32xf32>
    %477 = arith.divf %475, %476 : vector<8x32xf32>
    %478 = vector.extract_strided_slice %468 {offsets = [0, 32], sizes = [8, 32], strides = [1, 1]} : vector<8x96xf32> to vector<8x32xf32>
    %479 = vector.extract_strided_slice %469 {offsets = [0, 32], sizes = [8, 32], strides = [1, 1]} : vector<8x96xf32> to vector<8x32xf32>
    %480 = arith.addf %478, %479 : vector<8x32xf32>
    %481 = arith.negf %480 : vector<8x32xf32>
    %482 = math.exp %481 : vector<8x32xf32>
    %cst_99 = arith.constant 1.000000e+00 : f32
    %483 = vector.broadcast %cst_99 : f32 to vector<8x32xf32>
    %484 = arith.addf %483, %482 : vector<8x32xf32>
    %485 = arith.divf %483, %484 : vector<8x32xf32>
    %486 = vector.extract_strided_slice %468 {offsets = [0, 64], sizes = [8, 32], strides = [1, 1]} : vector<8x96xf32> to vector<8x32xf32>
    %487 = vector.extract_strided_slice %469 {offsets = [0, 64], sizes = [8, 32], strides = [1, 1]} : vector<8x96xf32> to vector<8x32xf32>
    %488 = arith.addf %487, %345 : vector<8x32xf32>
    %489 = arith.mulf %477, %488 : vector<8x32xf32>
    %490 = arith.addf %486, %489 : vector<8x32xf32>
    %491 = math.tanh %490 : vector<8x32xf32>
    %cst_100 = arith.constant 1.000000e+00 : f32
    %492 = vector.broadcast %cst_100 : f32 to vector<8x32xf32>
    %493 = arith.subf %492, %485 : vector<8x32xf32>
    %494 = arith.mulf %493, %491 : vector<8x32xf32>
    %495 = arith.mulf %485, %414 : vector<8x32xf32>
    %496 = arith.addf %494, %495 : vector<8x32xf32>
    %cst_101 = arith.constant dense<0.000000e+00> : vector<8x16xf32>
    %497 = tpu.matmul %496, %326, %cst_101 {dimension_numbers = #tpu.dot_dimension_numbers<[1], [0], [0], [1], [0, 0, 1, 1], [], []>} : vector<8x32xf32>, vector<32x16xf32>, vector<8x16xf32> -> vector<8x16xf32>
    %498 = arith.addf %497, %336 : vector<8x16xf32>
    %cst_102 = arith.constant dense<0xFF800000> : vector<8xf32>
    %499 = vector.multi_reduction <maximumf>, %498, %cst_102 [1] : vector<8x16xf32> to vector<8xf32>
    %500 = vector.shape_cast %499 : vector<8xf32> to vector<8x1xf32>
    %501 = vector.broadcast %500 : vector<8x1xf32> to vector<8x16xf32>
    %502 = arith.cmpf oeq, %498, %501 : vector<8x16xf32>
    %c16_i32_103 = arith.constant 16 : i32
    %503 = vector.broadcast %c16_i32_103 : i32 to vector<8x16xi32>
    %504 = arith.select %502, %1, %503 : vector<8x16xi1>, vector<8x16xi32>
    %cst_104 = arith.constant dense<2147483647> : vector<8xi32>
    %505 = vector.multi_reduction <minsi>, %504, %cst_104 [1] : vector<8x16xi32> to vector<8xi32>
    %506 = vector.shape_cast %505 : vector<8xi32> to vector<8x1xi32>
    %507 = vector.broadcast %506 : vector<8x1xi32> to vector<8x16xi32>
    %508 = arith.cmpi eq, %1, %507 : vector<8x16xi32>
    %509 = arith.extui %508 : vector<8x16xi1> to vector<8x16xi32>
    %510 = arith.sitofp %509 : vector<8x16xi32> to vector<8x16xf32>
    %511 = vector.broadcast %500 : vector<8x1xf32> to vector<8x16xf32>
    %512 = arith.subf %498, %511 : vector<8x16xf32>
    %513 = math.exp %512 : vector<8x16xf32>
    %cst_105 = arith.constant dense<0.000000e+00> : vector<8xf32>
    %514 = vector.multi_reduction <add>, %513, %cst_105 [1] : vector<8x16xf32> to vector<8xf32>
    %515 = vector.shape_cast %514 : vector<8xf32> to vector<8x1xf32>
    %516 = math.log %515 : vector<8x1xf32>
    %517 = vector.broadcast %516 : vector<8x1xf32> to vector<8x16xf32>
    %518 = arith.subf %512, %517 : vector<8x16xf32>
    %cst_106 = arith.constant dense<0.000000e+00> : vector<8x96xf32>
    %519 = tpu.matmul %510, %322, %cst_106 {dimension_numbers = #tpu.dot_dimension_numbers<[1], [0], [0], [1], [0, 0, 1, 1], [], []>} : vector<8x16xf32>, vector<16x96xf32>, vector<8x96xf32> -> vector<8x96xf32>
    %520 = arith.addf %519, %331 : vector<8x96xf32>
    %cst_107 = arith.constant dense<0.000000e+00> : vector<8x96xf32>
    %521 = tpu.matmul %466, %323, %cst_107 {dimension_numbers = #tpu.dot_dimension_numbers<[1], [0], [0], [1], [0, 0, 1, 1], [], []>} : vector<8x32xf32>, vector<32x96xf32>, vector<8x96xf32> -> vector<8x96xf32>
    %522 = vector.extract_strided_slice %520 {offsets = [0, 0], sizes = [8, 32], strides = [1, 1]} : vector<8x96xf32> to vector<8x32xf32>
    %523 = vector.extract_strided_slice %521 {offsets = [0, 0], sizes = [8, 32], strides = [1, 1]} : vector<8x96xf32> to vector<8x32xf32>
    %524 = arith.addf %522, %523 : vector<8x32xf32>
    %525 = arith.negf %524 : vector<8x32xf32>
    %526 = math.exp %525 : vector<8x32xf32>
    %cst_108 = arith.constant 1.000000e+00 : f32
    %527 = vector.broadcast %cst_108 : f32 to vector<8x32xf32>
    %528 = arith.addf %527, %526 : vector<8x32xf32>
    %529 = arith.divf %527, %528 : vector<8x32xf32>
    %530 = vector.extract_strided_slice %520 {offsets = [0, 32], sizes = [8, 32], strides = [1, 1]} : vector<8x96xf32> to vector<8x32xf32>
    %531 = vector.extract_strided_slice %521 {offsets = [0, 32], sizes = [8, 32], strides = [1, 1]} : vector<8x96xf32> to vector<8x32xf32>
    %532 = arith.addf %530, %531 : vector<8x32xf32>
    %533 = arith.negf %532 : vector<8x32xf32>
    %534 = math.exp %533 : vector<8x32xf32>
    %cst_109 = arith.constant 1.000000e+00 : f32
    %535 = vector.broadcast %cst_109 : f32 to vector<8x32xf32>
    %536 = arith.addf %535, %534 : vector<8x32xf32>
    %537 = arith.divf %535, %536 : vector<8x32xf32>
    %538 = vector.extract_strided_slice %520 {offsets = [0, 64], sizes = [8, 32], strides = [1, 1]} : vector<8x96xf32> to vector<8x32xf32>
    %539 = vector.extract_strided_slice %521 {offsets = [0, 64], sizes = [8, 32], strides = [1, 1]} : vector<8x96xf32> to vector<8x32xf32>
    %540 = arith.addf %539, %339 : vector<8x32xf32>
    %541 = arith.mulf %529, %540 : vector<8x32xf32>
    %542 = arith.addf %538, %541 : vector<8x32xf32>
    %543 = math.tanh %542 : vector<8x32xf32>
    %cst_110 = arith.constant 1.000000e+00 : f32
    %544 = vector.broadcast %cst_110 : f32 to vector<8x32xf32>
    %545 = arith.subf %544, %537 : vector<8x32xf32>
    %546 = arith.mulf %545, %543 : vector<8x32xf32>
    %547 = arith.mulf %537, %466 : vector<8x32xf32>
    %548 = arith.addf %546, %547 : vector<8x32xf32>
    %cst_111 = arith.constant dense<0.000000e+00> : vector<8x96xf32>
    %549 = tpu.matmul %548, %324, %cst_111 {dimension_numbers = #tpu.dot_dimension_numbers<[1], [0], [0], [1], [0, 0, 1, 1], [], []>} : vector<8x32xf32>, vector<32x96xf32>, vector<8x96xf32> -> vector<8x96xf32>
    %550 = arith.addf %549, %342 : vector<8x96xf32>
    %cst_112 = arith.constant dense<0.000000e+00> : vector<8x96xf32>
    %551 = tpu.matmul %496, %325, %cst_112 {dimension_numbers = #tpu.dot_dimension_numbers<[1], [0], [0], [1], [0, 0, 1, 1], [], []>} : vector<8x32xf32>, vector<32x96xf32>, vector<8x96xf32> -> vector<8x96xf32>
    %552 = vector.extract_strided_slice %550 {offsets = [0, 0], sizes = [8, 32], strides = [1, 1]} : vector<8x96xf32> to vector<8x32xf32>
    %553 = vector.extract_strided_slice %551 {offsets = [0, 0], sizes = [8, 32], strides = [1, 1]} : vector<8x96xf32> to vector<8x32xf32>
    %554 = arith.addf %552, %553 : vector<8x32xf32>
    %555 = arith.negf %554 : vector<8x32xf32>
    %556 = math.exp %555 : vector<8x32xf32>
    %cst_113 = arith.constant 1.000000e+00 : f32
    %557 = vector.broadcast %cst_113 : f32 to vector<8x32xf32>
    %558 = arith.addf %557, %556 : vector<8x32xf32>
    %559 = arith.divf %557, %558 : vector<8x32xf32>
    %560 = vector.extract_strided_slice %550 {offsets = [0, 32], sizes = [8, 32], strides = [1, 1]} : vector<8x96xf32> to vector<8x32xf32>
    %561 = vector.extract_strided_slice %551 {offsets = [0, 32], sizes = [8, 32], strides = [1, 1]} : vector<8x96xf32> to vector<8x32xf32>
    %562 = arith.addf %560, %561 : vector<8x32xf32>
    %563 = arith.negf %562 : vector<8x32xf32>
    %564 = math.exp %563 : vector<8x32xf32>
    %cst_114 = arith.constant 1.000000e+00 : f32
    %565 = vector.broadcast %cst_114 : f32 to vector<8x32xf32>
    %566 = arith.addf %565, %564 : vector<8x32xf32>
    %567 = arith.divf %565, %566 : vector<8x32xf32>
    %568 = vector.extract_strided_slice %550 {offsets = [0, 64], sizes = [8, 32], strides = [1, 1]} : vector<8x96xf32> to vector<8x32xf32>
    %569 = vector.extract_strided_slice %551 {offsets = [0, 64], sizes = [8, 32], strides = [1, 1]} : vector<8x96xf32> to vector<8x32xf32>
    %570 = arith.addf %569, %345 : vector<8x32xf32>
    %571 = arith.mulf %559, %570 : vector<8x32xf32>
    %572 = arith.addf %568, %571 : vector<8x32xf32>
    %573 = math.tanh %572 : vector<8x32xf32>
    %cst_115 = arith.constant 1.000000e+00 : f32
    %574 = vector.broadcast %cst_115 : f32 to vector<8x32xf32>
    %575 = arith.subf %574, %567 : vector<8x32xf32>
    %576 = arith.mulf %575, %573 : vector<8x32xf32>
    %577 = arith.mulf %567, %496 : vector<8x32xf32>
    %578 = arith.addf %576, %577 : vector<8x32xf32>
    %cst_116 = arith.constant dense<0.000000e+00> : vector<8x16xf32>
    %579 = tpu.matmul %578, %326, %cst_116 {dimension_numbers = #tpu.dot_dimension_numbers<[1], [0], [0], [1], [0, 0, 1, 1], [], []>} : vector<8x32xf32>, vector<32x16xf32>, vector<8x16xf32> -> vector<8x16xf32>
    %580 = arith.addf %579, %336 : vector<8x16xf32>
    %cst_117 = arith.constant dense<0xFF800000> : vector<8xf32>
    %581 = vector.multi_reduction <maximumf>, %580, %cst_117 [1] : vector<8x16xf32> to vector<8xf32>
    %582 = vector.shape_cast %581 : vector<8xf32> to vector<8x1xf32>
    %583 = vector.broadcast %582 : vector<8x1xf32> to vector<8x16xf32>
    %584 = arith.cmpf oeq, %580, %583 : vector<8x16xf32>
    %c16_i32_118 = arith.constant 16 : i32
    %585 = vector.broadcast %c16_i32_118 : i32 to vector<8x16xi32>
    %586 = arith.select %584, %1, %585 : vector<8x16xi1>, vector<8x16xi32>
    %cst_119 = arith.constant dense<2147483647> : vector<8xi32>
    %587 = vector.multi_reduction <minsi>, %586, %cst_119 [1] : vector<8x16xi32> to vector<8xi32>
    %588 = vector.shape_cast %587 : vector<8xi32> to vector<8x1xi32>
    %589 = vector.broadcast %588 : vector<8x1xi32> to vector<8x16xi32>
    %590 = arith.cmpi eq, %1, %589 : vector<8x16xi32>
    %591 = arith.extui %590 : vector<8x16xi1> to vector<8x16xi32>
    %592 = arith.sitofp %591 : vector<8x16xi32> to vector<8x16xf32>
    %593 = vector.broadcast %582 : vector<8x1xf32> to vector<8x16xf32>
    %594 = arith.subf %580, %593 : vector<8x16xf32>
    %595 = math.exp %594 : vector<8x16xf32>
    %cst_120 = arith.constant dense<0.000000e+00> : vector<8xf32>
    %596 = vector.multi_reduction <add>, %595, %cst_120 [1] : vector<8x16xf32> to vector<8xf32>
    %597 = vector.shape_cast %596 : vector<8xf32> to vector<8x1xf32>
    %598 = math.log %597 : vector<8x1xf32>
    %599 = vector.broadcast %598 : vector<8x1xf32> to vector<8x16xf32>
    %600 = arith.subf %594, %599 : vector<8x16xf32>
    %cst_121 = arith.constant dense<0.000000e+00> : vector<8x96xf32>
    %601 = tpu.matmul %592, %322, %cst_121 {dimension_numbers = #tpu.dot_dimension_numbers<[1], [0], [0], [1], [0, 0, 1, 1], [], []>} : vector<8x16xf32>, vector<16x96xf32>, vector<8x96xf32> -> vector<8x96xf32>
    %602 = arith.addf %601, %331 : vector<8x96xf32>
    %cst_122 = arith.constant dense<0.000000e+00> : vector<8x96xf32>
    %603 = tpu.matmul %548, %323, %cst_122 {dimension_numbers = #tpu.dot_dimension_numbers<[1], [0], [0], [1], [0, 0, 1, 1], [], []>} : vector<8x32xf32>, vector<32x96xf32>, vector<8x96xf32> -> vector<8x96xf32>
    %604 = vector.extract_strided_slice %602 {offsets = [0, 0], sizes = [8, 32], strides = [1, 1]} : vector<8x96xf32> to vector<8x32xf32>
    %605 = vector.extract_strided_slice %603 {offsets = [0, 0], sizes = [8, 32], strides = [1, 1]} : vector<8x96xf32> to vector<8x32xf32>
    %606 = arith.addf %604, %605 : vector<8x32xf32>
    %607 = arith.negf %606 : vector<8x32xf32>
    %608 = math.exp %607 : vector<8x32xf32>
    %cst_123 = arith.constant 1.000000e+00 : f32
    %609 = vector.broadcast %cst_123 : f32 to vector<8x32xf32>
    %610 = arith.addf %609, %608 : vector<8x32xf32>
    %611 = arith.divf %609, %610 : vector<8x32xf32>
    %612 = vector.extract_strided_slice %602 {offsets = [0, 32], sizes = [8, 32], strides = [1, 1]} : vector<8x96xf32> to vector<8x32xf32>
    %613 = vector.extract_strided_slice %603 {offsets = [0, 32], sizes = [8, 32], strides = [1, 1]} : vector<8x96xf32> to vector<8x32xf32>
    %614 = arith.addf %612, %613 : vector<8x32xf32>
    %615 = arith.negf %614 : vector<8x32xf32>
    %616 = math.exp %615 : vector<8x32xf32>
    %cst_124 = arith.constant 1.000000e+00 : f32
    %617 = vector.broadcast %cst_124 : f32 to vector<8x32xf32>
    %618 = arith.addf %617, %616 : vector<8x32xf32>
    %619 = arith.divf %617, %618 : vector<8x32xf32>
    %620 = vector.extract_strided_slice %602 {offsets = [0, 64], sizes = [8, 32], strides = [1, 1]} : vector<8x96xf32> to vector<8x32xf32>
    %621 = vector.extract_strided_slice %603 {offsets = [0, 64], sizes = [8, 32], strides = [1, 1]} : vector<8x96xf32> to vector<8x32xf32>
    %622 = arith.addf %621, %339 : vector<8x32xf32>
    %623 = arith.mulf %611, %622 : vector<8x32xf32>
    %624 = arith.addf %620, %623 : vector<8x32xf32>
    %625 = math.tanh %624 : vector<8x32xf32>
    %cst_125 = arith.constant 1.000000e+00 : f32
    %626 = vector.broadcast %cst_125 : f32 to vector<8x32xf32>
    %627 = arith.subf %626, %619 : vector<8x32xf32>
    %628 = arith.mulf %627, %625 : vector<8x32xf32>
    %629 = arith.mulf %619, %548 : vector<8x32xf32>
    %630 = arith.addf %628, %629 : vector<8x32xf32>
    %cst_126 = arith.constant dense<0.000000e+00> : vector<8x96xf32>
    %631 = tpu.matmul %630, %324, %cst_126 {dimension_numbers = #tpu.dot_dimension_numbers<[1], [0], [0], [1], [0, 0, 1, 1], [], []>} : vector<8x32xf32>, vector<32x96xf32>, vector<8x96xf32> -> vector<8x96xf32>
    %632 = arith.addf %631, %342 : vector<8x96xf32>
    %cst_127 = arith.constant dense<0.000000e+00> : vector<8x96xf32>
    %633 = tpu.matmul %578, %325, %cst_127 {dimension_numbers = #tpu.dot_dimension_numbers<[1], [0], [0], [1], [0, 0, 1, 1], [], []>} : vector<8x32xf32>, vector<32x96xf32>, vector<8x96xf32> -> vector<8x96xf32>
    %634 = vector.extract_strided_slice %632 {offsets = [0, 0], sizes = [8, 32], strides = [1, 1]} : vector<8x96xf32> to vector<8x32xf32>
    %635 = vector.extract_strided_slice %633 {offsets = [0, 0], sizes = [8, 32], strides = [1, 1]} : vector<8x96xf32> to vector<8x32xf32>
    %636 = arith.addf %634, %635 : vector<8x32xf32>
    %637 = arith.negf %636 : vector<8x32xf32>
    %638 = math.exp %637 : vector<8x32xf32>
    %cst_128 = arith.constant 1.000000e+00 : f32
    %639 = vector.broadcast %cst_128 : f32 to vector<8x32xf32>
    %640 = arith.addf %639, %638 : vector<8x32xf32>
    %641 = arith.divf %639, %640 : vector<8x32xf32>
    %642 = vector.extract_strided_slice %632 {offsets = [0, 32], sizes = [8, 32], strides = [1, 1]} : vector<8x96xf32> to vector<8x32xf32>
    %643 = vector.extract_strided_slice %633 {offsets = [0, 32], sizes = [8, 32], strides = [1, 1]} : vector<8x96xf32> to vector<8x32xf32>
    %644 = arith.addf %642, %643 : vector<8x32xf32>
    %645 = arith.negf %644 : vector<8x32xf32>
    %646 = math.exp %645 : vector<8x32xf32>
    %cst_129 = arith.constant 1.000000e+00 : f32
    %647 = vector.broadcast %cst_129 : f32 to vector<8x32xf32>
    %648 = arith.addf %647, %646 : vector<8x32xf32>
    %649 = arith.divf %647, %648 : vector<8x32xf32>
    %650 = vector.extract_strided_slice %632 {offsets = [0, 64], sizes = [8, 32], strides = [1, 1]} : vector<8x96xf32> to vector<8x32xf32>
    %651 = vector.extract_strided_slice %633 {offsets = [0, 64], sizes = [8, 32], strides = [1, 1]} : vector<8x96xf32> to vector<8x32xf32>
    %652 = arith.addf %651, %345 : vector<8x32xf32>
    %653 = arith.mulf %641, %652 : vector<8x32xf32>
    %654 = arith.addf %650, %653 : vector<8x32xf32>
    %655 = math.tanh %654 : vector<8x32xf32>
    %cst_130 = arith.constant 1.000000e+00 : f32
    %656 = vector.broadcast %cst_130 : f32 to vector<8x32xf32>
    %657 = arith.subf %656, %649 : vector<8x32xf32>
    %658 = arith.mulf %657, %655 : vector<8x32xf32>
    %659 = arith.mulf %649, %578 : vector<8x32xf32>
    %660 = arith.addf %658, %659 : vector<8x32xf32>
    %cst_131 = arith.constant dense<0.000000e+00> : vector<8x16xf32>
    %661 = tpu.matmul %660, %326, %cst_131 {dimension_numbers = #tpu.dot_dimension_numbers<[1], [0], [0], [1], [0, 0, 1, 1], [], []>} : vector<8x32xf32>, vector<32x16xf32>, vector<8x16xf32> -> vector<8x16xf32>
    %662 = arith.addf %661, %336 : vector<8x16xf32>
    %cst_132 = arith.constant dense<0xFF800000> : vector<8xf32>
    %663 = vector.multi_reduction <maximumf>, %662, %cst_132 [1] : vector<8x16xf32> to vector<8xf32>
    %664 = vector.shape_cast %663 : vector<8xf32> to vector<8x1xf32>
    %665 = vector.broadcast %664 : vector<8x1xf32> to vector<8x16xf32>
    %666 = arith.cmpf oeq, %662, %665 : vector<8x16xf32>
    %c16_i32_133 = arith.constant 16 : i32
    %667 = vector.broadcast %c16_i32_133 : i32 to vector<8x16xi32>
    %668 = arith.select %666, %1, %667 : vector<8x16xi1>, vector<8x16xi32>
    %cst_134 = arith.constant dense<2147483647> : vector<8xi32>
    %669 = vector.multi_reduction <minsi>, %668, %cst_134 [1] : vector<8x16xi32> to vector<8xi32>
    %670 = vector.shape_cast %669 : vector<8xi32> to vector<8x1xi32>
    %671 = vector.broadcast %670 : vector<8x1xi32> to vector<8x16xi32>
    %672 = arith.cmpi eq, %1, %671 : vector<8x16xi32>
    %673 = arith.extui %672 : vector<8x16xi1> to vector<8x16xi32>
    %674 = arith.sitofp %673 : vector<8x16xi32> to vector<8x16xf32>
    %675 = vector.broadcast %664 : vector<8x1xf32> to vector<8x16xf32>
    %676 = arith.subf %662, %675 : vector<8x16xf32>
    %677 = math.exp %676 : vector<8x16xf32>
    %cst_135 = arith.constant dense<0.000000e+00> : vector<8xf32>
    %678 = vector.multi_reduction <add>, %677, %cst_135 [1] : vector<8x16xf32> to vector<8xf32>
    %679 = vector.shape_cast %678 : vector<8xf32> to vector<8x1xf32>
    %680 = math.log %679 : vector<8x1xf32>
    %681 = vector.broadcast %680 : vector<8x1xf32> to vector<8x16xf32>
    %682 = arith.subf %676, %681 : vector<8x16xf32>
    %cst_136 = arith.constant dense<0.000000e+00> : vector<8x96xf32>
    %683 = tpu.matmul %674, %322, %cst_136 {dimension_numbers = #tpu.dot_dimension_numbers<[1], [0], [0], [1], [0, 0, 1, 1], [], []>} : vector<8x16xf32>, vector<16x96xf32>, vector<8x96xf32> -> vector<8x96xf32>
    %684 = arith.addf %683, %331 : vector<8x96xf32>
    %cst_137 = arith.constant dense<0.000000e+00> : vector<8x96xf32>
    %685 = tpu.matmul %630, %323, %cst_137 {dimension_numbers = #tpu.dot_dimension_numbers<[1], [0], [0], [1], [0, 0, 1, 1], [], []>} : vector<8x32xf32>, vector<32x96xf32>, vector<8x96xf32> -> vector<8x96xf32>
    %686 = vector.extract_strided_slice %684 {offsets = [0, 0], sizes = [8, 32], strides = [1, 1]} : vector<8x96xf32> to vector<8x32xf32>
    %687 = vector.extract_strided_slice %685 {offsets = [0, 0], sizes = [8, 32], strides = [1, 1]} : vector<8x96xf32> to vector<8x32xf32>
    %688 = arith.addf %686, %687 : vector<8x32xf32>
    %689 = arith.negf %688 : vector<8x32xf32>
    %690 = math.exp %689 : vector<8x32xf32>
    %cst_138 = arith.constant 1.000000e+00 : f32
    %691 = vector.broadcast %cst_138 : f32 to vector<8x32xf32>
    %692 = arith.addf %691, %690 : vector<8x32xf32>
    %693 = arith.divf %691, %692 : vector<8x32xf32>
    %694 = vector.extract_strided_slice %684 {offsets = [0, 32], sizes = [8, 32], strides = [1, 1]} : vector<8x96xf32> to vector<8x32xf32>
    %695 = vector.extract_strided_slice %685 {offsets = [0, 32], sizes = [8, 32], strides = [1, 1]} : vector<8x96xf32> to vector<8x32xf32>
    %696 = arith.addf %694, %695 : vector<8x32xf32>
    %697 = arith.negf %696 : vector<8x32xf32>
    %698 = math.exp %697 : vector<8x32xf32>
    %cst_139 = arith.constant 1.000000e+00 : f32
    %699 = vector.broadcast %cst_139 : f32 to vector<8x32xf32>
    %700 = arith.addf %699, %698 : vector<8x32xf32>
    %701 = arith.divf %699, %700 : vector<8x32xf32>
    %702 = vector.extract_strided_slice %684 {offsets = [0, 64], sizes = [8, 32], strides = [1, 1]} : vector<8x96xf32> to vector<8x32xf32>
    %703 = vector.extract_strided_slice %685 {offsets = [0, 64], sizes = [8, 32], strides = [1, 1]} : vector<8x96xf32> to vector<8x32xf32>
    %704 = arith.addf %703, %339 : vector<8x32xf32>
    %705 = arith.mulf %693, %704 : vector<8x32xf32>
    %706 = arith.addf %702, %705 : vector<8x32xf32>
    %707 = math.tanh %706 : vector<8x32xf32>
    %cst_140 = arith.constant 1.000000e+00 : f32
    %708 = vector.broadcast %cst_140 : f32 to vector<8x32xf32>
    %709 = arith.subf %708, %701 : vector<8x32xf32>
    %710 = arith.mulf %709, %707 : vector<8x32xf32>
    %711 = arith.mulf %701, %630 : vector<8x32xf32>
    %712 = arith.addf %710, %711 : vector<8x32xf32>
    %cst_141 = arith.constant dense<0.000000e+00> : vector<8x96xf32>
    %713 = tpu.matmul %712, %324, %cst_141 {dimension_numbers = #tpu.dot_dimension_numbers<[1], [0], [0], [1], [0, 0, 1, 1], [], []>} : vector<8x32xf32>, vector<32x96xf32>, vector<8x96xf32> -> vector<8x96xf32>
    %714 = arith.addf %713, %342 : vector<8x96xf32>
    %cst_142 = arith.constant dense<0.000000e+00> : vector<8x96xf32>
    %715 = tpu.matmul %660, %325, %cst_142 {dimension_numbers = #tpu.dot_dimension_numbers<[1], [0], [0], [1], [0, 0, 1, 1], [], []>} : vector<8x32xf32>, vector<32x96xf32>, vector<8x96xf32> -> vector<8x96xf32>
    %716 = vector.extract_strided_slice %714 {offsets = [0, 0], sizes = [8, 32], strides = [1, 1]} : vector<8x96xf32> to vector<8x32xf32>
    %717 = vector.extract_strided_slice %715 {offsets = [0, 0], sizes = [8, 32], strides = [1, 1]} : vector<8x96xf32> to vector<8x32xf32>
    %718 = arith.addf %716, %717 : vector<8x32xf32>
    %719 = arith.negf %718 : vector<8x32xf32>
    %720 = math.exp %719 : vector<8x32xf32>
    %cst_143 = arith.constant 1.000000e+00 : f32
    %721 = vector.broadcast %cst_143 : f32 to vector<8x32xf32>
    %722 = arith.addf %721, %720 : vector<8x32xf32>
    %723 = arith.divf %721, %722 : vector<8x32xf32>
    %724 = vector.extract_strided_slice %714 {offsets = [0, 32], sizes = [8, 32], strides = [1, 1]} : vector<8x96xf32> to vector<8x32xf32>
    %725 = vector.extract_strided_slice %715 {offsets = [0, 32], sizes = [8, 32], strides = [1, 1]} : vector<8x96xf32> to vector<8x32xf32>
    %726 = arith.addf %724, %725 : vector<8x32xf32>
    %727 = arith.negf %726 : vector<8x32xf32>
    %728 = math.exp %727 : vector<8x32xf32>
    %cst_144 = arith.constant 1.000000e+00 : f32
    %729 = vector.broadcast %cst_144 : f32 to vector<8x32xf32>
    %730 = arith.addf %729, %728 : vector<8x32xf32>
    %731 = arith.divf %729, %730 : vector<8x32xf32>
    %732 = vector.extract_strided_slice %714 {offsets = [0, 64], sizes = [8, 32], strides = [1, 1]} : vector<8x96xf32> to vector<8x32xf32>
    %733 = vector.extract_strided_slice %715 {offsets = [0, 64], sizes = [8, 32], strides = [1, 1]} : vector<8x96xf32> to vector<8x32xf32>
    %734 = arith.addf %733, %345 : vector<8x32xf32>
    %735 = arith.mulf %723, %734 : vector<8x32xf32>
    %736 = arith.addf %732, %735 : vector<8x32xf32>
    %737 = math.tanh %736 : vector<8x32xf32>
    %cst_145 = arith.constant 1.000000e+00 : f32
    %738 = vector.broadcast %cst_145 : f32 to vector<8x32xf32>
    %739 = arith.subf %738, %731 : vector<8x32xf32>
    %740 = arith.mulf %739, %737 : vector<8x32xf32>
    %741 = arith.mulf %731, %660 : vector<8x32xf32>
    %742 = arith.addf %740, %741 : vector<8x32xf32>
    %cst_146 = arith.constant dense<0.000000e+00> : vector<8x16xf32>
    %743 = tpu.matmul %742, %326, %cst_146 {dimension_numbers = #tpu.dot_dimension_numbers<[1], [0], [0], [1], [0, 0, 1, 1], [], []>} : vector<8x32xf32>, vector<32x16xf32>, vector<8x16xf32> -> vector<8x16xf32>
    %744 = arith.addf %743, %336 : vector<8x16xf32>
    %cst_147 = arith.constant dense<0xFF800000> : vector<8xf32>
    %745 = vector.multi_reduction <maximumf>, %744, %cst_147 [1] : vector<8x16xf32> to vector<8xf32>
    %746 = vector.shape_cast %745 : vector<8xf32> to vector<8x1xf32>
    %747 = vector.broadcast %746 : vector<8x1xf32> to vector<8x16xf32>
    %748 = arith.cmpf oeq, %744, %747 : vector<8x16xf32>
    %c16_i32_148 = arith.constant 16 : i32
    %749 = vector.broadcast %c16_i32_148 : i32 to vector<8x16xi32>
    %750 = arith.select %748, %1, %749 : vector<8x16xi1>, vector<8x16xi32>
    %cst_149 = arith.constant dense<2147483647> : vector<8xi32>
    %751 = vector.multi_reduction <minsi>, %750, %cst_149 [1] : vector<8x16xi32> to vector<8xi32>
    %752 = vector.shape_cast %751 : vector<8xi32> to vector<8x1xi32>
    %753 = vector.broadcast %752 : vector<8x1xi32> to vector<8x16xi32>
    %754 = arith.cmpi eq, %1, %753 : vector<8x16xi32>
    %755 = arith.extui %754 : vector<8x16xi1> to vector<8x16xi32>
    %756 = arith.sitofp %755 : vector<8x16xi32> to vector<8x16xf32>
    %757 = vector.broadcast %746 : vector<8x1xf32> to vector<8x16xf32>
    %758 = arith.subf %744, %757 : vector<8x16xf32>
    %759 = math.exp %758 : vector<8x16xf32>
    %cst_150 = arith.constant dense<0.000000e+00> : vector<8xf32>
    %760 = vector.multi_reduction <add>, %759, %cst_150 [1] : vector<8x16xf32> to vector<8xf32>
    %761 = vector.shape_cast %760 : vector<8xf32> to vector<8x1xf32>
    %762 = math.log %761 : vector<8x1xf32>
    %763 = vector.broadcast %762 : vector<8x1xf32> to vector<8x16xf32>
    %764 = arith.subf %758, %763 : vector<8x16xf32>
    %cst_151 = arith.constant dense<0.000000e+00> : vector<8x96xf32>
    %765 = tpu.matmul %756, %322, %cst_151 {dimension_numbers = #tpu.dot_dimension_numbers<[1], [0], [0], [1], [0, 0, 1, 1], [], []>} : vector<8x16xf32>, vector<16x96xf32>, vector<8x96xf32> -> vector<8x96xf32>
    %766 = arith.addf %765, %331 : vector<8x96xf32>
    %cst_152 = arith.constant dense<0.000000e+00> : vector<8x96xf32>
    %767 = tpu.matmul %712, %323, %cst_152 {dimension_numbers = #tpu.dot_dimension_numbers<[1], [0], [0], [1], [0, 0, 1, 1], [], []>} : vector<8x32xf32>, vector<32x96xf32>, vector<8x96xf32> -> vector<8x96xf32>
    %768 = vector.extract_strided_slice %766 {offsets = [0, 0], sizes = [8, 32], strides = [1, 1]} : vector<8x96xf32> to vector<8x32xf32>
    %769 = vector.extract_strided_slice %767 {offsets = [0, 0], sizes = [8, 32], strides = [1, 1]} : vector<8x96xf32> to vector<8x32xf32>
    %770 = arith.addf %768, %769 : vector<8x32xf32>
    %771 = arith.negf %770 : vector<8x32xf32>
    %772 = math.exp %771 : vector<8x32xf32>
    %cst_153 = arith.constant 1.000000e+00 : f32
    %773 = vector.broadcast %cst_153 : f32 to vector<8x32xf32>
    %774 = arith.addf %773, %772 : vector<8x32xf32>
    %775 = arith.divf %773, %774 : vector<8x32xf32>
    %776 = vector.extract_strided_slice %766 {offsets = [0, 32], sizes = [8, 32], strides = [1, 1]} : vector<8x96xf32> to vector<8x32xf32>
    %777 = vector.extract_strided_slice %767 {offsets = [0, 32], sizes = [8, 32], strides = [1, 1]} : vector<8x96xf32> to vector<8x32xf32>
    %778 = arith.addf %776, %777 : vector<8x32xf32>
    %779 = arith.negf %778 : vector<8x32xf32>
    %780 = math.exp %779 : vector<8x32xf32>
    %cst_154 = arith.constant 1.000000e+00 : f32
    %781 = vector.broadcast %cst_154 : f32 to vector<8x32xf32>
    %782 = arith.addf %781, %780 : vector<8x32xf32>
    %783 = arith.divf %781, %782 : vector<8x32xf32>
    %784 = vector.extract_strided_slice %766 {offsets = [0, 64], sizes = [8, 32], strides = [1, 1]} : vector<8x96xf32> to vector<8x32xf32>
    %785 = vector.extract_strided_slice %767 {offsets = [0, 64], sizes = [8, 32], strides = [1, 1]} : vector<8x96xf32> to vector<8x32xf32>
    %786 = arith.addf %785, %339 : vector<8x32xf32>
    %787 = arith.mulf %775, %786 : vector<8x32xf32>
    %788 = arith.addf %784, %787 : vector<8x32xf32>
    %789 = math.tanh %788 : vector<8x32xf32>
    %cst_155 = arith.constant 1.000000e+00 : f32
    %790 = vector.broadcast %cst_155 : f32 to vector<8x32xf32>
    %791 = arith.subf %790, %783 : vector<8x32xf32>
    %792 = arith.mulf %791, %789 : vector<8x32xf32>
    %793 = arith.mulf %783, %712 : vector<8x32xf32>
    %794 = arith.addf %792, %793 : vector<8x32xf32>
    %cst_156 = arith.constant dense<0.000000e+00> : vector<8x96xf32>
    %795 = tpu.matmul %794, %324, %cst_156 {dimension_numbers = #tpu.dot_dimension_numbers<[1], [0], [0], [1], [0, 0, 1, 1], [], []>} : vector<8x32xf32>, vector<32x96xf32>, vector<8x96xf32> -> vector<8x96xf32>
    %796 = arith.addf %795, %342 : vector<8x96xf32>
    %cst_157 = arith.constant dense<0.000000e+00> : vector<8x96xf32>
    %797 = tpu.matmul %742, %325, %cst_157 {dimension_numbers = #tpu.dot_dimension_numbers<[1], [0], [0], [1], [0, 0, 1, 1], [], []>} : vector<8x32xf32>, vector<32x96xf32>, vector<8x96xf32> -> vector<8x96xf32>
    %798 = vector.extract_strided_slice %796 {offsets = [0, 0], sizes = [8, 32], strides = [1, 1]} : vector<8x96xf32> to vector<8x32xf32>
    %799 = vector.extract_strided_slice %797 {offsets = [0, 0], sizes = [8, 32], strides = [1, 1]} : vector<8x96xf32> to vector<8x32xf32>
    %800 = arith.addf %798, %799 : vector<8x32xf32>
    %801 = arith.negf %800 : vector<8x32xf32>
    %802 = math.exp %801 : vector<8x32xf32>
    %cst_158 = arith.constant 1.000000e+00 : f32
    %803 = vector.broadcast %cst_158 : f32 to vector<8x32xf32>
    %804 = arith.addf %803, %802 : vector<8x32xf32>
    %805 = arith.divf %803, %804 : vector<8x32xf32>
    %806 = vector.extract_strided_slice %796 {offsets = [0, 32], sizes = [8, 32], strides = [1, 1]} : vector<8x96xf32> to vector<8x32xf32>
    %807 = vector.extract_strided_slice %797 {offsets = [0, 32], sizes = [8, 32], strides = [1, 1]} : vector<8x96xf32> to vector<8x32xf32>
    %808 = arith.addf %806, %807 : vector<8x32xf32>
    %809 = arith.negf %808 : vector<8x32xf32>
    %810 = math.exp %809 : vector<8x32xf32>
    %cst_159 = arith.constant 1.000000e+00 : f32
    %811 = vector.broadcast %cst_159 : f32 to vector<8x32xf32>
    %812 = arith.addf %811, %810 : vector<8x32xf32>
    %813 = arith.divf %811, %812 : vector<8x32xf32>
    %814 = vector.extract_strided_slice %796 {offsets = [0, 64], sizes = [8, 32], strides = [1, 1]} : vector<8x96xf32> to vector<8x32xf32>
    %815 = vector.extract_strided_slice %797 {offsets = [0, 64], sizes = [8, 32], strides = [1, 1]} : vector<8x96xf32> to vector<8x32xf32>
    %816 = arith.addf %815, %345 : vector<8x32xf32>
    %817 = arith.mulf %805, %816 : vector<8x32xf32>
    %818 = arith.addf %814, %817 : vector<8x32xf32>
    %819 = math.tanh %818 : vector<8x32xf32>
    %cst_160 = arith.constant 1.000000e+00 : f32
    %820 = vector.broadcast %cst_160 : f32 to vector<8x32xf32>
    %821 = arith.subf %820, %813 : vector<8x32xf32>
    %822 = arith.mulf %821, %819 : vector<8x32xf32>
    %823 = arith.mulf %813, %742 : vector<8x32xf32>
    %824 = arith.addf %822, %823 : vector<8x32xf32>
    %cst_161 = arith.constant dense<0.000000e+00> : vector<8x16xf32>
    %825 = tpu.matmul %824, %326, %cst_161 {dimension_numbers = #tpu.dot_dimension_numbers<[1], [0], [0], [1], [0, 0, 1, 1], [], []>} : vector<8x32xf32>, vector<32x16xf32>, vector<8x16xf32> -> vector<8x16xf32>
    %826 = arith.addf %825, %336 : vector<8x16xf32>
    %cst_162 = arith.constant dense<0xFF800000> : vector<8xf32>
    %827 = vector.multi_reduction <maximumf>, %826, %cst_162 [1] : vector<8x16xf32> to vector<8xf32>
    %828 = vector.shape_cast %827 : vector<8xf32> to vector<8x1xf32>
    %829 = vector.broadcast %828 : vector<8x1xf32> to vector<8x16xf32>
    %830 = arith.cmpf oeq, %826, %829 : vector<8x16xf32>
    %c16_i32_163 = arith.constant 16 : i32
    %831 = vector.broadcast %c16_i32_163 : i32 to vector<8x16xi32>
    %832 = arith.select %830, %1, %831 : vector<8x16xi1>, vector<8x16xi32>
    %cst_164 = arith.constant dense<2147483647> : vector<8xi32>
    %833 = vector.multi_reduction <minsi>, %832, %cst_164 [1] : vector<8x16xi32> to vector<8xi32>
    %834 = vector.shape_cast %833 : vector<8xi32> to vector<8x1xi32>
    %835 = vector.broadcast %834 : vector<8x1xi32> to vector<8x16xi32>
    %836 = arith.cmpi eq, %1, %835 : vector<8x16xi32>
    %837 = arith.extui %836 : vector<8x16xi1> to vector<8x16xi32>
    %838 = arith.sitofp %837 : vector<8x16xi32> to vector<8x16xf32>
    %839 = vector.broadcast %828 : vector<8x1xf32> to vector<8x16xf32>
    %840 = arith.subf %826, %839 : vector<8x16xf32>
    %841 = math.exp %840 : vector<8x16xf32>
    %cst_165 = arith.constant dense<0.000000e+00> : vector<8xf32>
    %842 = vector.multi_reduction <add>, %841, %cst_165 [1] : vector<8x16xf32> to vector<8xf32>
    %843 = vector.shape_cast %842 : vector<8xf32> to vector<8x1xf32>
    %844 = math.log %843 : vector<8x1xf32>
    %845 = vector.broadcast %844 : vector<8x1xf32> to vector<8x16xf32>
    %846 = arith.subf %840, %845 : vector<8x16xf32>
    %cst_166 = arith.constant dense<0.000000e+00> : vector<8x96xf32>
    %847 = tpu.matmul %838, %322, %cst_166 {dimension_numbers = #tpu.dot_dimension_numbers<[1], [0], [0], [1], [0, 0, 1, 1], [], []>} : vector<8x16xf32>, vector<16x96xf32>, vector<8x96xf32> -> vector<8x96xf32>
    %848 = arith.addf %847, %331 : vector<8x96xf32>
    %cst_167 = arith.constant dense<0.000000e+00> : vector<8x96xf32>
    %849 = tpu.matmul %794, %323, %cst_167 {dimension_numbers = #tpu.dot_dimension_numbers<[1], [0], [0], [1], [0, 0, 1, 1], [], []>} : vector<8x32xf32>, vector<32x96xf32>, vector<8x96xf32> -> vector<8x96xf32>
    %850 = vector.extract_strided_slice %848 {offsets = [0, 0], sizes = [8, 32], strides = [1, 1]} : vector<8x96xf32> to vector<8x32xf32>
    %851 = vector.extract_strided_slice %849 {offsets = [0, 0], sizes = [8, 32], strides = [1, 1]} : vector<8x96xf32> to vector<8x32xf32>
    %852 = arith.addf %850, %851 : vector<8x32xf32>
    %853 = arith.negf %852 : vector<8x32xf32>
    %854 = math.exp %853 : vector<8x32xf32>
    %cst_168 = arith.constant 1.000000e+00 : f32
    %855 = vector.broadcast %cst_168 : f32 to vector<8x32xf32>
    %856 = arith.addf %855, %854 : vector<8x32xf32>
    %857 = arith.divf %855, %856 : vector<8x32xf32>
    %858 = vector.extract_strided_slice %848 {offsets = [0, 32], sizes = [8, 32], strides = [1, 1]} : vector<8x96xf32> to vector<8x32xf32>
    %859 = vector.extract_strided_slice %849 {offsets = [0, 32], sizes = [8, 32], strides = [1, 1]} : vector<8x96xf32> to vector<8x32xf32>
    %860 = arith.addf %858, %859 : vector<8x32xf32>
    %861 = arith.negf %860 : vector<8x32xf32>
    %862 = math.exp %861 : vector<8x32xf32>
    %cst_169 = arith.constant 1.000000e+00 : f32
    %863 = vector.broadcast %cst_169 : f32 to vector<8x32xf32>
    %864 = arith.addf %863, %862 : vector<8x32xf32>
    %865 = arith.divf %863, %864 : vector<8x32xf32>
    %866 = vector.extract_strided_slice %848 {offsets = [0, 64], sizes = [8, 32], strides = [1, 1]} : vector<8x96xf32> to vector<8x32xf32>
    %867 = vector.extract_strided_slice %849 {offsets = [0, 64], sizes = [8, 32], strides = [1, 1]} : vector<8x96xf32> to vector<8x32xf32>
    %868 = arith.addf %867, %339 : vector<8x32xf32>
    %869 = arith.mulf %857, %868 : vector<8x32xf32>
    %870 = arith.addf %866, %869 : vector<8x32xf32>
    %871 = math.tanh %870 : vector<8x32xf32>
    %cst_170 = arith.constant 1.000000e+00 : f32
    %872 = vector.broadcast %cst_170 : f32 to vector<8x32xf32>
    %873 = arith.subf %872, %865 : vector<8x32xf32>
    %874 = arith.mulf %873, %871 : vector<8x32xf32>
    %875 = arith.mulf %865, %794 : vector<8x32xf32>
    %876 = arith.addf %874, %875 : vector<8x32xf32>
    %cst_171 = arith.constant dense<0.000000e+00> : vector<8x96xf32>
    %877 = tpu.matmul %876, %324, %cst_171 {dimension_numbers = #tpu.dot_dimension_numbers<[1], [0], [0], [1], [0, 0, 1, 1], [], []>} : vector<8x32xf32>, vector<32x96xf32>, vector<8x96xf32> -> vector<8x96xf32>
    %878 = arith.addf %877, %342 : vector<8x96xf32>
    %cst_172 = arith.constant dense<0.000000e+00> : vector<8x96xf32>
    %879 = tpu.matmul %824, %325, %cst_172 {dimension_numbers = #tpu.dot_dimension_numbers<[1], [0], [0], [1], [0, 0, 1, 1], [], []>} : vector<8x32xf32>, vector<32x96xf32>, vector<8x96xf32> -> vector<8x96xf32>
    %880 = vector.extract_strided_slice %878 {offsets = [0, 0], sizes = [8, 32], strides = [1, 1]} : vector<8x96xf32> to vector<8x32xf32>
    %881 = vector.extract_strided_slice %879 {offsets = [0, 0], sizes = [8, 32], strides = [1, 1]} : vector<8x96xf32> to vector<8x32xf32>
    %882 = arith.addf %880, %881 : vector<8x32xf32>
    %883 = arith.negf %882 : vector<8x32xf32>
    %884 = math.exp %883 : vector<8x32xf32>
    %cst_173 = arith.constant 1.000000e+00 : f32
    %885 = vector.broadcast %cst_173 : f32 to vector<8x32xf32>
    %886 = arith.addf %885, %884 : vector<8x32xf32>
    %887 = arith.divf %885, %886 : vector<8x32xf32>
    %888 = vector.extract_strided_slice %878 {offsets = [0, 32], sizes = [8, 32], strides = [1, 1]} : vector<8x96xf32> to vector<8x32xf32>
    %889 = vector.extract_strided_slice %879 {offsets = [0, 32], sizes = [8, 32], strides = [1, 1]} : vector<8x96xf32> to vector<8x32xf32>
    %890 = arith.addf %888, %889 : vector<8x32xf32>
    %891 = arith.negf %890 : vector<8x32xf32>
    %892 = math.exp %891 : vector<8x32xf32>
    %cst_174 = arith.constant 1.000000e+00 : f32
    %893 = vector.broadcast %cst_174 : f32 to vector<8x32xf32>
    %894 = arith.addf %893, %892 : vector<8x32xf32>
    %895 = arith.divf %893, %894 : vector<8x32xf32>
    %896 = vector.extract_strided_slice %878 {offsets = [0, 64], sizes = [8, 32], strides = [1, 1]} : vector<8x96xf32> to vector<8x32xf32>
    %897 = vector.extract_strided_slice %879 {offsets = [0, 64], sizes = [8, 32], strides = [1, 1]} : vector<8x96xf32> to vector<8x32xf32>
    %898 = arith.addf %897, %345 : vector<8x32xf32>
    %899 = arith.mulf %887, %898 : vector<8x32xf32>
    %900 = arith.addf %896, %899 : vector<8x32xf32>
    %901 = math.tanh %900 : vector<8x32xf32>
    %cst_175 = arith.constant 1.000000e+00 : f32
    %902 = vector.broadcast %cst_175 : f32 to vector<8x32xf32>
    %903 = arith.subf %902, %895 : vector<8x32xf32>
    %904 = arith.mulf %903, %901 : vector<8x32xf32>
    %905 = arith.mulf %895, %824 : vector<8x32xf32>
    %906 = arith.addf %904, %905 : vector<8x32xf32>
    %cst_176 = arith.constant dense<0.000000e+00> : vector<8x16xf32>
    %907 = tpu.matmul %906, %326, %cst_176 {dimension_numbers = #tpu.dot_dimension_numbers<[1], [0], [0], [1], [0, 0, 1, 1], [], []>} : vector<8x32xf32>, vector<32x16xf32>, vector<8x16xf32> -> vector<8x16xf32>
    %908 = arith.addf %907, %336 : vector<8x16xf32>
    %cst_177 = arith.constant dense<0xFF800000> : vector<8xf32>
    %909 = vector.multi_reduction <maximumf>, %908, %cst_177 [1] : vector<8x16xf32> to vector<8xf32>
    %910 = vector.shape_cast %909 : vector<8xf32> to vector<8x1xf32>
    %911 = vector.broadcast %910 : vector<8x1xf32> to vector<8x16xf32>
    %912 = arith.cmpf oeq, %908, %911 : vector<8x16xf32>
    %c16_i32_178 = arith.constant 16 : i32
    %913 = vector.broadcast %c16_i32_178 : i32 to vector<8x16xi32>
    %914 = arith.select %912, %1, %913 : vector<8x16xi1>, vector<8x16xi32>
    %cst_179 = arith.constant dense<2147483647> : vector<8xi32>
    %915 = vector.multi_reduction <minsi>, %914, %cst_179 [1] : vector<8x16xi32> to vector<8xi32>
    %916 = vector.shape_cast %915 : vector<8xi32> to vector<8x1xi32>
    %917 = vector.broadcast %916 : vector<8x1xi32> to vector<8x16xi32>
    %918 = arith.cmpi eq, %1, %917 : vector<8x16xi32>
    %919 = arith.extui %918 : vector<8x16xi1> to vector<8x16xi32>
    %920 = arith.sitofp %919 : vector<8x16xi32> to vector<8x16xf32>
    %921 = vector.broadcast %910 : vector<8x1xf32> to vector<8x16xf32>
    %922 = arith.subf %908, %921 : vector<8x16xf32>
    %923 = math.exp %922 : vector<8x16xf32>
    %cst_180 = arith.constant dense<0.000000e+00> : vector<8xf32>
    %924 = vector.multi_reduction <add>, %923, %cst_180 [1] : vector<8x16xf32> to vector<8xf32>
    %925 = vector.shape_cast %924 : vector<8xf32> to vector<8x1xf32>
    %926 = math.log %925 : vector<8x1xf32>
    %927 = vector.broadcast %926 : vector<8x1xf32> to vector<8x16xf32>
    %928 = arith.subf %922, %927 : vector<8x16xf32>
    %cst_181 = arith.constant dense<0.000000e+00> : vector<8x96xf32>
    %929 = tpu.matmul %920, %322, %cst_181 {dimension_numbers = #tpu.dot_dimension_numbers<[1], [0], [0], [1], [0, 0, 1, 1], [], []>} : vector<8x16xf32>, vector<16x96xf32>, vector<8x96xf32> -> vector<8x96xf32>
    %930 = arith.addf %929, %331 : vector<8x96xf32>
    %cst_182 = arith.constant dense<0.000000e+00> : vector<8x96xf32>
    %931 = tpu.matmul %876, %323, %cst_182 {dimension_numbers = #tpu.dot_dimension_numbers<[1], [0], [0], [1], [0, 0, 1, 1], [], []>} : vector<8x32xf32>, vector<32x96xf32>, vector<8x96xf32> -> vector<8x96xf32>
    %932 = vector.extract_strided_slice %930 {offsets = [0, 0], sizes = [8, 32], strides = [1, 1]} : vector<8x96xf32> to vector<8x32xf32>
    %933 = vector.extract_strided_slice %931 {offsets = [0, 0], sizes = [8, 32], strides = [1, 1]} : vector<8x96xf32> to vector<8x32xf32>
    %934 = arith.addf %932, %933 : vector<8x32xf32>
    %935 = arith.negf %934 : vector<8x32xf32>
    %936 = math.exp %935 : vector<8x32xf32>
    %cst_183 = arith.constant 1.000000e+00 : f32
    %937 = vector.broadcast %cst_183 : f32 to vector<8x32xf32>
    %938 = arith.addf %937, %936 : vector<8x32xf32>
    %939 = arith.divf %937, %938 : vector<8x32xf32>
    %940 = vector.extract_strided_slice %930 {offsets = [0, 32], sizes = [8, 32], strides = [1, 1]} : vector<8x96xf32> to vector<8x32xf32>
    %941 = vector.extract_strided_slice %931 {offsets = [0, 32], sizes = [8, 32], strides = [1, 1]} : vector<8x96xf32> to vector<8x32xf32>
    %942 = arith.addf %940, %941 : vector<8x32xf32>
    %943 = arith.negf %942 : vector<8x32xf32>
    %944 = math.exp %943 : vector<8x32xf32>
    %cst_184 = arith.constant 1.000000e+00 : f32
    %945 = vector.broadcast %cst_184 : f32 to vector<8x32xf32>
    %946 = arith.addf %945, %944 : vector<8x32xf32>
    %947 = arith.divf %945, %946 : vector<8x32xf32>
    %948 = vector.extract_strided_slice %930 {offsets = [0, 64], sizes = [8, 32], strides = [1, 1]} : vector<8x96xf32> to vector<8x32xf32>
    %949 = vector.extract_strided_slice %931 {offsets = [0, 64], sizes = [8, 32], strides = [1, 1]} : vector<8x96xf32> to vector<8x32xf32>
    %950 = arith.addf %949, %339 : vector<8x32xf32>
    %951 = arith.mulf %939, %950 : vector<8x32xf32>
    %952 = arith.addf %948, %951 : vector<8x32xf32>
    %953 = math.tanh %952 : vector<8x32xf32>
    %cst_185 = arith.constant 1.000000e+00 : f32
    %954 = vector.broadcast %cst_185 : f32 to vector<8x32xf32>
    %955 = arith.subf %954, %947 : vector<8x32xf32>
    %956 = arith.mulf %955, %953 : vector<8x32xf32>
    %957 = arith.mulf %947, %876 : vector<8x32xf32>
    %958 = arith.addf %956, %957 : vector<8x32xf32>
    %cst_186 = arith.constant dense<0.000000e+00> : vector<8x96xf32>
    %959 = tpu.matmul %958, %324, %cst_186 {dimension_numbers = #tpu.dot_dimension_numbers<[1], [0], [0], [1], [0, 0, 1, 1], [], []>} : vector<8x32xf32>, vector<32x96xf32>, vector<8x96xf32> -> vector<8x96xf32>
    %960 = arith.addf %959, %342 : vector<8x96xf32>
    %cst_187 = arith.constant dense<0.000000e+00> : vector<8x96xf32>
    %961 = tpu.matmul %906, %325, %cst_187 {dimension_numbers = #tpu.dot_dimension_numbers<[1], [0], [0], [1], [0, 0, 1, 1], [], []>} : vector<8x32xf32>, vector<32x96xf32>, vector<8x96xf32> -> vector<8x96xf32>
    %962 = vector.extract_strided_slice %960 {offsets = [0, 0], sizes = [8, 32], strides = [1, 1]} : vector<8x96xf32> to vector<8x32xf32>
    %963 = vector.extract_strided_slice %961 {offsets = [0, 0], sizes = [8, 32], strides = [1, 1]} : vector<8x96xf32> to vector<8x32xf32>
    %964 = arith.addf %962, %963 : vector<8x32xf32>
    %965 = arith.negf %964 : vector<8x32xf32>
    %966 = math.exp %965 : vector<8x32xf32>
    %cst_188 = arith.constant 1.000000e+00 : f32
    %967 = vector.broadcast %cst_188 : f32 to vector<8x32xf32>
    %968 = arith.addf %967, %966 : vector<8x32xf32>
    %969 = arith.divf %967, %968 : vector<8x32xf32>
    %970 = vector.extract_strided_slice %960 {offsets = [0, 32], sizes = [8, 32], strides = [1, 1]} : vector<8x96xf32> to vector<8x32xf32>
    %971 = vector.extract_strided_slice %961 {offsets = [0, 32], sizes = [8, 32], strides = [1, 1]} : vector<8x96xf32> to vector<8x32xf32>
    %972 = arith.addf %970, %971 : vector<8x32xf32>
    %973 = arith.negf %972 : vector<8x32xf32>
    %974 = math.exp %973 : vector<8x32xf32>
    %cst_189 = arith.constant 1.000000e+00 : f32
    %975 = vector.broadcast %cst_189 : f32 to vector<8x32xf32>
    %976 = arith.addf %975, %974 : vector<8x32xf32>
    %977 = arith.divf %975, %976 : vector<8x32xf32>
    %978 = vector.extract_strided_slice %960 {offsets = [0, 64], sizes = [8, 32], strides = [1, 1]} : vector<8x96xf32> to vector<8x32xf32>
    %979 = vector.extract_strided_slice %961 {offsets = [0, 64], sizes = [8, 32], strides = [1, 1]} : vector<8x96xf32> to vector<8x32xf32>
    %980 = arith.addf %979, %345 : vector<8x32xf32>
    %981 = arith.mulf %969, %980 : vector<8x32xf32>
    %982 = arith.addf %978, %981 : vector<8x32xf32>
    %983 = math.tanh %982 : vector<8x32xf32>
    %cst_190 = arith.constant 1.000000e+00 : f32
    %984 = vector.broadcast %cst_190 : f32 to vector<8x32xf32>
    %985 = arith.subf %984, %977 : vector<8x32xf32>
    %986 = arith.mulf %985, %983 : vector<8x32xf32>
    %987 = arith.mulf %977, %906 : vector<8x32xf32>
    %988 = arith.addf %986, %987 : vector<8x32xf32>
    %cst_191 = arith.constant dense<0.000000e+00> : vector<8x16xf32>
    %989 = tpu.matmul %988, %326, %cst_191 {dimension_numbers = #tpu.dot_dimension_numbers<[1], [0], [0], [1], [0, 0, 1, 1], [], []>} : vector<8x32xf32>, vector<32x16xf32>, vector<8x16xf32> -> vector<8x16xf32>
    %990 = arith.addf %989, %336 : vector<8x16xf32>
    %cst_192 = arith.constant dense<0xFF800000> : vector<8xf32>
    %991 = vector.multi_reduction <maximumf>, %990, %cst_192 [1] : vector<8x16xf32> to vector<8xf32>
    %992 = vector.shape_cast %991 : vector<8xf32> to vector<8x1xf32>
    %993 = vector.broadcast %992 : vector<8x1xf32> to vector<8x16xf32>
    %994 = arith.subf %990, %993 : vector<8x16xf32>
    %995 = math.exp %994 : vector<8x16xf32>
    %cst_193 = arith.constant dense<0.000000e+00> : vector<8xf32>
    %996 = vector.multi_reduction <add>, %995, %cst_193 [1] : vector<8x16xf32> to vector<8xf32>
    %997 = vector.shape_cast %996 : vector<8xf32> to vector<8x1xf32>
    %998 = math.log %997 : vector<8x1xf32>
    %999 = vector.broadcast %998 : vector<8x1xf32> to vector<8x16xf32>
    %1000 = arith.subf %994, %999 : vector<8x16xf32>
    %1001 = tpu.concatenate %436, %518, %600, %682, %764, %846, %928, %1000 in 1 : vector<8x16xf32>, vector<8x16xf32>, vector<8x16xf32>, vector<8x16xf32>, vector<8x16xf32>, vector<8x16xf32>, vector<8x16xf32>, vector<8x16xf32> -> vector<8x128xf32>
    %c0_194 = arith.constant 0 : index
    %c0_195 = arith.constant 0 : index
    %1002 = vector.load %arg3[%c0_194, %c0_195] : memref<8x128xf32, #tpu.memory_space<vmem>>, vector<8x128xf32>
    tpu.vector_store %arg3[%c0_194, %c0_195], %1001 {strides = array<i32>} : memref<8x128xf32, #tpu.memory_space<vmem>>, vector<8x128xf32>,
    return
  }
  func.func @transform_0(%arg0: i32) -> (i32, i32) {
    %c0_i32 = arith.constant 0 : i32
    %c0_i32_0 = arith.constant 0 : i32
    return %arg0, %c0_i32 : i32, i32
  }
  func.func @transform_1(%arg0: i32) -> (i32, i32) {
    %c0_i32 = arith.constant 0 : i32
    %c0_i32_0 = arith.constant 0 : i32
    %c0_i32_1 = arith.constant 0 : i32
    return %c0_i32, %c0_i32_0 : i32, i32
  }
  func.func @transform_2(%arg0: i32) -> (i32, i32) {
    %c0_i32 = arith.constant 0 : i32
    %c0_i32_0 = arith.constant 0 : i32
    return %arg0, %c0_i32 : i32, i32
  }
  func.func @transform_3(%arg0: i32) -> (i32, i32) {
    %c0_i32 = arith.constant 0 : i32
    %c0_i32_0 = arith.constant 0 : i32
    return %arg0, %c0_i32 : i32, i32
  }
}

</mosaic_0001>

<llo_original>
// kernel: tpu_custom_call.1
$region0: #{tpu_custom_call.1}
  #allocation0 [shape = 'u32[]', space=smem, size = 0x4, offset = 0x4, fixed_abs, tag = 'smem constant byte address 0x4 - core index']
  #allocation1 [shape = 'u32[144,128]{1,0:T(1,128)}', space=vmem, size = 0x12000, scoped, tag = 'internal scratch']
  %s0 = inlined_call_operand.vmem [shape: s32[16,8], index: 0, kind: input, shape index: {}]
  %s1 = inlined_call_operand.hbm [shape: f32[48,784], index: 1, kind: input, shape index: {}]
  %s2 = inlined_call_operand.hbm [shape: f32[16,128], index: 2, kind: output, shape index: {0}]
  %s3 = inlined_call_operand.hbm [shape: f32[16,16], index: 3, kind: output, shape index: {1}]
  %4 = xla_tuple %s2, %s3
  %s5 = sld [smem:[#allocation0]]
  $region53: #{tpu_custom_call.1} parent=0
    _
  %s7 = ssub.s32 1, %s5
  %s8 = scalar_select 0, %s7, %s5
  $region1: #{tpu_custom_call.1} parent=0
    #allocation2 [shape = 'u8[172032]{0}', space=vmem, size = 0x2a000, scoped, tag = 'input window, operand 1, single buffered']
    #allocation3 [shape = 's32[2]{0}', space=sflag, size = 0x8, scoped, tag = 'scoped memory for tpu_custom_call.1']
    #allocation4 [shape = 's32[2]{0}', space=sflag, size = 0x8, scoped, tag = 'scoped memory for tpu_custom_call.1']
    #allocation5 [shape = 'u8[8192]{0}', space=vmem, size = 0x2000, scoped, tag = 'output window, operand 0']
    #allocation6 [shape = 'u8[8192]{0}', space=vmem, size = 0x2000, scoped, tag = 'output window, operand 1']
    #allocation7 [shape = 's32[2]{0}', space=sflag, size = 0x8, scoped, tag = 'scoped memory for tpu_custom_call.1']
    %9 = vsyncpa [#allocation3], 0
    %10 = vsyncpa [#allocation4], 0
    %s11 = scalar_lea.sflag [#allocation4], 1
    %12 = vsyncpa %s11, 0
    %13 = vsyncpa [#allocation7], 0
    %s14 = scalar_lea.sflag [#allocation7], 1
    %15 = vsyncpa %s14, 0
    loop: start=0, step=1, limit=4
    $region2: #{tpu_custom_call.1} parent=1 // loop_pre_header
      _
    $region3: #{tpu_custom_call.1} parent=1 // loop_header
      %s17 = sphi 0, %s21
      %p18 = scmp.ge.s32.totalorder %s17, 4
      %s27 = sphi 0, %s29
      %s30 = sphi 0, %s27
      %s31 = sphi 0, %s30
      %s47 = sphi 0, %s31
      %s51 = sphi 0, %s51
      %s53 = sphi 0, %s51
      %s54 = sphi 0, %s53
      %s68 = sphi 0, %s54
      %s74 = sphi 0, %s76
      %s77 = sphi 0, %s74
      %s78 = sphi 0, %s77
      %s94 = sphi 0, %s78
      %s100 = sphi 0, %s102
      %s103 = sphi 0, %s100
      %s104 = sphi 0, %s103
      %s120 = sphi 0, %s104
    $region4: #{tpu_custom_call.1} parent=1 // loop_header_branch
      %20 = sbr.rel (%p18) target = $region8
    $region5: #{tpu_custom_call.1} parent=1 // loop_body
      %s22 = ssub.s32 %s17, 1
      %s23 = ssub.s32 %s17, 2
      %s24 = sadd.s32 %s17, 1
      %s25 = ssub.s32 %s17, %s24
      %p26 = scmp.eq.s32.totalorder %s25, 0
      %s28 = sadd.s32 %s27, 1
      %s29 = scalar_select %p26, %s27, %s28
      %p32 = pneg %p26
      %p33 = scmp.eq.s32.totalorder %s17, 1
      %p34 = por %p32, %p33
      %p35 = scmp.ne.s32.totalorder %s27, %s30
      %p36 = scmp.eq.s32.totalorder %s17, 0
      %p37 = por %p35, %p36
      %p38 = scmp.ne.s32.totalorder %s27, %s30
      %p39 = scmp.eq.s32.totalorder %s22, 1
      %p40 = por %p38, %p39
      %p41 = scmp.ne.s32.totalorder %s30, %s31
      %p42 = scmp.eq.s32.totalorder %s22, 0
      %p43 = por %p41, %p42
      %p44 = scmp.ne.s32.totalorder %s30, %s31
      %p45 = scmp.eq.s32.totalorder %s23, 1
      %p46 = por %p44, %p45
      %p48 = scmp.ne.s32.totalorder %s31, %s47
      %p49 = scmp.eq.s32.totalorder %s23, 0
      %p50 = por %p48, %p49
      %s52 = sadd.s32 %s51, 1
      %p55 = scmp.eq.s32.totalorder %s17, 1
      %p56 = scmp.ne.s32.totalorder %s51, %s53
      %p57 = scmp.eq.s32.totalorder %s17, 0
      %p58 = por %p56, %p57
      %p59 = scmp.ne.s32.totalorder %s51, %s53
      %p60 = scmp.eq.s32.totalorder %s22, 1
      %p61 = por %p59, %p60
      %p62 = scmp.ne.s32.totalorder %s53, %s54
      %p63 = scmp.eq.s32.totalorder %s22, 0
      %p64 = por %p62, %p63
      %p65 = scmp.ne.s32.totalorder %s53, %s54
      %p66 = scmp.eq.s32.totalorder %s23, 1
      %p67 = por %p65, %p66
      %p69 = scmp.ne.s32.totalorder %s54, %s68
      %p70 = scmp.eq.s32.totalorder %s23, 0
      %p71 = por %p69, %p70
      %s72 = ssub.s32 %s17, %s24
      %p73 = scmp.eq.s32.totalorder %s72, 0
      %s75 = sadd.s32 %s74, 1
      %s76 = scalar_select %p73, %s74, %s75
      %p79 = pneg %p73
      %p80 = scmp.eq.s32.totalorder %s17, 1
      %p81 = por %p79, %p80
      %p82 = scmp.ne.s32.totalorder %s74, %s77
      %p83 = scmp.eq.s32.totalorder %s17, 0
      %p84 = por %p82, %p83
      %p85 = scmp.ne.s32.totalorder %s74, %s77
      %p86 = scmp.eq.s32.totalorder %s22, 1
      %p87 = por %p85, %p86
      %p88 = scmp.ne.s32.totalorder %s77, %s78
      %p89 = scmp.eq.s32.totalorder %s22, 0
      %p90 = por %p88, %p89
      %p91 = scmp.ne.s32.totalorder %s77, %s78
      %p92 = scmp.eq.s32.totalorder %s23, 1
      %p93 = por %p91, %p92
      %p95 = scmp.ne.s32.totalorder %s78, %s94
      %p96 = scmp.eq.s32.totalorder %s23, 0
      %p97 = por %p95, %p96
      %s98 = ssub.s32 %s17, %s24
      %p99 = scmp.eq.s32.totalorder %s98, 0
      %s101 = sadd.s32 %s100, 1
      %s102 = scalar_select %p99, %s100, %s101
      %p105 = pneg %p99
      %p106 = scmp.eq.s32.totalorder %s17, 1
      %p107 = por %p105, %p106
      %p108 = scmp.ne.s32.totalorder %s100, %s103
      %p109 = scmp.eq.s32.totalorder %s17, 0
      %p110 = por %p108, %p109
      %p111 = scmp.ne.s32.totalorder %s100, %s103
      %p112 = scmp.eq.s32.totalorder %s22, 1
      %p113 = por %p111, %p112
      %p114 = scmp.ne.s32.totalorder %s103, %s104
      %p115 = scmp.eq.s32.totalorder %s22, 0
      %p116 = por %p114, %p115
      %p117 = scmp.ne.s32.totalorder %s103, %s104
      %p118 = scmp.eq.s32.totalorder %s23, 1
      %p119 = por %p117, %p118
      %p121 = scmp.ne.s32.totalorder %s104, %s120
      %p122 = scmp.eq.s32.totalorder %s23, 0
      %p123 = por %p121, %p122
      %p124 = scmp.le.s32.totalorder 1, %s17
      %p125 = scmp.lt.s32.totalorder %s17, 3
      %p126 = pnand %p124, %p125
      %p127 = pneg %p126
      // Predicated region
      $region9: #{tpu_custom_call.1} parent=5 // pred_check
        _
      $region10: #{tpu_custom_call.1} parent=5 // pred_check_branch
        %129 = sbr.rel (%p126) target = $region12
      $region11: #{tpu_custom_call.1} parent=5 // pred_region
        %s130 = ssub.s32 %s17, 1
        // Predicated region
        $region13: #{tpu_custom_call.1} parent=11 // pred_check
          %p131 = pneg %p64
        $region14: #{tpu_custom_call.1} parent=11 // pred_check_branch
          %133 = sbr.rel (%p131) target = $region16
        $region15: #{tpu_custom_call.1} parent=11 // pred_region
          %s135 = ssub.s32 5376, 5376
          %136 = vsyncadd [#allocation3], %s135
          %s137 = sshll.u32 [#allocation2], 4
          %s138 = int_to_ptr.vmem [resolvable:$true] %s137
          %143 = dma.hbm_to_vmem [thread:$0]  %s1, 5376, %s138, [#allocation3], 896, 896, 56
        $region16: #{tpu_custom_call.1} parent=11 // pred_fallthru
          _
      $region12: #{tpu_custom_call.1} parent=5 // pred_fallthru
        _
      %p144 = scmp.lt.s32.totalorder %s17, 2
      // Predicated region
      $region17: #{tpu_custom_call.1} parent=5 // pred_check
        %p145 = pneg %p144
      $region18: #{tpu_custom_call.1} parent=5 // pred_check_branch
        %147 = sbr.rel (%p145) target = $region20
      $region19: #{tpu_custom_call.1} parent=5 // pred_region
        // Predicated region
        $region21: #{tpu_custom_call.1} parent=19 // pred_check
          %p148 = pneg %p37
        $region22: #{tpu_custom_call.1} parent=19 // pred_check_branch
          %150 = sbr.rel (%p148) target = $region24
        $region23: #{tpu_custom_call.1} parent=19 // pred_region
          %p151 = scmp.lt.s32.totalorder %s17, 1
          %s152 = scalar_select %p151, %s17, 1
          %s153 = smul.addr %s152, 8
          %s154 = scalar_lea.vmem %s0, %s153
        $region24: #{tpu_custom_call.1} parent=19 // pred_fallthru
          _
      $region20: #{tpu_custom_call.1} parent=5 // pred_fallthru
        _
      %p155 = scmp.le.s32.totalorder 1, %s17
      %p156 = scmp.lt.s32.totalorder %s17, 3
      %p157 = pnand %p155, %p156
      %p158 = pneg %p157
      // Predicated region
      $region25: #{tpu_custom_call.1} parent=5 // pred_check
        _
      $region26: #{tpu_custom_call.1} parent=5 // pred_check_branch
        %160 = sbr.rel (%p157) target = $region28
      $region27: #{tpu_custom_call.1} parent=5 // pred_region
        %s161 = ssub.s32 %s17, 1
        // Predicated region
        $region29: #{tpu_custom_call.1} parent=27 // pred_check
          %p162 = pneg %p64
        $region30: #{tpu_custom_call.1} parent=27 // pred_check_branch
          %164 = sbr.rel (%p162) target = $region32
        $region31: #{tpu_custom_call.1} parent=27 // pred_region
          %165 = dma.done [#allocation3], 5376
        $region32: #{tpu_custom_call.1} parent=27 // pred_fallthru
          _
        %p166 = scmp.lt.s32.totalorder %s22, 1
        %s167 = scalar_select %p166, %s22, 1
        %s168 = smul.addr %s167, 8
        %s169 = scalar_lea.vmem %s0, %s168
        %p170 = pneg %p43
        %p171 = pneg %p40
        %p172 = pneg %p64
        %p173 = pneg %p61
        %p174 = pneg %p90
        %p175 = pneg %p87
        %s176 = sand.u32 %s77, 1
        %s177 = scalar_lea.sflag [#allocation4], %s176
        %s178 = sand.u32 %s77, 1
        %s179 = smul.addr %s178, 8
        %s180 = scalar_lea.vmem [#allocation5], %s179
        %p181 = pneg %p116
        %p182 = pneg %p113
        %s183 = sand.u32 %s103, 1
        %s184 = scalar_lea.sflag [#allocation7], %s183
        %s185 = sand.u32 %s103, 1
        %s186 = smul.addr %s185, 8
        %s187 = scalar_lea.vmem [#allocation6], %s186
        %p188 = scmp.lt.s32.totalorder %s22, 1
        %s189 = scalar_select %p188, %s22, 1
        %s190 = smul.addr %s189, 8
        %s191 = scalar_lea.vmem %s0, %s190
        %v192 = vld [vmem:[%s191] sm:$0xff]
        %v193 = vlaneseq
        %v194 = vand.u32 %v193, 127
        %v195 = vld [vmem:[#allocation2 + $0xe0] sm:$0xff]
        %v196 = vld [vmem:[#allocation2 + $0x118] sm:$0xff]
        %v197 = vld [vmem:[#allocation2] sm:$0xff]
        %v198 = vld [vmem:[#allocation2 + $0x38] sm:$0xff]
        %v199 = vld [vmem:[#allocation2 + $0x70] sm:$0xff]
        %v200 = vld [vmem:[#allocation2 + $0xa8] sm:$0xff]
        %v201 = vld [vmem:[#allocation2 + $0x120] ss:$0 sm:$0xff]
        %v202 = vld [vmem:[#allocation2 + $0x128] ss:$0 sm:$0xff]
        %205 = vrot.lane.b32.xlu0 %v201, 48
        %v206 = vpop.permute.xlu0 %205
        %207 = vrot.lane.b32.xlu0 %v202, 48
        %v208 = vpop.permute.xlu0 %207
        %vm209 = vcmask 392192
        %v210 = vsel %vm209, %v206, %v208
        %vm212 = vcmask 261120
        %v214 = vsel %vm212, %v195, 0
        %v217 = vsel %vm212, %v196, 0
        %219 = vmatprep.subr.mxu0 0.0
        %220 = vmatpush1.msra.mxu0 %v197
        %221 = vmatprep.subr.mxu0 0.0
        %222 = vmatpush1.msra.mxu0 %v198
        %223 = vmatprep.subr.mxu0 0.0
        %224 = vmatpush1.msra.mxu0 %v199
        %225 = vmatprep.subr.mxu0 0.0
        %226 = vmatpush1.msra.mxu0 %v200
        %227 = vmatprep.subr.mxu0 0.0
        %228 = vmatpush1.msra.mxu0 0.0
        %229 = vmatprep.subr.mxu0 0.0
        %230 = vmatpush1.msra.mxu0 0.0
        %231 = vmatprep.subr.mxu0 0.0
        %232 = vmatpush1.msra.mxu0 0.0
        %233 = vmatprep.subr.mxu0 0.0
        %234 = vmatpush1.msra.mxu0 0.0
        %235 = vmatprep.subr.mxu0 0.0
        %236 = vmatpush1.msra.mxu0 0.0
        %237 = vmatprep.subr.mxu0 0.0
        %238 = vmatpush1.msra.mxu0 0.0
        %239 = vmatprep.subr.mxu0 0.0
        %240 = vmatpush1.msra.mxu0 0.0
        %241 = vmatprep.subr.mxu0 0.0
        %242 = vmatpush1.msra.mxu0 0.0
        %243 = vmatprep.subr.mxu0 0.0
        %244 = vmatpush1.msra.mxu0 0.0
        %245 = vmatprep.subr.mxu0 0.0
        %246 = vmatpush1.msra.mxu0 0.0
        %247 = vmatprep.subr.mxu0 0.0
        %248 = vmatpush1.msra.mxu0 0.0
        %249 = vmatprep.subr.mxu0 0.0
        %250 = vmatpush1.msra.mxu0 0.0
        %251 = vmatprep.subr.mxu0 0.0
        %252 = vmatpush1.msra.mxu0 0.0
        %253 = vmatprep.subr.mxu0 0.0
        %254 = vmatpush1.msra.mxu0 0.0
        %255 = vmatprep.subr.mxu0 0.0
        %256 = vmatpush1.msra.mxu0 0.0
        %257 = vmatprep.subr.mxu0 0.0
        %258 = vmatpush1.msra.mxu0 0.0
        %259 = vmatprep.subr.mxu0 0.0
        %260 = vmatpush1.msra.mxu0 0.0
        %261 = vmatprep.subr.mxu0 0.0
        %262 = vmatpush1.msra.mxu0 0.0
        %263 = vmatprep.subr.mxu0 0.0
        %264 = vmatpush1.msra.mxu0 0.0
        %265 = vmatprep.subr.mxu0 0.0
        %266 = vmatpush1.msra.mxu0 0.0
        %267 = vmatprep.subr.mxu0 0.0
        %268 = vmatpush1.msra.mxu0 0.0
        %269 = vmatprep.subr.mxu0 0.0
        %270 = vmatpush1.msra.mxu0 0.0
        %271 = vmatprep.subr.mxu0 0.0
        %272 = vmatpush1.msra.mxu0 0.0
        %273 = vmatprep.subr.mxu0 0.0
        %274 = vmatpush1.msra.mxu0 0.0
        %275 = vmatprep.subr.mxu0 0.0
        %276 = vmatpush1.msra.mxu0 0.0
        %277 = vmatprep.subr.mxu0 0.0
        %278 = vmatpush1.msra.mxu0 0.0
        %279 = vmatprep.subr.mxu0 0.0
        %280 = vmatpush1.msra.mxu0 0.0
        %281 = vmatprep.subr.mxu0 0.0
        %282 = vmatpush1.msra.mxu0 0.0
        %283 = vmatprep.mubr.f32.mxu0 0.0
        %284 = vmatmul.mubr.f32.gmra.mrb[0].mxu0 %v214
        %v285 = vpop.f32.mrb[0].mxu0
        %v286 = vadd.f32 %v210, %v285
        %v287 = vpop.f32.mrb[0].mxu0
        %288 = vmatprep.mubr.f32.mxu0 0.0
        %289 = vmatmul.mubr.f32.gmra.mrb[0].mxu0 %v217
        %v290 = vpop.f32.mrb[0].mxu0
        %v291 = vadd.f32 %v210, %v290
        %v292 = vpop.f32.mrb[0].mxu0
        %293 = vdwg.mxu0
        %v294 = vld [vmem:[#allocation2] sm:$0xff]
        %v295 = vld [vmem:[#allocation2 + $0x8] sm:$0xff]
        %v296 = vld [vmem:[#allocation2 + $0x38] sm:$0xff]
        %v297 = vld [vmem:[#allocation2 + $0x40] sm:$0xff]
        %v298 = vld [vmem:[#allocation2 + $0x70] sm:$0xff]
        %v299 = vld [vmem:[#allocation2 + $0x78] sm:$0xff]
        %v300 = vld [vmem:[#allocation2 + $0xa8] sm:$0xff]
        %v301 = vld [vmem:[#allocation2 + $0xb0] sm:$0xff]
        %302 = vset.pattern.permute.xlu0 0
        %303 = vperm.xlu0 %302, %v192
        %v304 = vpop.permute.xlu0 %303
        %vm305 = vcmp.eq.s32.totalorder %v194, %v304
        %v306 = vsel %vm305, 1, 0
        %v307 = vcvt.s32.f32 %v306
        %308 = vset.pattern.permute.xlu0 1
        %309 = vperm.xlu0 %308, %v192
        %v310 = vpop.permute.xlu0 %309
        %vm311 = vcmp.eq.s32.totalorder %v194, %v310
        %v312 = vsel %vm311, 1, 0
        %v313 = vcvt.s32.f32 %v312
        %314 = vset.pattern.permute.xlu0 2
        %315 = vperm.xlu0 %314, %v192
        %v316 = vpop.permute.xlu0 %315
        %vm317 = vcmp.eq.s32.totalorder %v194, %v316
        %v318 = vsel %vm317, 1, 0
        %v319 = vcvt.s32.f32 %v318
        %320 = vset.pattern.permute.xlu0 3
        %321 = vperm.xlu0 %320, %v192
        %v322 = vpop.permute.xlu0 %321
        %vm323 = vcmp.eq.s32.totalorder %v194, %v322
        %v324 = vsel %vm323, 1, 0
        %v325 = vcvt.s32.f32 %v324
        %326 = vset.pattern.permute.xlu0 4
        %327 = vperm.xlu0 %326, %v192
        %v328 = vpop.permute.xlu0 %327
        %vm329 = vcmp.eq.s32.totalorder %v194, %v328
        %v330 = vsel %vm329, 1, 0
        %v331 = vcvt.s32.f32 %v330
        %332 = vset.pattern.permute.xlu0 5
        %333 = vperm.xlu0 %332, %v192
        %v334 = vpop.permute.xlu0 %333
        %vm335 = vcmp.eq.s32.totalorder %v194, %v334
        %v336 = vsel %vm335, 1, 0
        %v337 = vcvt.s32.f32 %v336
        %338 = vset.pattern.permute.xlu0 6
        %339 = vperm.xlu0 %338, %v192
        %v340 = vpop.permute.xlu0 %339
        %vm341 = vcmp.eq.s32.totalorder %v194, %v340
        %v342 = vsel %vm341, 1, 0
        %v343 = vcvt.s32.f32 %v342
        %344 = vset.pattern.permute.xlu0 7
        %345 = vperm.xlu0 %344, %v192
        %v346 = vpop.permute.xlu0 %345
        %vm347 = vcmp.eq.s32.totalorder %v194, %v346
        %v348 = vsel %vm347, 1, 0
        %v349 = vcvt.s32.f32 %v348
        %vm350 = vcmask 130048
        %v352 = vsel %vm350, %v307, 0
        %v355 = vsel %vm350, %v313, 0
        %v358 = vsel %vm350, %v319, 0
        %v361 = vsel %vm350, %v325, 0
        %v364 = vsel %vm350, %v331, 0
        %v367 = vsel %vm350, %v337, 0
        %v370 = vsel %vm350, %v343, 0
        %v373 = vsel %vm350, %v349, 0
        %375 = vmatprep.subr.mxu0 0.0
        %376 = vmatpush1.msra.mxu0 %v286
        %377 = vmatprep.subr.mxu0 0.0
        %378 = vmatpush1.msra.mxu0 %v291
        %379 = vmatprep.subr.mxu0 0.0
        %380 = vmatpush1.msra.mxu0 0.0
        %381 = vmatprep.subr.mxu0 0.0
        %382 = vmatpush1.msra.mxu0 0.0
        %383 = vmatprep.subr.mxu0 0.0
        %384 = vmatpush1.msra.mxu0 0.0
        %385 = vmatprep.subr.mxu0 0.0
        %386 = vmatpush1.msra.mxu0 0.0
        %387 = vmatprep.subr.mxu0 0.0
        %388 = vmatpush1.msra.mxu0 0.0
        %389 = vmatprep.subr.mxu0 0.0
        %390 = vmatpush1.msra.mxu0 0.0
        %391 = vmatprep.subr.mxu0 0.0
        %392 = vmatpush1.msra.mxu0 0.0
        %393 = vmatprep.subr.mxu0 0.0
        %394 = vmatpush1.msra.mxu0 0.0
        %395 = vmatprep.subr.mxu0 0.0
        %396 = vmatpush1.msra.mxu0 0.0
        %397 = vmatprep.subr.mxu0 0.0
        %398 = vmatpush1.msra.mxu0 0.0
        %399 = vmatprep.subr.mxu0 0.0
        %400 = vmatpush1.msra.mxu0 0.0
        %401 = vmatprep.subr.mxu0 0.0
        %402 = vmatpush1.msra.mxu0 0.0
        %403 = vmatprep.subr.mxu0 0.0
        %404 = vmatpush1.msra.mxu0 0.0
        %405 = vmatprep.subr.mxu0 0.0
        %406 = vmatpush1.msra.mxu0 0.0
        %407 = vmatprep.subr.mxu0 0.0
        %408 = vmatpush1.msra.mxu0 0.0
        %409 = vmatprep.subr.mxu0 0.0
        %410 = vmatpush1.msra.mxu0 0.0
        %411 = vmatprep.subr.mxu0 0.0
        %412 = vmatpush1.msra.mxu0 0.0
        %413 = vmatprep.subr.mxu0 0.0
        %414 = vmatpush1.msra.mxu0 0.0
        %415 = vmatprep.subr.mxu0 0.0
        %416 = vmatpush1.msra.mxu0 0.0
        %417 = vmatprep.subr.mxu0 0.0
        %418 = vmatpush1.msra.mxu0 0.0
        %419 = vmatprep.subr.mxu0 0.0
        %420 = vmatpush1.msra.mxu0 0.0
        %421 = vmatprep.subr.mxu0 0.0
        %422 = vmatpush1.msra.mxu0 0.0
        %423 = vmatprep.subr.mxu0 0.0
        %424 = vmatpush1.msra.mxu0 0.0
        %425 = vmatprep.subr.mxu0 0.0
        %426 = vmatpush1.msra.mxu0 0.0
        %427 = vmatprep.subr.mxu0 0.0
        %428 = vmatpush1.msra.mxu0 0.0
        %429 = vmatprep.subr.mxu0 0.0
        %430 = vmatpush1.msra.mxu0 0.0
        %431 = vmatprep.subr.mxu0 0.0
        %432 = vmatpush1.msra.mxu0 0.0
        %433 = vmatprep.subr.mxu0 0.0
        %434 = vmatpush1.msra.mxu0 0.0
        %435 = vmatprep.subr.mxu0 0.0
        %436 = vmatpush1.msra.mxu0 0.0
        %437 = vmatprep.subr.mxu0 0.0
        %438 = vmatpush1.msra.mxu0 0.0
        %439 = vmatprep.mubr.f32.mxu0 0.0
        %440 = vmatmul.mubr.f32.gmra.mrb[0].mxu0 %v352
        %v441 = vpop.f32.mrb[0].mxu0
        %v442 = vadd.f32 0.0, %v441
        %v443 = vpop.f32.mrb[0].mxu0
        %444 = vmatprep.mubr.f32.mxu0 0.0
        %445 = vmatmul.mubr.f32.gmra.mrb[0].mxu0 %v355
        %v446 = vpop.f32.mrb[0].mxu0
        %v447 = vadd.f32 0.0, %v446
        %v448 = vpop.f32.mrb[0].mxu0
        %449 = vmatprep.mubr.f32.mxu0 0.0
        %450 = vmatmul.mubr.f32.gmra.mrb[0].mxu0 %v358
        %v451 = vpop.f32.mrb[0].mxu0
        %v452 = vadd.f32 0.0, %v451
        %v453 = vpop.f32.mrb[0].mxu0
        %454 = vmatprep.mubr.f32.mxu0 0.0
        %455 = vmatmul.mubr.f32.gmra.mrb[0].mxu0 %v361
        %v456 = vpop.f32.mrb[0].mxu0
        %v457 = vadd.f32 0.0, %v456
        %v458 = vpop.f32.mrb[0].mxu0
        %459 = vmatprep.mubr.f32.mxu0 0.0
        %460 = vmatmul.mubr.f32.gmra.mrb[0].mxu0 %v364
        %v461 = vpop.f32.mrb[0].mxu0
        %v462 = vadd.f32 0.0, %v461
        %v463 = vpop.f32.mrb[0].mxu0
        %464 = vmatprep.mubr.f32.mxu0 0.0
        %465 = vmatmul.mubr.f32.gmra.mrb[0].mxu0 %v367
        %v466 = vpop.f32.mrb[0].mxu0
        %v467 = vadd.f32 0.0, %v466
        %v468 = vpop.f32.mrb[0].mxu0
        %469 = vmatprep.mubr.f32.mxu0 0.0
        %470 = vmatmul.mubr.f32.gmra.mrb[0].mxu0 %v370
        %v471 = vpop.f32.mrb[0].mxu0
        %v472 = vadd.f32 0.0, %v471
        %v473 = vpop.f32.mrb[0].mxu0
        %474 = vmatprep.mubr.f32.mxu0 0.0
        %475 = vmatmul.mubr.f32.gmra.mrb[0].mxu0 %v373
        %v476 = vpop.f32.mrb[0].mxu0
        %v477 = vadd.f32 0.0, %v476
        %v478 = vpop.f32.mrb[0].mxu0
        %479 = vdwg.mxu0
        %488 = vrot.lane.b32.xlu0 %v294, 32
        %v489 = vpop.permute.xlu0 %488
        %490 = vrot.lane.b32.xlu0 %v295, 32
        %v491 = vpop.permute.xlu0 %490
        %492 = vrot.lane.b32.xlu0 %v296, 32
        %v493 = vpop.permute.xlu0 %492
        %494 = vrot.lane.b32.xlu0 %v297, 32
        %v495 = vpop.permute.xlu0 %494
        %496 = vrot.lane.b32.xlu0 %v298, 32
        %v497 = vpop.permute.xlu0 %496
        %498 = vrot.lane.b32.xlu0 %v299, 32
        %v499 = vpop.permute.xlu0 %498
        %500 = vrot.lane.b32.xlu0 %v300, 32
        %v501 = vpop.permute.xlu0 %500
        %502 = vrot.lane.b32.xlu0 %v301, 32
        %v503 = vpop.permute.xlu0 %502
        %v504 = vsel %vm212, %v489, %v491
        %v505 = vsel %vm212, %v493, %v495
        %v506 = vsel %vm212, %v497, %v499
        %v507 = vsel %vm212, %v501, %v503
        %v513 = vsel %vm212, 0.0, 0
        %515 = vmatprep.subr.mxu0 0.0
        %516 = vmatpush1.msra.mxu0 %v504
        %517 = vmatprep.subr.mxu0 0.0
        %518 = vmatpush1.msra.mxu0 %v505
        %519 = vmatprep.subr.mxu0 0.0
        %520 = vmatpush1.msra.mxu0 %v506
        %521 = vmatprep.subr.mxu0 0.0
        %522 = vmatpush1.msra.mxu0 %v507
        %523 = vmatprep.subr.mxu0 0.0
        %524 = vmatpush1.msra.mxu0 0.0
        %525 = vmatprep.subr.mxu0 0.0
        %526 = vmatpush1.msra.mxu0 0.0
        %527 = vmatprep.subr.mxu0 0.0
        %528 = vmatpush1.msra.mxu0 0.0
        %529 = vmatprep.subr.mxu0 0.0
        %530 = vmatpush1.msra.mxu0 0.0
        %531 = vmatprep.subr.mxu0 0.0
        %532 = vmatpush1.msra.mxu0 0.0
        %533 = vmatprep.subr.mxu0 0.0
        %534 = vmatpush1.msra.mxu0 0.0
        %535 = vmatprep.subr.mxu0 0.0
        %536 = vmatpush1.msra.mxu0 0.0
        %537 = vmatprep.subr.mxu0 0.0
        %538 = vmatpush1.msra.mxu0 0.0
        %539 = vmatprep.subr.mxu0 0.0
        %540 = vmatpush1.msra.mxu0 0.0
        %541 = vmatprep.subr.mxu0 0.0
        %542 = vmatpush1.msra.mxu0 0.0
        %543 = vmatprep.subr.mxu0 0.0
        %544 = vmatpush1.msra.mxu0 0.0
        %545 = vmatprep.subr.mxu0 0.0
        %546 = vmatpush1.msra.mxu0 0.0
        %547 = vmatprep.subr.mxu0 0.0
        %548 = vmatpush1.msra.mxu0 0.0
        %549 = vmatprep.subr.mxu0 0.0
        %550 = vmatpush1.msra.mxu0 0.0
        %551 = vmatprep.subr.mxu0 0.0
        %552 = vmatpush1.msra.mxu0 0.0
        %553 = vmatprep.subr.mxu0 0.0
        %554 = vmatpush1.msra.mxu0 0.0
        %555 = vmatprep.subr.mxu0 0.0
        %556 = vmatpush1.msra.mxu0 0.0
        %557 = vmatprep.subr.mxu0 0.0
        %558 = vmatpush1.msra.mxu0 0.0
        %559 = vmatprep.subr.mxu0 0.0
        %560 = vmatpush1.msra.mxu0 0.0
        %561 = vmatprep.subr.mxu0 0.0
        %562 = vmatpush1.msra.mxu0 0.0
        %563 = vmatprep.subr.mxu0 0.0
        %564 = vmatpush1.msra.mxu0 0.0
        %565 = vmatprep.subr.mxu0 0.0
        %566 = vmatpush1.msra.mxu0 0.0
        %567 = vmatprep.subr.mxu0 0.0
        %568 = vmatpush1.msra.mxu0 0.0
        %569 = vmatprep.subr.mxu0 0.0
        %570 = vmatpush1.msra.mxu0 0.0
        %571 = vmatprep.subr.mxu0 0.0
        %572 = vmatpush1.msra.mxu0 0.0
        %573 = vmatprep.subr.mxu0 0.0
        %574 = vmatpush1.msra.mxu0 0.0
        %575 = vmatprep.subr.mxu0 0.0
        %576 = vmatpush1.msra.mxu0 0.0
        %577 = vmatprep.subr.mxu0 0.0
        %578 = vmatpush1.msra.mxu0 0.0
        %579 = vmatprep.mubr.f32.mxu0 0.0
        %580 = vmatmul.mubr.f32.gmra.mrb[0].mxu0 %v513
        %v581 = vpop.f32.mrb[0].mxu0
        %v582 = vadd.f32 0.0, %v581
        %v583 = vpop.f32.mrb[0].mxu0
        %584 = vdwg.mxu0
        %v585 = vadd.f32 %v442, %v582
        %v586 = vxor.u32 %v585, 2147483648
        %v587 = vmul.f32 %v586, 1.442695
        %v588 = vpow.pop %v587
        %v589 = vadd.f32 %v588, 1.0
        %v590 = vrcp.pop %v589
        %v591 = vmul.f32 1.0, %v590
        %592 = vrot.lane.b32.xlu0 %v202, 16
        %v593 = vpop.permute.xlu0 %592
        %v595 = vadd.f32 %v582, %v593
        %597 = vrot.lane.b32.xlu0 %v595, 64
        %v598 = vpop.permute.xlu0 %597
        %v600 = vmul.f32 %v591, %v598
        %602 = vrot.lane.b32.xlu0 %v600, 64
        %v603 = vpop.permute.xlu0 %602
        %v605 = vadd.f32 %v442, %v603
        %v606 = vtanh.pop %v605
        %v607 = vsub.f32 1.0, %v591
        %609 = vrot.lane.b32.xlu0 %v606, 96
        %v610 = vpop.permute.xlu0 %609
        %v612 = vmul.f32 %v607, %v610
        %v613 = vmul.f32 %v591, 0.0
        %v614 = vadd.f32 %v612, %v613
        %616 = vrot.lane.b32.xlu0 %v614, 96
        %v617 = vpop.permute.xlu0 %616
        %v618 = vsel %vm212, %v617, 0
        %620 = vmatprep.subr.mxu0 0.0
        %621 = vmatpush1.msra.mxu0 %v504
        %622 = vmatprep.subr.mxu0 0.0
        %623 = vmatpush1.msra.mxu0 %v505
        %624 = vmatprep.subr.mxu0 0.0
        %625 = vmatpush1.msra.mxu0 %v506
        %626 = vmatprep.subr.mxu0 0.0
        %627 = vmatpush1.msra.mxu0 %v507
        %628 = vmatprep.subr.mxu0 0.0
        %629 = vmatpush1.msra.mxu0 0.0
        %630 = vmatprep.subr.mxu0 0.0
        %631 = vmatpush1.msra.mxu0 0.0
        %632 = vmatprep.subr.mxu0 0.0
        %633 = vmatpush1.msra.mxu0 0.0
        %634 = vmatprep.subr.mxu0 0.0
        %635 = vmatpush1.msra.mxu0 0.0
        %636 = vmatprep.subr.mxu0 0.0
        %637 = vmatpush1.msra.mxu0 0.0
        %638 = vmatprep.subr.mxu0 0.0
        %639 = vmatpush1.msra.mxu0 0.0
        %640 = vmatprep.subr.mxu0 0.0
        %641 = vmatpush1.msra.mxu0 0.0
        %642 = vmatprep.subr.mxu0 0.0
        %643 = vmatpush1.msra.mxu0 0.0
        %644 = vmatprep.subr.mxu0 0.0
        %645 = vmatpush1.msra.mxu0 0.0
        %646 = vmatprep.subr.mxu0 0.0
        %647 = vmatpush1.msra.mxu0 0.0
        %648 = vmatprep.subr.mxu0 0.0
        %649 = vmatpush1.msra.mxu0 0.0
        %650 = vmatprep.subr.mxu0 0.0
        %651 = vmatpush1.msra.mxu0 0.0
        %652 = vmatprep.subr.mxu0 0.0
        %653 = vmatpush1.msra.mxu0 0.0
        %654 = vmatprep.subr.mxu0 0.0
        %655 = vmatpush1.msra.mxu0 0.0
        %656 = vmatprep.subr.mxu0 0.0
        %657 = vmatpush1.msra.mxu0 0.0
        %658 = vmatprep.subr.mxu0 0.0
        %659 = vmatpush1.msra.mxu0 0.0
        %660 = vmatprep.subr.mxu0 0.0
        %661 = vmatpush1.msra.mxu0 0.0
        %662 = vmatprep.subr.mxu0 0.0
        %663 = vmatpush1.msra.mxu0 0.0
        %664 = vmatprep.subr.mxu0 0.0
        %665 = vmatpush1.msra.mxu0 0.0
        %666 = vmatprep.subr.mxu0 0.0
        %667 = vmatpush1.msra.mxu0 0.0
        %668 = vmatprep.subr.mxu0 0.0
        %669 = vmatpush1.msra.mxu0 0.0
        %670 = vmatprep.subr.mxu0 0.0
        %671 = vmatpush1.msra.mxu0 0.0
        %672 = vmatprep.subr.mxu0 0.0
        %673 = vmatpush1.msra.mxu0 0.0
        %674 = vmatprep.subr.mxu0 0.0
        %675 = vmatpush1.msra.mxu0 0.0
        %676 = vmatprep.subr.mxu0 0.0
        %677 = vmatpush1.msra.mxu0 0.0
        %678 = vmatprep.subr.mxu0 0.0
        %679 = vmatpush1.msra.mxu0 0.0
        %680 = vmatprep.subr.mxu0 0.0
        %681 = vmatpush1.msra.mxu0 0.0
        %682 = vmatprep.subr.mxu0 0.0
        %683 = vmatpush1.msra.mxu0 0.0
        %684 = vmatprep.mubr.f32.mxu0 0.0
        %685 = vmatmul.mubr.f32.gmra.mrb[0].mxu0 %v618
        %v686 = vpop.f32.mrb[0].mxu0
        %v687 = vadd.f32 0.0, %v686
        %v688 = vpop.f32.mrb[0].mxu0
        %689 = vdwg.mxu0
        %v690 = vadd.f32 %v447, %v687
        %v691 = vxor.u32 %v690, 2147483648
        %v692 = vmul.f32 %v691, 1.442695
        %v693 = vpow.pop %v692
        %v694 = vadd.f32 %v693, 1.0
        %v695 = vrcp.pop %v694
        %v696 = vmul.f32 1.0, %v695
        %v697 = vadd.f32 %v687, %v593
        %699 = vrot.lane.b32.xlu0 %v697, 64
        %v700 = vpop.permute.xlu0 %699
        %v702 = vmul.f32 %v696, %v700
        %704 = vrot.lane.b32.xlu0 %v702, 64
        %v705 = vpop.permute.xlu0 %704
        %v707 = vadd.f32 %v447, %v705
        %v708 = vtanh.pop %v707
        %v709 = vsub.f32 1.0, %v696
        %711 = vrot.lane.b32.xlu0 %v708, 96
        %v712 = vpop.permute.xlu0 %711
        %v714 = vmul.f32 %v709, %v712
        %v715 = vmul.f32 %v696, %v614
        %v716 = vadd.f32 %v714, %v715
        %718 = vrot.lane.b32.xlu0 %v716, 96
        %v719 = vpop.permute.xlu0 %718
        %v720 = vsel %vm212, %v719, 0
        %722 = vmatprep.subr.mxu0 0.0
        %723 = vmatpush1.msra.mxu0 %v504
        %724 = vmatprep.subr.mxu0 0.0
        %725 = vmatpush1.msra.mxu0 %v505
        %726 = vmatprep.subr.mxu0 0.0
        %727 = vmatpush1.msra.mxu0 %v506
        %728 = vmatprep.subr.mxu0 0.0
        %729 = vmatpush1.msra.mxu0 %v507
        %730 = vmatprep.subr.mxu0 0.0
        %731 = vmatpush1.msra.mxu0 0.0
        %732 = vmatprep.subr.mxu0 0.0
        %733 = vmatpush1.msra.mxu0 0.0
        %734 = vmatprep.subr.mxu0 0.0
        %735 = vmatpush1.msra.mxu0 0.0
        %736 = vmatprep.subr.mxu0 0.0
        %737 = vmatpush1.msra.mxu0 0.0
        %738 = vmatprep.subr.mxu0 0.0
        %739 = vmatpush1.msra.mxu0 0.0
        %740 = vmatprep.subr.mxu0 0.0
        %741 = vmatpush1.msra.mxu0 0.0
        %742 = vmatprep.subr.mxu0 0.0
        %743 = vmatpush1.msra.mxu0 0.0
        %744 = vmatprep.subr.mxu0 0.0
        %745 = vmatpush1.msra.mxu0 0.0
        %746 = vmatprep.subr.mxu0 0.0
        %747 = vmatpush1.msra.mxu0 0.0
        %748 = vmatprep.subr.mxu0 0.0
        %749 = vmatpush1.msra.mxu0 0.0
        %750 = vmatprep.subr.mxu0 0.0
        %751 = vmatpush1.msra.mxu0 0.0
        %752 = vmatprep.subr.mxu0 0.0
        %753 = vmatpush1.msra.mxu0 0.0
        %754 = vmatprep.subr.mxu0 0.0
        %755 = vmatpush1.msra.mxu0 0.0
        %756 = vmatprep.subr.mxu0 0.0
        %757 = vmatpush1.msra.mxu0 0.0
        %758 = vmatprep.subr.mxu0 0.0
        %759 = vmatpush1.msra.mxu0 0.0
        %760 = vmatprep.subr.mxu0 0.0
        %761 = vmatpush1.msra.mxu0 0.0
        %762 = vmatprep.subr.mxu0 0.0
        %763 = vmatpush1.msra.mxu0 0.0
        %764 = vmatprep.subr.mxu0 0.0
        %765 = vmatpush1.msra.mxu0 0.0
        %766 = vmatprep.subr.mxu0 0.0
        %767 = vmatpush1.msra.mxu0 0.0
        %768 = vmatprep.subr.mxu0 0.0
        %769 = vmatpush1.msra.mxu0 0.0
        %770 = vmatprep.subr.mxu0 0.0
        %771 = vmatpush1.msra.mxu0 0.0
        %772 = vmatprep.subr.mxu0 0.0
        %773 = vmatpush1.msra.mxu0 0.0
        %774 = vmatprep.subr.mxu0 0.0
        %775 = vmatpush1.msra.mxu0 0.0
        %776 = vmatprep.subr.mxu0 0.0
        %777 = vmatpush1.msra.mxu0 0.0
        %778 = vmatprep.subr.mxu0 0.0
        %779 = vmatpush1.msra.mxu0 0.0
        %780 = vmatprep.subr.mxu0 0.0
        %781 = vmatpush1.msra.mxu0 0.0
        %782 = vmatprep.subr.mxu0 0.0
        %783 = vmatpush1.msra.mxu0 0.0
        %784 = vmatprep.subr.mxu0 0.0
        %785 = vmatpush1.msra.mxu0 0.0
        %786 = vmatprep.mubr.f32.mxu0 0.0
        %787 = vmatmul.mubr.f32.gmra.mrb[0].mxu0 %v720
        %v788 = vpop.f32.mrb[0].mxu0
        %v789 = vadd.f32 0.0, %v788
        %v790 = vpop.f32.mrb[0].mxu0
        %791 = vdwg.mxu0
        %v792 = vadd.f32 %v452, %v789
        %v793 = vxor.u32 %v792, 2147483648
        %v794 = vmul.f32 %v793, 1.442695
        %v795 = vpow.pop %v794
        %v796 = vadd.f32 %v795, 1.0
        %v797 = vrcp.pop %v796
        %v798 = vmul.f32 1.0, %v797
        %v799 = vadd.f32 %v789, %v593
        %801 = vrot.lane.b32.xlu0 %v799, 64
        %v802 = vpop.permute.xlu0 %801
        %v804 = vmul.f32 %v798, %v802
        %806 = vrot.lane.b32.xlu0 %v804, 64
        %v807 = vpop.permute.xlu0 %806
        %v809 = vadd.f32 %v452, %v807
        %v810 = vtanh.pop %v809
        %v811 = vsub.f32 1.0, %v798
        %813 = vrot.lane.b32.xlu0 %v810, 96
        %v814 = vpop.permute.xlu0 %813
        %v816 = vmul.f32 %v811, %v814
        %v817 = vmul.f32 %v798, %v716
        %v818 = vadd.f32 %v816, %v817
        %820 = vrot.lane.b32.xlu0 %v818, 96
        %v821 = vpop.permute.xlu0 %820
        %v822 = vsel %vm212, %v821, 0
        %824 = vmatprep.subr.mxu0 0.0
        %825 = vmatpush1.msra.mxu0 %v504
        %826 = vmatprep.subr.mxu0 0.0
        %827 = vmatpush1.msra.mxu0 %v505
        %828 = vmatprep.subr.mxu0 0.0
        %829 = vmatpush1.msra.mxu0 %v506
        %830 = vmatprep.subr.mxu0 0.0
        %831 = vmatpush1.msra.mxu0 %v507
        %832 = vmatprep.subr.mxu0 0.0
        %833 = vmatpush1.msra.mxu0 0.0
        %834 = vmatprep.subr.mxu0 0.0
        %835 = vmatpush1.msra.mxu0 0.0
        %836 = vmatprep.subr.mxu0 0.0
        %837 = vmatpush1.msra.mxu0 0.0
        %838 = vmatprep.subr.mxu0 0.0
        %839 = vmatpush1.msra.mxu0 0.0
        %840 = vmatprep.subr.mxu0 0.0
        %841 = vmatpush1.msra.mxu0 0.0
        %842 = vmatprep.subr.mxu0 0.0
        %843 = vmatpush1.msra.mxu0 0.0
        %844 = vmatprep.subr.mxu0 0.0
        %845 = vmatpush1.msra.mxu0 0.0
        %846 = vmatprep.subr.mxu0 0.0
        %847 = vmatpush1.msra.mxu0 0.0
        %848 = vmatprep.subr.mxu0 0.0
        %849 = vmatpush1.msra.mxu0 0.0
        %850 = vmatprep.subr.mxu0 0.0
        %851 = vmatpush1.msra.mxu0 0.0
        %852 = vmatprep.subr.mxu0 0.0
        %853 = vmatpush1.msra.mxu0 0.0
        %854 = vmatprep.subr.mxu0 0.0
        %855 = vmatpush1.msra.mxu0 0.0
        %856 = vmatprep.subr.mxu0 0.0
        %857 = vmatpush1.msra.mxu0 0.0
        %858 = vmatprep.subr.mxu0 0.0
        %859 = vmatpush1.msra.mxu0 0.0
        %860 = vmatprep.subr.mxu0 0.0
        %861 = vmatpush1.msra.mxu0 0.0
        %862 = vmatprep.subr.mxu0 0.0
        %863 = vmatpush1.msra.mxu0 0.0
        %864 = vmatprep.subr.mxu0 0.0
        %865 = vmatpush1.msra.mxu0 0.0
        %866 = vmatprep.subr.mxu0 0.0
        %867 = vmatpush1.msra.mxu0 0.0
        %868 = vmatprep.subr.mxu0 0.0
        %869 = vmatpush1.msra.mxu0 0.0
        %870 = vmatprep.subr.mxu0 0.0
        %871 = vmatpush1.msra.mxu0 0.0
        %872 = vmatprep.subr.mxu0 0.0
        %873 = vmatpush1.msra.mxu0 0.0
        %874 = vmatprep.subr.mxu0 0.0
        %875 = vmatpush1.msra.mxu0 0.0
        %876 = vmatprep.subr.mxu0 0.0
        %877 = vmatpush1.msra.mxu0 0.0
        %878 = vmatprep.subr.mxu0 0.0
        %879 = vmatpush1.msra.mxu0 0.0
        %880 = vmatprep.subr.mxu0 0.0
        %881 = vmatpush1.msra.mxu0 0.0
        %882 = vmatprep.subr.mxu0 0.0
        %883 = vmatpush1.msra.mxu0 0.0
        %884 = vmatprep.subr.mxu0 0.0
        %885 = vmatpush1.msra.mxu0 0.0
        %886 = vmatprep.subr.mxu0 0.0
        %887 = vmatpush1.msra.mxu0 0.0
        %888 = vmatprep.mubr.f32.mxu0 0.0
        %889 = vmatmul.mubr.f32.gmra.mrb[0].mxu0 %v822
        %v890 = vpop.f32.mrb[0].mxu0
        %v891 = vadd.f32 0.0, %v890
        %v892 = vpop.f32.mrb[0].mxu0
        %893 = vdwg.mxu0
        %v894 = vadd.f32 %v457, %v891
        %v895 = vxor.u32 %v894, 2147483648
        %v896 = vmul.f32 %v895, 1.442695
        %v897 = vpow.pop %v896
        %v898 = vadd.f32 %v897, 1.0
        %v899 = vrcp.pop %v898
        %v900 = vmul.f32 1.0, %v899
        %v901 = vadd.f32 %v891, %v593
        %903 = vrot.lane.b32.xlu0 %v901, 64
        %v904 = vpop.permute.xlu0 %903
        %v906 = vmul.f32 %v900, %v904
        %908 = vrot.lane.b32.xlu0 %v906, 64
        %v909 = vpop.permute.xlu0 %908
        %v911 = vadd.f32 %v457, %v909
        %v912 = vtanh.pop %v911
        %v913 = vsub.f32 1.0, %v900
        %915 = vrot.lane.b32.xlu0 %v912, 96
        %v916 = vpop.permute.xlu0 %915
        %v918 = vmul.f32 %v913, %v916
        %v919 = vmul.f32 %v900, %v818
        %v920 = vadd.f32 %v918, %v919
        %922 = vrot.lane.b32.xlu0 %v920, 96
        %v923 = vpop.permute.xlu0 %922
        %v924 = vsel %vm212, %v923, 0
        %926 = vmatprep.subr.mxu0 0.0
        %927 = vmatpush1.msra.mxu0 %v504
        %928 = vmatprep.subr.mxu0 0.0
        %929 = vmatpush1.msra.mxu0 %v505
        %930 = vmatprep.subr.mxu0 0.0
        %931 = vmatpush1.msra.mxu0 %v506
        %932 = vmatprep.subr.mxu0 0.0
        %933 = vmatpush1.msra.mxu0 %v507
        %934 = vmatprep.subr.mxu0 0.0
        %935 = vmatpush1.msra.mxu0 0.0
        %936 = vmatprep.subr.mxu0 0.0
        %937 = vmatpush1.msra.mxu0 0.0
        %938 = vmatprep.subr.mxu0 0.0
        %939 = vmatpush1.msra.mxu0 0.0
        %940 = vmatprep.subr.mxu0 0.0
        %941 = vmatpush1.msra.mxu0 0.0
        %942 = vmatprep.subr.mxu0 0.0
        %943 = vmatpush1.msra.mxu0 0.0
        %944 = vmatprep.subr.mxu0 0.0
        %945 = vmatpush1.msra.mxu0 0.0
        %946 = vmatprep.subr.mxu0 0.0
        %947 = vmatpush1.msra.mxu0 0.0
        %948 = vmatprep.subr.mxu0 0.0
        %949 = vmatpush1.msra.mxu0 0.0
        %950 = vmatprep.subr.mxu0 0.0
        %951 = vmatpush1.msra.mxu0 0.0
        %952 = vmatprep.subr.mxu0 0.0
        %953 = vmatpush1.msra.mxu0 0.0
        %954 = vmatprep.subr.mxu0 0.0
        %955 = vmatpush1.msra.mxu0 0.0
        %956 = vmatprep.subr.mxu0 0.0
        %957 = vmatpush1.msra.mxu0 0.0
        %958 = vmatprep.subr.mxu0 0.0
        %959 = vmatpush1.msra.mxu0 0.0
        %960 = vmatprep.subr.mxu0 0.0
        %961 = vmatpush1.msra.mxu0 0.0
        %962 = vmatprep.subr.mxu0 0.0
        %963 = vmatpush1.msra.mxu0 0.0
        %964 = vmatprep.subr.mxu0 0.0
        %965 = vmatpush1.msra.mxu0 0.0
        %966 = vmatprep.subr.mxu0 0.0
        %967 = vmatpush1.msra.mxu0 0.0
        %968 = vmatprep.subr.mxu0 0.0
        %969 = vmatpush1.msra.mxu0 0.0
        %970 = vmatprep.subr.mxu0 0.0
        %971 = vmatpush1.msra.mxu0 0.0
        %972 = vmatprep.subr.mxu0 0.0
        %973 = vmatpush1.msra.mxu0 0.0
        %974 = vmatprep.subr.mxu0 0.0
        %975 = vmatpush1.msra.mxu0 0.0
        %976 = vmatprep.subr.mxu0 0.0
        %977 = vmatpush1.msra.mxu0 0.0
        %978 = vmatprep.subr.mxu0 0.0
        %979 = vmatpush1.msra.mxu0 0.0
        %980 = vmatprep.subr.mxu0 0.0
        %981 = vmatpush1.msra.mxu0 0.0
        %982 = vmatprep.subr.mxu0 0.0
        %983 = vmatpush1.msra.mxu0 0.0
        %984 = vmatprep.subr.mxu0 0.0
        %985 = vmatpush1.msra.mxu0 0.0
        %986 = vmatprep.subr.mxu0 0.0
        %987 = vmatpush1.msra.mxu0 0.0
        %988 = vmatprep.subr.mxu0 0.0
        %989 = vmatpush1.msra.mxu0 0.0
        %990 = vmatprep.mubr.f32.mxu0 0.0
        %991 = vmatmul.mubr.f32.gmra.mrb[0].mxu0 %v924
        %v992 = vpop.f32.mrb[0].mxu0
        %v993 = vadd.f32 0.0, %v992
        %v994 = vpop.f32.mrb[0].mxu0
        %995 = vdwg.mxu0
        %v996 = vadd.f32 %v462, %v993
        %v997 = vxor.u32 %v996, 2147483648
        %v998 = vmul.f32 %v997, 1.442695
        %v999 = vpow.pop %v998
        %v1000 = vadd.f32 %v999, 1.0
        %v1001 = vrcp.pop %v1000
        %v1002 = vmul.f32 1.0, %v1001
        %v1003 = vadd.f32 %v993, %v593
        %1005 = vrot.lane.b32.xlu0 %v1003, 64
        %v1006 = vpop.permute.xlu0 %1005
        %v1008 = vmul.f32 %v1002, %v1006
        %1010 = vrot.lane.b32.xlu0 %v1008, 64
        %v1011 = vpop.permute.xlu0 %1010
        %v1013 = vadd.f32 %v462, %v1011
        %v1014 = vtanh.pop %v1013
        %v1015 = vsub.f32 1.0, %v1002
        %1017 = vrot.lane.b32.xlu0 %v1014, 96
        %v1018 = vpop.permute.xlu0 %1017
        %v1020 = vmul.f32 %v1015, %v1018
        %v1021 = vmul.f32 %v1002, %v920
        %v1022 = vadd.f32 %v1020, %v1021
        %1024 = vrot.lane.b32.xlu0 %v1022, 96
        %v1025 = vpop.permute.xlu0 %1024
        %v1026 = vsel %vm212, %v1025, 0
        %1028 = vmatprep.subr.mxu0 0.0
        %1029 = vmatpush1.msra.mxu0 %v504
        %1030 = vmatprep.subr.mxu0 0.0
        %1031 = vmatpush1.msra.mxu0 %v505
        %1032 = vmatprep.subr.mxu0 0.0
        %1033 = vmatpush1.msra.mxu0 %v506
        %1034 = vmatprep.subr.mxu0 0.0
        %1035 = vmatpush1.msra.mxu0 %v507
        %1036 = vmatprep.subr.mxu0 0.0
        %1037 = vmatpush1.msra.mxu0 0.0
        %1038 = vmatprep.subr.mxu0 0.0
        %1039 = vmatpush1.msra.mxu0 0.0
        %1040 = vmatprep.subr.mxu0 0.0
        %1041 = vmatpush1.msra.mxu0 0.0
        %1042 = vmatprep.subr.mxu0 0.0
        %1043 = vmatpush1.msra.mxu0 0.0
        %1044 = vmatprep.subr.mxu0 0.0
        %1045 = vmatpush1.msra.mxu0 0.0
        %1046 = vmatprep.subr.mxu0 0.0
        %1047 = vmatpush1.msra.mxu0 0.0
        %1048 = vmatprep.subr.mxu0 0.0
        %1049 = vmatpush1.msra.mxu0 0.0
        %1050 = vmatprep.subr.mxu0 0.0
        %1051 = vmatpush1.msra.mxu0 0.0
        %1052 = vmatprep.subr.mxu0 0.0
        %1053 = vmatpush1.msra.mxu0 0.0
        %1054 = vmatprep.subr.mxu0 0.0
        %1055 = vmatpush1.msra.mxu0 0.0
        %1056 = vmatprep.subr.mxu0 0.0
        %1057 = vmatpush1.msra.mxu0 0.0
        %1058 = vmatprep.subr.mxu0 0.0
        %1059 = vmatpush1.msra.mxu0 0.0
        %1060 = vmatprep.subr.mxu0 0.0
        %1061 = vmatpush1.msra.mxu0 0.0
        %1062 = vmatprep.subr.mxu0 0.0
        %1063 = vmatpush1.msra.mxu0 0.0
        %1064 = vmatprep.subr.mxu0 0.0
        %1065 = vmatpush1.msra.mxu0 0.0
        %1066 = vmatprep.subr.mxu0 0.0
        %1067 = vmatpush1.msra.mxu0 0.0
        %1068 = vmatprep.subr.mxu0 0.0
        %1069 = vmatpush1.msra.mxu0 0.0
        %1070 = vmatprep.subr.mxu0 0.0
        %1071 = vmatpush1.msra.mxu0 0.0
        %1072 = vmatprep.subr.mxu0 0.0
        %1073 = vmatpush1.msra.mxu0 0.0
        %1074 = vmatprep.subr.mxu0 0.0
        %1075 = vmatpush1.msra.mxu0 0.0
        %1076 = vmatprep.subr.mxu0 0.0
        %1077 = vmatpush1.msra.mxu0 0.0
        %1078 = vmatprep.subr.mxu0 0.0
        %1079 = vmatpush1.msra.mxu0 0.0
        %1080 = vmatprep.subr.mxu0 0.0
        %1081 = vmatpush1.msra.mxu0 0.0
        %1082 = vmatprep.subr.mxu0 0.0
        %1083 = vmatpush1.msra.mxu0 0.0
        %1084 = vmatprep.subr.mxu0 0.0
        %1085 = vmatpush1.msra.mxu0 0.0
        %1086 = vmatprep.subr.mxu0 0.0
        %1087 = vmatpush1.msra.mxu0 0.0
        %1088 = vmatprep.subr.mxu0 0.0
        %1089 = vmatpush1.msra.mxu0 0.0
        %1090 = vmatprep.subr.mxu0 0.0
        %1091 = vmatpush1.msra.mxu0 0.0
        %1092 = vmatprep.mubr.f32.mxu0 0.0
        %1093 = vmatmul.mubr.f32.gmra.mrb[0].mxu0 %v1026
        %v1094 = vpop.f32.mrb[0].mxu0
        %v1095 = vadd.f32 0.0, %v1094
        %v1096 = vpop.f32.mrb[0].mxu0
        %1097 = vdwg.mxu0
        %v1098 = vadd.f32 %v467, %v1095
        %v1099 = vxor.u32 %v1098, 2147483648
        %v1100 = vmul.f32 %v1099, 1.442695
        %v1101 = vpow.pop %v1100
        %v1102 = vadd.f32 %v1101, 1.0
        %v1103 = vrcp.pop %v1102
        %v1104 = vmul.f32 1.0, %v1103
        %v1105 = vadd.f32 %v1095, %v593
        %1107 = vrot.lane.b32.xlu0 %v1105, 64
        %v1108 = vpop.permute.xlu0 %1107
        %v1110 = vmul.f32 %v1104, %v1108
        %1112 = vrot.lane.b32.xlu0 %v1110, 64
        %v1113 = vpop.permute.xlu0 %1112
        %v1115 = vadd.f32 %v467, %v1113
        %v1116 = vtanh.pop %v1115
        %v1117 = vsub.f32 1.0, %v1104
        %1119 = vrot.lane.b32.xlu0 %v1116, 96
        %v1120 = vpop.permute.xlu0 %1119
        %v1122 = vmul.f32 %v1117, %v1120
        %v1123 = vmul.f32 %v1104, %v1022
        %v1124 = vadd.f32 %v1122, %v1123
        %1126 = vrot.lane.b32.xlu0 %v1124, 96
        %v1127 = vpop.permute.xlu0 %1126
        %v1128 = vsel %vm212, %v1127, 0
        %1130 = vmatprep.subr.mxu0 0.0
        %1131 = vmatpush1.msra.mxu0 %v504
        %1132 = vmatprep.subr.mxu0 0.0
        %1133 = vmatpush1.msra.mxu0 %v505
        %1134 = vmatprep.subr.mxu0 0.0
        %1135 = vmatpush1.msra.mxu0 %v506
        %1136 = vmatprep.subr.mxu0 0.0
        %1137 = vmatpush1.msra.mxu0 %v507
        %1138 = vmatprep.subr.mxu0 0.0
        %1139 = vmatpush1.msra.mxu0 0.0
        %1140 = vmatprep.subr.mxu0 0.0
        %1141 = vmatpush1.msra.mxu0 0.0
        %1142 = vmatprep.subr.mxu0 0.0
        %1143 = vmatpush1.msra.mxu0 0.0
        %1144 = vmatprep.subr.mxu0 0.0
        %1145 = vmatpush1.msra.mxu0 0.0
        %1146 = vmatprep.subr.mxu0 0.0
        %1147 = vmatpush1.msra.mxu0 0.0
        %1148 = vmatprep.subr.mxu0 0.0
        %1149 = vmatpush1.msra.mxu0 0.0
        %1150 = vmatprep.subr.mxu0 0.0
        %1151 = vmatpush1.msra.mxu0 0.0
        %1152 = vmatprep.subr.mxu0 0.0
        %1153 = vmatpush1.msra.mxu0 0.0
        %1154 = vmatprep.subr.mxu0 0.0
        %1155 = vmatpush1.msra.mxu0 0.0
        %1156 = vmatprep.subr.mxu0 0.0
        %1157 = vmatpush1.msra.mxu0 0.0
        %1158 = vmatprep.subr.mxu0 0.0
        %1159 = vmatpush1.msra.mxu0 0.0
        %1160 = vmatprep.subr.mxu0 0.0
        %1161 = vmatpush1.msra.mxu0 0.0
        %1162 = vmatprep.subr.mxu0 0.0
        %1163 = vmatpush1.msra.mxu0 0.0
        %1164 = vmatprep.subr.mxu0 0.0
        %1165 = vmatpush1.msra.mxu0 0.0
        %1166 = vmatprep.subr.mxu0 0.0
        %1167 = vmatpush1.msra.mxu0 0.0
        %1168 = vmatprep.subr.mxu0 0.0
        %1169 = vmatpush1.msra.mxu0 0.0
        %1170 = vmatprep.subr.mxu0 0.0
        %1171 = vmatpush1.msra.mxu0 0.0
        %1172 = vmatprep.subr.mxu0 0.0
        %1173 = vmatpush1.msra.mxu0 0.0
        %1174 = vmatprep.subr.mxu0 0.0
        %1175 = vmatpush1.msra.mxu0 0.0
        %1176 = vmatprep.subr.mxu0 0.0
        %1177 = vmatpush1.msra.mxu0 0.0
        %1178 = vmatprep.subr.mxu0 0.0
        %1179 = vmatpush1.msra.mxu0 0.0
        %1180 = vmatprep.subr.mxu0 0.0
        %1181 = vmatpush1.msra.mxu0 0.0
        %1182 = vmatprep.subr.mxu0 0.0
        %1183 = vmatpush1.msra.mxu0 0.0
        %1184 = vmatprep.subr.mxu0 0.0
        %1185 = vmatpush1.msra.mxu0 0.0
        %1186 = vmatprep.subr.mxu0 0.0
        %1187 = vmatpush1.msra.mxu0 0.0
        %1188 = vmatprep.subr.mxu0 0.0
        %1189 = vmatpush1.msra.mxu0 0.0
        %1190 = vmatprep.subr.mxu0 0.0
        %1191 = vmatpush1.msra.mxu0 0.0
        %1192 = vmatprep.subr.mxu0 0.0
        %1193 = vmatpush1.msra.mxu0 0.0
        %1194 = vmatprep.mubr.f32.mxu0 0.0
        %1195 = vmatmul.mubr.f32.gmra.mrb[0].mxu0 %v1128
        %v1196 = vpop.f32.mrb[0].mxu0
        %v1197 = vadd.f32 0.0, %v1196
        %v1198 = vpop.f32.mrb[0].mxu0
        %1199 = vdwg.mxu0
        %v1200 = vadd.f32 %v472, %v1197
        %v1201 = vxor.u32 %v1200, 2147483648
        %v1202 = vmul.f32 %v1201, 1.442695
        %v1203 = vpow.pop %v1202
        %v1204 = vadd.f32 %v1203, 1.0
        %v1205 = vrcp.pop %v1204
        %v1206 = vmul.f32 1.0, %v1205
        %v1207 = vadd.f32 %v1197, %v593
        %1209 = vrot.lane.b32.xlu0 %v1207, 64
        %v1210 = vpop.permute.xlu0 %1209
        %v1212 = vmul.f32 %v1206, %v1210
        %1214 = vrot.lane.b32.xlu0 %v1212, 64
        %v1215 = vpop.permute.xlu0 %1214
        %v1217 = vadd.f32 %v472, %v1215
        %v1218 = vtanh.pop %v1217
        %v1219 = vsub.f32 1.0, %v1206
        %1221 = vrot.lane.b32.xlu0 %v1218, 96
        %v1222 = vpop.permute.xlu0 %1221
        %v1224 = vmul.f32 %v1219, %v1222
        %v1225 = vmul.f32 %v1206, %v1124
        %v1226 = vadd.f32 %v1224, %v1225
        %1228 = vrot.lane.b32.xlu0 %v1226, 96
        %v1229 = vpop.permute.xlu0 %1228
        %v1230 = vsel %vm212, %v1229, 0
        %1232 = vmatprep.subr.mxu0 0.0
        %1233 = vmatpush1.msra.mxu0 %v504
        %1234 = vmatprep.subr.mxu0 0.0
        %1235 = vmatpush1.msra.mxu0 %v505
        %1236 = vmatprep.subr.mxu0 0.0
        %1237 = vmatpush1.msra.mxu0 %v506
        %1238 = vmatprep.subr.mxu0 0.0
        %1239 = vmatpush1.msra.mxu0 %v507
        %1240 = vmatprep.subr.mxu0 0.0
        %1241 = vmatpush1.msra.mxu0 0.0
        %1242 = vmatprep.subr.mxu0 0.0
        %1243 = vmatpush1.msra.mxu0 0.0
        %1244 = vmatprep.subr.mxu0 0.0
        %1245 = vmatpush1.msra.mxu0 0.0
        %1246 = vmatprep.subr.mxu0 0.0
        %1247 = vmatpush1.msra.mxu0 0.0
        %1248 = vmatprep.subr.mxu0 0.0
        %1249 = vmatpush1.msra.mxu0 0.0
        %1250 = vmatprep.subr.mxu0 0.0
        %1251 = vmatpush1.msra.mxu0 0.0
        %1252 = vmatprep.subr.mxu0 0.0
        %1253 = vmatpush1.msra.mxu0 0.0
        %1254 = vmatprep.subr.mxu0 0.0
        %1255 = vmatpush1.msra.mxu0 0.0
        %1256 = vmatprep.subr.mxu0 0.0
        %1257 = vmatpush1.msra.mxu0 0.0
        %1258 = vmatprep.subr.mxu0 0.0
        %1259 = vmatpush1.msra.mxu0 0.0
        %1260 = vmatprep.subr.mxu0 0.0
        %1261 = vmatpush1.msra.mxu0 0.0
        %1262 = vmatprep.subr.mxu0 0.0
        %1263 = vmatpush1.msra.mxu0 0.0
        %1264 = vmatprep.subr.mxu0 0.0
        %1265 = vmatpush1.msra.mxu0 0.0
        %1266 = vmatprep.subr.mxu0 0.0
        %1267 = vmatpush1.msra.mxu0 0.0
        %1268 = vmatprep.subr.mxu0 0.0
        %1269 = vmatpush1.msra.mxu0 0.0
        %1270 = vmatprep.subr.mxu0 0.0
        %1271 = vmatpush1.msra.mxu0 0.0
        %1272 = vmatprep.subr.mxu0 0.0
        %1273 = vmatpush1.msra.mxu0 0.0
        %1274 = vmatprep.subr.mxu0 0.0
        %1275 = vmatpush1.msra.mxu0 0.0
        %1276 = vmatprep.subr.mxu0 0.0
        %1277 = vmatpush1.msra.mxu0 0.0
        %1278 = vmatprep.subr.mxu0 0.0
        %1279 = vmatpush1.msra.mxu0 0.0
        %1280 = vmatprep.subr.mxu0 0.0
        %1281 = vmatpush1.msra.mxu0 0.0
        %1282 = vmatprep.subr.mxu0 0.0
        %1283 = vmatpush1.msra.mxu0 0.0
        %1284 = vmatprep.subr.mxu0 0.0
        %1285 = vmatpush1.msra.mxu0 0.0
        %1286 = vmatprep.subr.mxu0 0.0
        %1287 = vmatpush1.msra.mxu0 0.0
        %1288 = vmatprep.subr.mxu0 0.0
        %1289 = vmatpush1.msra.mxu0 0.0
        %1290 = vmatprep.subr.mxu0 0.0
        %1291 = vmatpush1.msra.mxu0 0.0
        %1292 = vmatprep.subr.mxu0 0.0
        %1293 = vmatpush1.msra.mxu0 0.0
        %1294 = vmatprep.subr.mxu0 0.0
        %1295 = vmatpush1.msra.mxu0 0.0
        %1296 = vmatprep.mubr.f32.mxu0 0.0
        %1297 = vmatmul.mubr.f32.gmra.mrb[0].mxu0 %v1230
        %v1298 = vpop.f32.mrb[0].mxu0
        %v1299 = vadd.f32 0.0, %v1298
        %v1300 = vpop.f32.mrb[0].mxu0
        %1301 = vdwg.mxu0
        %v1302 = vadd.f32 %v477, %v1299
        %v1303 = vxor.u32 %v1302, 2147483648
        %v1304 = vmul.f32 %v1303, 1.442695
        %v1305 = vpow.pop %v1304
        %v1306 = vadd.f32 %v1305, 1.0
        %v1307 = vrcp.pop %v1306
        %v1308 = vmul.f32 1.0, %v1307
        %v1309 = vadd.f32 %v1299, %v593
        %1311 = vrot.lane.b32.xlu0 %v1309, 64
        %v1312 = vpop.permute.xlu0 %1311
        %v1314 = vmul.f32 %v1308, %v1312
        %1316 = vrot.lane.b32.xlu0 %v1314, 64
        %v1317 = vpop.permute.xlu0 %1316
        %v1319 = vadd.f32 %v477, %v1317
        %v1320 = vtanh.pop %v1319
        %v1321 = vsub.f32 1.0, %v1308
        %1323 = vrot.lane.b32.xlu0 %v1320, 96
        %v1324 = vpop.permute.xlu0 %1323
        %v1326 = vmul.f32 %v1321, %v1324
        %v1327 = vmul.f32 %v1308, %v1226
        %v1328 = vadd.f32 %v1326, %v1327
        %1329 = vmatprep.subr.mxu0 0.0
        %1330 = vmatpush1.msra.mxu0 %v195
        %1331 = vmatprep.subr.mxu0 0.0
        %1332 = vmatpush1.msra.mxu0 %v196
        %1333 = vmatprep.subr.mxu0 0.0
        %1334 = vmatpush1.msra.mxu0 0.0
        %1335 = vmatprep.subr.mxu0 0.0
        %1336 = vmatpush1.msra.mxu0 0.0
        %1337 = vmatprep.subr.mxu0 0.0
        %1338 = vmatpush1.msra.mxu0 0.0
        %1339 = vmatprep.subr.mxu0 0.0
        %1340 = vmatpush1.msra.mxu0 0.0
        %1341 = vmatprep.subr.mxu0 0.0
        %1342 = vmatpush1.msra.mxu0 0.0
        %1343 = vmatprep.subr.mxu0 0.0
        %1344 = vmatpush1.msra.mxu0 0.0
        %1345 = vmatprep.subr.mxu0 0.0
        %1346 = vmatpush1.msra.mxu0 0.0
        %1347 = vmatprep.subr.mxu0 0.0
        %1348 = vmatpush1.msra.mxu0 0.0
        %1349 = vmatprep.subr.mxu0 0.0
        %1350 = vmatpush1.msra.mxu0 0.0
        %1351 = vmatprep.subr.mxu0 0.0
        %1352 = vmatpush1.msra.mxu0 0.0
        %1353 = vmatprep.subr.mxu0 0.0
        %1354 = vmatpush1.msra.mxu0 0.0
        %1355 = vmatprep.subr.mxu0 0.0
        %1356 = vmatpush1.msra.mxu0 0.0
        %1357 = vmatprep.subr.mxu0 0.0
        %1358 = vmatpush1.msra.mxu0 0.0
        %1359 = vmatprep.subr.mxu0 0.0
        %1360 = vmatpush1.msra.mxu0 0.0
        %1361 = vmatprep.subr.mxu0 0.0
        %1362 = vmatpush1.msra.mxu0 0.0
        %1363 = vmatprep.subr.mxu0 0.0
        %1364 = vmatpush1.msra.mxu0 0.0
        %1365 = vmatprep.subr.mxu0 0.0
        %1366 = vmatpush1.msra.mxu0 0.0
        %1367 = vmatprep.subr.mxu0 0.0
        %1368 = vmatpush1.msra.mxu0 0.0
        %1369 = vmatprep.subr.mxu0 0.0
        %1370 = vmatpush1.msra.mxu0 0.0
        %1371 = vmatprep.subr.mxu0 0.0
        %1372 = vmatpush1.msra.mxu0 0.0
        %1373 = vmatprep.subr.mxu0 0.0
        %1374 = vmatpush1.msra.mxu0 0.0
        %1375 = vmatprep.subr.mxu0 0.0
        %1376 = vmatpush1.msra.mxu0 0.0
        %1377 = vmatprep.subr.mxu0 0.0
        %1378 = vmatpush1.msra.mxu0 0.0
        %1379 = vmatprep.subr.mxu0 0.0
        %1380 = vmatpush1.msra.mxu0 0.0
        %1381 = vmatprep.subr.mxu0 0.0
        %1382 = vmatpush1.msra.mxu0 0.0
        %1383 = vmatprep.subr.mxu0 0.0
        %1384 = vmatpush1.msra.mxu0 0.0
        %1385 = vmatprep.subr.mxu0 0.0
        %1386 = vmatpush1.msra.mxu0 0.0
        %1387 = vmatprep.subr.mxu0 0.0
        %1388 = vmatpush1.msra.mxu0 0.0
        %1389 = vmatprep.subr.mxu0 0.0
        %1390 = vmatpush1.msra.mxu0 0.0
        %1391 = vmatprep.subr.mxu0 0.0
        %1392 = vmatpush1.msra.mxu0 0.0
        %1393 = vmatprep.mubr.f32.mxu0 0.0
        %1394 = vmatmul.mubr.f32.gmra.mrb[0].mxu0 %v373
        %v1395 = vpop.f32.mrb[0].mxu0
        %v1396 = vadd.f32 0.0, %v1395
        %v1397 = vpop.f32.mrb[0].mxu0
        %1398 = vdwg.mxu0
        %v1399 = vld [vmem:[#allocation2 + $0x8] sm:$0xff]
        %v1400 = vld [vmem:[#allocation2 + $0x10] sm:$0xff]
        %v1401 = vld [vmem:[#allocation2 + $0x40] sm:$0xff]
        %v1402 = vld [vmem:[#allocation2 + $0x48] sm:$0xff]
        %v1403 = vld [vmem:[#allocation2 + $0x78] sm:$0xff]
        %v1404 = vld [vmem:[#allocation2 + $0x80] sm:$0xff]
        %v1405 = vld [vmem:[#allocation2 + $0xb0] sm:$0xff]
        %v1406 = vld [vmem:[#allocation2 + $0xb8] sm:$0xff]
        %v1407 = vld [vmem:[#allocation2 + $0x128] ss:$0 sm:$0xff]
        %v1408 = vld [vmem:[#allocation2 + $0x130] ss:$0 sm:$0xff]
        %1417 = vrot.lane.b32.xlu0 %v1399, 64
        %v1418 = vpop.permute.xlu0 %1417
        %1419 = vrot.lane.b32.xlu0 %v1400, 64
        %v1420 = vpop.permute.xlu0 %1419
        %1421 = vrot.lane.b32.xlu0 %v1401, 64
        %v1422 = vpop.permute.xlu0 %1421
        %1423 = vrot.lane.b32.xlu0 %v1402, 64
        %v1424 = vpop.permute.xlu0 %1423
        %1425 = vrot.lane.b32.xlu0 %v1403, 64
        %v1426 = vpop.permute.xlu0 %1425
        %1427 = vrot.lane.b32.xlu0 %v1404, 64
        %v1428 = vpop.permute.xlu0 %1427
        %1429 = vrot.lane.b32.xlu0 %v1405, 64
        %v1430 = vpop.permute.xlu0 %1429
        %1431 = vrot.lane.b32.xlu0 %v1406, 64
        %v1432 = vpop.permute.xlu0 %1431
        %vm1433 = vcmask 523264
        %v1434 = vsel %vm1433, %v1418, %v1420
        %v1435 = vsel %vm1433, %v1422, %v1424
        %v1436 = vsel %vm1433, %v1426, %v1428
        %v1437 = vsel %vm1433, %v1430, %v1432
        %1444 = vrot.lane.b32.xlu0 %v1407, 48
        %v1445 = vpop.permute.xlu0 %1444
        %1446 = vrot.lane.b32.xlu0 %v1408, 48
        %v1447 = vpop.permute.xlu0 %1446
        %v1448 = vsel %vm209, %v1445, %v1447
        %v1451 = vsel %vm212, %v1396, 0
        %1453 = vmatprep.subr.mxu0 0.0
        %1454 = vmatpush1.msra.mxu0 %v1434
        %1455 = vmatprep.subr.mxu0 0.0
        %1456 = vmatpush1.msra.mxu0 %v1435
        %1457 = vmatprep.subr.mxu0 0.0
        %1458 = vmatpush1.msra.mxu0 %v1436
        %1459 = vmatprep.subr.mxu0 0.0
        %1460 = vmatpush1.msra.mxu0 %v1437
        %1461 = vmatprep.subr.mxu0 0.0
        %1462 = vmatpush1.msra.mxu0 0.0
        %1463 = vmatprep.subr.mxu0 0.0
        %1464 = vmatpush1.msra.mxu0 0.0
        %1465 = vmatprep.subr.mxu0 0.0
        %1466 = vmatpush1.msra.mxu0 0.0
        %1467 = vmatprep.subr.mxu0 0.0
        %1468 = vmatpush1.msra.mxu0 0.0
        %1469 = vmatprep.subr.mxu0 0.0
        %1470 = vmatpush1.msra.mxu0 0.0
        %1471 = vmatprep.subr.mxu0 0.0
        %1472 = vmatpush1.msra.mxu0 0.0
        %1473 = vmatprep.subr.mxu0 0.0
        %1474 = vmatpush1.msra.mxu0 0.0
        %1475 = vmatprep.subr.mxu0 0.0
        %1476 = vmatpush1.msra.mxu0 0.0
        %1477 = vmatprep.subr.mxu0 0.0
        %1478 = vmatpush1.msra.mxu0 0.0
        %1479 = vmatprep.subr.mxu0 0.0
        %1480 = vmatpush1.msra.mxu0 0.0
        %1481 = vmatprep.subr.mxu0 0.0
        %1482 = vmatpush1.msra.mxu0 0.0
        %1483 = vmatprep.subr.mxu0 0.0
        %1484 = vmatpush1.msra.mxu0 0.0
        %1485 = vmatprep.subr.mxu0 0.0
        %1486 = vmatpush1.msra.mxu0 0.0
        %1487 = vmatprep.subr.mxu0 0.0
        %1488 = vmatpush1.msra.mxu0 0.0
        %1489 = vmatprep.subr.mxu0 0.0
        %1490 = vmatpush1.msra.mxu0 0.0
        %1491 = vmatprep.subr.mxu0 0.0
        %1492 = vmatpush1.msra.mxu0 0.0
        %1493 = vmatprep.subr.mxu0 0.0
        %1494 = vmatpush1.msra.mxu0 0.0
        %1495 = vmatprep.subr.mxu0 0.0
        %1496 = vmatpush1.msra.mxu0 0.0
        %1497 = vmatprep.subr.mxu0 0.0
        %1498 = vmatpush1.msra.mxu0 0.0
        %1499 = vmatprep.subr.mxu0 0.0
        %1500 = vmatpush1.msra.mxu0 0.0
        %1501 = vmatprep.subr.mxu0 0.0
        %1502 = vmatpush1.msra.mxu0 0.0
        %1503 = vmatprep.subr.mxu0 0.0
        %1504 = vmatpush1.msra.mxu0 0.0
        %1505 = vmatprep.subr.mxu0 0.0
        %1506 = vmatpush1.msra.mxu0 0.0
        %1507 = vmatprep.subr.mxu0 0.0
        %1508 = vmatpush1.msra.mxu0 0.0
        %1509 = vmatprep.subr.mxu0 0.0
        %1510 = vmatpush1.msra.mxu0 0.0
        %1511 = vmatprep.subr.mxu0 0.0
        %1512 = vmatpush1.msra.mxu0 0.0
        %1513 = vmatprep.subr.mxu0 0.0
        %1514 = vmatpush1.msra.mxu0 0.0
        %1515 = vmatprep.subr.mxu0 0.0
        %1516 = vmatpush1.msra.mxu0 0.0
        %1517 = vmatprep.mubr.f32.mxu0 0.0
        %1518 = vmatmul.mubr.f32.gmra.mrb[0].mxu0 %v1451
        %v1519 = vpop.f32.mrb[0].mxu0
        %v1520 = vadd.f32 %v1448, %v1519
        %v1521 = vpop.f32.mrb[0].mxu0
        %1522 = vdwg.mxu0
        %v1523 = vxor.u32 %v1520, 2147483648
        %v1524 = vmul.f32 %v1523, 1.442695
        %v1525 = vpow.pop %v1524
        %v1526 = vadd.f32 %v1525, 1.0
        %v1527 = vrcp.pop %v1526
        %v1528 = vmul.f32 1.0, %v1527
        %1529 = vrot.lane.b32.xlu0 %v1408, 80
        %v1530 = vpop.permute.xlu0 %1529
        %v1532 = vmul.f32 %v1528, %v1530
        %1534 = vrot.lane.b32.xlu0 %v1532, 64
        %v1535 = vpop.permute.xlu0 %1534
        %v1537 = vadd.f32 %v1520, %v1535
        %v1538 = vtanh.pop %v1537
        %v1539 = vsub.f32 1.0, %v1528
        %1541 = vrot.lane.b32.xlu0 %v1538, 96
        %v1542 = vpop.permute.xlu0 %1541
        %v1544 = vmul.f32 %v1539, %v1542
        %v1545 = vadd.f32 %v1328, %v1544
        %v1546 = vld [vmem:[#allocation2 + $0x28] sm:$0xff]
        %v1547 = vld [vmem:[#allocation2 + $0x60] sm:$0xff]
        %v1548 = vld [vmem:[#allocation2 + $0x98] sm:$0xff]
        %v1549 = vld [vmem:[#allocation2 + $0xd0] sm:$0xff]
        %v1550 = vld [vmem:[#allocation2 + $0x140] ss:$0 sm:$0xff]
        %1552 = vrot.lane.b32.xlu0 %v1545, 96
        %v1553 = vpop.permute.xlu0 %1552
        %1558 = vrot.lane.b32.xlu0 %v1546, 96
        %v1559 = vpop.permute.xlu0 %1558
        %1560 = vrot.lane.b32.xlu0 %v1547, 96
        %v1561 = vpop.permute.xlu0 %1560
        %1562 = vrot.lane.b32.xlu0 %v1548, 96
        %v1563 = vpop.permute.xlu0 %1562
        %1564 = vrot.lane.b32.xlu0 %v1549, 96
        %v1565 = vpop.permute.xlu0 %1564
        %1571 = vrot.lane.b32.xlu0 %v1550, 48
        %v1572 = vpop.permute.xlu0 %1571
        %v1574 = vsel %vm212, %v1553, 0
        %1576 = vmatprep.subr.mxu0 0.0
        %1577 = vmatpush1.msra.mxu0 %v1559
        %1578 = vmatprep.subr.mxu0 0.0
        %1579 = vmatpush1.msra.mxu0 %v1561
        %1580 = vmatprep.subr.mxu0 0.0
        %1581 = vmatpush1.msra.mxu0 %v1563
        %1582 = vmatprep.subr.mxu0 0.0
        %1583 = vmatpush1.msra.mxu0 %v1565
        %1584 = vmatprep.subr.mxu0 0.0
        %1585 = vmatpush1.msra.mxu0 0.0
        %1586 = vmatprep.subr.mxu0 0.0
        %1587 = vmatpush1.msra.mxu0 0.0
        %1588 = vmatprep.subr.mxu0 0.0
        %1589 = vmatpush1.msra.mxu0 0.0
        %1590 = vmatprep.subr.mxu0 0.0
        %1591 = vmatpush1.msra.mxu0 0.0
        %1592 = vmatprep.subr.mxu0 0.0
        %1593 = vmatpush1.msra.mxu0 0.0
        %1594 = vmatprep.subr.mxu0 0.0
        %1595 = vmatpush1.msra.mxu0 0.0
        %1596 = vmatprep.subr.mxu0 0.0
        %1597 = vmatpush1.msra.mxu0 0.0
        %1598 = vmatprep.subr.mxu0 0.0
        %1599 = vmatpush1.msra.mxu0 0.0
        %1600 = vmatprep.subr.mxu0 0.0
        %1601 = vmatpush1.msra.mxu0 0.0
        %1602 = vmatprep.subr.mxu0 0.0
        %1603 = vmatpush1.msra.mxu0 0.0
        %1604 = vmatprep.subr.mxu0 0.0
        %1605 = vmatpush1.msra.mxu0 0.0
        %1606 = vmatprep.subr.mxu0 0.0
        %1607 = vmatpush1.msra.mxu0 0.0
        %1608 = vmatprep.subr.mxu0 0.0
        %1609 = vmatpush1.msra.mxu0 0.0
        %1610 = vmatprep.subr.mxu0 0.0
        %1611 = vmatpush1.msra.mxu0 0.0
        %1612 = vmatprep.subr.mxu0 0.0
        %1613 = vmatpush1.msra.mxu0 0.0
        %1614 = vmatprep.subr.mxu0 0.0
        %1615 = vmatpush1.msra.mxu0 0.0
        %1616 = vmatprep.subr.mxu0 0.0
        %1617 = vmatpush1.msra.mxu0 0.0
        %1618 = vmatprep.subr.mxu0 0.0
        %1619 = vmatpush1.msra.mxu0 0.0
        %1620 = vmatprep.subr.mxu0 0.0
        %1621 = vmatpush1.msra.mxu0 0.0
        %1622 = vmatprep.subr.mxu0 0.0
        %1623 = vmatpush1.msra.mxu0 0.0
        %1624 = vmatprep.subr.mxu0 0.0
        %1625 = vmatpush1.msra.mxu0 0.0
        %1626 = vmatprep.subr.mxu0 0.0
        %1627 = vmatpush1.msra.mxu0 0.0
        %1628 = vmatprep.subr.mxu0 0.0
        %1629 = vmatpush1.msra.mxu0 0.0
        %1630 = vmatprep.subr.mxu0 0.0
        %1631 = vmatpush1.msra.mxu0 0.0
        %1632 = vmatprep.subr.mxu0 0.0
        %1633 = vmatpush1.msra.mxu0 0.0
        %1634 = vmatprep.subr.mxu0 0.0
        %1635 = vmatpush1.msra.mxu0 0.0
        %1636 = vmatprep.subr.mxu0 0.0
        %1637 = vmatpush1.msra.mxu0 0.0
        %1638 = vmatprep.subr.mxu0 0.0
        %1639 = vmatpush1.msra.mxu0 0.0
        %1640 = vmatprep.mubr.f32.mxu0 0.0
        %1641 = vmatmul.mubr.f32.gmra.mrb[0].mxu0 %v1574
        %v1642 = vpop.f32.mrb[0].mxu0
        %v1643 = vadd.f32 %v1572, %v1642
        %v1644 = vpop.f32.mrb[0].mxu0
        %1645 = vdwg.mxu0
        %1646 = vst.msk [vmem:[%s187] sm:$0xff] %vm350, %v1643
        %v1647 = vld [vmem:[#allocation2 + $0xe0] sm:$0xff]
        %v1648 = vld [vmem:[#allocation2 + $0x118] sm:$0xff]
        %v1649 = vxor.u32 %v1647, 2147483648
        %v1650 = vxor.u32 %v1648, 2147483648
        %v1651 = vmul.f32 %v1649, 1.442695
        %v1652 = vpow.pop %v1651
        %v1653 = vmul.f32 %v1650, 1.442695
        %v1654 = vpow.pop %v1653
        %v1655 = vadd.f32 %v1652, 1.0
        %v1656 = vadd.f32 %v1654, 1.0
        %v1657 = vrcp.pop %v1655
        %v1658 = vmul.f32 1.0, %v1657
        %v1659 = vrcp.pop %v1656
        %v1660 = vmul.f32 1.0, %v1659
        %v1661 = vmul.f32 %v1647, %v1658
        %v1662 = vmul.f32 %v1648, %v1660
        %v1663 = vld [vmem:[#allocation2 + $0x10] sm:$0xff]
        %v1664 = vld [vmem:[#allocation2 + $0x48] sm:$0xff]
        %v1665 = vld [vmem:[#allocation2 + $0x80] sm:$0xff]
        %v1666 = vld [vmem:[#allocation2 + $0xb8] sm:$0xff]
        %1669 = vrot.lane.b32.xlu0 %v1661, 96
        %v1670 = vpop.permute.xlu0 %1669
        %1671 = vrot.lane.b32.xlu0 %v1662, 96
        %v1672 = vpop.permute.xlu0 %1671
        %1677 = vrot.lane.b32.xlu0 %v1663, 96
        %v1678 = vpop.permute.xlu0 %1677
        %1679 = vrot.lane.b32.xlu0 %v1664, 96
        %v1680 = vpop.permute.xlu0 %1679
        %1681 = vrot.lane.b32.xlu0 %v1665, 96
        %v1682 = vpop.permute.xlu0 %1681
        %1683 = vrot.lane.b32.xlu0 %v1666, 96
        %v1684 = vpop.permute.xlu0 %1683
        %v1689 = vsel %vm212, %v1670, 0
        %v1691 = vsel %vm212, %v1672, 0
        %1693 = vmatprep.subr.mxu0 0.0
        %1694 = vmatpush1.msra.mxu0 %v1678
        %1695 = vmatprep.subr.mxu0 0.0
        %1696 = vmatpush1.msra.mxu0 %v1680
        %1697 = vmatprep.subr.mxu0 0.0
        %1698 = vmatpush1.msra.mxu0 %v1682
        %1699 = vmatprep.subr.mxu0 0.0
        %1700 = vmatpush1.msra.mxu0 %v1684
        %1701 = vmatprep.subr.mxu0 0.0
        %1702 = vmatpush1.msra.mxu0 0.0
        %1703 = vmatprep.subr.mxu0 0.0
        %1704 = vmatpush1.msra.mxu0 0.0
        %1705 = vmatprep.subr.mxu0 0.0
        %1706 = vmatpush1.msra.mxu0 0.0
        %1707 = vmatprep.subr.mxu0 0.0
        %1708 = vmatpush1.msra.mxu0 0.0
        %1709 = vmatprep.subr.mxu0 0.0
        %1710 = vmatpush1.msra.mxu0 0.0
        %1711 = vmatprep.subr.mxu0 0.0
        %1712 = vmatpush1.msra.mxu0 0.0
        %1713 = vmatprep.subr.mxu0 0.0
        %1714 = vmatpush1.msra.mxu0 0.0
        %1715 = vmatprep.subr.mxu0 0.0
        %1716 = vmatpush1.msra.mxu0 0.0
        %1717 = vmatprep.subr.mxu0 0.0
        %1718 = vmatpush1.msra.mxu0 0.0
        %1719 = vmatprep.subr.mxu0 0.0
        %1720 = vmatpush1.msra.mxu0 0.0
        %1721 = vmatprep.subr.mxu0 0.0
        %1722 = vmatpush1.msra.mxu0 0.0
        %1723 = vmatprep.subr.mxu0 0.0
        %1724 = vmatpush1.msra.mxu0 0.0
        %1725 = vmatprep.subr.mxu0 0.0
        %1726 = vmatpush1.msra.mxu0 0.0
        %1727 = vmatprep.subr.mxu0 0.0
        %1728 = vmatpush1.msra.mxu0 0.0
        %1729 = vmatprep.subr.mxu0 0.0
        %1730 = vmatpush1.msra.mxu0 0.0
        %1731 = vmatprep.subr.mxu0 0.0
        %1732 = vmatpush1.msra.mxu0 0.0
        %1733 = vmatprep.subr.mxu0 0.0
        %1734 = vmatpush1.msra.mxu0 0.0
        %1735 = vmatprep.subr.mxu0 0.0
        %1736 = vmatpush1.msra.mxu0 0.0
        %1737 = vmatprep.subr.mxu0 0.0
        %1738 = vmatpush1.msra.mxu0 0.0
        %1739 = vmatprep.subr.mxu0 0.0
        %1740 = vmatpush1.msra.mxu0 0.0
        %1741 = vmatprep.subr.mxu0 0.0
        %1742 = vmatpush1.msra.mxu0 0.0
        %1743 = vmatprep.subr.mxu0 0.0
        %1744 = vmatpush1.msra.mxu0 0.0
        %1745 = vmatprep.subr.mxu0 0.0
        %1746 = vmatpush1.msra.mxu0 0.0
        %1747 = vmatprep.subr.mxu0 0.0
        %1748 = vmatpush1.msra.mxu0 0.0
        %1749 = vmatprep.subr.mxu0 0.0
        %1750 = vmatpush1.msra.mxu0 0.0
        %1751 = vmatprep.subr.mxu0 0.0
        %1752 = vmatpush1.msra.mxu0 0.0
        %1753 = vmatprep.subr.mxu0 0.0
        %1754 = vmatpush1.msra.mxu0 0.0
        %1755 = vmatprep.subr.mxu0 0.0
        %1756 = vmatpush1.msra.mxu0 0.0
        %1757 = vmatprep.mubr.f32.mxu0 0.0
        %1758 = vmatmul.mubr.f32.gmra.mrb[0].mxu0 %v1689
        %v1759 = vpop.f32.mrb[0].mxu0
        %v1760 = vadd.f32 0.0, %v1759
        %v1761 = vpop.f32.mrb[0].mxu0
        %1762 = vmatprep.mubr.f32.mxu0 0.0
        %1763 = vmatmul.mubr.f32.gmra.mrb[0].mxu0 %v1691
        %v1764 = vpop.f32.mrb[0].mxu0
        %v1765 = vadd.f32 0.0, %v1764
        %v1766 = vpop.f32.mrb[0].mxu0
        %1767 = vdwg.mxu0
        %v1768 = vld [vmem:[#allocation2 + $0x18] sm:$0xff]
        %v1769 = vld [vmem:[#allocation2 + $0x50] sm:$0xff]
        %v1770 = vld [vmem:[#allocation2 + $0x88] sm:$0xff]
        %v1771 = vld [vmem:[#allocation2 + $0xc0] sm:$0xff]
        %v1772 = vld [vmem:[#allocation2 + $0x20] sm:$0xff]
        %v1773 = vld [vmem:[#allocation2 + $0x58] sm:$0xff]
        %v1774 = vld [vmem:[#allocation2 + $0x90] sm:$0xff]
        %v1775 = vld [vmem:[#allocation2 + $0xc8] sm:$0xff]
        %v1776 = vld [vmem:[#allocation2 + $0x28] sm:$0xff]
        %v1777 = vld [vmem:[#allocation2 + $0x60] sm:$0xff]
        %v1778 = vld [vmem:[#allocation2 + $0x98] sm:$0xff]
        %v1779 = vld [vmem:[#allocation2 + $0xd0] sm:$0xff]
        %v1780 = vld [vmem:[#allocation2 + $0xe0] sm:$0xff]
        %v1781 = vld [vmem:[#allocation2 + $0xe8] sm:$0xff]
        %v1782 = vld [vmem:[#allocation2 + $0x130] ss:$0 sm:$0xff]
        %v1783 = vld [vmem:[#allocation2 + $0x138] ss:$0 sm:$0xff]
        %1786 = vrot.lane.b32.xlu0 %v1780, 32
        %v1787 = vpop.permute.xlu0 %1786
        %1788 = vrot.lane.b32.xlu0 %v1781, 32
        %v1789 = vpop.permute.xlu0 %1788
        %v1790 = vsel %vm212, %v1787, %v1789
        %1794 = vrot.lane.b32.xlu0 %v1782, 48
        %v1795 = vpop.permute.xlu0 %1794
        %1796 = vrot.lane.b32.xlu0 %v1783, 48
        %v1797 = vpop.permute.xlu0 %1796
        %v1798 = vsel %vm209, %v1795, %v1797
        %vm1800 = vcmask 64512
        %v1802 = vsel %vm1800, %v1643, 0
        %1804 = vmatprep.subr.mxu0 0.0
        %1805 = vmatpush1.msra.mxu0 %v1790
        %1806 = vmatprep.subr.mxu0 0.0
        %1807 = vmatpush1.msra.mxu0 0.0
        %1808 = vmatprep.subr.mxu0 0.0
        %1809 = vmatpush1.msra.mxu0 0.0
        %1810 = vmatprep.subr.mxu0 0.0
        %1811 = vmatpush1.msra.mxu0 0.0
        %1812 = vmatprep.subr.mxu0 0.0
        %1813 = vmatpush1.msra.mxu0 0.0
        %1814 = vmatprep.subr.mxu0 0.0
        %1815 = vmatpush1.msra.mxu0 0.0
        %1816 = vmatprep.subr.mxu0 0.0
        %1817 = vmatpush1.msra.mxu0 0.0
        %1818 = vmatprep.subr.mxu0 0.0
        %1819 = vmatpush1.msra.mxu0 0.0
        %1820 = vmatprep.subr.mxu0 0.0
        %1821 = vmatpush1.msra.mxu0 0.0
        %1822 = vmatprep.subr.mxu0 0.0
        %1823 = vmatpush1.msra.mxu0 0.0
        %1824 = vmatprep.subr.mxu0 0.0
        %1825 = vmatpush1.msra.mxu0 0.0
        %1826 = vmatprep.subr.mxu0 0.0
        %1827 = vmatpush1.msra.mxu0 0.0
        %1828 = vmatprep.subr.mxu0 0.0
        %1829 = vmatpush1.msra.mxu0 0.0
        %1830 = vmatprep.subr.mxu0 0.0
        %1831 = vmatpush1.msra.mxu0 0.0
        %1832 = vmatprep.subr.mxu0 0.0
        %1833 = vmatpush1.msra.mxu0 0.0
        %1834 = vmatprep.subr.mxu0 0.0
        %1835 = vmatpush1.msra.mxu0 0.0
        %1836 = vmatprep.subr.mxu0 0.0
        %1837 = vmatpush1.msra.mxu0 0.0
        %1838 = vmatprep.subr.mxu0 0.0
        %1839 = vmatpush1.msra.mxu0 0.0
        %1840 = vmatprep.subr.mxu0 0.0
        %1841 = vmatpush1.msra.mxu0 0.0
        %1842 = vmatprep.subr.mxu0 0.0
        %1843 = vmatpush1.msra.mxu0 0.0
        %1844 = vmatprep.subr.mxu0 0.0
        %1845 = vmatpush1.msra.mxu0 0.0
        %1846 = vmatprep.subr.mxu0 0.0
        %1847 = vmatpush1.msra.mxu0 0.0
        %1848 = vmatprep.subr.mxu0 0.0
        %1849 = vmatpush1.msra.mxu0 0.0
        %1850 = vmatprep.subr.mxu0 0.0
        %1851 = vmatpush1.msra.mxu0 0.0
        %1852 = vmatprep.subr.mxu0 0.0
        %1853 = vmatpush1.msra.mxu0 0.0
        %1854 = vmatprep.subr.mxu0 0.0
        %1855 = vmatpush1.msra.mxu0 0.0
        %1856 = vmatprep.subr.mxu0 0.0
        %1857 = vmatpush1.msra.mxu0 0.0
        %1858 = vmatprep.subr.mxu0 0.0
        %1859 = vmatpush1.msra.mxu0 0.0
        %1860 = vmatprep.subr.mxu0 0.0
        %1861 = vmatpush1.msra.mxu0 0.0
        %1862 = vmatprep.subr.mxu0 0.0
        %1863 = vmatpush1.msra.mxu0 0.0
        %1864 = vmatprep.subr.mxu0 0.0
        %1865 = vmatpush1.msra.mxu0 0.0
        %1866 = vmatprep.subr.mxu0 0.0
        %1867 = vmatpush1.msra.mxu0 0.0
        %1868 = vmatprep.mubr.f32.mxu0 0.0
        %1869 = vmatmul.mubr.f32.gmra.mrb[0].mxu0 %v1802
        %v1870 = vpop.f32.mrb[0].mxu0
        %v1871 = vadd.f32 %v1798, %v1870
        %v1872 = vpop.f32.mrb[0].mxu0
        %1873 = vdwg.mxu0
        %v1874 = vld [vmem:[#allocation2 + $0x148] ss:$0 sm:$0xff]
        %1875 = vrot.lane.b32.xlu0 %v1781, 64
        %v1876 = vpop.permute.xlu0 %1875
        %1878 = vmatprep.subr.mxu0 0.0
        %1879 = vmatpush1.msra.mxu0 %v1876
        %1880 = vmatprep.subr.mxu0 0.0
        %1881 = vmatpush1.msra.mxu0 0.0
        %1882 = vmatprep.subr.mxu0 0.0
        %1883 = vmatpush1.msra.mxu0 0.0
        %1884 = vmatprep.subr.mxu0 0.0
        %1885 = vmatpush1.msra.mxu0 0.0
        %1886 = vmatprep.subr.mxu0 0.0
        %1887 = vmatpush1.msra.mxu0 0.0
        %1888 = vmatprep.subr.mxu0 0.0
        %1889 = vmatpush1.msra.mxu0 0.0
        %1890 = vmatprep.subr.mxu0 0.0
        %1891 = vmatpush1.msra.mxu0 0.0
        %1892 = vmatprep.subr.mxu0 0.0
        %1893 = vmatpush1.msra.mxu0 0.0
        %1894 = vmatprep.subr.mxu0 0.0
        %1895 = vmatpush1.msra.mxu0 0.0
        %1896 = vmatprep.subr.mxu0 0.0
        %1897 = vmatpush1.msra.mxu0 0.0
        %1898 = vmatprep.subr.mxu0 0.0
        %1899 = vmatpush1.msra.mxu0 0.0
        %1900 = vmatprep.subr.mxu0 0.0
        %1901 = vmatpush1.msra.mxu0 0.0
        %1902 = vmatprep.subr.mxu0 0.0
        %1903 = vmatpush1.msra.mxu0 0.0
        %1904 = vmatprep.subr.mxu0 0.0
        %1905 = vmatpush1.msra.mxu0 0.0
        %1906 = vmatprep.subr.mxu0 0.0
        %1907 = vmatpush1.msra.mxu0 0.0
        %1908 = vmatprep.subr.mxu0 0.0
        %1909 = vmatpush1.msra.mxu0 0.0
        %1910 = vmatprep.subr.mxu0 0.0
        %1911 = vmatpush1.msra.mxu0 0.0
        %1912 = vmatprep.subr.mxu0 0.0
        %1913 = vmatpush1.msra.mxu0 0.0
        %1914 = vmatprep.subr.mxu0 0.0
        %1915 = vmatpush1.msra.mxu0 0.0
        %1916 = vmatprep.subr.mxu0 0.0
        %1917 = vmatpush1.msra.mxu0 0.0
        %1918 = vmatprep.subr.mxu0 0.0
        %1919 = vmatpush1.msra.mxu0 0.0
        %1920 = vmatprep.subr.mxu0 0.0
        %1921 = vmatpush1.msra.mxu0 0.0
        %1922 = vmatprep.subr.mxu0 0.0
        %1923 = vmatpush1.msra.mxu0 0.0
        %1924 = vmatprep.subr.mxu0 0.0
        %1925 = vmatpush1.msra.mxu0 0.0
        %1926 = vmatprep.subr.mxu0 0.0
        %1927 = vmatpush1.msra.mxu0 0.0
        %1928 = vmatprep.subr.mxu0 0.0
        %1929 = vmatpush1.msra.mxu0 0.0
        %1930 = vmatprep.subr.mxu0 0.0
        %1931 = vmatpush1.msra.mxu0 0.0
        %1932 = vmatprep.subr.mxu0 0.0
        %1933 = vmatpush1.msra.mxu0 0.0
        %1934 = vmatprep.subr.mxu0 0.0
        %1935 = vmatpush1.msra.mxu0 0.0
        %1936 = vmatprep.subr.mxu0 0.0
        %1937 = vmatpush1.msra.mxu0 0.0
        %1938 = vmatprep.subr.mxu0 0.0
        %1939 = vmatpush1.msra.mxu0 0.0
        %1940 = vmatprep.subr.mxu0 0.0
        %1941 = vmatpush1.msra.mxu0 0.0
        %1942 = vmatprep.mubr.f32.mxu0 0.0
        %1943 = vmatmul.mubr.f32.gmra.mrb[0].mxu0 %v1802
        %v1944 = vpop.f32.mrb[0].mxu0
        %v1945 = vadd.f32 %v1874, %v1944
        %v1946 = vpop.f32.mrb[0].mxu0
        %1947 = vdwg.mxu0
        %v1948 = vld [vmem:[#allocation2 + $0x138] ss:$0 sm:$0xff]
        %v1949 = vld [vmem:[#allocation2 + $0x140] ss:$0 sm:$0xff]
        %v1950 = vld [vmem:[#allocation2 + $0xe0] sm:$0xff]
        %1952 = vrot.lane.b32.xlu0 %v1950, 64
        %v1953 = vpop.permute.xlu0 %1952
        %1956 = vrot.lane.b32.xlu0 %v1949, 32
        %v1957 = vpop.permute.xlu0 %1956
        %1959 = vmatprep.subr.mxu0 0.0
        %1960 = vmatpush1.msra.mxu0 %v1953
        %1961 = vmatprep.subr.mxu0 0.0
        %1962 = vmatpush1.msra.mxu0 0.0
        %1963 = vmatprep.subr.mxu0 0.0
        %1964 = vmatpush1.msra.mxu0 0.0
        %1965 = vmatprep.subr.mxu0 0.0
        %1966 = vmatpush1.msra.mxu0 0.0
        %1967 = vmatprep.subr.mxu0 0.0
        %1968 = vmatpush1.msra.mxu0 0.0
        %1969 = vmatprep.subr.mxu0 0.0
        %1970 = vmatpush1.msra.mxu0 0.0
        %1971 = vmatprep.subr.mxu0 0.0
        %1972 = vmatpush1.msra.mxu0 0.0
        %1973 = vmatprep.subr.mxu0 0.0
        %1974 = vmatpush1.msra.mxu0 0.0
        %1975 = vmatprep.subr.mxu0 0.0
        %1976 = vmatpush1.msra.mxu0 0.0
        %1977 = vmatprep.subr.mxu0 0.0
        %1978 = vmatpush1.msra.mxu0 0.0
        %1979 = vmatprep.subr.mxu0 0.0
        %1980 = vmatpush1.msra.mxu0 0.0
        %1981 = vmatprep.subr.mxu0 0.0
        %1982 = vmatpush1.msra.mxu0 0.0
        %1983 = vmatprep.subr.mxu0 0.0
        %1984 = vmatpush1.msra.mxu0 0.0
        %1985 = vmatprep.subr.mxu0 0.0
        %1986 = vmatpush1.msra.mxu0 0.0
        %1987 = vmatprep.subr.mxu0 0.0
        %1988 = vmatpush1.msra.mxu0 0.0
        %1989 = vmatprep.subr.mxu0 0.0
        %1990 = vmatpush1.msra.mxu0 0.0
        %1991 = vmatprep.subr.mxu0 0.0
        %1992 = vmatpush1.msra.mxu0 0.0
        %1993 = vmatprep.subr.mxu0 0.0
        %1994 = vmatpush1.msra.mxu0 0.0
        %1995 = vmatprep.subr.mxu0 0.0
        %1996 = vmatpush1.msra.mxu0 0.0
        %1997 = vmatprep.subr.mxu0 0.0
        %1998 = vmatpush1.msra.mxu0 0.0
        %1999 = vmatprep.subr.mxu0 0.0
        %2000 = vmatpush1.msra.mxu0 0.0
        %2001 = vmatprep.subr.mxu0 0.0
        %2002 = vmatpush1.msra.mxu0 0.0
        %2003 = vmatprep.subr.mxu0 0.0
        %2004 = vmatpush1.msra.mxu0 0.0
        %2005 = vmatprep.subr.mxu0 0.0
        %2006 = vmatpush1.msra.mxu0 0.0
        %2007 = vmatprep.subr.mxu0 0.0
        %2008 = vmatpush1.msra.mxu0 0.0
        %2009 = vmatprep.subr.mxu0 0.0
        %2010 = vmatpush1.msra.mxu0 0.0
        %2011 = vmatprep.subr.mxu0 0.0
        %2012 = vmatpush1.msra.mxu0 0.0
        %2013 = vmatprep.subr.mxu0 0.0
        %2014 = vmatpush1.msra.mxu0 0.0
        %2015 = vmatprep.subr.mxu0 0.0
        %2016 = vmatpush1.msra.mxu0 0.0
        %2017 = vmatprep.subr.mxu0 0.0
        %2018 = vmatpush1.msra.mxu0 0.0
        %2019 = vmatprep.subr.mxu0 0.0
        %2020 = vmatpush1.msra.mxu0 0.0
        %2021 = vmatprep.subr.mxu0 0.0
        %2022 = vmatpush1.msra.mxu0 0.0
        %2023 = vmatprep.mubr.f32.mxu0 0.0
        %2024 = vmatmul.mubr.f32.gmra.mrb[0].mxu0 %v1802
        %v2025 = vpop.f32.mrb[0].mxu0
        %v2026 = vadd.f32 %v1957, %v2025
        %v2027 = vpop.f32.mrb[0].mxu0
        %2028 = vdwg.mxu0
        %vm2029 = vcmp.eq.s32.totalorder %v194, 1
        %v2030 = vsel %vm2029, 1, 0
        %v2031 = vcvt.s32.f32 %v2030
        %v2033 = vsel %vm350, %v2031, 0
        %2035 = vmatprep.subr.mxu0 0.0
        %2036 = vmatpush1.msra.mxu0 %v1760
        %2037 = vmatprep.subr.mxu0 0.0
        %2038 = vmatpush1.msra.mxu0 %v1765
        %2039 = vmatprep.subr.mxu0 0.0
        %2040 = vmatpush1.msra.mxu0 0.0
        %2041 = vmatprep.subr.mxu0 0.0
        %2042 = vmatpush1.msra.mxu0 0.0
        %2043 = vmatprep.subr.mxu0 0.0
        %2044 = vmatpush1.msra.mxu0 0.0
        %2045 = vmatprep.subr.mxu0 0.0
        %2046 = vmatpush1.msra.mxu0 0.0
        %2047 = vmatprep.subr.mxu0 0.0
        %2048 = vmatpush1.msra.mxu0 0.0
        %2049 = vmatprep.subr.mxu0 0.0
        %2050 = vmatpush1.msra.mxu0 0.0
        %2051 = vmatprep.subr.mxu0 0.0
        %2052 = vmatpush1.msra.mxu0 0.0
        %2053 = vmatprep.subr.mxu0 0.0
        %2054 = vmatpush1.msra.mxu0 0.0
        %2055 = vmatprep.subr.mxu0 0.0
        %2056 = vmatpush1.msra.mxu0 0.0
        %2057 = vmatprep.subr.mxu0 0.0
        %2058 = vmatpush1.msra.mxu0 0.0
        %2059 = vmatprep.subr.mxu0 0.0
        %2060 = vmatpush1.msra.mxu0 0.0
        %2061 = vmatprep.subr.mxu0 0.0
        %2062 = vmatpush1.msra.mxu0 0.0
        %2063 = vmatprep.subr.mxu0 0.0
        %2064 = vmatpush1.msra.mxu0 0.0
        %2065 = vmatprep.subr.mxu0 0.0
        %2066 = vmatpush1.msra.mxu0 0.0
        %2067 = vmatprep.subr.mxu0 0.0
        %2068 = vmatpush1.msra.mxu0 0.0
        %2069 = vmatprep.subr.mxu0 0.0
        %2070 = vmatpush1.msra.mxu0 0.0
        %2071 = vmatprep.subr.mxu0 0.0
        %2072 = vmatpush1.msra.mxu0 0.0
        %2073 = vmatprep.subr.mxu0 0.0
        %2074 = vmatpush1.msra.mxu0 0.0
        %2075 = vmatprep.subr.mxu0 0.0
        %2076 = vmatpush1.msra.mxu0 0.0
        %2077 = vmatprep.subr.mxu0 0.0
        %2078 = vmatpush1.msra.mxu0 0.0
        %2079 = vmatprep.subr.mxu0 0.0
        %2080 = vmatpush1.msra.mxu0 0.0
        %2081 = vmatprep.subr.mxu0 0.0
        %2082 = vmatpush1.msra.mxu0 0.0
        %2083 = vmatprep.subr.mxu0 0.0
        %2084 = vmatpush1.msra.mxu0 0.0
        %2085 = vmatprep.subr.mxu0 0.0
        %2086 = vmatpush1.msra.mxu0 0.0
        %2087 = vmatprep.subr.mxu0 0.0
        %2088 = vmatpush1.msra.mxu0 0.0
        %2089 = vmatprep.subr.mxu0 0.0
        %2090 = vmatpush1.msra.mxu0 0.0
        %2091 = vmatprep.subr.mxu0 0.0
        %2092 = vmatpush1.msra.mxu0 0.0
        %2093 = vmatprep.subr.mxu0 0.0
        %2094 = vmatpush1.msra.mxu0 0.0
        %2095 = vmatprep.subr.mxu0 0.0
        %2096 = vmatpush1.msra.mxu0 0.0
        %2097 = vmatprep.subr.mxu0 0.0
        %2098 = vmatpush1.msra.mxu0 0.0
        %2099 = vmatprep.mubr.f32.mxu0 0.0
        %2100 = vmatmul.mubr.f32.gmra.mrb[0].mxu0 %v2033
        %v2101 = vpop.f32.mrb[0].mxu0
        %v2102 = vadd.f32 %v1871, %v2101
        %v2103 = vpop.f32.mrb[0].mxu0
        %2104 = vdwg.mxu0
        %v2106 = vsel %vm212, %v2026, 0
        %2108 = vmatprep.subr.mxu0 0.0
        %2109 = vmatpush1.msra.mxu0 %v1768
        %2110 = vmatprep.subr.mxu0 0.0
        %2111 = vmatpush1.msra.mxu0 %v1769
        %2112 = vmatprep.subr.mxu0 0.0
        %2113 = vmatpush1.msra.mxu0 %v1770
        %2114 = vmatprep.subr.mxu0 0.0
        %2115 = vmatpush1.msra.mxu0 %v1771
        %2116 = vmatprep.subr.mxu0 0.0
        %2117 = vmatpush1.msra.mxu0 0.0
        %2118 = vmatprep.subr.mxu0 0.0
        %2119 = vmatpush1.msra.mxu0 0.0
        %2120 = vmatprep.subr.mxu0 0.0
        %2121 = vmatpush1.msra.mxu0 0.0
        %2122 = vmatprep.subr.mxu0 0.0
        %2123 = vmatpush1.msra.mxu0 0.0
        %2124 = vmatprep.subr.mxu0 0.0
        %2125 = vmatpush1.msra.mxu0 0.0
        %2126 = vmatprep.subr.mxu0 0.0
        %2127 = vmatpush1.msra.mxu0 0.0
        %2128 = vmatprep.subr.mxu0 0.0
        %2129 = vmatpush1.msra.mxu0 0.0
        %2130 = vmatprep.subr.mxu0 0.0
        %2131 = vmatpush1.msra.mxu0 0.0
        %2132 = vmatprep.subr.mxu0 0.0
        %2133 = vmatpush1.msra.mxu0 0.0
        %2134 = vmatprep.subr.mxu0 0.0
        %2135 = vmatpush1.msra.mxu0 0.0
        %2136 = vmatprep.subr.mxu0 0.0
        %2137 = vmatpush1.msra.mxu0 0.0
        %2138 = vmatprep.subr.mxu0 0.0
        %2139 = vmatpush1.msra.mxu0 0.0
        %2140 = vmatprep.subr.mxu0 0.0
        %2141 = vmatpush1.msra.mxu0 0.0
        %2142 = vmatprep.subr.mxu0 0.0
        %2143 = vmatpush1.msra.mxu0 0.0
        %2144 = vmatprep.subr.mxu0 0.0
        %2145 = vmatpush1.msra.mxu0 0.0
        %2146 = vmatprep.subr.mxu0 0.0
        %2147 = vmatpush1.msra.mxu0 0.0
        %2148 = vmatprep.subr.mxu0 0.0
        %2149 = vmatpush1.msra.mxu0 0.0
        %2150 = vmatprep.subr.mxu0 0.0
        %2151 = vmatpush1.msra.mxu0 0.0
        %2152 = vmatprep.subr.mxu0 0.0
        %2153 = vmatpush1.msra.mxu0 0.0
        %2154 = vmatprep.subr.mxu0 0.0
        %2155 = vmatpush1.msra.mxu0 0.0
        %2156 = vmatprep.subr.mxu0 0.0
        %2157 = vmatpush1.msra.mxu0 0.0
        %2158 = vmatprep.subr.mxu0 0.0
        %2159 = vmatpush1.msra.mxu0 0.0
        %2160 = vmatprep.subr.mxu0 0.0
        %2161 = vmatpush1.msra.mxu0 0.0
        %2162 = vmatprep.subr.mxu0 0.0
        %2163 = vmatpush1.msra.mxu0 0.0
        %2164 = vmatprep.subr.mxu0 0.0
        %2165 = vmatpush1.msra.mxu0 0.0
        %2166 = vmatprep.subr.mxu0 0.0
        %2167 = vmatpush1.msra.mxu0 0.0
        %2168 = vmatprep.subr.mxu0 0.0
        %2169 = vmatpush1.msra.mxu0 0.0
        %2170 = vmatprep.subr.mxu0 0.0
        %2171 = vmatpush1.msra.mxu0 0.0
        %2172 = vmatprep.mubr.f32.mxu0 0.0
        %2173 = vmatmul.mubr.f32.gmra.mrb[0].mxu0 %v2106
        %v2174 = vpop.f32.mrb[0].mxu0
        %v2175 = vadd.f32 0.0, %v2174
        %v2176 = vpop.f32.mrb[0].mxu0
        %2177 = vdwg.mxu0
        %v2178 = vadd.f32 %v2102, %v2175
        %v2179 = vxor.u32 %v2178, 2147483648
        %v2180 = vmul.f32 %v2179, 1.442695
        %v2181 = vpow.pop %v2180
        %v2182 = vadd.f32 %v2181, 1.0
        %v2183 = vrcp.pop %v2182
        %v2184 = vmul.f32 1.0, %v2183
        %2185 = vrot.lane.b32.xlu0 %v1783, 16
        %v2186 = vpop.permute.xlu0 %2185
        %v2188 = vadd.f32 %v2175, %v2186
        %2190 = vrot.lane.b32.xlu0 %v2188, 64
        %v2191 = vpop.permute.xlu0 %2190
        %v2193 = vmul.f32 %v2184, %v2191
        %2195 = vrot.lane.b32.xlu0 %v2193, 64
        %v2196 = vpop.permute.xlu0 %2195
        %v2198 = vadd.f32 %v2102, %v2196
        %v2199 = vtanh.pop %v2198
        %v2200 = vsub.f32 1.0, %v2184
        %2202 = vrot.lane.b32.xlu0 %v2199, 96
        %v2203 = vpop.permute.xlu0 %2202
        %v2205 = vmul.f32 %v2200, %v2203
        %2206 = vrot.lane.b32.xlu0 %v2026, 32
        %v2207 = vpop.permute.xlu0 %2206
        %v2209 = vmul.f32 %v2184, %v2207
        %v2210 = vadd.f32 %v2205, %v2209
        %2212 = vrot.lane.b32.xlu0 %v2210, 96
        %v2213 = vpop.permute.xlu0 %2212
        %2222 = vrot.lane.b32.xlu0 %v1768, 32
        %v2223 = vpop.permute.xlu0 %2222
        %2224 = vrot.lane.b32.xlu0 %v1772, 32
        %v2225 = vpop.permute.xlu0 %2224
        %2226 = vrot.lane.b32.xlu0 %v1769, 32
        %v2227 = vpop.permute.xlu0 %2226
        %2228 = vrot.lane.b32.xlu0 %v1773, 32
        %v2229 = vpop.permute.xlu0 %2228
        %2230 = vrot.lane.b32.xlu0 %v1770, 32
        %v2231 = vpop.permute.xlu0 %2230
        %2232 = vrot.lane.b32.xlu0 %v1774, 32
        %v2233 = vpop.permute.xlu0 %2232
        %2234 = vrot.lane.b32.xlu0 %v1771, 32
        %v2235 = vpop.permute.xlu0 %2234
        %2236 = vrot.lane.b32.xlu0 %v1775, 32
        %v2237 = vpop.permute.xlu0 %2236
        %v2238 = vsel %vm212, %v2223, %v2225
        %v2239 = vsel %vm212, %v2227, %v2229
        %v2240 = vsel %vm212, %v2231, %v2233
        %v2241 = vsel %vm212, %v2235, %v2237
        %2247 = vrot.lane.b32.xlu0 %v1948, 48
        %v2248 = vpop.permute.xlu0 %2247
        %2249 = vrot.lane.b32.xlu0 %v1949, 48
        %v2250 = vpop.permute.xlu0 %2249
        %v2251 = vsel %vm209, %v2248, %v2250
        %v2253 = vsel %vm212, %v2213, 0
        %2255 = vmatprep.subr.mxu0 0.0
        %2256 = vmatpush1.msra.mxu0 %v2238
        %2257 = vmatprep.subr.mxu0 0.0
        %2258 = vmatpush1.msra.mxu0 %v2239
        %2259 = vmatprep.subr.mxu0 0.0
        %2260 = vmatpush1.msra.mxu0 %v2240
        %2261 = vmatprep.subr.mxu0 0.0
        %2262 = vmatpush1.msra.mxu0 %v2241
        %2263 = vmatprep.subr.mxu0 0.0
        %2264 = vmatpush1.msra.mxu0 0.0
        %2265 = vmatprep.subr.mxu0 0.0
        %2266 = vmatpush1.msra.mxu0 0.0
        %2267 = vmatprep.subr.mxu0 0.0
        %2268 = vmatpush1.msra.mxu0 0.0
        %2269 = vmatprep.subr.mxu0 0.0
        %2270 = vmatpush1.msra.mxu0 0.0
        %2271 = vmatprep.subr.mxu0 0.0
        %2272 = vmatpush1.msra.mxu0 0.0
        %2273 = vmatprep.subr.mxu0 0.0
        %2274 = vmatpush1.msra.mxu0 0.0
        %2275 = vmatprep.subr.mxu0 0.0
        %2276 = vmatpush1.msra.mxu0 0.0
        %2277 = vmatprep.subr.mxu0 0.0
        %2278 = vmatpush1.msra.mxu0 0.0
        %2279 = vmatprep.subr.mxu0 0.0
        %2280 = vmatpush1.msra.mxu0 0.0
        %2281 = vmatprep.subr.mxu0 0.0
        %2282 = vmatpush1.msra.mxu0 0.0
        %2283 = vmatprep.subr.mxu0 0.0
        %2284 = vmatpush1.msra.mxu0 0.0
        %2285 = vmatprep.subr.mxu0 0.0
        %2286 = vmatpush1.msra.mxu0 0.0
        %2287 = vmatprep.subr.mxu0 0.0
        %2288 = vmatpush1.msra.mxu0 0.0
        %2289 = vmatprep.subr.mxu0 0.0
        %2290 = vmatpush1.msra.mxu0 0.0
        %2291 = vmatprep.subr.mxu0 0.0
        %2292 = vmatpush1.msra.mxu0 0.0
        %2293 = vmatprep.subr.mxu0 0.0
        %2294 = vmatpush1.msra.mxu0 0.0
        %2295 = vmatprep.subr.mxu0 0.0
        %2296 = vmatpush1.msra.mxu0 0.0
        %2297 = vmatprep.subr.mxu0 0.0
        %2298 = vmatpush1.msra.mxu0 0.0
        %2299 = vmatprep.subr.mxu0 0.0
        %2300 = vmatpush1.msra.mxu0 0.0
        %2301 = vmatprep.subr.mxu0 0.0
        %2302 = vmatpush1.msra.mxu0 0.0
        %2303 = vmatprep.subr.mxu0 0.0
        %2304 = vmatpush1.msra.mxu0 0.0
        %2305 = vmatprep.subr.mxu0 0.0
        %2306 = vmatpush1.msra.mxu0 0.0
        %2307 = vmatprep.subr.mxu0 0.0
        %2308 = vmatpush1.msra.mxu0 0.0
        %2309 = vmatprep.subr.mxu0 0.0
        %2310 = vmatpush1.msra.mxu0 0.0
        %2311 = vmatprep.subr.mxu0 0.0
        %2312 = vmatpush1.msra.mxu0 0.0
        %2313 = vmatprep.subr.mxu0 0.0
        %2314 = vmatpush1.msra.mxu0 0.0
        %2315 = vmatprep.subr.mxu0 0.0
        %2316 = vmatpush1.msra.mxu0 0.0
        %2317 = vmatprep.subr.mxu0 0.0
        %2318 = vmatpush1.msra.mxu0 0.0
        %2319 = vmatprep.mubr.f32.mxu0 0.0
        %2320 = vmatmul.mubr.f32.gmra.mrb[0].mxu0 %v2253
        %v2321 = vpop.f32.mrb[0].mxu0
        %v2322 = vadd.f32 %v2251, %v2321
        %v2323 = vpop.f32.mrb[0].mxu0
        %2324 = vdwg.mxu0
        %2329 = vrot.lane.b32.xlu0 %v1772, 64
        %v2330 = vpop.permute.xlu0 %2329
        %2331 = vrot.lane.b32.xlu0 %v1776, 64
        %v2332 = vpop.permute.xlu0 %2331
        %2333 = vrot.lane.b32.xlu0 %v1773, 64
        %v2334 = vpop.permute.xlu0 %2333
        %2335 = vrot.lane.b32.xlu0 %v1777, 64
        %v2336 = vpop.permute.xlu0 %2335
        %2337 = vrot.lane.b32.xlu0 %v1774, 64
        %v2338 = vpop.permute.xlu0 %2337
        %2339 = vrot.lane.b32.xlu0 %v1778, 64
        %v2340 = vpop.permute.xlu0 %2339
        %2341 = vrot.lane.b32.xlu0 %v1775, 64
        %v2342 = vpop.permute.xlu0 %2341
        %2343 = vrot.lane.b32.xlu0 %v1779, 64
        %v2344 = vpop.permute.xlu0 %2343
        %v2345 = vsel %vm1433, %v2330, %v2332
        %v2346 = vsel %vm1433, %v2334, %v2336
        %v2347 = vsel %vm1433, %v2338, %v2340
        %v2348 = vsel %vm1433, %v2342, %v2344
        %2353 = vmatprep.subr.mxu0 0.0
        %2354 = vmatpush1.msra.mxu0 %v2345
        %2355 = vmatprep.subr.mxu0 0.0
        %2356 = vmatpush1.msra.mxu0 %v2346
        %2357 = vmatprep.subr.mxu0 0.0
        %2358 = vmatpush1.msra.mxu0 %v2347
        %2359 = vmatprep.subr.mxu0 0.0
        %2360 = vmatpush1.msra.mxu0 %v2348
        %2361 = vmatprep.subr.mxu0 0.0
        %2362 = vmatpush1.msra.mxu0 0.0
        %2363 = vmatprep.subr.mxu0 0.0
        %2364 = vmatpush1.msra.mxu0 0.0
        %2365 = vmatprep.subr.mxu0 0.0
        %2366 = vmatpush1.msra.mxu0 0.0
        %2367 = vmatprep.subr.mxu0 0.0
        %2368 = vmatpush1.msra.mxu0 0.0
        %2369 = vmatprep.subr.mxu0 0.0
        %2370 = vmatpush1.msra.mxu0 0.0
        %2371 = vmatprep.subr.mxu0 0.0
        %2372 = vmatpush1.msra.mxu0 0.0
        %2373 = vmatprep.subr.mxu0 0.0
        %2374 = vmatpush1.msra.mxu0 0.0
        %2375 = vmatprep.subr.mxu0 0.0
        %2376 = vmatpush1.msra.mxu0 0.0
        %2377 = vmatprep.subr.mxu0 0.0
        %2378 = vmatpush1.msra.mxu0 0.0
        %2379 = vmatprep.subr.mxu0 0.0
        %2380 = vmatpush1.msra.mxu0 0.0
        %2381 = vmatprep.subr.mxu0 0.0
        %2382 = vmatpush1.msra.mxu0 0.0
        %2383 = vmatprep.subr.mxu0 0.0
        %2384 = vmatpush1.msra.mxu0 0.0
        %2385 = vmatprep.subr.mxu0 0.0
        %2386 = vmatpush1.msra.mxu0 0.0
        %2387 = vmatprep.subr.mxu0 0.0
        %2388 = vmatpush1.msra.mxu0 0.0
        %2389 = vmatprep.subr.mxu0 0.0
        %2390 = vmatpush1.msra.mxu0 0.0
        %2391 = vmatprep.subr.mxu0 0.0
        %2392 = vmatpush1.msra.mxu0 0.0
        %2393 = vmatprep.subr.mxu0 0.0
        %2394 = vmatpush1.msra.mxu0 0.0
        %2395 = vmatprep.subr.mxu0 0.0
        %2396 = vmatpush1.msra.mxu0 0.0
        %2397 = vmatprep.subr.mxu0 0.0
        %2398 = vmatpush1.msra.mxu0 0.0
        %2399 = vmatprep.subr.mxu0 0.0
        %2400 = vmatpush1.msra.mxu0 0.0
        %2401 = vmatprep.subr.mxu0 0.0
        %2402 = vmatpush1.msra.mxu0 0.0
        %2403 = vmatprep.subr.mxu0 0.0
        %2404 = vmatpush1.msra.mxu0 0.0
        %2405 = vmatprep.subr.mxu0 0.0
        %2406 = vmatpush1.msra.mxu0 0.0
        %2407 = vmatprep.subr.mxu0 0.0
        %2408 = vmatpush1.msra.mxu0 0.0
        %2409 = vmatprep.subr.mxu0 0.0
        %2410 = vmatpush1.msra.mxu0 0.0
        %2411 = vmatprep.subr.mxu0 0.0
        %2412 = vmatpush1.msra.mxu0 0.0
        %2413 = vmatprep.subr.mxu0 0.0
        %2414 = vmatpush1.msra.mxu0 0.0
        %2415 = vmatprep.subr.mxu0 0.0
        %2416 = vmatpush1.msra.mxu0 0.0
        %2417 = vmatprep.mubr.f32.mxu0 0.0
        %2418 = vmatmul.mubr.f32.gmra.mrb[0].mxu0 %v2106
        %v2419 = vpop.f32.mrb[0].mxu0
        %v2420 = vadd.f32 0.0, %v2419
        %v2421 = vpop.f32.mrb[0].mxu0
        %2422 = vdwg.mxu0
        %v2423 = vadd.f32 %v2322, %v2420
        %v2424 = vxor.u32 %v2423, 2147483648
        %v2425 = vmul.f32 %v2424, 1.442695
        %v2426 = vpow.pop %v2425
        %v2427 = vadd.f32 %v2426, 1.0
        %v2428 = vrcp.pop %v2427
        %v2429 = vmul.f32 1.0, %v2428
        %2430 = vrot.lane.b32.xlu0 %v1949, 16
        %v2431 = vpop.permute.xlu0 %2430
        %v2433 = vadd.f32 %v2420, %v2431
        %2435 = vrot.lane.b32.xlu0 %v2433, 64
        %v2436 = vpop.permute.xlu0 %2435
        %v2438 = vmul.f32 %v2429, %v2436
        %2440 = vrot.lane.b32.xlu0 %v2438, 64
        %v2441 = vpop.permute.xlu0 %2440
        %v2443 = vadd.f32 %v2322, %v2441
        %v2444 = vtanh.pop %v2443
        %v2445 = vsub.f32 1.0, %v2429
        %2447 = vrot.lane.b32.xlu0 %v2444, 96
        %v2448 = vpop.permute.xlu0 %2447
        %v2450 = vmul.f32 %v2445, %v2448
        %v2451 = vmul.f32 %v2429, %v2207
        %v2452 = vadd.f32 %v2450, %v2451
        %2454 = vrot.lane.b32.xlu0 %v2452, 96
        %v2455 = vpop.permute.xlu0 %2454
        %2456 = vrot.lane.b32.xlu0 %v1776, 80
        %v2457 = vpop.permute.xlu0 %2456
        %2458 = vrot.lane.b32.xlu0 %v1777, 80
        %v2459 = vpop.permute.xlu0 %2458
        %2460 = vrot.lane.b32.xlu0 %v1778, 80
        %v2461 = vpop.permute.xlu0 %2460
        %2462 = vrot.lane.b32.xlu0 %v1779, 80
        %v2463 = vpop.permute.xlu0 %2462
        %v2468 = vsel %vm212, %v2455, 0
        %2470 = vmatprep.subr.mxu0 0.0
        %2471 = vmatpush1.msra.mxu0 %v2457
        %2472 = vmatprep.subr.mxu0 0.0
        %2473 = vmatpush1.msra.mxu0 %v2459
        %2474 = vmatprep.subr.mxu0 0.0
        %2475 = vmatpush1.msra.mxu0 %v2461
        %2476 = vmatprep.subr.mxu0 0.0
        %2477 = vmatpush1.msra.mxu0 %v2463
        %2478 = vmatprep.subr.mxu0 0.0
        %2479 = vmatpush1.msra.mxu0 0.0
        %2480 = vmatprep.subr.mxu0 0.0
        %2481 = vmatpush1.msra.mxu0 0.0
        %2482 = vmatprep.subr.mxu0 0.0
        %2483 = vmatpush1.msra.mxu0 0.0
        %2484 = vmatprep.subr.mxu0 0.0
        %2485 = vmatpush1.msra.mxu0 0.0
        %2486 = vmatprep.subr.mxu0 0.0
        %2487 = vmatpush1.msra.mxu0 0.0
        %2488 = vmatprep.subr.mxu0 0.0
        %2489 = vmatpush1.msra.mxu0 0.0
        %2490 = vmatprep.subr.mxu0 0.0
        %2491 = vmatpush1.msra.mxu0 0.0
        %2492 = vmatprep.subr.mxu0 0.0
        %2493 = vmatpush1.msra.mxu0 0.0
        %2494 = vmatprep.subr.mxu0 0.0
        %2495 = vmatpush1.msra.mxu0 0.0
        %2496 = vmatprep.subr.mxu0 0.0
        %2497 = vmatpush1.msra.mxu0 0.0
        %2498 = vmatprep.subr.mxu0 0.0
        %2499 = vmatpush1.msra.mxu0 0.0
        %2500 = vmatprep.subr.mxu0 0.0
        %2501 = vmatpush1.msra.mxu0 0.0
        %2502 = vmatprep.subr.mxu0 0.0
        %2503 = vmatpush1.msra.mxu0 0.0
        %2504 = vmatprep.subr.mxu0 0.0
        %2505 = vmatpush1.msra.mxu0 0.0
        %2506 = vmatprep.subr.mxu0 0.0
        %2507 = vmatpush1.msra.mxu0 0.0
        %2508 = vmatprep.subr.mxu0 0.0
        %2509 = vmatpush1.msra.mxu0 0.0
        %2510 = vmatprep.subr.mxu0 0.0
        %2511 = vmatpush1.msra.mxu0 0.0
        %2512 = vmatprep.subr.mxu0 0.0
        %2513 = vmatpush1.msra.mxu0 0.0
        %2514 = vmatprep.subr.mxu0 0.0
        %2515 = vmatpush1.msra.mxu0 0.0
        %2516 = vmatprep.subr.mxu0 0.0
        %2517 = vmatpush1.msra.mxu0 0.0
        %2518 = vmatprep.subr.mxu0 0.0
        %2519 = vmatpush1.msra.mxu0 0.0
        %2520 = vmatprep.subr.mxu0 0.0
        %2521 = vmatpush1.msra.mxu0 0.0
        %2522 = vmatprep.subr.mxu0 0.0
        %2523 = vmatpush1.msra.mxu0 0.0
        %2524 = vmatprep.subr.mxu0 0.0
        %2525 = vmatpush1.msra.mxu0 0.0
        %2526 = vmatprep.subr.mxu0 0.0
        %2527 = vmatpush1.msra.mxu0 0.0
        %2528 = vmatprep.subr.mxu0 0.0
        %2529 = vmatpush1.msra.mxu0 0.0
        %2530 = vmatprep.subr.mxu0 0.0
        %2531 = vmatpush1.msra.mxu0 0.0
        %2532 = vmatprep.subr.mxu0 0.0
        %2533 = vmatpush1.msra.mxu0 0.0
        %2534 = vmatprep.mubr.f32.mxu0 0.0
        %2535 = vmatmul.mubr.f32.gmra.mrb[0].mxu0 %v2468
        %v2536 = vpop.f32.mrb[0].mxu0
        %v2537 = vadd.f32 %v1945, %v2536
        %v2538 = vpop.f32.mrb[0].mxu0
        %2539 = vdwg.mxu0
        %v2540 = vsel %vm350, %v2537, -inf
        %2541 = vmax.xlane.f32.xlu0 %v2540
        %v2542 = vpop.xlane.xlu0 %2541
        %vm2543 = vcmp.eq.f32.partialorder %v2537, %v2542
        %v2544 = vsel %vm2543, %v194, 16
        %v2545 = vsel %vm350, %v2544, 2147483647
        %v2546 = vand.u32 %v2545, 65535
        %v2547 = vshra.s32 %v2545, 16
        %v2548 = vcvt.s32.f32 %v2546
        %v2549 = vcvt.s32.f32 %v2547
        %2550 = vmin.xlane.f32.xlu0 %v2549
        %v2551 = vpop.xlane.xlu0 %2550
        %vm2552 = vcmp.eq.f32.partialorder %v2549, %v2551
        %v2553 = vsel %vm2552, %v2548, inf
        %2554 = vmin.xlane.f32.xlu0 %v2553
        %v2555 = vpop.xlane.xlu0 %2554
        %v2556 = vcvt.f32.s32 %v2555
        %v2557 = vcvt.f32.s32 %v2551
        %v2558 = vshll.u32 %v2557, 16
        %v2559 = vadd.s32 %v2558, %v2556
        %vm2560 = vcmp.eq.s32.totalorder %v194, %v2559
        %v2561 = vsel %vm2560, 1, 0
        %v2562 = vcvt.s32.f32 %v2561
        %v2563 = vsub.f32 %v2537, %v2542
        %v2564 = vmul.f32 %v2563, 1.442695
        %v2565 = vpow.pop %v2564
        %v2566 = vsel %vm350, %v2565, 0.0
        %2567 = vadd.xlane.f32.xlu0 %v2566
        %v2568 = vpop.xlane.xlu0 %2567
        %v2569 = vlog2.pop %v2568
        %v2570 = vmul.f32 %v2569, 0.6931472
        %v2571 = vsub.f32 %v2563, %v2570
        %v2573 = vsel %vm350, %v2562, 0
        %2575 = vmatprep.subr.mxu0 0.0
        %2576 = vmatpush1.msra.mxu0 %v1760
        %2577 = vmatprep.subr.mxu0 0.0
        %2578 = vmatpush1.msra.mxu0 %v1765
        %2579 = vmatprep.subr.mxu0 0.0
        %2580 = vmatpush1.msra.mxu0 0.0
        %2581 = vmatprep.subr.mxu0 0.0
        %2582 = vmatpush1.msra.mxu0 0.0
        %2583 = vmatprep.subr.mxu0 0.0
        %2584 = vmatpush1.msra.mxu0 0.0
        %2585 = vmatprep.subr.mxu0 0.0
        %2586 = vmatpush1.msra.mxu0 0.0
        %2587 = vmatprep.subr.mxu0 0.0
        %2588 = vmatpush1.msra.mxu0 0.0
        %2589 = vmatprep.subr.mxu0 0.0
        %2590 = vmatpush1.msra.mxu0 0.0
        %2591 = vmatprep.subr.mxu0 0.0
        %2592 = vmatpush1.msra.mxu0 0.0
        %2593 = vmatprep.subr.mxu0 0.0
        %2594 = vmatpush1.msra.mxu0 0.0
        %2595 = vmatprep.subr.mxu0 0.0
        %2596 = vmatpush1.msra.mxu0 0.0
        %2597 = vmatprep.subr.mxu0 0.0
        %2598 = vmatpush1.msra.mxu0 0.0
        %2599 = vmatprep.subr.mxu0 0.0
        %2600 = vmatpush1.msra.mxu0 0.0
        %2601 = vmatprep.subr.mxu0 0.0
        %2602 = vmatpush1.msra.mxu0 0.0
        %2603 = vmatprep.subr.mxu0 0.0
        %2604 = vmatpush1.msra.mxu0 0.0
        %2605 = vmatprep.subr.mxu0 0.0
        %2606 = vmatpush1.msra.mxu0 0.0
        %2607 = vmatprep.subr.mxu0 0.0
        %2608 = vmatpush1.msra.mxu0 0.0
        %2609 = vmatprep.subr.mxu0 0.0
        %2610 = vmatpush1.msra.mxu0 0.0
        %2611 = vmatprep.subr.mxu0 0.0
        %2612 = vmatpush1.msra.mxu0 0.0
        %2613 = vmatprep.subr.mxu0 0.0
        %2614 = vmatpush1.msra.mxu0 0.0
        %2615 = vmatprep.subr.mxu0 0.0
        %2616 = vmatpush1.msra.mxu0 0.0
        %2617 = vmatprep.subr.mxu0 0.0
        %2618 = vmatpush1.msra.mxu0 0.0
        %2619 = vmatprep.subr.mxu0 0.0
        %2620 = vmatpush1.msra.mxu0 0.0
        %2621 = vmatprep.subr.mxu0 0.0
        %2622 = vmatpush1.msra.mxu0 0.0
        %2623 = vmatprep.subr.mxu0 0.0
        %2624 = vmatpush1.msra.mxu0 0.0
        %2625 = vmatprep.subr.mxu0 0.0
        %2626 = vmatpush1.msra.mxu0 0.0
        %2627 = vmatprep.subr.mxu0 0.0
        %2628 = vmatpush1.msra.mxu0 0.0
        %2629 = vmatprep.subr.mxu0 0.0
        %2630 = vmatpush1.msra.mxu0 0.0
        %2631 = vmatprep.subr.mxu0 0.0
        %2632 = vmatpush1.msra.mxu0 0.0
        %2633 = vmatprep.subr.mxu0 0.0
        %2634 = vmatpush1.msra.mxu0 0.0
        %2635 = vmatprep.subr.mxu0 0.0
        %2636 = vmatpush1.msra.mxu0 0.0
        %2637 = vmatprep.subr.mxu0 0.0
        %2638 = vmatpush1.msra.mxu0 0.0
        %2639 = vmatprep.mubr.f32.mxu0 0.0
        %2640 = vmatmul.mubr.f32.gmra.mrb[0].mxu0 %v2573
        %v2641 = vpop.f32.mrb[0].mxu0
        %v2642 = vadd.f32 %v1871, %v2641
        %v2643 = vpop.f32.mrb[0].mxu0
        %2644 = vdwg.mxu0
        %2645 = vmatprep.subr.mxu0 0.0
        %2646 = vmatpush1.msra.mxu0 %v1768
        %2647 = vmatprep.subr.mxu0 0.0
        %2648 = vmatpush1.msra.mxu0 %v1769
        %2649 = vmatprep.subr.mxu0 0.0
        %2650 = vmatpush1.msra.mxu0 %v1770
        %2651 = vmatprep.subr.mxu0 0.0
        %2652 = vmatpush1.msra.mxu0 %v1771
        %2653 = vmatprep.subr.mxu0 0.0
        %2654 = vmatpush1.msra.mxu0 0.0
        %2655 = vmatprep.subr.mxu0 0.0
        %2656 = vmatpush1.msra.mxu0 0.0
        %2657 = vmatprep.subr.mxu0 0.0
        %2658 = vmatpush1.msra.mxu0 0.0
        %2659 = vmatprep.subr.mxu0 0.0
        %2660 = vmatpush1.msra.mxu0 0.0
        %2661 = vmatprep.subr.mxu0 0.0
        %2662 = vmatpush1.msra.mxu0 0.0
        %2663 = vmatprep.subr.mxu0 0.0
        %2664 = vmatpush1.msra.mxu0 0.0
        %2665 = vmatprep.subr.mxu0 0.0
        %2666 = vmatpush1.msra.mxu0 0.0
        %2667 = vmatprep.subr.mxu0 0.0
        %2668 = vmatpush1.msra.mxu0 0.0
        %2669 = vmatprep.subr.mxu0 0.0
        %2670 = vmatpush1.msra.mxu0 0.0
        %2671 = vmatprep.subr.mxu0 0.0
        %2672 = vmatpush1.msra.mxu0 0.0
        %2673 = vmatprep.subr.mxu0 0.0
        %2674 = vmatpush1.msra.mxu0 0.0
        %2675 = vmatprep.subr.mxu0 0.0
        %2676 = vmatpush1.msra.mxu0 0.0
        %2677 = vmatprep.subr.mxu0 0.0
        %2678 = vmatpush1.msra.mxu0 0.0
        %2679 = vmatprep.subr.mxu0 0.0
        %2680 = vmatpush1.msra.mxu0 0.0
        %2681 = vmatprep.subr.mxu0 0.0
        %2682 = vmatpush1.msra.mxu0 0.0
        %2683 = vmatprep.subr.mxu0 0.0
        %2684 = vmatpush1.msra.mxu0 0.0
        %2685 = vmatprep.subr.mxu0 0.0
        %2686 = vmatpush1.msra.mxu0 0.0
        %2687 = vmatprep.subr.mxu0 0.0
        %2688 = vmatpush1.msra.mxu0 0.0
        %2689 = vmatprep.subr.mxu0 0.0
        %2690 = vmatpush1.msra.mxu0 0.0
        %2691 = vmatprep.subr.mxu0 0.0
        %2692 = vmatpush1.msra.mxu0 0.0
        %2693 = vmatprep.subr.mxu0 0.0
        %2694 = vmatpush1.msra.mxu0 0.0
        %2695 = vmatprep.subr.mxu0 0.0
        %2696 = vmatpush1.msra.mxu0 0.0
        %2697 = vmatprep.subr.mxu0 0.0
        %2698 = vmatpush1.msra.mxu0 0.0
        %2699 = vmatprep.subr.mxu0 0.0
        %2700 = vmatpush1.msra.mxu0 0.0
        %2701 = vmatprep.subr.mxu0 0.0
        %2702 = vmatpush1.msra.mxu0 0.0
        %2703 = vmatprep.subr.mxu0 0.0
        %2704 = vmatpush1.msra.mxu0 0.0
        %2705 = vmatprep.subr.mxu0 0.0
        %2706 = vmatpush1.msra.mxu0 0.0
        %2707 = vmatprep.subr.mxu0 0.0
        %2708 = vmatpush1.msra.mxu0 0.0
        %2709 = vmatprep.mubr.f32.mxu0 0.0
        %2710 = vmatmul.mubr.f32.gmra.mrb[0].mxu0 %v2253
        %v2711 = vpop.f32.mrb[0].mxu0
        %v2712 = vadd.f32 0.0, %v2711
        %v2713 = vpop.f32.mrb[0].mxu0
        %2714 = vdwg.mxu0
        %v2715 = vadd.f32 %v2642, %v2712
        %v2716 = vxor.u32 %v2715, 2147483648
        %v2717 = vmul.f32 %v2716, 1.442695
        %v2718 = vpow.pop %v2717
        %v2719 = vadd.f32 %v2718, 1.0
        %v2720 = vrcp.pop %v2719
        %v2721 = vmul.f32 1.0, %v2720
        %v2722 = vadd.f32 %v2712, %v2186
        %2724 = vrot.lane.b32.xlu0 %v2722, 64
        %v2725 = vpop.permute.xlu0 %2724
        %v2727 = vmul.f32 %v2721, %v2725
        %2729 = vrot.lane.b32.xlu0 %v2727, 64
        %v2730 = vpop.permute.xlu0 %2729
        %v2732 = vadd.f32 %v2642, %v2730
        %v2733 = vtanh.pop %v2732
        %v2734 = vsub.f32 1.0, %v2721
        %2736 = vrot.lane.b32.xlu0 %v2733, 96
        %v2737 = vpop.permute.xlu0 %2736
        %v2739 = vmul.f32 %v2734, %v2737
        %v2740 = vmul.f32 %v2721, %v2210
        %v2741 = vadd.f32 %v2739, %v2740
        %2743 = vrot.lane.b32.xlu0 %v2741, 96
        %v2744 = vpop.permute.xlu0 %2743
        %v2745 = vsel %vm212, %v2744, 0
        %2747 = vmatprep.subr.mxu0 0.0
        %2748 = vmatpush1.msra.mxu0 %v2238
        %2749 = vmatprep.subr.mxu0 0.0
        %2750 = vmatpush1.msra.mxu0 %v2239
        %2751 = vmatprep.subr.mxu0 0.0
        %2752 = vmatpush1.msra.mxu0 %v2240
        %2753 = vmatprep.subr.mxu0 0.0
        %2754 = vmatpush1.msra.mxu0 %v2241
        %2755 = vmatprep.subr.mxu0 0.0
        %2756 = vmatpush1.msra.mxu0 0.0
        %2757 = vmatprep.subr.mxu0 0.0
        %2758 = vmatpush1.msra.mxu0 0.0
        %2759 = vmatprep.subr.mxu0 0.0
        %2760 = vmatpush1.msra.mxu0 0.0
        %2761 = vmatprep.subr.mxu0 0.0
        %2762 = vmatpush1.msra.mxu0 0.0
        %2763 = vmatprep.subr.mxu0 0.0
        %2764 = vmatpush1.msra.mxu0 0.0
        %2765 = vmatprep.subr.mxu0 0.0
        %2766 = vmatpush1.msra.mxu0 0.0
        %2767 = vmatprep.subr.mxu0 0.0
        %2768 = vmatpush1.msra.mxu0 0.0
        %2769 = vmatprep.subr.mxu0 0.0
        %2770 = vmatpush1.msra.mxu0 0.0
        %2771 = vmatprep.subr.mxu0 0.0
        %2772 = vmatpush1.msra.mxu0 0.0
        %2773 = vmatprep.subr.mxu0 0.0
        %2774 = vmatpush1.msra.mxu0 0.0
        %2775 = vmatprep.subr.mxu0 0.0
        %2776 = vmatpush1.msra.mxu0 0.0
        %2777 = vmatprep.subr.mxu0 0.0
        %2778 = vmatpush1.msra.mxu0 0.0
        %2779 = vmatprep.subr.mxu0 0.0
        %2780 = vmatpush1.msra.mxu0 0.0
        %2781 = vmatprep.subr.mxu0 0.0
        %2782 = vmatpush1.msra.mxu0 0.0
        %2783 = vmatprep.subr.mxu0 0.0
        %2784 = vmatpush1.msra.mxu0 0.0
        %2785 = vmatprep.subr.mxu0 0.0
        %2786 = vmatpush1.msra.mxu0 0.0
        %2787 = vmatprep.subr.mxu0 0.0
        %2788 = vmatpush1.msra.mxu0 0.0
        %2789 = vmatprep.subr.mxu0 0.0
        %2790 = vmatpush1.msra.mxu0 0.0
        %2791 = vmatprep.subr.mxu0 0.0
        %2792 = vmatpush1.msra.mxu0 0.0
        %2793 = vmatprep.subr.mxu0 0.0
        %2794 = vmatpush1.msra.mxu0 0.0
        %2795 = vmatprep.subr.mxu0 0.0
        %2796 = vmatpush1.msra.mxu0 0.0
        %2797 = vmatprep.subr.mxu0 0.0
        %2798 = vmatpush1.msra.mxu0 0.0
        %2799 = vmatprep.subr.mxu0 0.0
        %2800 = vmatpush1.msra.mxu0 0.0
        %2801 = vmatprep.subr.mxu0 0.0
        %2802 = vmatpush1.msra.mxu0 0.0
        %2803 = vmatprep.subr.mxu0 0.0
        %2804 = vmatpush1.msra.mxu0 0.0
        %2805 = vmatprep.subr.mxu0 0.0
        %2806 = vmatpush1.msra.mxu0 0.0
        %2807 = vmatprep.subr.mxu0 0.0
        %2808 = vmatpush1.msra.mxu0 0.0
        %2809 = vmatprep.subr.mxu0 0.0
        %2810 = vmatpush1.msra.mxu0 0.0
        %2811 = vmatprep.mubr.f32.mxu0 0.0
        %2812 = vmatmul.mubr.f32.gmra.mrb[0].mxu0 %v2745
        %v2813 = vpop.f32.mrb[0].mxu0
        %v2814 = vadd.f32 %v2251, %v2813
        %v2815 = vpop.f32.mrb[0].mxu0
        %2816 = vdwg.mxu0
        %2817 = vmatprep.subr.mxu0 0.0
        %2818 = vmatpush1.msra.mxu0 %v2345
        %2819 = vmatprep.subr.mxu0 0.0
        %2820 = vmatpush1.msra.mxu0 %v2346
        %2821 = vmatprep.subr.mxu0 0.0
        %2822 = vmatpush1.msra.mxu0 %v2347
        %2823 = vmatprep.subr.mxu0 0.0
        %2824 = vmatpush1.msra.mxu0 %v2348
        %2825 = vmatprep.subr.mxu0 0.0
        %2826 = vmatpush1.msra.mxu0 0.0
        %2827 = vmatprep.subr.mxu0 0.0
        %2828 = vmatpush1.msra.mxu0 0.0
        %2829 = vmatprep.subr.mxu0 0.0
        %2830 = vmatpush1.msra.mxu0 0.0
        %2831 = vmatprep.subr.mxu0 0.0
        %2832 = vmatpush1.msra.mxu0 0.0
        %2833 = vmatprep.subr.mxu0 0.0
        %2834 = vmatpush1.msra.mxu0 0.0
        %2835 = vmatprep.subr.mxu0 0.0
        %2836 = vmatpush1.msra.mxu0 0.0
        %2837 = vmatprep.subr.mxu0 0.0
        %2838 = vmatpush1.msra.mxu0 0.0
        %2839 = vmatprep.subr.mxu0 0.0
        %2840 = vmatpush1.msra.mxu0 0.0
        %2841 = vmatprep.subr.mxu0 0.0
        %2842 = vmatpush1.msra.mxu0 0.0
        %2843 = vmatprep.subr.mxu0 0.0
        %2844 = vmatpush1.msra.mxu0 0.0
        %2845 = vmatprep.subr.mxu0 0.0
        %2846 = vmatpush1.msra.mxu0 0.0
        %2847 = vmatprep.subr.mxu0 0.0
        %2848 = vmatpush1.msra.mxu0 0.0
        %2849 = vmatprep.subr.mxu0 0.0
        %2850 = vmatpush1.msra.mxu0 0.0
        %2851 = vmatprep.subr.mxu0 0.0
        %2852 = vmatpush1.msra.mxu0 0.0
        %2853 = vmatprep.subr.mxu0 0.0
        %2854 = vmatpush1.msra.mxu0 0.0
        %2855 = vmatprep.subr.mxu0 0.0
        %2856 = vmatpush1.msra.mxu0 0.0
        %2857 = vmatprep.subr.mxu0 0.0
        %2858 = vmatpush1.msra.mxu0 0.0
        %2859 = vmatprep.subr.mxu0 0.0
        %2860 = vmatpush1.msra.mxu0 0.0
        %2861 = vmatprep.subr.mxu0 0.0
        %2862 = vmatpush1.msra.mxu0 0.0
        %2863 = vmatprep.subr.mxu0 0.0
        %2864 = vmatpush1.msra.mxu0 0.0
        %2865 = vmatprep.subr.mxu0 0.0
        %2866 = vmatpush1.msra.mxu0 0.0
        %2867 = vmatprep.subr.mxu0 0.0
        %2868 = vmatpush1.msra.mxu0 0.0
        %2869 = vmatprep.subr.mxu0 0.0
        %2870 = vmatpush1.msra.mxu0 0.0
        %2871 = vmatprep.subr.mxu0 0.0
        %2872 = vmatpush1.msra.mxu0 0.0
        %2873 = vmatprep.subr.mxu0 0.0
        %2874 = vmatpush1.msra.mxu0 0.0
        %2875 = vmatprep.subr.mxu0 0.0
        %2876 = vmatpush1.msra.mxu0 0.0
        %2877 = vmatprep.subr.mxu0 0.0
        %2878 = vmatpush1.msra.mxu0 0.0
        %2879 = vmatprep.subr.mxu0 0.0
        %2880 = vmatpush1.msra.mxu0 0.0
        %2881 = vmatprep.mubr.f32.mxu0 0.0
        %2882 = vmatmul.mubr.f32.gmra.mrb[0].mxu0 %v2468
        %v2883 = vpop.f32.mrb[0].mxu0
        %v2884 = vadd.f32 0.0, %v2883
        %v2885 = vpop.f32.mrb[0].mxu0
        %2886 = vdwg.mxu0
        %v2887 = vadd.f32 %v2814, %v2884
        %v2888 = vxor.u32 %v2887, 2147483648
        %v2889 = vmul.f32 %v2888, 1.442695
        %v2890 = vpow.pop %v2889
        %v2891 = vadd.f32 %v2890, 1.0
        %v2892 = vrcp.pop %v2891
        %v2893 = vmul.f32 1.0, %v2892
        %v2894 = vadd.f32 %v2884, %v2431
        %2896 = vrot.lane.b32.xlu0 %v2894, 64
        %v2897 = vpop.permute.xlu0 %2896
        %v2899 = vmul.f32 %v2893, %v2897
        %2901 = vrot.lane.b32.xlu0 %v2899, 64
        %v2902 = vpop.permute.xlu0 %2901
        %v2904 = vadd.f32 %v2814, %v2902
        %v2905 = vtanh.pop %v2904
        %v2906 = vsub.f32 1.0, %v2893
        %2908 = vrot.lane.b32.xlu0 %v2905, 96
        %v2909 = vpop.permute.xlu0 %2908
        %v2911 = vmul.f32 %v2906, %v2909
        %v2912 = vmul.f32 %v2893, %v2452
        %v2913 = vadd.f32 %v2911, %v2912
        %2915 = vrot.lane.b32.xlu0 %v2913, 96
        %v2916 = vpop.permute.xlu0 %2915
        %v2917 = vsel %vm212, %v2916, 0
        %2919 = vmatprep.subr.mxu0 0.0
        %2920 = vmatpush1.msra.mxu0 %v2457
        %2921 = vmatprep.subr.mxu0 0.0
        %2922 = vmatpush1.msra.mxu0 %v2459
        %2923 = vmatprep.subr.mxu0 0.0
        %2924 = vmatpush1.msra.mxu0 %v2461
        %2925 = vmatprep.subr.mxu0 0.0
        %2926 = vmatpush1.msra.mxu0 %v2463
        %2927 = vmatprep.subr.mxu0 0.0
        %2928 = vmatpush1.msra.mxu0 0.0
        %2929 = vmatprep.subr.mxu0 0.0
        %2930 = vmatpush1.msra.mxu0 0.0
        %2931 = vmatprep.subr.mxu0 0.0
        %2932 = vmatpush1.msra.mxu0 0.0
        %2933 = vmatprep.subr.mxu0 0.0
        %2934 = vmatpush1.msra.mxu0 0.0
        %2935 = vmatprep.subr.mxu0 0.0
        %2936 = vmatpush1.msra.mxu0 0.0
        %2937 = vmatprep.subr.mxu0 0.0
        %2938 = vmatpush1.msra.mxu0 0.0
        %2939 = vmatprep.subr.mxu0 0.0
        %2940 = vmatpush1.msra.mxu0 0.0
        %2941 = vmatprep.subr.mxu0 0.0
        %2942 = vmatpush1.msra.mxu0 0.0
        %2943 = vmatprep.subr.mxu0 0.0
        %2944 = vmatpush1.msra.mxu0 0.0
        %2945 = vmatprep.subr.mxu0 0.0
        %2946 = vmatpush1.msra.mxu0 0.0
        %2947 = vmatprep.subr.mxu0 0.0
        %2948 = vmatpush1.msra.mxu0 0.0
        %2949 = vmatprep.subr.mxu0 0.0
        %2950 = vmatpush1.msra.mxu0 0.0
        %2951 = vmatprep.subr.mxu0 0.0
        %2952 = vmatpush1.msra.mxu0 0.0
        %2953 = vmatprep.subr.mxu0 0.0
        %2954 = vmatpush1.msra.mxu0 0.0
        %2955 = vmatprep.subr.mxu0 0.0
        %2956 = vmatpush1.msra.mxu0 0.0
        %2957 = vmatprep.subr.mxu0 0.0
        %2958 = vmatpush1.msra.mxu0 0.0
        %2959 = vmatprep.subr.mxu0 0.0
        %2960 = vmatpush1.msra.mxu0 0.0
        %2961 = vmatprep.subr.mxu0 0.0
        %2962 = vmatpush1.msra.mxu0 0.0
        %2963 = vmatprep.subr.mxu0 0.0
        %2964 = vmatpush1.msra.mxu0 0.0
        %2965 = vmatprep.subr.mxu0 0.0
        %2966 = vmatpush1.msra.mxu0 0.0
        %2967 = vmatprep.subr.mxu0 0.0
        %2968 = vmatpush1.msra.mxu0 0.0
        %2969 = vmatprep.subr.mxu0 0.0
        %2970 = vmatpush1.msra.mxu0 0.0
        %2971 = vmatprep.subr.mxu0 0.0
        %2972 = vmatpush1.msra.mxu0 0.0
        %2973 = vmatprep.subr.mxu0 0.0
        %2974 = vmatpush1.msra.mxu0 0.0
        %2975 = vmatprep.subr.mxu0 0.0
        %2976 = vmatpush1.msra.mxu0 0.0
        %2977 = vmatprep.subr.mxu0 0.0
        %2978 = vmatpush1.msra.mxu0 0.0
        %2979 = vmatprep.subr.mxu0 0.0
        %2980 = vmatpush1.msra.mxu0 0.0
        %2981 = vmatprep.subr.mxu0 0.0
        %2982 = vmatpush1.msra.mxu0 0.0
        %2983 = vmatprep.mubr.f32.mxu0 0.0
        %2984 = vmatmul.mubr.f32.gmra.mrb[0].mxu0 %v2917
        %v2985 = vpop.f32.mrb[0].mxu0
        %v2986 = vadd.f32 %v1945, %v2985
        %v2987 = vpop.f32.mrb[0].mxu0
        %2988 = vdwg.mxu0
        %v2989 = vsel %vm350, %v2986, -inf
        %2990 = vmax.xlane.f32.xlu0 %v2989
        %v2991 = vpop.xlane.xlu0 %2990
        %vm2992 = vcmp.eq.f32.partialorder %v2986, %v2991
        %v2993 = vsel %vm2992, %v194, 16
        %v2994 = vsel %vm350, %v2993, 2147483647
        %v2995 = vand.u32 %v2994, 65535
        %v2996 = vshra.s32 %v2994, 16
        %v2997 = vcvt.s32.f32 %v2995
        %v2998 = vcvt.s32.f32 %v2996
        %2999 = vmin.xlane.f32.xlu0 %v2998
        %v3000 = vpop.xlane.xlu0 %2999
        %vm3001 = vcmp.eq.f32.partialorder %v2998, %v3000
        %v3002 = vsel %vm3001, %v2997, inf
        %3003 = vmin.xlane.f32.xlu0 %v3002
        %v3004 = vpop.xlane.xlu0 %3003
        %v3005 = vcvt.f32.s32 %v3004
        %v3006 = vcvt.f32.s32 %v3000
        %v3007 = vshll.u32 %v3006, 16
        %v3008 = vadd.s32 %v3007, %v3005
        %vm3009 = vcmp.eq.s32.totalorder %v194, %v3008
        %v3010 = vsel %vm3009, 1, 0
        %v3011 = vcvt.s32.f32 %v3010
        %v3012 = vsub.f32 %v2986, %v2991
        %v3013 = vmul.f32 %v3012, 1.442695
        %v3014 = vpow.pop %v3013
        %v3015 = vsel %vm350, %v3014, 0.0
        %3016 = vadd.xlane.f32.xlu0 %v3015
        %v3017 = vpop.xlane.xlu0 %3016
        %v3018 = vlog2.pop %v3017
        %v3019 = vmul.f32 %v3018, 0.6931472
        %v3020 = vsub.f32 %v3012, %v3019
        %v3022 = vsel %vm350, %v3011, 0
        %3024 = vmatprep.subr.mxu0 0.0
        %3025 = vmatpush1.msra.mxu0 %v1760
        %3026 = vmatprep.subr.mxu0 0.0
        %3027 = vmatpush1.msra.mxu0 %v1765
        %3028 = vmatprep.subr.mxu0 0.0
        %3029 = vmatpush1.msra.mxu0 0.0
        %3030 = vmatprep.subr.mxu0 0.0
        %3031 = vmatpush1.msra.mxu0 0.0
        %3032 = vmatprep.subr.mxu0 0.0
        %3033 = vmatpush1.msra.mxu0 0.0
        %3034 = vmatprep.subr.mxu0 0.0
        %3035 = vmatpush1.msra.mxu0 0.0
        %3036 = vmatprep.subr.mxu0 0.0
        %3037 = vmatpush1.msra.mxu0 0.0
        %3038 = vmatprep.subr.mxu0 0.0
        %3039 = vmatpush1.msra.mxu0 0.0
        %3040 = vmatprep.subr.mxu0 0.0
        %3041 = vmatpush1.msra.mxu0 0.0
        %3042 = vmatprep.subr.mxu0 0.0
        %3043 = vmatpush1.msra.mxu0 0.0
        %3044 = vmatprep.subr.mxu0 0.0
        %3045 = vmatpush1.msra.mxu0 0.0
        %3046 = vmatprep.subr.mxu0 0.0
        %3047 = vmatpush1.msra.mxu0 0.0
        %3048 = vmatprep.subr.mxu0 0.0
        %3049 = vmatpush1.msra.mxu0 0.0
        %3050 = vmatprep.subr.mxu0 0.0
        %3051 = vmatpush1.msra.mxu0 0.0
        %3052 = vmatprep.subr.mxu0 0.0
        %3053 = vmatpush1.msra.mxu0 0.0
        %3054 = vmatprep.subr.mxu0 0.0
        %3055 = vmatpush1.msra.mxu0 0.0
        %3056 = vmatprep.subr.mxu0 0.0
        %3057 = vmatpush1.msra.mxu0 0.0
        %3058 = vmatprep.subr.mxu0 0.0
        %3059 = vmatpush1.msra.mxu0 0.0
        %3060 = vmatprep.subr.mxu0 0.0
        %3061 = vmatpush1.msra.mxu0 0.0
        %3062 = vmatprep.subr.mxu0 0.0
        %3063 = vmatpush1.msra.mxu0 0.0
        %3064 = vmatprep.subr.mxu0 0.0
        %3065 = vmatpush1.msra.mxu0 0.0
        %3066 = vmatprep.subr.mxu0 0.0
        %3067 = vmatpush1.msra.mxu0 0.0
        %3068 = vmatprep.subr.mxu0 0.0
        %3069 = vmatpush1.msra.mxu0 0.0
        %3070 = vmatprep.subr.mxu0 0.0
        %3071 = vmatpush1.msra.mxu0 0.0
        %3072 = vmatprep.subr.mxu0 0.0
        %3073 = vmatpush1.msra.mxu0 0.0
        %3074 = vmatprep.subr.mxu0 0.0
        %3075 = vmatpush1.msra.mxu0 0.0
        %3076 = vmatprep.subr.mxu0 0.0
        %3077 = vmatpush1.msra.mxu0 0.0
        %3078 = vmatprep.subr.mxu0 0.0
        %3079 = vmatpush1.msra.mxu0 0.0
        %3080 = vmatprep.subr.mxu0 0.0
        %3081 = vmatpush1.msra.mxu0 0.0
        %3082 = vmatprep.subr.mxu0 0.0
        %3083 = vmatpush1.msra.mxu0 0.0
        %3084 = vmatprep.subr.mxu0 0.0
        %3085 = vmatpush1.msra.mxu0 0.0
        %3086 = vmatprep.subr.mxu0 0.0
        %3087 = vmatpush1.msra.mxu0 0.0
        %3088 = vmatprep.mubr.f32.mxu0 0.0
        %3089 = vmatmul.mubr.f32.gmra.mrb[0].mxu0 %v3022
        %v3090 = vpop.f32.mrb[0].mxu0
        %v3091 = vadd.f32 %v1871, %v3090
        %v3092 = vpop.f32.mrb[0].mxu0
        %3093 = vdwg.mxu0
        %3094 = vmatprep.subr.mxu0 0.0
        %3095 = vmatpush1.msra.mxu0 %v1768
        %3096 = vmatprep.subr.mxu0 0.0
        %3097 = vmatpush1.msra.mxu0 %v1769
        %3098 = vmatprep.subr.mxu0 0.0
        %3099 = vmatpush1.msra.mxu0 %v1770
        %3100 = vmatprep.subr.mxu0 0.0
        %3101 = vmatpush1.msra.mxu0 %v1771
        %3102 = vmatprep.subr.mxu0 0.0
        %3103 = vmatpush1.msra.mxu0 0.0
        %3104 = vmatprep.subr.mxu0 0.0
        %3105 = vmatpush1.msra.mxu0 0.0
        %3106 = vmatprep.subr.mxu0 0.0
        %3107 = vmatpush1.msra.mxu0 0.0
        %3108 = vmatprep.subr.mxu0 0.0
        %3109 = vmatpush1.msra.mxu0 0.0
        %3110 = vmatprep.subr.mxu0 0.0
        %3111 = vmatpush1.msra.mxu0 0.0
        %3112 = vmatprep.subr.mxu0 0.0
        %3113 = vmatpush1.msra.mxu0 0.0
        %3114 = vmatprep.subr.mxu0 0.0
        %3115 = vmatpush1.msra.mxu0 0.0
        %3116 = vmatprep.subr.mxu0 0.0
        %3117 = vmatpush1.msra.mxu0 0.0
        %3118 = vmatprep.subr.mxu0 0.0
        %3119 = vmatpush1.msra.mxu0 0.0
        %3120 = vmatprep.subr.mxu0 0.0
        %3121 = vmatpush1.msra.mxu0 0.0
        %3122 = vmatprep.subr.mxu0 0.0
        %3123 = vmatpush1.msra.mxu0 0.0
        %3124 = vmatprep.subr.mxu0 0.0
        %3125 = vmatpush1.msra.mxu0 0.0
        %3126 = vmatprep.subr.mxu0 0.0
        %3127 = vmatpush1.msra.mxu0 0.0
        %3128 = vmatprep.subr.mxu0 0.0
        %3129 = vmatpush1.msra.mxu0 0.0
        %3130 = vmatprep.subr.mxu0 0.0
        %3131 = vmatpush1.msra.mxu0 0.0
        %3132 = vmatprep.subr.mxu0 0.0
        %3133 = vmatpush1.msra.mxu0 0.0
        %3134 = vmatprep.subr.mxu0 0.0
        %3135 = vmatpush1.msra.mxu0 0.0
        %3136 = vmatprep.subr.mxu0 0.0
        %3137 = vmatpush1.msra.mxu0 0.0
        %3138 = vmatprep.subr.mxu0 0.0
        %3139 = vmatpush1.msra.mxu0 0.0
        %3140 = vmatprep.subr.mxu0 0.0
        %3141 = vmatpush1.msra.mxu0 0.0
        %3142 = vmatprep.subr.mxu0 0.0
        %3143 = vmatpush1.msra.mxu0 0.0
        %3144 = vmatprep.subr.mxu0 0.0
        %3145 = vmatpush1.msra.mxu0 0.0
        %3146 = vmatprep.subr.mxu0 0.0
        %3147 = vmatpush1.msra.mxu0 0.0
        %3148 = vmatprep.subr.mxu0 0.0
        %3149 = vmatpush1.msra.mxu0 0.0
        %3150 = vmatprep.subr.mxu0 0.0
        %3151 = vmatpush1.msra.mxu0 0.0
        %3152 = vmatprep.subr.mxu0 0.0
        %3153 = vmatpush1.msra.mxu0 0.0
        %3154 = vmatprep.subr.mxu0 0.0
        %3155 = vmatpush1.msra.mxu0 0.0
        %3156 = vmatprep.subr.mxu0 0.0
        %3157 = vmatpush1.msra.mxu0 0.0
        %3158 = vmatprep.mubr.f32.mxu0 0.0
        %3159 = vmatmul.mubr.f32.gmra.mrb[0].mxu0 %v2745
        %v3160 = vpop.f32.mrb[0].mxu0
        %v3161 = vadd.f32 0.0, %v3160
        %v3162 = vpop.f32.mrb[0].mxu0
        %3163 = vdwg.mxu0
        %v3164 = vadd.f32 %v3091, %v3161
        %v3165 = vxor.u32 %v3164, 2147483648
        %v3166 = vmul.f32 %v3165, 1.442695
        %v3167 = vpow.pop %v3166
        %v3168 = vadd.f32 %v3167, 1.0
        %v3169 = vrcp.pop %v3168
        %v3170 = vmul.f32 1.0, %v3169
        %v3171 = vadd.f32 %v3161, %v2186
        %3173 = vrot.lane.b32.xlu0 %v3171, 64
        %v3174 = vpop.permute.xlu0 %3173
        %v3176 = vmul.f32 %v3170, %v3174
        %3178 = vrot.lane.b32.xlu0 %v3176, 64
        %v3179 = vpop.permute.xlu0 %3178
        %v3181 = vadd.f32 %v3091, %v3179
        %v3182 = vtanh.pop %v3181
        %v3183 = vsub.f32 1.0, %v3170
        %3185 = vrot.lane.b32.xlu0 %v3182, 96
        %v3186 = vpop.permute.xlu0 %3185
        %v3188 = vmul.f32 %v3183, %v3186
        %v3189 = vmul.f32 %v3170, %v2741
        %v3190 = vadd.f32 %v3188, %v3189
        %3192 = vrot.lane.b32.xlu0 %v3190, 96
        %v3193 = vpop.permute.xlu0 %3192
        %v3194 = vsel %vm212, %v3193, 0
        %3196 = vmatprep.subr.mxu0 0.0
        %3197 = vmatpush1.msra.mxu0 %v2238
        %3198 = vmatprep.subr.mxu0 0.0
        %3199 = vmatpush1.msra.mxu0 %v2239
        %3200 = vmatprep.subr.mxu0 0.0
        %3201 = vmatpush1.msra.mxu0 %v2240
        %3202 = vmatprep.subr.mxu0 0.0
        %3203 = vmatpush1.msra.mxu0 %v2241
        %3204 = vmatprep.subr.mxu0 0.0
        %3205 = vmatpush1.msra.mxu0 0.0
        %3206 = vmatprep.subr.mxu0 0.0
        %3207 = vmatpush1.msra.mxu0 0.0
        %3208 = vmatprep.subr.mxu0 0.0
        %3209 = vmatpush1.msra.mxu0 0.0
        %3210 = vmatprep.subr.mxu0 0.0
        %3211 = vmatpush1.msra.mxu0 0.0
        %3212 = vmatprep.subr.mxu0 0.0
        %3213 = vmatpush1.msra.mxu0 0.0
        %3214 = vmatprep.subr.mxu0 0.0
        %3215 = vmatpush1.msra.mxu0 0.0
        %3216 = vmatprep.subr.mxu0 0.0
        %3217 = vmatpush1.msra.mxu0 0.0
        %3218 = vmatprep.subr.mxu0 0.0
        %3219 = vmatpush1.msra.mxu0 0.0
        %3220 = vmatprep.subr.mxu0 0.0
        %3221 = vmatpush1.msra.mxu0 0.0
        %3222 = vmatprep.subr.mxu0 0.0
        %3223 = vmatpush1.msra.mxu0 0.0
        %3224 = vmatprep.subr.mxu0 0.0
        %3225 = vmatpush1.msra.mxu0 0.0
        %3226 = vmatprep.subr.mxu0 0.0
        %3227 = vmatpush1.msra.mxu0 0.0
        %3228 = vmatprep.subr.mxu0 0.0
        %3229 = vmatpush1.msra.mxu0 0.0
        %3230 = vmatprep.subr.mxu0 0.0
        %3231 = vmatpush1.msra.mxu0 0.0
        %3232 = vmatprep.subr.mxu0 0.0
        %3233 = vmatpush1.msra.mxu0 0.0
        %3234 = vmatprep.subr.mxu0 0.0
        %3235 = vmatpush1.msra.mxu0 0.0
        %3236 = vmatprep.subr.mxu0 0.0
        %3237 = vmatpush1.msra.mxu0 0.0
        %3238 = vmatprep.subr.mxu0 0.0
        %3239 = vmatpush1.msra.mxu0 0.0
        %3240 = vmatprep.subr.mxu0 0.0
        %3241 = vmatpush1.msra.mxu0 0.0
        %3242 = vmatprep.subr.mxu0 0.0
        %3243 = vmatpush1.msra.mxu0 0.0
        %3244 = vmatprep.subr.mxu0 0.0
        %3245 = vmatpush1.msra.mxu0 0.0
        %3246 = vmatprep.subr.mxu0 0.0
        %3247 = vmatpush1.msra.mxu0 0.0
        %3248 = vmatprep.subr.mxu0 0.0
        %3249 = vmatpush1.msra.mxu0 0.0
        %3250 = vmatprep.subr.mxu0 0.0
        %3251 = vmatpush1.msra.mxu0 0.0
        %3252 = vmatprep.subr.mxu0 0.0
        %3253 = vmatpush1.msra.mxu0 0.0
        %3254 = vmatprep.subr.mxu0 0.0
        %3255 = vmatpush1.msra.mxu0 0.0
        %3256 = vmatprep.subr.mxu0 0.0
        %3257 = vmatpush1.msra.mxu0 0.0
        %3258 = vmatprep.subr.mxu0 0.0
        %3259 = vmatpush1.msra.mxu0 0.0
        %3260 = vmatprep.mubr.f32.mxu0 0.0
        %3261 = vmatmul.mubr.f32.gmra.mrb[0].mxu0 %v3194
        %v3262 = vpop.f32.mrb[0].mxu0
        %v3263 = vadd.f32 %v2251, %v3262
        %v3264 = vpop.f32.mrb[0].mxu0
        %3265 = vdwg.mxu0
        %3266 = vmatprep.subr.mxu0 0.0
        %3267 = vmatpush1.msra.mxu0 %v2345
        %3268 = vmatprep.subr.mxu0 0.0
        %3269 = vmatpush1.msra.mxu0 %v2346
        %3270 = vmatprep.subr.mxu0 0.0
        %3271 = vmatpush1.msra.mxu0 %v2347
        %3272 = vmatprep.subr.mxu0 0.0
        %3273 = vmatpush1.msra.mxu0 %v2348
        %3274 = vmatprep.subr.mxu0 0.0
        %3275 = vmatpush1.msra.mxu0 0.0
        %3276 = vmatprep.subr.mxu0 0.0
        %3277 = vmatpush1.msra.mxu0 0.0
        %3278 = vmatprep.subr.mxu0 0.0
        %3279 = vmatpush1.msra.mxu0 0.0
        %3280 = vmatprep.subr.mxu0 0.0
        %3281 = vmatpush1.msra.mxu0 0.0
        %3282 = vmatprep.subr.mxu0 0.0
        %3283 = vmatpush1.msra.mxu0 0.0
        %3284 = vmatprep.subr.mxu0 0.0
        %3285 = vmatpush1.msra.mxu0 0.0
        %3286 = vmatprep.subr.mxu0 0.0
        %3287 = vmatpush1.msra.mxu0 0.0
        %3288 = vmatprep.subr.mxu0 0.0
        %3289 = vmatpush1.msra.mxu0 0.0
        %3290 = vmatprep.subr.mxu0 0.0
        %3291 = vmatpush1.msra.mxu0 0.0
        %3292 = vmatprep.subr.mxu0 0.0
        %3293 = vmatpush1.msra.mxu0 0.0
        %3294 = vmatprep.subr.mxu0 0.0
        %3295 = vmatpush1.msra.mxu0 0.0
        %3296 = vmatprep.subr.mxu0 0.0
        %3297 = vmatpush1.msra.mxu0 0.0
        %3298 = vmatprep.subr.mxu0 0.0
        %3299 = vmatpush1.msra.mxu0 0.0
        %3300 = vmatprep.subr.mxu0 0.0
        %3301 = vmatpush1.msra.mxu0 0.0
        %3302 = vmatprep.subr.mxu0 0.0
        %3303 = vmatpush1.msra.mxu0 0.0
        %3304 = vmatprep.subr.mxu0 0.0
        %3305 = vmatpush1.msra.mxu0 0.0
        %3306 = vmatprep.subr.mxu0 0.0
        %3307 = vmatpush1.msra.mxu0 0.0
        %3308 = vmatprep.subr.mxu0 0.0
        %3309 = vmatpush1.msra.mxu0 0.0
        %3310 = vmatprep.subr.mxu0 0.0
        %3311 = vmatpush1.msra.mxu0 0.0
        %3312 = vmatprep.subr.mxu0 0.0
        %3313 = vmatpush1.msra.mxu0 0.0
        %3314 = vmatprep.subr.mxu0 0.0
        %3315 = vmatpush1.msra.mxu0 0.0
        %3316 = vmatprep.subr.mxu0 0.0
        %3317 = vmatpush1.msra.mxu0 0.0
        %3318 = vmatprep.subr.mxu0 0.0
        %3319 = vmatpush1.msra.mxu0 0.0
        %3320 = vmatprep.subr.mxu0 0.0
        %3321 = vmatpush1.msra.mxu0 0.0
        %3322 = vmatprep.subr.mxu0 0.0
        %3323 = vmatpush1.msra.mxu0 0.0
        %3324 = vmatprep.subr.mxu0 0.0
        %3325 = vmatpush1.msra.mxu0 0.0
        %3326 = vmatprep.subr.mxu0 0.0
        %3327 = vmatpush1.msra.mxu0 0.0
        %3328 = vmatprep.subr.mxu0 0.0
        %3329 = vmatpush1.msra.mxu0 0.0
        %3330 = vmatprep.mubr.f32.mxu0 0.0
        %3331 = vmatmul.mubr.f32.gmra.mrb[0].mxu0 %v2917
        %v3332 = vpop.f32.mrb[0].mxu0
        %v3333 = vadd.f32 0.0, %v3332
        %v3334 = vpop.f32.mrb[0].mxu0
        %3335 = vdwg.mxu0
        %v3336 = vadd.f32 %v3263, %v3333
        %v3337 = vxor.u32 %v3336, 2147483648
        %v3338 = vmul.f32 %v3337, 1.442695
        %v3339 = vpow.pop %v3338
        %v3340 = vadd.f32 %v3339, 1.0
        %v3341 = vrcp.pop %v3340
        %v3342 = vmul.f32 1.0, %v3341
        %v3343 = vadd.f32 %v3333, %v2431
        %3345 = vrot.lane.b32.xlu0 %v3343, 64
        %v3346 = vpop.permute.xlu0 %3345
        %v3348 = vmul.f32 %v3342, %v3346
        %3350 = vrot.lane.b32.xlu0 %v3348, 64
        %v3351 = vpop.permute.xlu0 %3350
        %v3353 = vadd.f32 %v3263, %v3351
        %v3354 = vtanh.pop %v3353
        %v3355 = vsub.f32 1.0, %v3342
        %3357 = vrot.lane.b32.xlu0 %v3354, 96
        %v3358 = vpop.permute.xlu0 %3357
        %v3360 = vmul.f32 %v3355, %v3358
        %v3361 = vmul.f32 %v3342, %v2913
        %v3362 = vadd.f32 %v3360, %v3361
        %3364 = vrot.lane.b32.xlu0 %v3362, 96
        %v3365 = vpop.permute.xlu0 %3364
        %v3366 = vsel %vm212, %v3365, 0
        %3368 = vmatprep.subr.mxu0 0.0
        %3369 = vmatpush1.msra.mxu0 %v2457
        %3370 = vmatprep.subr.mxu0 0.0
        %3371 = vmatpush1.msra.mxu0 %v2459
        %3372 = vmatprep.subr.mxu0 0.0
        %3373 = vmatpush1.msra.mxu0 %v2461
        %3374 = vmatprep.subr.mxu0 0.0
        %3375 = vmatpush1.msra.mxu0 %v2463
        %3376 = vmatprep.subr.mxu0 0.0
        %3377 = vmatpush1.msra.mxu0 0.0
        %3378 = vmatprep.subr.mxu0 0.0
        %3379 = vmatpush1.msra.mxu0 0.0
        %3380 = vmatprep.subr.mxu0 0.0
        %3381 = vmatpush1.msra.mxu0 0.0
        %3382 = vmatprep.subr.mxu0 0.0
        %3383 = vmatpush1.msra.mxu0 0.0
        %3384 = vmatprep.subr.mxu0 0.0
        %3385 = vmatpush1.msra.mxu0 0.0
        %3386 = vmatprep.subr.mxu0 0.0
        %3387 = vmatpush1.msra.mxu0 0.0
        %3388 = vmatprep.subr.mxu0 0.0
        %3389 = vmatpush1.msra.mxu0 0.0
        %3390 = vmatprep.subr.mxu0 0.0
        %3391 = vmatpush1.msra.mxu0 0.0
        %3392 = vmatprep.subr.mxu0 0.0
        %3393 = vmatpush1.msra.mxu0 0.0
        %3394 = vmatprep.subr.mxu0 0.0
        %3395 = vmatpush1.msra.mxu0 0.0
        %3396 = vmatprep.subr.mxu0 0.0
        %3397 = vmatpush1.msra.mxu0 0.0
        %3398 = vmatprep.subr.mxu0 0.0
        %3399 = vmatpush1.msra.mxu0 0.0
        %3400 = vmatprep.subr.mxu0 0.0
        %3401 = vmatpush1.msra.mxu0 0.0
        %3402 = vmatprep.subr.mxu0 0.0
        %3403 = vmatpush1.msra.mxu0 0.0
        %3404 = vmatprep.subr.mxu0 0.0
        %3405 = vmatpush1.msra.mxu0 0.0
        %3406 = vmatprep.subr.mxu0 0.0
        %3407 = vmatpush1.msra.mxu0 0.0
        %3408 = vmatprep.subr.mxu0 0.0
        %3409 = vmatpush1.msra.mxu0 0.0
        %3410 = vmatprep.subr.mxu0 0.0
        %3411 = vmatpush1.msra.mxu0 0.0
        %3412 = vmatprep.subr.mxu0 0.0
        %3413 = vmatpush1.msra.mxu0 0.0
        %3414 = vmatprep.subr.mxu0 0.0
        %3415 = vmatpush1.msra.mxu0 0.0
        %3416 = vmatprep.subr.mxu0 0.0
        %3417 = vmatpush1.msra.mxu0 0.0
        %3418 = vmatprep.subr.mxu0 0.0
        %3419 = vmatpush1.msra.mxu0 0.0
        %3420 = vmatprep.subr.mxu0 0.0
        %3421 = vmatpush1.msra.mxu0 0.0
        %3422 = vmatprep.subr.mxu0 0.0
        %3423 = vmatpush1.msra.mxu0 0.0
        %3424 = vmatprep.subr.mxu0 0.0
        %3425 = vmatpush1.msra.mxu0 0.0
        %3426 = vmatprep.subr.mxu0 0.0
        %3427 = vmatpush1.msra.mxu0 0.0
        %3428 = vmatprep.subr.mxu0 0.0
        %3429 = vmatpush1.msra.mxu0 0.0
        %3430 = vmatprep.subr.mxu0 0.0
        %3431 = vmatpush1.msra.mxu0 0.0
        %3432 = vmatprep.mubr.f32.mxu0 0.0
        %3433 = vmatmul.mubr.f32.gmra.mrb[0].mxu0 %v3366
        %v3434 = vpop.f32.mrb[0].mxu0
        %v3435 = vadd.f32 %v1945, %v3434
        %v3436 = vpop.f32.mrb[0].mxu0
        %3437 = vdwg.mxu0
        %v3438 = vsel %vm350, %v3435, -inf
        %3439 = vmax.xlane.f32.xlu0 %v3438
        %v3440 = vpop.xlane.xlu0 %3439
        %vm3441 = vcmp.eq.f32.partialorder %v3435, %v3440
        %v3442 = vsel %vm3441, %v194, 16
        %v3443 = vsel %vm350, %v3442, 2147483647
        %v3444 = vand.u32 %v3443, 65535
        %v3445 = vshra.s32 %v3443, 16
        %v3446 = vcvt.s32.f32 %v3444
        %v3447 = vcvt.s32.f32 %v3445
        %3448 = vmin.xlane.f32.xlu0 %v3447
        %v3449 = vpop.xlane.xlu0 %3448
        %vm3450 = vcmp.eq.f32.partialorder %v3447, %v3449
        %v3451 = vsel %vm3450, %v3446, inf
        %3452 = vmin.xlane.f32.xlu0 %v3451
        %v3453 = vpop.xlane.xlu0 %3452
        %v3454 = vcvt.f32.s32 %v3453
        %v3455 = vcvt.f32.s32 %v3449
        %v3456 = vshll.u32 %v3455, 16
        %v3457 = vadd.s32 %v3456, %v3454
        %vm3458 = vcmp.eq.s32.totalorder %v194, %v3457
        %v3459 = vsel %vm3458, 1, 0
        %v3460 = vcvt.s32.f32 %v3459
        %v3461 = vsub.f32 %v3435, %v3440
        %v3462 = vmul.f32 %v3461, 1.442695
        %v3463 = vpow.pop %v3462
        %v3464 = vsel %vm350, %v3463, 0.0
        %3465 = vadd.xlane.f32.xlu0 %v3464
        %v3466 = vpop.xlane.xlu0 %3465
        %v3467 = vlog2.pop %v3466
        %v3468 = vmul.f32 %v3467, 0.6931472
        %v3469 = vsub.f32 %v3461, %v3468
        %v3471 = vsel %vm350, %v3460, 0
        %3473 = vmatprep.subr.mxu0 0.0
        %3474 = vmatpush1.msra.mxu0 %v1760
        %3475 = vmatprep.subr.mxu0 0.0
        %3476 = vmatpush1.msra.mxu0 %v1765
        %3477 = vmatprep.subr.mxu0 0.0
        %3478 = vmatpush1.msra.mxu0 0.0
        %3479 = vmatprep.subr.mxu0 0.0
        %3480 = vmatpush1.msra.mxu0 0.0
        %3481 = vmatprep.subr.mxu0 0.0
        %3482 = vmatpush1.msra.mxu0 0.0
        %3483 = vmatprep.subr.mxu0 0.0
        %3484 = vmatpush1.msra.mxu0 0.0
        %3485 = vmatprep.subr.mxu0 0.0
        %3486 = vmatpush1.msra.mxu0 0.0
        %3487 = vmatprep.subr.mxu0 0.0
        %3488 = vmatpush1.msra.mxu0 0.0
        %3489 = vmatprep.subr.mxu0 0.0
        %3490 = vmatpush1.msra.mxu0 0.0
        %3491 = vmatprep.subr.mxu0 0.0
        %3492 = vmatpush1.msra.mxu0 0.0
        %3493 = vmatprep.subr.mxu0 0.0
        %3494 = vmatpush1.msra.mxu0 0.0
        %3495 = vmatprep.subr.mxu0 0.0
        %3496 = vmatpush1.msra.mxu0 0.0
        %3497 = vmatprep.subr.mxu0 0.0
        %3498 = vmatpush1.msra.mxu0 0.0
        %3499 = vmatprep.subr.mxu0 0.0
        %3500 = vmatpush1.msra.mxu0 0.0
        %3501 = vmatprep.subr.mxu0 0.0
        %3502 = vmatpush1.msra.mxu0 0.0
        %3503 = vmatprep.subr.mxu0 0.0
        %3504 = vmatpush1.msra.mxu0 0.0
        %3505 = vmatprep.subr.mxu0 0.0
        %3506 = vmatpush1.msra.mxu0 0.0
        %3507 = vmatprep.subr.mxu0 0.0
        %3508 = vmatpush1.msra.mxu0 0.0
        %3509 = vmatprep.subr.mxu0 0.0
        %3510 = vmatpush1.msra.mxu0 0.0
        %3511 = vmatprep.subr.mxu0 0.0
        %3512 = vmatpush1.msra.mxu0 0.0
        %3513 = vmatprep.subr.mxu0 0.0
        %3514 = vmatpush1.msra.mxu0 0.0
        %3515 = vmatprep.subr.mxu0 0.0
        %3516 = vmatpush1.msra.mxu0 0.0
        %3517 = vmatprep.subr.mxu0 0.0
        %3518 = vmatpush1.msra.mxu0 0.0
        %3519 = vmatprep.subr.mxu0 0.0
        %3520 = vmatpush1.msra.mxu0 0.0
        %3521 = vmatprep.subr.mxu0 0.0
        %3522 = vmatpush1.msra.mxu0 0.0
        %3523 = vmatprep.subr.mxu0 0.0
        %3524 = vmatpush1.msra.mxu0 0.0
        %3525 = vmatprep.subr.mxu0 0.0
        %3526 = vmatpush1.msra.mxu0 0.0
        %3527 = vmatprep.subr.mxu0 0.0
        %3528 = vmatpush1.msra.mxu0 0.0
        %3529 = vmatprep.subr.mxu0 0.0
        %3530 = vmatpush1.msra.mxu0 0.0
        %3531 = vmatprep.subr.mxu0 0.0
        %3532 = vmatpush1.msra.mxu0 0.0
        %3533 = vmatprep.subr.mxu0 0.0
        %3534 = vmatpush1.msra.mxu0 0.0
        %3535 = vmatprep.subr.mxu0 0.0
        %3536 = vmatpush1.msra.mxu0 0.0
        %3537 = vmatprep.mubr.f32.mxu0 0.0
        %3538 = vmatmul.mubr.f32.gmra.mrb[0].mxu0 %v3471
        %v3539 = vpop.f32.mrb[0].mxu0
        %v3540 = vadd.f32 %v1871, %v3539
        %v3541 = vpop.f32.mrb[0].mxu0
        %3542 = vdwg.mxu0
        %3543 = vmatprep.subr.mxu0 0.0
        %3544 = vmatpush1.msra.mxu0 %v1768
        %3545 = vmatprep.subr.mxu0 0.0
        %3546 = vmatpush1.msra.mxu0 %v1769
        %3547 = vmatprep.subr.mxu0 0.0
        %3548 = vmatpush1.msra.mxu0 %v1770
        %3549 = vmatprep.subr.mxu0 0.0
        %3550 = vmatpush1.msra.mxu0 %v1771
        %3551 = vmatprep.subr.mxu0 0.0
        %3552 = vmatpush1.msra.mxu0 0.0
        %3553 = vmatprep.subr.mxu0 0.0
        %3554 = vmatpush1.msra.mxu0 0.0
        %3555 = vmatprep.subr.mxu0 0.0
        %3556 = vmatpush1.msra.mxu0 0.0
        %3557 = vmatprep.subr.mxu0 0.0
        %3558 = vmatpush1.msra.mxu0 0.0
        %3559 = vmatprep.subr.mxu0 0.0
        %3560 = vmatpush1.msra.mxu0 0.0
        %3561 = vmatprep.subr.mxu0 0.0
        %3562 = vmatpush1.msra.mxu0 0.0
        %3563 = vmatprep.subr.mxu0 0.0
        %3564 = vmatpush1.msra.mxu0 0.0
        %3565 = vmatprep.subr.mxu0 0.0
        %3566 = vmatpush1.msra.mxu0 0.0
        %3567 = vmatprep.subr.mxu0 0.0
        %3568 = vmatpush1.msra.mxu0 0.0
        %3569 = vmatprep.subr.mxu0 0.0
        %3570 = vmatpush1.msra.mxu0 0.0
        %3571 = vmatprep.subr.mxu0 0.0
        %3572 = vmatpush1.msra.mxu0 0.0
        %3573 = vmatprep.subr.mxu0 0.0
        %3574 = vmatpush1.msra.mxu0 0.0
        %3575 = vmatprep.subr.mxu0 0.0
        %3576 = vmatpush1.msra.mxu0 0.0
        %3577 = vmatprep.subr.mxu0 0.0
        %3578 = vmatpush1.msra.mxu0 0.0
        %3579 = vmatprep.subr.mxu0 0.0
        %3580 = vmatpush1.msra.mxu0 0.0
        %3581 = vmatprep.subr.mxu0 0.0
        %3582 = vmatpush1.msra.mxu0 0.0
        %3583 = vmatprep.subr.mxu0 0.0
        %3584 = vmatpush1.msra.mxu0 0.0
        %3585 = vmatprep.subr.mxu0 0.0
        %3586 = vmatpush1.msra.mxu0 0.0
        %3587 = vmatprep.subr.mxu0 0.0
        %3588 = vmatpush1.msra.mxu0 0.0
        %3589 = vmatprep.subr.mxu0 0.0
        %3590 = vmatpush1.msra.mxu0 0.0
        %3591 = vmatprep.subr.mxu0 0.0
        %3592 = vmatpush1.msra.mxu0 0.0
        %3593 = vmatprep.subr.mxu0 0.0
        %3594 = vmatpush1.msra.mxu0 0.0
        %3595 = vmatprep.subr.mxu0 0.0
        %3596 = vmatpush1.msra.mxu0 0.0
        %3597 = vmatprep.subr.mxu0 0.0
        %3598 = vmatpush1.msra.mxu0 0.0
        %3599 = vmatprep.subr.mxu0 0.0
        %3600 = vmatpush1.msra.mxu0 0.0
        %3601 = vmatprep.subr.mxu0 0.0
        %3602 = vmatpush1.msra.mxu0 0.0
        %3603 = vmatprep.subr.mxu0 0.0
        %3604 = vmatpush1.msra.mxu0 0.0
        %3605 = vmatprep.subr.mxu0 0.0
        %3606 = vmatpush1.msra.mxu0 0.0
        %3607 = vmatprep.mubr.f32.mxu0 0.0
        %3608 = vmatmul.mubr.f32.gmra.mrb[0].mxu0 %v3194
        %v3609 = vpop.f32.mrb[0].mxu0
        %v3610 = vadd.f32 0.0, %v3609
        %v3611 = vpop.f32.mrb[0].mxu0
        %3612 = vdwg.mxu0
        %v3613 = vadd.f32 %v3540, %v3610
        %v3614 = vxor.u32 %v3613, 2147483648
        %v3615 = vmul.f32 %v3614, 1.442695
        %v3616 = vpow.pop %v3615
        %v3617 = vadd.f32 %v3616, 1.0
        %v3618 = vrcp.pop %v3617
        %v3619 = vmul.f32 1.0, %v3618
        %v3620 = vadd.f32 %v3610, %v2186
        %3622 = vrot.lane.b32.xlu0 %v3620, 64
        %v3623 = vpop.permute.xlu0 %3622
        %v3625 = vmul.f32 %v3619, %v3623
        %3627 = vrot.lane.b32.xlu0 %v3625, 64
        %v3628 = vpop.permute.xlu0 %3627
        %v3630 = vadd.f32 %v3540, %v3628
        %v3631 = vtanh.pop %v3630
        %v3632 = vsub.f32 1.0, %v3619
        %3634 = vrot.lane.b32.xlu0 %v3631, 96
        %v3635 = vpop.permute.xlu0 %3634
        %v3637 = vmul.f32 %v3632, %v3635
        %v3638 = vmul.f32 %v3619, %v3190
        %v3639 = vadd.f32 %v3637, %v3638
        %3641 = vrot.lane.b32.xlu0 %v3639, 96
        %v3642 = vpop.permute.xlu0 %3641
        %v3643 = vsel %vm212, %v3642, 0
        %3645 = vmatprep.subr.mxu0 0.0
        %3646 = vmatpush1.msra.mxu0 %v2238
        %3647 = vmatprep.subr.mxu0 0.0
        %3648 = vmatpush1.msra.mxu0 %v2239
        %3649 = vmatprep.subr.mxu0 0.0
        %3650 = vmatpush1.msra.mxu0 %v2240
        %3651 = vmatprep.subr.mxu0 0.0
        %3652 = vmatpush1.msra.mxu0 %v2241
        %3653 = vmatprep.subr.mxu0 0.0
        %3654 = vmatpush1.msra.mxu0 0.0
        %3655 = vmatprep.subr.mxu0 0.0
        %3656 = vmatpush1.msra.mxu0 0.0
        %3657 = vmatprep.subr.mxu0 0.0
        %3658 = vmatpush1.msra.mxu0 0.0
        %3659 = vmatprep.subr.mxu0 0.0
        %3660 = vmatpush1.msra.mxu0 0.0
        %3661 = vmatprep.subr.mxu0 0.0
        %3662 = vmatpush1.msra.mxu0 0.0
        %3663 = vmatprep.subr.mxu0 0.0
        %3664 = vmatpush1.msra.mxu0 0.0
        %3665 = vmatprep.subr.mxu0 0.0
        %3666 = vmatpush1.msra.mxu0 0.0
        %3667 = vmatprep.subr.mxu0 0.0
        %3668 = vmatpush1.msra.mxu0 0.0
        %3669 = vmatprep.subr.mxu0 0.0
        %3670 = vmatpush1.msra.mxu0 0.0
        %3671 = vmatprep.subr.mxu0 0.0
        %3672 = vmatpush1.msra.mxu0 0.0
        %3673 = vmatprep.subr.mxu0 0.0
        %3674 = vmatpush1.msra.mxu0 0.0
        %3675 = vmatprep.subr.mxu0 0.0
        %3676 = vmatpush1.msra.mxu0 0.0
        %3677 = vmatprep.subr.mxu0 0.0
        %3678 = vmatpush1.msra.mxu0 0.0
        %3679 = vmatprep.subr.mxu0 0.0
        %3680 = vmatpush1.msra.mxu0 0.0
        %3681 = vmatprep.subr.mxu0 0.0
        %3682 = vmatpush1.msra.mxu0 0.0
        %3683 = vmatprep.subr.mxu0 0.0
        %3684 = vmatpush1.msra.mxu0 0.0
        %3685 = vmatprep.subr.mxu0 0.0
        %3686 = vmatpush1.msra.mxu0 0.0
        %3687 = vmatprep.subr.mxu0 0.0
        %3688 = vmatpush1.msra.mxu0 0.0
        %3689 = vmatprep.subr.mxu0 0.0
        %3690 = vmatpush1.msra.mxu0 0.0
        %3691 = vmatprep.subr.mxu0 0.0
        %3692 = vmatpush1.msra.mxu0 0.0
        %3693 = vmatprep.subr.mxu0 0.0
        %3694 = vmatpush1.msra.mxu0 0.0
        %3695 = vmatprep.subr.mxu0 0.0
        %3696 = vmatpush1.msra.mxu0 0.0
        %3697 = vmatprep.subr.mxu0 0.0
        %3698 = vmatpush1.msra.mxu0 0.0
        %3699 = vmatprep.subr.mxu0 0.0
        %3700 = vmatpush1.msra.mxu0 0.0
        %3701 = vmatprep.subr.mxu0 0.0
        %3702 = vmatpush1.msra.mxu0 0.0
        %3703 = vmatprep.subr.mxu0 0.0
        %3704 = vmatpush1.msra.mxu0 0.0
        %3705 = vmatprep.subr.mxu0 0.0
        %3706 = vmatpush1.msra.mxu0 0.0
        %3707 = vmatprep.subr.mxu0 0.0
        %3708 = vmatpush1.msra.mxu0 0.0
        %3709 = vmatprep.mubr.f32.mxu0 0.0
        %3710 = vmatmul.mubr.f32.gmra.mrb[0].mxu0 %v3643
        %v3711 = vpop.f32.mrb[0].mxu0
        %v3712 = vadd.f32 %v2251, %v3711
        %v3713 = vpop.f32.mrb[0].mxu0
        %3714 = vdwg.mxu0
        %3715 = vmatprep.subr.mxu0 0.0
        %3716 = vmatpush1.msra.mxu0 %v2345
        %3717 = vmatprep.subr.mxu0 0.0
        %3718 = vmatpush1.msra.mxu0 %v2346
        %3719 = vmatprep.subr.mxu0 0.0
        %3720 = vmatpush1.msra.mxu0 %v2347
        %3721 = vmatprep.subr.mxu0 0.0
        %3722 = vmatpush1.msra.mxu0 %v2348
        %3723 = vmatprep.subr.mxu0 0.0
        %3724 = vmatpush1.msra.mxu0 0.0
        %3725 = vmatprep.subr.mxu0 0.0
        %3726 = vmatpush1.msra.mxu0 0.0
        %3727 = vmatprep.subr.mxu0 0.0
        %3728 = vmatpush1.msra.mxu0 0.0
        %3729 = vmatprep.subr.mxu0 0.0
        %3730 = vmatpush1.msra.mxu0 0.0
        %3731 = vmatprep.subr.mxu0 0.0
        %3732 = vmatpush1.msra.mxu0 0.0
        %3733 = vmatprep.subr.mxu0 0.0
        %3734 = vmatpush1.msra.mxu0 0.0
        %3735 = vmatprep.subr.mxu0 0.0
        %3736 = vmatpush1.msra.mxu0 0.0
        %3737 = vmatprep.subr.mxu0 0.0
        %3738 = vmatpush1.msra.mxu0 0.0
        %3739 = vmatprep.subr.mxu0 0.0
        %3740 = vmatpush1.msra.mxu0 0.0
        %3741 = vmatprep.subr.mxu0 0.0
        %3742 = vmatpush1.msra.mxu0 0.0
        %3743 = vmatprep.subr.mxu0 0.0
        %3744 = vmatpush1.msra.mxu0 0.0
        %3745 = vmatprep.subr.mxu0 0.0
        %3746 = vmatpush1.msra.mxu0 0.0
        %3747 = vmatprep.subr.mxu0 0.0
        %3748 = vmatpush1.msra.mxu0 0.0
        %3749 = vmatprep.subr.mxu0 0.0
        %3750 = vmatpush1.msra.mxu0 0.0
        %3751 = vmatprep.subr.mxu0 0.0
        %3752 = vmatpush1.msra.mxu0 0.0
        %3753 = vmatprep.subr.mxu0 0.0
        %3754 = vmatpush1.msra.mxu0 0.0
        %3755 = vmatprep.subr.mxu0 0.0
        %3756 = vmatpush1.msra.mxu0 0.0
        %3757 = vmatprep.subr.mxu0 0.0
        %3758 = vmatpush1.msra.mxu0 0.0
        %3759 = vmatprep.subr.mxu0 0.0
        %3760 = vmatpush1.msra.mxu0 0.0
        %3761 = vmatprep.subr.mxu0 0.0
        %3762 = vmatpush1.msra.mxu0 0.0
        %3763 = vmatprep.subr.mxu0 0.0
        %3764 = vmatpush1.msra.mxu0 0.0
        %3765 = vmatprep.subr.mxu0 0.0
        %3766 = vmatpush1.msra.mxu0 0.0
        %3767 = vmatprep.subr.mxu0 0.0
        %3768 = vmatpush1.msra.mxu0 0.0
        %3769 = vmatprep.subr.mxu0 0.0
        %3770 = vmatpush1.msra.mxu0 0.0
        %3771 = vmatprep.subr.mxu0 0.0
        %3772 = vmatpush1.msra.mxu0 0.0
        %3773 = vmatprep.subr.mxu0 0.0
        %3774 = vmatpush1.msra.mxu0 0.0
        %3775 = vmatprep.subr.mxu0 0.0
        %3776 = vmatpush1.msra.mxu0 0.0
        %3777 = vmatprep.subr.mxu0 0.0
        %3778 = vmatpush1.msra.mxu0 0.0
        %3779 = vmatprep.mubr.f32.mxu0 0.0
        %3780 = vmatmul.mubr.f32.gmra.mrb[0].mxu0 %v3366
        %v3781 = vpop.f32.mrb[0].mxu0
        %v3782 = vadd.f32 0.0, %v3781
        %v3783 = vpop.f32.mrb[0].mxu0
        %3784 = vdwg.mxu0
        %v3785 = vadd.f32 %v3712, %v3782
        %v3786 = vxor.u32 %v3785, 2147483648
        %v3787 = vmul.f32 %v3786, 1.442695
        %v3788 = vpow.pop %v3787
        %v3789 = vadd.f32 %v3788, 1.0
        %v3790 = vrcp.pop %v3789
        %v3791 = vmul.f32 1.0, %v3790
        %v3792 = vadd.f32 %v3782, %v2431
        %3794 = vrot.lane.b32.xlu0 %v3792, 64
        %v3795 = vpop.permute.xlu0 %3794
        %v3797 = vmul.f32 %v3791, %v3795
        %3799 = vrot.lane.b32.xlu0 %v3797, 64
        %v3800 = vpop.permute.xlu0 %3799
        %v3802 = vadd.f32 %v3712, %v3800
        %v3803 = vtanh.pop %v3802
        %v3804 = vsub.f32 1.0, %v3791
        %3806 = vrot.lane.b32.xlu0 %v3803, 96
        %v3807 = vpop.permute.xlu0 %3806
        %v3809 = vmul.f32 %v3804, %v3807
        %v3810 = vmul.f32 %v3791, %v3362
        %v3811 = vadd.f32 %v3809, %v3810
        %3813 = vrot.lane.b32.xlu0 %v3811, 96
        %v3814 = vpop.permute.xlu0 %3813
        %v3815 = vsel %vm212, %v3814, 0
        %3817 = vmatprep.subr.mxu0 0.0
        %3818 = vmatpush1.msra.mxu0 %v2457
        %3819 = vmatprep.subr.mxu0 0.0
        %3820 = vmatpush1.msra.mxu0 %v2459
        %3821 = vmatprep.subr.mxu0 0.0
        %3822 = vmatpush1.msra.mxu0 %v2461
        %3823 = vmatprep.subr.mxu0 0.0
        %3824 = vmatpush1.msra.mxu0 %v2463
        %3825 = vmatprep.subr.mxu0 0.0
        %3826 = vmatpush1.msra.mxu0 0.0
        %3827 = vmatprep.subr.mxu0 0.0
        %3828 = vmatpush1.msra.mxu0 0.0
        %3829 = vmatprep.subr.mxu0 0.0
        %3830 = vmatpush1.msra.mxu0 0.0
        %3831 = vmatprep.subr.mxu0 0.0
        %3832 = vmatpush1.msra.mxu0 0.0
        %3833 = vmatprep.subr.mxu0 0.0
        %3834 = vmatpush1.msra.mxu0 0.0
        %3835 = vmatprep.subr.mxu0 0.0
        %3836 = vmatpush1.msra.mxu0 0.0
        %3837 = vmatprep.subr.mxu0 0.0
        %3838 = vmatpush1.msra.mxu0 0.0
        %3839 = vmatprep.subr.mxu0 0.0
        %3840 = vmatpush1.msra.mxu0 0.0
        %3841 = vmatprep.subr.mxu0 0.0
        %3842 = vmatpush1.msra.mxu0 0.0
        %3843 = vmatprep.subr.mxu0 0.0
        %3844 = vmatpush1.msra.mxu0 0.0
        %3845 = vmatprep.subr.mxu0 0.0
        %3846 = vmatpush1.msra.mxu0 0.0
        %3847 = vmatprep.subr.mxu0 0.0
        %3848 = vmatpush1.msra.mxu0 0.0
        %3849 = vmatprep.subr.mxu0 0.0
        %3850 = vmatpush1.msra.mxu0 0.0
        %3851 = vmatprep.subr.mxu0 0.0
        %3852 = vmatpush1.msra.mxu0 0.0
        %3853 = vmatprep.subr.mxu0 0.0
        %3854 = vmatpush1.msra.mxu0 0.0
        %3855 = vmatprep.subr.mxu0 0.0
        %3856 = vmatpush1.msra.mxu0 0.0
        %3857 = vmatprep.subr.mxu0 0.0
        %3858 = vmatpush1.msra.mxu0 0.0
        %3859 = vmatprep.subr.mxu0 0.0
        %3860 = vmatpush1.msra.mxu0 0.0
        %3861 = vmatprep.subr.mxu0 0.0
        %3862 = vmatpush1.msra.mxu0 0.0
        %3863 = vmatprep.subr.mxu0 0.0
        %3864 = vmatpush1.msra.mxu0 0.0
        %3865 = vmatprep.subr.mxu0 0.0
        %3866 = vmatpush1.msra.mxu0 0.0
        %3867 = vmatprep.subr.mxu0 0.0
        %3868 = vmatpush1.msra.mxu0 0.0
        %3869 = vmatprep.subr.mxu0 0.0
        %3870 = vmatpush1.msra.mxu0 0.0
        %3871 = vmatprep.subr.mxu0 0.0
        %3872 = vmatpush1.msra.mxu0 0.0
        %3873 = vmatprep.subr.mxu0 0.0
        %3874 = vmatpush1.msra.mxu0 0.0
        %3875 = vmatprep.subr.mxu0 0.0
        %3876 = vmatpush1.msra.mxu0 0.0
        %3877 = vmatprep.subr.mxu0 0.0
        %3878 = vmatpush1.msra.mxu0 0.0
        %3879 = vmatprep.subr.mxu0 0.0
        %3880 = vmatpush1.msra.mxu0 0.0
        %3881 = vmatprep.mubr.f32.mxu0 0.0
        %3882 = vmatmul.mubr.f32.gmra.mrb[0].mxu0 %v3815
        %v3883 = vpop.f32.mrb[0].mxu0
        %v3884 = vadd.f32 %v1945, %v3883
        %v3885 = vpop.f32.mrb[0].mxu0
        %3886 = vdwg.mxu0
        %v3887 = vsel %vm350, %v3884, -inf
        %3888 = vmax.xlane.f32.xlu0 %v3887
        %v3889 = vpop.xlane.xlu0 %3888
        %vm3890 = vcmp.eq.f32.partialorder %v3884, %v3889
        %v3891 = vsel %vm3890, %v194, 16
        %v3892 = vsel %vm350, %v3891, 2147483647
        %v3893 = vand.u32 %v3892, 65535
        %v3894 = vshra.s32 %v3892, 16
        %v3895 = vcvt.s32.f32 %v3893
        %v3896 = vcvt.s32.f32 %v3894
        %3897 = vmin.xlane.f32.xlu0 %v3896
        %v3898 = vpop.xlane.xlu0 %3897
        %vm3899 = vcmp.eq.f32.partialorder %v3896, %v3898
        %v3900 = vsel %vm3899, %v3895, inf
        %3901 = vmin.xlane.f32.xlu0 %v3900
        %v3902 = vpop.xlane.xlu0 %3901
        %v3903 = vcvt.f32.s32 %v3902
        %v3904 = vcvt.f32.s32 %v3898
        %v3905 = vshll.u32 %v3904, 16
        %v3906 = vadd.s32 %v3905, %v3903
        %vm3907 = vcmp.eq.s32.totalorder %v194, %v3906
        %v3908 = vsel %vm3907, 1, 0
        %v3909 = vcvt.s32.f32 %v3908
        %v3910 = vsub.f32 %v3884, %v3889
        %v3911 = vmul.f32 %v3910, 1.442695
        %v3912 = vpow.pop %v3911
        %v3913 = vsel %vm350, %v3912, 0.0
        %3914 = vadd.xlane.f32.xlu0 %v3913
        %v3915 = vpop.xlane.xlu0 %3914
        %v3916 = vlog2.pop %v3915
        %v3917 = vmul.f32 %v3916, 0.6931472
        %v3918 = vsub.f32 %v3910, %v3917
        %v3920 = vsel %vm350, %v3909, 0
        %3922 = vmatprep.subr.mxu0 0.0
        %3923 = vmatpush1.msra.mxu0 %v1760
        %3924 = vmatprep.subr.mxu0 0.0
        %3925 = vmatpush1.msra.mxu0 %v1765
        %3926 = vmatprep.subr.mxu0 0.0
        %3927 = vmatpush1.msra.mxu0 0.0
        %3928 = vmatprep.subr.mxu0 0.0
        %3929 = vmatpush1.msra.mxu0 0.0
        %3930 = vmatprep.subr.mxu0 0.0
        %3931 = vmatpush1.msra.mxu0 0.0
        %3932 = vmatprep.subr.mxu0 0.0
        %3933 = vmatpush1.msra.mxu0 0.0
        %3934 = vmatprep.subr.mxu0 0.0
        %3935 = vmatpush1.msra.mxu0 0.0
        %3936 = vmatprep.subr.mxu0 0.0
        %3937 = vmatpush1.msra.mxu0 0.0
        %3938 = vmatprep.subr.mxu0 0.0
        %3939 = vmatpush1.msra.mxu0 0.0
        %3940 = vmatprep.subr.mxu0 0.0
        %3941 = vmatpush1.msra.mxu0 0.0
        %3942 = vmatprep.subr.mxu0 0.0
        %3943 = vmatpush1.msra.mxu0 0.0
        %3944 = vmatprep.subr.mxu0 0.0
        %3945 = vmatpush1.msra.mxu0 0.0
        %3946 = vmatprep.subr.mxu0 0.0
        %3947 = vmatpush1.msra.mxu0 0.0
        %3948 = vmatprep.subr.mxu0 0.0
        %3949 = vmatpush1.msra.mxu0 0.0
        %3950 = vmatprep.subr.mxu0 0.0
        %3951 = vmatpush1.msra.mxu0 0.0
        %3952 = vmatprep.subr.mxu0 0.0
        %3953 = vmatpush1.msra.mxu0 0.0
        %3954 = vmatprep.subr.mxu0 0.0
        %3955 = vmatpush1.msra.mxu0 0.0
        %3956 = vmatprep.subr.mxu0 0.0
        %3957 = vmatpush1.msra.mxu0 0.0
        %3958 = vmatprep.subr.mxu0 0.0
        %3959 = vmatpush1.msra.mxu0 0.0
        %3960 = vmatprep.subr.mxu0 0.0
        %3961 = vmatpush1.msra.mxu0 0.0
        %3962 = vmatprep.subr.mxu0 0.0
        %3963 = vmatpush1.msra.mxu0 0.0
        %3964 = vmatprep.subr.mxu0 0.0
        %3965 = vmatpush1.msra.mxu0 0.0
        %3966 = vmatprep.subr.mxu0 0.0
        %3967 = vmatpush1.msra.mxu0 0.0
        %3968 = vmatprep.subr.mxu0 0.0
        %3969 = vmatpush1.msra.mxu0 0.0
        %3970 = vmatprep.subr.mxu0 0.0
        %3971 = vmatpush1.msra.mxu0 0.0
        %3972 = vmatprep.subr.mxu0 0.0
        %3973 = vmatpush1.msra.mxu0 0.0
        %3974 = vmatprep.subr.mxu0 0.0
        %3975 = vmatpush1.msra.mxu0 0.0
        %3976 = vmatprep.subr.mxu0 0.0
        %3977 = vmatpush1.msra.mxu0 0.0
        %3978 = vmatprep.subr.mxu0 0.0
        %3979 = vmatpush1.msra.mxu0 0.0
        %3980 = vmatprep.subr.mxu0 0.0
        %3981 = vmatpush1.msra.mxu0 0.0
        %3982 = vmatprep.subr.mxu0 0.0
        %3983 = vmatpush1.msra.mxu0 0.0
        %3984 = vmatprep.subr.mxu0 0.0
        %3985 = vmatpush1.msra.mxu0 0.0
        %3986 = vmatprep.mubr.f32.mxu0 0.0
        %3987 = vmatmul.mubr.f32.gmra.mrb[0].mxu0 %v3920
        %v3988 = vpop.f32.mrb[0].mxu0
        %v3989 = vadd.f32 %v1871, %v3988
        %v3990 = vpop.f32.mrb[0].mxu0
        %3991 = vdwg.mxu0
        %3992 = vmatprep.subr.mxu0 0.0
        %3993 = vmatpush1.msra.mxu0 %v1768
        %3994 = vmatprep.subr.mxu0 0.0
        %3995 = vmatpush1.msra.mxu0 %v1769
        %3996 = vmatprep.subr.mxu0 0.0
        %3997 = vmatpush1.msra.mxu0 %v1770
        %3998 = vmatprep.subr.mxu0 0.0
        %3999 = vmatpush1.msra.mxu0 %v1771
        %4000 = vmatprep.subr.mxu0 0.0
        %4001 = vmatpush1.msra.mxu0 0.0
        %4002 = vmatprep.subr.mxu0 0.0
        %4003 = vmatpush1.msra.mxu0 0.0
        %4004 = vmatprep.subr.mxu0 0.0
        %4005 = vmatpush1.msra.mxu0 0.0
        %4006 = vmatprep.subr.mxu0 0.0
        %4007 = vmatpush1.msra.mxu0 0.0
        %4008 = vmatprep.subr.mxu0 0.0
        %4009 = vmatpush1.msra.mxu0 0.0
        %4010 = vmatprep.subr.mxu0 0.0
        %4011 = vmatpush1.msra.mxu0 0.0
        %4012 = vmatprep.subr.mxu0 0.0
        %4013 = vmatpush1.msra.mxu0 0.0
        %4014 = vmatprep.subr.mxu0 0.0
        %4015 = vmatpush1.msra.mxu0 0.0
        %4016 = vmatprep.subr.mxu0 0.0
        %4017 = vmatpush1.msra.mxu0 0.0
        %4018 = vmatprep.subr.mxu0 0.0
        %4019 = vmatpush1.msra.mxu0 0.0
        %4020 = vmatprep.subr.mxu0 0.0
        %4021 = vmatpush1.msra.mxu0 0.0
        %4022 = vmatprep.subr.mxu0 0.0
        %4023 = vmatpush1.msra.mxu0 0.0
        %4024 = vmatprep.subr.mxu0 0.0
        %4025 = vmatpush1.msra.mxu0 0.0
        %4026 = vmatprep.subr.mxu0 0.0
        %4027 = vmatpush1.msra.mxu0 0.0
        %4028 = vmatprep.subr.mxu0 0.0
        %4029 = vmatpush1.msra.mxu0 0.0
        %4030 = vmatprep.subr.mxu0 0.0
        %4031 = vmatpush1.msra.mxu0 0.0
        %4032 = vmatprep.subr.mxu0 0.0
        %4033 = vmatpush1.msra.mxu0 0.0
        %4034 = vmatprep.subr.mxu0 0.0
        %4035 = vmatpush1.msra.mxu0 0.0
        %4036 = vmatprep.subr.mxu0 0.0
        %4037 = vmatpush1.msra.mxu0 0.0
        %4038 = vmatprep.subr.mxu0 0.0
        %4039 = vmatpush1.msra.mxu0 0.0
        %4040 = vmatprep.subr.mxu0 0.0
        %4041 = vmatpush1.msra.mxu0 0.0
        %4042 = vmatprep.subr.mxu0 0.0
        %4043 = vmatpush1.msra.mxu0 0.0
        %4044 = vmatprep.subr.mxu0 0.0
        %4045 = vmatpush1.msra.mxu0 0.0
        %4046 = vmatprep.subr.mxu0 0.0
        %4047 = vmatpush1.msra.mxu0 0.0
        %4048 = vmatprep.subr.mxu0 0.0
        %4049 = vmatpush1.msra.mxu0 0.0
        %4050 = vmatprep.subr.mxu0 0.0
        %4051 = vmatpush1.msra.mxu0 0.0
        %4052 = vmatprep.subr.mxu0 0.0
        %4053 = vmatpush1.msra.mxu0 0.0
        %4054 = vmatprep.subr.mxu0 0.0
        %4055 = vmatpush1.msra.mxu0 0.0
        %4056 = vmatprep.mubr.f32.mxu0 0.0
        %4057 = vmatmul.mubr.f32.gmra.mrb[0].mxu0 %v3643
        %v4058 = vpop.f32.mrb[0].mxu0
        %v4059 = vadd.f32 0.0, %v4058
        %v4060 = vpop.f32.mrb[0].mxu0
        %4061 = vdwg.mxu0
        %v4062 = vadd.f32 %v3989, %v4059
        %v4063 = vxor.u32 %v4062, 2147483648
        %v4064 = vmul.f32 %v4063, 1.442695
        %v4065 = vpow.pop %v4064
        %v4066 = vadd.f32 %v4065, 1.0
        %v4067 = vrcp.pop %v4066
        %v4068 = vmul.f32 1.0, %v4067
        %v4069 = vadd.f32 %v4059, %v2186
        %4071 = vrot.lane.b32.xlu0 %v4069, 64
        %v4072 = vpop.permute.xlu0 %4071
        %v4074 = vmul.f32 %v4068, %v4072
        %4076 = vrot.lane.b32.xlu0 %v4074, 64
        %v4077 = vpop.permute.xlu0 %4076
        %v4079 = vadd.f32 %v3989, %v4077
        %v4080 = vtanh.pop %v4079
        %v4081 = vsub.f32 1.0, %v4068
        %4083 = vrot.lane.b32.xlu0 %v4080, 96
        %v4084 = vpop.permute.xlu0 %4083
        %v4086 = vmul.f32 %v4081, %v4084
        %v4087 = vmul.f32 %v4068, %v3639
        %v4088 = vadd.f32 %v4086, %v4087
        %4090 = vrot.lane.b32.xlu0 %v4088, 96
        %v4091 = vpop.permute.xlu0 %4090
        %v4092 = vsel %vm212, %v4091, 0
        %4094 = vmatprep.subr.mxu0 0.0
        %4095 = vmatpush1.msra.mxu0 %v2238
        %4096 = vmatprep.subr.mxu0 0.0
        %4097 = vmatpush1.msra.mxu0 %v2239
        %4098 = vmatprep.subr.mxu0 0.0
        %4099 = vmatpush1.msra.mxu0 %v2240
        %4100 = vmatprep.subr.mxu0 0.0
        %4101 = vmatpush1.msra.mxu0 %v2241
        %4102 = vmatprep.subr.mxu0 0.0
        %4103 = vmatpush1.msra.mxu0 0.0
        %4104 = vmatprep.subr.mxu0 0.0
        %4105 = vmatpush1.msra.mxu0 0.0
        %4106 = vmatprep.subr.mxu0 0.0
        %4107 = vmatpush1.msra.mxu0 0.0
        %4108 = vmatprep.subr.mxu0 0.0
        %4109 = vmatpush1.msra.mxu0 0.0
        %4110 = vmatprep.subr.mxu0 0.0
        %4111 = vmatpush1.msra.mxu0 0.0
        %4112 = vmatprep.subr.mxu0 0.0
        %4113 = vmatpush1.msra.mxu0 0.0
        %4114 = vmatprep.subr.mxu0 0.0
        %4115 = vmatpush1.msra.mxu0 0.0
        %4116 = vmatprep.subr.mxu0 0.0
        %4117 = vmatpush1.msra.mxu0 0.0
        %4118 = vmatprep.subr.mxu0 0.0
        %4119 = vmatpush1.msra.mxu0 0.0
        %4120 = vmatprep.subr.mxu0 0.0
        %4121 = vmatpush1.msra.mxu0 0.0
        %4122 = vmatprep.subr.mxu0 0.0
        %4123 = vmatpush1.msra.mxu0 0.0
        %4124 = vmatprep.subr.mxu0 0.0
        %4125 = vmatpush1.msra.mxu0 0.0
        %4126 = vmatprep.subr.mxu0 0.0
        %4127 = vmatpush1.msra.mxu0 0.0
        %4128 = vmatprep.subr.mxu0 0.0
        %4129 = vmatpush1.msra.mxu0 0.0
        %4130 = vmatprep.subr.mxu0 0.0
        %4131 = vmatpush1.msra.mxu0 0.0
        %4132 = vmatprep.subr.mxu0 0.0
        %4133 = vmatpush1.msra.mxu0 0.0
        %4134 = vmatprep.subr.mxu0 0.0
        %4135 = vmatpush1.msra.mxu0 0.0
        %4136 = vmatprep.subr.mxu0 0.0
        %4137 = vmatpush1.msra.mxu0 0.0
        %4138 = vmatprep.subr.mxu0 0.0
        %4139 = vmatpush1.msra.mxu0 0.0
        %4140 = vmatprep.subr.mxu0 0.0
        %4141 = vmatpush1.msra.mxu0 0.0
        %4142 = vmatprep.subr.mxu0 0.0
        %4143 = vmatpush1.msra.mxu0 0.0
        %4144 = vmatprep.subr.mxu0 0.0
        %4145 = vmatpush1.msra.mxu0 0.0
        %4146 = vmatprep.subr.mxu0 0.0
        %4147 = vmatpush1.msra.mxu0 0.0
        %4148 = vmatprep.subr.mxu0 0.0
        %4149 = vmatpush1.msra.mxu0 0.0
        %4150 = vmatprep.subr.mxu0 0.0
        %4151 = vmatpush1.msra.mxu0 0.0
        %4152 = vmatprep.subr.mxu0 0.0
        %4153 = vmatpush1.msra.mxu0 0.0
        %4154 = vmatprep.subr.mxu0 0.0
        %4155 = vmatpush1.msra.mxu0 0.0
        %4156 = vmatprep.subr.mxu0 0.0
        %4157 = vmatpush1.msra.mxu0 0.0
        %4158 = vmatprep.mubr.f32.mxu0 0.0
        %4159 = vmatmul.mubr.f32.gmra.mrb[0].mxu0 %v4092
        %v4160 = vpop.f32.mrb[0].mxu0
        %v4161 = vadd.f32 %v2251, %v4160
        %v4162 = vpop.f32.mrb[0].mxu0
        %4163 = vdwg.mxu0
        %4164 = vmatprep.subr.mxu0 0.0
        %4165 = vmatpush1.msra.mxu0 %v2345
        %4166 = vmatprep.subr.mxu0 0.0
        %4167 = vmatpush1.msra.mxu0 %v2346
        %4168 = vmatprep.subr.mxu0 0.0
        %4169 = vmatpush1.msra.mxu0 %v2347
        %4170 = vmatprep.subr.mxu0 0.0
        %4171 = vmatpush1.msra.mxu0 %v2348
        %4172 = vmatprep.subr.mxu0 0.0
        %4173 = vmatpush1.msra.mxu0 0.0
        %4174 = vmatprep.subr.mxu0 0.0
        %4175 = vmatpush1.msra.mxu0 0.0
        %4176 = vmatprep.subr.mxu0 0.0
        %4177 = vmatpush1.msra.mxu0 0.0
        %4178 = vmatprep.subr.mxu0 0.0
        %4179 = vmatpush1.msra.mxu0 0.0
        %4180 = vmatprep.subr.mxu0 0.0
        %4181 = vmatpush1.msra.mxu0 0.0
        %4182 = vmatprep.subr.mxu0 0.0
        %4183 = vmatpush1.msra.mxu0 0.0
        %4184 = vmatprep.subr.mxu0 0.0
        %4185 = vmatpush1.msra.mxu0 0.0
        %4186 = vmatprep.subr.mxu0 0.0
        %4187 = vmatpush1.msra.mxu0 0.0
        %4188 = vmatprep.subr.mxu0 0.0
        %4189 = vmatpush1.msra.mxu0 0.0
        %4190 = vmatprep.subr.mxu0 0.0
        %4191 = vmatpush1.msra.mxu0 0.0
        %4192 = vmatprep.subr.mxu0 0.0
        %4193 = vmatpush1.msra.mxu0 0.0
        %4194 = vmatprep.subr.mxu0 0.0
        %4195 = vmatpush1.msra.mxu0 0.0
        %4196 = vmatprep.subr.mxu0 0.0
        %4197 = vmatpush1.msra.mxu0 0.0
        %4198 = vmatprep.subr.mxu0 0.0
        %4199 = vmatpush1.msra.mxu0 0.0
        %4200 = vmatprep.subr.mxu0 0.0
        %4201 = vmatpush1.msra.mxu0 0.0
        %4202 = vmatprep.subr.mxu0 0.0
        %4203 = vmatpush1.msra.mxu0 0.0
        %4204 = vmatprep.subr.mxu0 0.0
        %4205 = vmatpush1.msra.mxu0 0.0
        %4206 = vmatprep.subr.mxu0 0.0
        %4207 = vmatpush1.msra.mxu0 0.0
        %4208 = vmatprep.subr.mxu0 0.0
        %4209 = vmatpush1.msra.mxu0 0.0
        %4210 = vmatprep.subr.mxu0 0.0
        %4211 = vmatpush1.msra.mxu0 0.0
        %4212 = vmatprep.subr.mxu0 0.0
        %4213 = vmatpush1.msra.mxu0 0.0
        %4214 = vmatprep.subr.mxu0 0.0
        %4215 = vmatpush1.msra.mxu0 0.0
        %4216 = vmatprep.subr.mxu0 0.0
        %4217 = vmatpush1.msra.mxu0 0.0
        %4218 = vmatprep.subr.mxu0 0.0
        %4219 = vmatpush1.msra.mxu0 0.0
        %4220 = vmatprep.subr.mxu0 0.0
        %4221 = vmatpush1.msra.mxu0 0.0
        %4222 = vmatprep.subr.mxu0 0.0
        %4223 = vmatpush1.msra.mxu0 0.0
        %4224 = vmatprep.subr.mxu0 0.0
        %4225 = vmatpush1.msra.mxu0 0.0
        %4226 = vmatprep.subr.mxu0 0.0
        %4227 = vmatpush1.msra.mxu0 0.0
        %4228 = vmatprep.mubr.f32.mxu0 0.0
        %4229 = vmatmul.mubr.f32.gmra.mrb[0].mxu0 %v3815
        %v4230 = vpop.f32.mrb[0].mxu0
        %v4231 = vadd.f32 0.0, %v4230
        %v4232 = vpop.f32.mrb[0].mxu0
        %4233 = vdwg.mxu0
        %v4234 = vadd.f32 %v4161, %v4231
        %v4235 = vxor.u32 %v4234, 2147483648
        %v4236 = vmul.f32 %v4235, 1.442695
        %v4237 = vpow.pop %v4236
        %v4238 = vadd.f32 %v4237, 1.0
        %v4239 = vrcp.pop %v4238
        %v4240 = vmul.f32 1.0, %v4239
        %v4241 = vadd.f32 %v4231, %v2431
        %4243 = vrot.lane.b32.xlu0 %v4241, 64
        %v4244 = vpop.permute.xlu0 %4243
        %v4246 = vmul.f32 %v4240, %v4244
        %4248 = vrot.lane.b32.xlu0 %v4246, 64
        %v4249 = vpop.permute.xlu0 %4248
        %v4251 = vadd.f32 %v4161, %v4249
        %v4252 = vtanh.pop %v4251
        %v4253 = vsub.f32 1.0, %v4240
        %4255 = vrot.lane.b32.xlu0 %v4252, 96
        %v4256 = vpop.permute.xlu0 %4255
        %v4258 = vmul.f32 %v4253, %v4256
        %v4259 = vmul.f32 %v4240, %v3811
        %v4260 = vadd.f32 %v4258, %v4259
        %4262 = vrot.lane.b32.xlu0 %v4260, 96
        %v4263 = vpop.permute.xlu0 %4262
        %v4264 = vsel %vm212, %v4263, 0
        %4266 = vmatprep.subr.mxu0 0.0
        %4267 = vmatpush1.msra.mxu0 %v2457
        %4268 = vmatprep.subr.mxu0 0.0
        %4269 = vmatpush1.msra.mxu0 %v2459
        %4270 = vmatprep.subr.mxu0 0.0
        %4271 = vmatpush1.msra.mxu0 %v2461
        %4272 = vmatprep.subr.mxu0 0.0
        %4273 = vmatpush1.msra.mxu0 %v2463
        %4274 = vmatprep.subr.mxu0 0.0
        %4275 = vmatpush1.msra.mxu0 0.0
        %4276 = vmatprep.subr.mxu0 0.0
        %4277 = vmatpush1.msra.mxu0 0.0
        %4278 = vmatprep.subr.mxu0 0.0
        %4279 = vmatpush1.msra.mxu0 0.0
        %4280 = vmatprep.subr.mxu0 0.0
        %4281 = vmatpush1.msra.mxu0 0.0
        %4282 = vmatprep.subr.mxu0 0.0
        %4283 = vmatpush1.msra.mxu0 0.0
        %4284 = vmatprep.subr.mxu0 0.0
        %4285 = vmatpush1.msra.mxu0 0.0
        %4286 = vmatprep.subr.mxu0 0.0
        %4287 = vmatpush1.msra.mxu0 0.0
        %4288 = vmatprep.subr.mxu0 0.0
        %4289 = vmatpush1.msra.mxu0 0.0
        %4290 = vmatprep.subr.mxu0 0.0
        %4291 = vmatpush1.msra.mxu0 0.0
        %4292 = vmatprep.subr.mxu0 0.0
        %4293 = vmatpush1.msra.mxu0 0.0
        %4294 = vmatprep.subr.mxu0 0.0
        %4295 = vmatpush1.msra.mxu0 0.0
        %4296 = vmatprep.subr.mxu0 0.0
        %4297 = vmatpush1.msra.mxu0 0.0
        %4298 = vmatprep.subr.mxu0 0.0
        %4299 = vmatpush1.msra.mxu0 0.0
        %4300 = vmatprep.subr.mxu0 0.0
        %4301 = vmatpush1.msra.mxu0 0.0
        %4302 = vmatprep.subr.mxu0 0.0
        %4303 = vmatpush1.msra.mxu0 0.0
        %4304 = vmatprep.subr.mxu0 0.0
        %4305 = vmatpush1.msra.mxu0 0.0
        %4306 = vmatprep.subr.mxu0 0.0
        %4307 = vmatpush1.msra.mxu0 0.0
        %4308 = vmatprep.subr.mxu0 0.0
        %4309 = vmatpush1.msra.mxu0 0.0
        %4310 = vmatprep.subr.mxu0 0.0
        %4311 = vmatpush1.msra.mxu0 0.0
        %4312 = vmatprep.subr.mxu0 0.0
        %4313 = vmatpush1.msra.mxu0 0.0
        %4314 = vmatprep.subr.mxu0 0.0
        %4315 = vmatpush1.msra.mxu0 0.0
        %4316 = vmatprep.subr.mxu0 0.0
        %4317 = vmatpush1.msra.mxu0 0.0
        %4318 = vmatprep.subr.mxu0 0.0
        %4319 = vmatpush1.msra.mxu0 0.0
        %4320 = vmatprep.subr.mxu0 0.0
        %4321 = vmatpush1.msra.mxu0 0.0
        %4322 = vmatprep.subr.mxu0 0.0
        %4323 = vmatpush1.msra.mxu0 0.0
        %4324 = vmatprep.subr.mxu0 0.0
        %4325 = vmatpush1.msra.mxu0 0.0
        %4326 = vmatprep.subr.mxu0 0.0
        %4327 = vmatpush1.msra.mxu0 0.0
        %4328 = vmatprep.subr.mxu0 0.0
        %4329 = vmatpush1.msra.mxu0 0.0
        %4330 = vmatprep.mubr.f32.mxu0 0.0
        %4331 = vmatmul.mubr.f32.gmra.mrb[0].mxu0 %v4264
        %v4332 = vpop.f32.mrb[0].mxu0
        %v4333 = vadd.f32 %v1945, %v4332
        %v4334 = vpop.f32.mrb[0].mxu0
        %4335 = vdwg.mxu0
        %v4336 = vsel %vm350, %v4333, -inf
        %4337 = vmax.xlane.f32.xlu0 %v4336
        %v4338 = vpop.xlane.xlu0 %4337
        %vm4339 = vcmp.eq.f32.partialorder %v4333, %v4338
        %v4340 = vsel %vm4339, %v194, 16
        %v4341 = vsel %vm350, %v4340, 2147483647
        %v4342 = vand.u32 %v4341, 65535
        %v4343 = vshra.s32 %v4341, 16
        %v4344 = vcvt.s32.f32 %v4342
        %v4345 = vcvt.s32.f32 %v4343
        %4346 = vmin.xlane.f32.xlu0 %v4345
        %v4347 = vpop.xlane.xlu0 %4346
        %vm4348 = vcmp.eq.f32.partialorder %v4345, %v4347
        %v4349 = vsel %vm4348, %v4344, inf
        %4350 = vmin.xlane.f32.xlu0 %v4349
        %v4351 = vpop.xlane.xlu0 %4350
        %v4352 = vcvt.f32.s32 %v4351
        %v4353 = vcvt.f32.s32 %v4347
        %v4354 = vshll.u32 %v4353, 16
        %v4355 = vadd.s32 %v4354, %v4352
        %vm4356 = vcmp.eq.s32.totalorder %v194, %v4355
        %v4357 = vsel %vm4356, 1, 0
        %v4358 = vcvt.s32.f32 %v4357
        %v4359 = vsub.f32 %v4333, %v4338
        %v4360 = vmul.f32 %v4359, 1.442695
        %v4361 = vpow.pop %v4360
        %v4362 = vsel %vm350, %v4361, 0.0
        %4363 = vadd.xlane.f32.xlu0 %v4362
        %v4364 = vpop.xlane.xlu0 %4363
        %v4365 = vlog2.pop %v4364
        %v4366 = vmul.f32 %v4365, 0.6931472
        %v4367 = vsub.f32 %v4359, %v4366
        %v4369 = vsel %vm350, %v4358, 0
        %4371 = vmatprep.subr.mxu0 0.0
        %4372 = vmatpush1.msra.mxu0 %v1760
        %4373 = vmatprep.subr.mxu0 0.0
        %4374 = vmatpush1.msra.mxu0 %v1765
        %4375 = vmatprep.subr.mxu0 0.0
        %4376 = vmatpush1.msra.mxu0 0.0
        %4377 = vmatprep.subr.mxu0 0.0
        %4378 = vmatpush1.msra.mxu0 0.0
        %4379 = vmatprep.subr.mxu0 0.0
        %4380 = vmatpush1.msra.mxu0 0.0
        %4381 = vmatprep.subr.mxu0 0.0
        %4382 = vmatpush1.msra.mxu0 0.0
        %4383 = vmatprep.subr.mxu0 0.0
        %4384 = vmatpush1.msra.mxu0 0.0
        %4385 = vmatprep.subr.mxu0 0.0
        %4386 = vmatpush1.msra.mxu0 0.0
        %4387 = vmatprep.subr.mxu0 0.0
        %4388 = vmatpush1.msra.mxu0 0.0
        %4389 = vmatprep.subr.mxu0 0.0
        %4390 = vmatpush1.msra.mxu0 0.0
        %4391 = vmatprep.subr.mxu0 0.0
        %4392 = vmatpush1.msra.mxu0 0.0
        %4393 = vmatprep.subr.mxu0 0.0
        %4394 = vmatpush1.msra.mxu0 0.0
        %4395 = vmatprep.subr.mxu0 0.0
        %4396 = vmatpush1.msra.mxu0 0.0
        %4397 = vmatprep.subr.mxu0 0.0
        %4398 = vmatpush1.msra.mxu0 0.0
        %4399 = vmatprep.subr.mxu0 0.0
        %4400 = vmatpush1.msra.mxu0 0.0
        %4401 = vmatprep.subr.mxu0 0.0
        %4402 = vmatpush1.msra.mxu0 0.0
        %4403 = vmatprep.subr.mxu0 0.0
        %4404 = vmatpush1.msra.mxu0 0.0
        %4405 = vmatprep.subr.mxu0 0.0
        %4406 = vmatpush1.msra.mxu0 0.0
        %4407 = vmatprep.subr.mxu0 0.0
        %4408 = vmatpush1.msra.mxu0 0.0
        %4409 = vmatprep.subr.mxu0 0.0
        %4410 = vmatpush1.msra.mxu0 0.0
        %4411 = vmatprep.subr.mxu0 0.0
        %4412 = vmatpush1.msra.mxu0 0.0
        %4413 = vmatprep.subr.mxu0 0.0
        %4414 = vmatpush1.msra.mxu0 0.0
        %4415 = vmatprep.subr.mxu0 0.0
        %4416 = vmatpush1.msra.mxu0 0.0
        %4417 = vmatprep.subr.mxu0 0.0
        %4418 = vmatpush1.msra.mxu0 0.0
        %4419 = vmatprep.subr.mxu0 0.0
        %4420 = vmatpush1.msra.mxu0 0.0
        %4421 = vmatprep.subr.mxu0 0.0
        %4422 = vmatpush1.msra.mxu0 0.0
        %4423 = vmatprep.subr.mxu0 0.0
        %4424 = vmatpush1.msra.mxu0 0.0
        %4425 = vmatprep.subr.mxu0 0.0
        %4426 = vmatpush1.msra.mxu0 0.0
        %4427 = vmatprep.subr.mxu0 0.0
        %4428 = vmatpush1.msra.mxu0 0.0
        %4429 = vmatprep.subr.mxu0 0.0
        %4430 = vmatpush1.msra.mxu0 0.0
        %4431 = vmatprep.subr.mxu0 0.0
        %4432 = vmatpush1.msra.mxu0 0.0
        %4433 = vmatprep.subr.mxu0 0.0
        %4434 = vmatpush1.msra.mxu0 0.0
        %4435 = vmatprep.mubr.f32.mxu0 0.0
        %4436 = vmatmul.mubr.f32.gmra.mrb[0].mxu0 %v4369
        %v4437 = vpop.f32.mrb[0].mxu0
        %v4438 = vadd.f32 %v1871, %v4437
        %v4439 = vpop.f32.mrb[0].mxu0
        %4440 = vdwg.mxu0
        %4441 = vmatprep.subr.mxu0 0.0
        %4442 = vmatpush1.msra.mxu0 %v1768
        %4443 = vmatprep.subr.mxu0 0.0
        %4444 = vmatpush1.msra.mxu0 %v1769
        %4445 = vmatprep.subr.mxu0 0.0
        %4446 = vmatpush1.msra.mxu0 %v1770
        %4447 = vmatprep.subr.mxu0 0.0
        %4448 = vmatpush1.msra.mxu0 %v1771
        %4449 = vmatprep.subr.mxu0 0.0
        %4450 = vmatpush1.msra.mxu0 0.0
        %4451 = vmatprep.subr.mxu0 0.0
        %4452 = vmatpush1.msra.mxu0 0.0
        %4453 = vmatprep.subr.mxu0 0.0
        %4454 = vmatpush1.msra.mxu0 0.0
        %4455 = vmatprep.subr.mxu0 0.0
        %4456 = vmatpush1.msra.mxu0 0.0
        %4457 = vmatprep.subr.mxu0 0.0
        %4458 = vmatpush1.msra.mxu0 0.0
        %4459 = vmatprep.subr.mxu0 0.0
        %4460 = vmatpush1.msra.mxu0 0.0
        %4461 = vmatprep.subr.mxu0 0.0
        %4462 = vmatpush1.msra.mxu0 0.0
        %4463 = vmatprep.subr.mxu0 0.0
        %4464 = vmatpush1.msra.mxu0 0.0
        %4465 = vmatprep.subr.mxu0 0.0
        %4466 = vmatpush1.msra.mxu0 0.0
        %4467 = vmatprep.subr.mxu0 0.0
        %4468 = vmatpush1.msra.mxu0 0.0
        %4469 = vmatprep.subr.mxu0 0.0
        %4470 = vmatpush1.msra.mxu0 0.0
        %4471 = vmatprep.subr.mxu0 0.0
        %4472 = vmatpush1.msra.mxu0 0.0
        %4473 = vmatprep.subr.mxu0 0.0
        %4474 = vmatpush1.msra.mxu0 0.0
        %4475 = vmatprep.subr.mxu0 0.0
        %4476 = vmatpush1.msra.mxu0 0.0
        %4477 = vmatprep.subr.mxu0 0.0
        %4478 = vmatpush1.msra.mxu0 0.0
        %4479 = vmatprep.subr.mxu0 0.0
        %4480 = vmatpush1.msra.mxu0 0.0
        %4481 = vmatprep.subr.mxu0 0.0
        %4482 = vmatpush1.msra.mxu0 0.0
        %4483 = vmatprep.subr.mxu0 0.0
        %4484 = vmatpush1.msra.mxu0 0.0
        %4485 = vmatprep.subr.mxu0 0.0
        %4486 = vmatpush1.msra.mxu0 0.0
        %4487 = vmatprep.subr.mxu0 0.0
        %4488 = vmatpush1.msra.mxu0 0.0
        %4489 = vmatprep.subr.mxu0 0.0
        %4490 = vmatpush1.msra.mxu0 0.0
        %4491 = vmatprep.subr.mxu0 0.0
        %4492 = vmatpush1.msra.mxu0 0.0
        %4493 = vmatprep.subr.mxu0 0.0
        %4494 = vmatpush1.msra.mxu0 0.0
        %4495 = vmatprep.subr.mxu0 0.0
        %4496 = vmatpush1.msra.mxu0 0.0
        %4497 = vmatprep.subr.mxu0 0.0
        %4498 = vmatpush1.msra.mxu0 0.0
        %4499 = vmatprep.subr.mxu0 0.0
        %4500 = vmatpush1.msra.mxu0 0.0
        %4501 = vmatprep.subr.mxu0 0.0
        %4502 = vmatpush1.msra.mxu0 0.0
        %4503 = vmatprep.subr.mxu0 0.0
        %4504 = vmatpush1.msra.mxu0 0.0
        %4505 = vmatprep.mubr.f32.mxu0 0.0
        %4506 = vmatmul.mubr.f32.gmra.mrb[0].mxu0 %v4092
        %v4507 = vpop.f32.mrb[0].mxu0
        %v4508 = vadd.f32 0.0, %v4507
        %v4509 = vpop.f32.mrb[0].mxu0
        %4510 = vdwg.mxu0
        %v4511 = vadd.f32 %v4438, %v4508
        %v4512 = vxor.u32 %v4511, 2147483648
        %v4513 = vmul.f32 %v4512, 1.442695
        %v4514 = vpow.pop %v4513
        %v4515 = vadd.f32 %v4514, 1.0
        %v4516 = vrcp.pop %v4515
        %v4517 = vmul.f32 1.0, %v4516
        %v4518 = vadd.f32 %v4508, %v2186
        %4520 = vrot.lane.b32.xlu0 %v4518, 64
        %v4521 = vpop.permute.xlu0 %4520
        %v4523 = vmul.f32 %v4517, %v4521
        %4525 = vrot.lane.b32.xlu0 %v4523, 64
        %v4526 = vpop.permute.xlu0 %4525
        %v4528 = vadd.f32 %v4438, %v4526
        %v4529 = vtanh.pop %v4528
        %v4530 = vsub.f32 1.0, %v4517
        %4532 = vrot.lane.b32.xlu0 %v4529, 96
        %v4533 = vpop.permute.xlu0 %4532
        %v4535 = vmul.f32 %v4530, %v4533
        %v4536 = vmul.f32 %v4517, %v4088
        %v4537 = vadd.f32 %v4535, %v4536
        %4539 = vrot.lane.b32.xlu0 %v4537, 96
        %v4540 = vpop.permute.xlu0 %4539
        %v4541 = vsel %vm212, %v4540, 0
        %4543 = vmatprep.subr.mxu0 0.0
        %4544 = vmatpush1.msra.mxu0 %v2238
        %4545 = vmatprep.subr.mxu0 0.0
        %4546 = vmatpush1.msra.mxu0 %v2239
        %4547 = vmatprep.subr.mxu0 0.0
        %4548 = vmatpush1.msra.mxu0 %v2240
        %4549 = vmatprep.subr.mxu0 0.0
        %4550 = vmatpush1.msra.mxu0 %v2241
        %4551 = vmatprep.subr.mxu0 0.0
        %4552 = vmatpush1.msra.mxu0 0.0
        %4553 = vmatprep.subr.mxu0 0.0
        %4554 = vmatpush1.msra.mxu0 0.0
        %4555 = vmatprep.subr.mxu0 0.0
        %4556 = vmatpush1.msra.mxu0 0.0
        %4557 = vmatprep.subr.mxu0 0.0
        %4558 = vmatpush1.msra.mxu0 0.0
        %4559 = vmatprep.subr.mxu0 0.0
        %4560 = vmatpush1.msra.mxu0 0.0
        %4561 = vmatprep.subr.mxu0 0.0
        %4562 = vmatpush1.msra.mxu0 0.0
        %4563 = vmatprep.subr.mxu0 0.0
        %4564 = vmatpush1.msra.mxu0 0.0
        %4565 = vmatprep.subr.mxu0 0.0
        %4566 = vmatpush1.msra.mxu0 0.0
        %4567 = vmatprep.subr.mxu0 0.0
        %4568 = vmatpush1.msra.mxu0 0.0
        %4569 = vmatprep.subr.mxu0 0.0
        %4570 = vmatpush1.msra.mxu0 0.0
        %4571 = vmatprep.subr.mxu0 0.0
        %4572 = vmatpush1.msra.mxu0 0.0
        %4573 = vmatprep.subr.mxu0 0.0
        %4574 = vmatpush1.msra.mxu0 0.0
        %4575 = vmatprep.subr.mxu0 0.0
        %4576 = vmatpush1.msra.mxu0 0.0
        %4577 = vmatprep.subr.mxu0 0.0
        %4578 = vmatpush1.msra.mxu0 0.0
        %4579 = vmatprep.subr.mxu0 0.0
        %4580 = vmatpush1.msra.mxu0 0.0
        %4581 = vmatprep.subr.mxu0 0.0
        %4582 = vmatpush1.msra.mxu0 0.0
        %4583 = vmatprep.subr.mxu0 0.0
        %4584 = vmatpush1.msra.mxu0 0.0
        %4585 = vmatprep.subr.mxu0 0.0
        %4586 = vmatpush1.msra.mxu0 0.0
        %4587 = vmatprep.subr.mxu0 0.0
        %4588 = vmatpush1.msra.mxu0 0.0
        %4589 = vmatprep.subr.mxu0 0.0
        %4590 = vmatpush1.msra.mxu0 0.0
        %4591 = vmatprep.subr.mxu0 0.0
        %4592 = vmatpush1.msra.mxu0 0.0
        %4593 = vmatprep.subr.mxu0 0.0
        %4594 = vmatpush1.msra.mxu0 0.0
        %4595 = vmatprep.subr.mxu0 0.0
        %4596 = vmatpush1.msra.mxu0 0.0
        %4597 = vmatprep.subr.mxu0 0.0
        %4598 = vmatpush1.msra.mxu0 0.0
        %4599 = vmatprep.subr.mxu0 0.0
        %4600 = vmatpush1.msra.mxu0 0.0
        %4601 = vmatprep.subr.mxu0 0.0
        %4602 = vmatpush1.msra.mxu0 0.0
        %4603 = vmatprep.subr.mxu0 0.0
        %4604 = vmatpush1.msra.mxu0 0.0
        %4605 = vmatprep.subr.mxu0 0.0
        %4606 = vmatpush1.msra.mxu0 0.0
        %4607 = vmatprep.mubr.f32.mxu0 0.0
        %4608 = vmatmul.mubr.f32.gmra.mrb[0].mxu0 %v4541
        %v4609 = vpop.f32.mrb[0].mxu0
        %v4610 = vadd.f32 %v2251, %v4609
        %v4611 = vpop.f32.mrb[0].mxu0
        %4612 = vdwg.mxu0
        %4613 = vmatprep.subr.mxu0 0.0
        %4614 = vmatpush1.msra.mxu0 %v2345
        %4615 = vmatprep.subr.mxu0 0.0
        %4616 = vmatpush1.msra.mxu0 %v2346
        %4617 = vmatprep.subr.mxu0 0.0
        %4618 = vmatpush1.msra.mxu0 %v2347
        %4619 = vmatprep.subr.mxu0 0.0
        %4620 = vmatpush1.msra.mxu0 %v2348
        %4621 = vmatprep.subr.mxu0 0.0
        %4622 = vmatpush1.msra.mxu0 0.0
        %4623 = vmatprep.subr.mxu0 0.0
        %4624 = vmatpush1.msra.mxu0 0.0
        %4625 = vmatprep.subr.mxu0 0.0
        %4626 = vmatpush1.msra.mxu0 0.0
        %4627 = vmatprep.subr.mxu0 0.0
        %4628 = vmatpush1.msra.mxu0 0.0
        %4629 = vmatprep.subr.mxu0 0.0
        %4630 = vmatpush1.msra.mxu0 0.0
        %4631 = vmatprep.subr.mxu0 0.0
        %4632 = vmatpush1.msra.mxu0 0.0
        %4633 = vmatprep.subr.mxu0 0.0
        %4634 = vmatpush1.msra.mxu0 0.0
        %4635 = vmatprep.subr.mxu0 0.0
        %4636 = vmatpush1.msra.mxu0 0.0
        %4637 = vmatprep.subr.mxu0 0.0
        %4638 = vmatpush1.msra.mxu0 0.0
        %4639 = vmatprep.subr.mxu0 0.0
        %4640 = vmatpush1.msra.mxu0 0.0
        %4641 = vmatprep.subr.mxu0 0.0
        %4642 = vmatpush1.msra.mxu0 0.0
        %4643 = vmatprep.subr.mxu0 0.0
        %4644 = vmatpush1.msra.mxu0 0.0
        %4645 = vmatprep.subr.mxu0 0.0
        %4646 = vmatpush1.msra.mxu0 0.0
        %4647 = vmatprep.subr.mxu0 0.0
        %4648 = vmatpush1.msra.mxu0 0.0
        %4649 = vmatprep.subr.mxu0 0.0
        %4650 = vmatpush1.msra.mxu0 0.0
        %4651 = vmatprep.subr.mxu0 0.0
        %4652 = vmatpush1.msra.mxu0 0.0
        %4653 = vmatprep.subr.mxu0 0.0
        %4654 = vmatpush1.msra.mxu0 0.0
        %4655 = vmatprep.subr.mxu0 0.0
        %4656 = vmatpush1.msra.mxu0 0.0
        %4657 = vmatprep.subr.mxu0 0.0
        %4658 = vmatpush1.msra.mxu0 0.0
        %4659 = vmatprep.subr.mxu0 0.0
        %4660 = vmatpush1.msra.mxu0 0.0
        %4661 = vmatprep.subr.mxu0 0.0
        %4662 = vmatpush1.msra.mxu0 0.0
        %4663 = vmatprep.subr.mxu0 0.0
        %4664 = vmatpush1.msra.mxu0 0.0
        %4665 = vmatprep.subr.mxu0 0.0
        %4666 = vmatpush1.msra.mxu0 0.0
        %4667 = vmatprep.subr.mxu0 0.0
        %4668 = vmatpush1.msra.mxu0 0.0
        %4669 = vmatprep.subr.mxu0 0.0
        %4670 = vmatpush1.msra.mxu0 0.0
        %4671 = vmatprep.subr.mxu0 0.0
        %4672 = vmatpush1.msra.mxu0 0.0
        %4673 = vmatprep.subr.mxu0 0.0
        %4674 = vmatpush1.msra.mxu0 0.0
        %4675 = vmatprep.subr.mxu0 0.0
        %4676 = vmatpush1.msra.mxu0 0.0
        %4677 = vmatprep.mubr.f32.mxu0 0.0
        %4678 = vmatmul.mubr.f32.gmra.mrb[0].mxu0 %v4264
        %v4679 = vpop.f32.mrb[0].mxu0
        %v4680 = vadd.f32 0.0, %v4679
        %v4681 = vpop.f32.mrb[0].mxu0
        %4682 = vdwg.mxu0
        %v4683 = vadd.f32 %v4610, %v4680
        %v4684 = vxor.u32 %v4683, 2147483648
        %v4685 = vmul.f32 %v4684, 1.442695
        %v4686 = vpow.pop %v4685
        %v4687 = vadd.f32 %v4686, 1.0
        %v4688 = vrcp.pop %v4687
        %v4689 = vmul.f32 1.0, %v4688
        %v4690 = vadd.f32 %v4680, %v2431
        %4692 = vrot.lane.b32.xlu0 %v4690, 64
        %v4693 = vpop.permute.xlu0 %4692
        %v4695 = vmul.f32 %v4689, %v4693
        %4697 = vrot.lane.b32.xlu0 %v4695, 64
        %v4698 = vpop.permute.xlu0 %4697
        %v4700 = vadd.f32 %v4610, %v4698
        %v4701 = vtanh.pop %v4700
        %v4702 = vsub.f32 1.0, %v4689
        %4704 = vrot.lane.b32.xlu0 %v4701, 96
        %v4705 = vpop.permute.xlu0 %4704
        %v4707 = vmul.f32 %v4702, %v4705
        %v4708 = vmul.f32 %v4689, %v4260
        %v4709 = vadd.f32 %v4707, %v4708
        %4711 = vrot.lane.b32.xlu0 %v4709, 96
        %v4712 = vpop.permute.xlu0 %4711
        %v4713 = vsel %vm212, %v4712, 0
        %4715 = vmatprep.subr.mxu0 0.0
        %4716 = vmatpush1.msra.mxu0 %v2457
        %4717 = vmatprep.subr.mxu0 0.0
        %4718 = vmatpush1.msra.mxu0 %v2459
        %4719 = vmatprep.subr.mxu0 0.0
        %4720 = vmatpush1.msra.mxu0 %v2461
        %4721 = vmatprep.subr.mxu0 0.0
        %4722 = vmatpush1.msra.mxu0 %v2463
        %4723 = vmatprep.subr.mxu0 0.0
        %4724 = vmatpush1.msra.mxu0 0.0
        %4725 = vmatprep.subr.mxu0 0.0
        %4726 = vmatpush1.msra.mxu0 0.0
        %4727 = vmatprep.subr.mxu0 0.0
        %4728 = vmatpush1.msra.mxu0 0.0
        %4729 = vmatprep.subr.mxu0 0.0
        %4730 = vmatpush1.msra.mxu0 0.0
        %4731 = vmatprep.subr.mxu0 0.0
        %4732 = vmatpush1.msra.mxu0 0.0
        %4733 = vmatprep.subr.mxu0 0.0
        %4734 = vmatpush1.msra.mxu0 0.0
        %4735 = vmatprep.subr.mxu0 0.0
        %4736 = vmatpush1.msra.mxu0 0.0
        %4737 = vmatprep.subr.mxu0 0.0
        %4738 = vmatpush1.msra.mxu0 0.0
        %4739 = vmatprep.subr.mxu0 0.0
        %4740 = vmatpush1.msra.mxu0 0.0
        %4741 = vmatprep.subr.mxu0 0.0
        %4742 = vmatpush1.msra.mxu0 0.0
        %4743 = vmatprep.subr.mxu0 0.0
        %4744 = vmatpush1.msra.mxu0 0.0
        %4745 = vmatprep.subr.mxu0 0.0
        %4746 = vmatpush1.msra.mxu0 0.0
        %4747 = vmatprep.subr.mxu0 0.0
        %4748 = vmatpush1.msra.mxu0 0.0
        %4749 = vmatprep.subr.mxu0 0.0
        %4750 = vmatpush1.msra.mxu0 0.0
        %4751 = vmatprep.subr.mxu0 0.0
        %4752 = vmatpush1.msra.mxu0 0.0
        %4753 = vmatprep.subr.mxu0 0.0
        %4754 = vmatpush1.msra.mxu0 0.0
        %4755 = vmatprep.subr.mxu0 0.0
        %4756 = vmatpush1.msra.mxu0 0.0
        %4757 = vmatprep.subr.mxu0 0.0
        %4758 = vmatpush1.msra.mxu0 0.0
        %4759 = vmatprep.subr.mxu0 0.0
        %4760 = vmatpush1.msra.mxu0 0.0
        %4761 = vmatprep.subr.mxu0 0.0
        %4762 = vmatpush1.msra.mxu0 0.0
        %4763 = vmatprep.subr.mxu0 0.0
        %4764 = vmatpush1.msra.mxu0 0.0
        %4765 = vmatprep.subr.mxu0 0.0
        %4766 = vmatpush1.msra.mxu0 0.0
        %4767 = vmatprep.subr.mxu0 0.0
        %4768 = vmatpush1.msra.mxu0 0.0
        %4769 = vmatprep.subr.mxu0 0.0
        %4770 = vmatpush1.msra.mxu0 0.0
        %4771 = vmatprep.subr.mxu0 0.0
        %4772 = vmatpush1.msra.mxu0 0.0
        %4773 = vmatprep.subr.mxu0 0.0
        %4774 = vmatpush1.msra.mxu0 0.0
        %4775 = vmatprep.subr.mxu0 0.0
        %4776 = vmatpush1.msra.mxu0 0.0
        %4777 = vmatprep.subr.mxu0 0.0
        %4778 = vmatpush1.msra.mxu0 0.0
        %4779 = vmatprep.mubr.f32.mxu0 0.0
        %4780 = vmatmul.mubr.f32.gmra.mrb[0].mxu0 %v4713
        %v4781 = vpop.f32.mrb[0].mxu0
        %v4782 = vadd.f32 %v1945, %v4781
        %v4783 = vpop.f32.mrb[0].mxu0
        %4784 = vdwg.mxu0
        %v4785 = vsel %vm350, %v4782, -inf
        %4786 = vmax.xlane.f32.xlu0 %v4785
        %v4787 = vpop.xlane.xlu0 %4786
        %vm4788 = vcmp.eq.f32.partialorder %v4782, %v4787
        %v4789 = vsel %vm4788, %v194, 16
        %v4790 = vsel %vm350, %v4789, 2147483647
        %v4791 = vand.u32 %v4790, 65535
        %v4792 = vshra.s32 %v4790, 16
        %v4793 = vcvt.s32.f32 %v4791
        %v4794 = vcvt.s32.f32 %v4792
        %4795 = vmin.xlane.f32.xlu0 %v4794
        %v4796 = vpop.xlane.xlu0 %4795
        %vm4797 = vcmp.eq.f32.partialorder %v4794, %v4796
        %v4798 = vsel %vm4797, %v4793, inf
        %4799 = vmin.xlane.f32.xlu0 %v4798
        %v4800 = vpop.xlane.xlu0 %4799
        %v4801 = vcvt.f32.s32 %v4800
        %v4802 = vcvt.f32.s32 %v4796
        %v4803 = vshll.u32 %v4802, 16
        %v4804 = vadd.s32 %v4803, %v4801
        %vm4805 = vcmp.eq.s32.totalorder %v194, %v4804
        %v4806 = vsel %vm4805, 1, 0
        %v4807 = vcvt.s32.f32 %v4806
        %v4808 = vsub.f32 %v4782, %v4787
        %v4809 = vmul.f32 %v4808, 1.442695
        %v4810 = vpow.pop %v4809
        %v4811 = vsel %vm350, %v4810, 0.0
        %4812 = vadd.xlane.f32.xlu0 %v4811
        %v4813 = vpop.xlane.xlu0 %4812
        %v4814 = vlog2.pop %v4813
        %v4815 = vmul.f32 %v4814, 0.6931472
        %v4816 = vsub.f32 %v4808, %v4815
        %v4818 = vsel %vm350, %v4807, 0
        %4820 = vmatprep.subr.mxu0 0.0
        %4821 = vmatpush1.msra.mxu0 %v1760
        %4822 = vmatprep.subr.mxu0 0.0
        %4823 = vmatpush1.msra.mxu0 %v1765
        %4824 = vmatprep.subr.mxu0 0.0
        %4825 = vmatpush1.msra.mxu0 0.0
        %4826 = vmatprep.subr.mxu0 0.0
        %4827 = vmatpush1.msra.mxu0 0.0
        %4828 = vmatprep.subr.mxu0 0.0
        %4829 = vmatpush1.msra.mxu0 0.0
        %4830 = vmatprep.subr.mxu0 0.0
        %4831 = vmatpush1.msra.mxu0 0.0
        %4832 = vmatprep.subr.mxu0 0.0
        %4833 = vmatpush1.msra.mxu0 0.0
        %4834 = vmatprep.subr.mxu0 0.0
        %4835 = vmatpush1.msra.mxu0 0.0
        %4836 = vmatprep.subr.mxu0 0.0
        %4837 = vmatpush1.msra.mxu0 0.0
        %4838 = vmatprep.subr.mxu0 0.0
        %4839 = vmatpush1.msra.mxu0 0.0
        %4840 = vmatprep.subr.mxu0 0.0
        %4841 = vmatpush1.msra.mxu0 0.0
        %4842 = vmatprep.subr.mxu0 0.0
        %4843 = vmatpush1.msra.mxu0 0.0
        %4844 = vmatprep.subr.mxu0 0.0
        %4845 = vmatpush1.msra.mxu0 0.0
        %4846 = vmatprep.subr.mxu0 0.0
        %4847 = vmatpush1.msra.mxu0 0.0
        %4848 = vmatprep.subr.mxu0 0.0
        %4849 = vmatpush1.msra.mxu0 0.0
        %4850 = vmatprep.subr.mxu0 0.0
        %4851 = vmatpush1.msra.mxu0 0.0
        %4852 = vmatprep.subr.mxu0 0.0
        %4853 = vmatpush1.msra.mxu0 0.0
        %4854 = vmatprep.subr.mxu0 0.0
        %4855 = vmatpush1.msra.mxu0 0.0
        %4856 = vmatprep.subr.mxu0 0.0
        %4857 = vmatpush1.msra.mxu0 0.0
        %4858 = vmatprep.subr.mxu0 0.0
        %4859 = vmatpush1.msra.mxu0 0.0
        %4860 = vmatprep.subr.mxu0 0.0
        %4861 = vmatpush1.msra.mxu0 0.0
        %4862 = vmatprep.subr.mxu0 0.0
        %4863 = vmatpush1.msra.mxu0 0.0
        %4864 = vmatprep.subr.mxu0 0.0
        %4865 = vmatpush1.msra.mxu0 0.0
        %4866 = vmatprep.subr.mxu0 0.0
        %4867 = vmatpush1.msra.mxu0 0.0
        %4868 = vmatprep.subr.mxu0 0.0
        %4869 = vmatpush1.msra.mxu0 0.0
        %4870 = vmatprep.subr.mxu0 0.0
        %4871 = vmatpush1.msra.mxu0 0.0
        %4872 = vmatprep.subr.mxu0 0.0
        %4873 = vmatpush1.msra.mxu0 0.0
        %4874 = vmatprep.subr.mxu0 0.0
        %4875 = vmatpush1.msra.mxu0 0.0
        %4876 = vmatprep.subr.mxu0 0.0
        %4877 = vmatpush1.msra.mxu0 0.0
        %4878 = vmatprep.subr.mxu0 0.0
        %4879 = vmatpush1.msra.mxu0 0.0
        %4880 = vmatprep.subr.mxu0 0.0
        %4881 = vmatpush1.msra.mxu0 0.0
        %4882 = vmatprep.subr.mxu0 0.0
        %4883 = vmatpush1.msra.mxu0 0.0
        %4884 = vmatprep.mubr.f32.mxu0 0.0
        %4885 = vmatmul.mubr.f32.gmra.mrb[0].mxu0 %v4818
        %v4886 = vpop.f32.mrb[0].mxu0
        %v4887 = vadd.f32 %v1871, %v4886
        %v4888 = vpop.f32.mrb[0].mxu0
        %4889 = vdwg.mxu0
        %4890 = vmatprep.subr.mxu0 0.0
        %4891 = vmatpush1.msra.mxu0 %v1768
        %4892 = vmatprep.subr.mxu0 0.0
        %4893 = vmatpush1.msra.mxu0 %v1769
        %4894 = vmatprep.subr.mxu0 0.0
        %4895 = vmatpush1.msra.mxu0 %v1770
        %4896 = vmatprep.subr.mxu0 0.0
        %4897 = vmatpush1.msra.mxu0 %v1771
        %4898 = vmatprep.subr.mxu0 0.0
        %4899 = vmatpush1.msra.mxu0 0.0
        %4900 = vmatprep.subr.mxu0 0.0
        %4901 = vmatpush1.msra.mxu0 0.0
        %4902 = vmatprep.subr.mxu0 0.0
        %4903 = vmatpush1.msra.mxu0 0.0
        %4904 = vmatprep.subr.mxu0 0.0
        %4905 = vmatpush1.msra.mxu0 0.0
        %4906 = vmatprep.subr.mxu0 0.0
        %4907 = vmatpush1.msra.mxu0 0.0
        %4908 = vmatprep.subr.mxu0 0.0
        %4909 = vmatpush1.msra.mxu0 0.0
        %4910 = vmatprep.subr.mxu0 0.0
        %4911 = vmatpush1.msra.mxu0 0.0
        %4912 = vmatprep.subr.mxu0 0.0
        %4913 = vmatpush1.msra.mxu0 0.0
        %4914 = vmatprep.subr.mxu0 0.0
        %4915 = vmatpush1.msra.mxu0 0.0
        %4916 = vmatprep.subr.mxu0 0.0
        %4917 = vmatpush1.msra.mxu0 0.0
        %4918 = vmatprep.subr.mxu0 0.0
        %4919 = vmatpush1.msra.mxu0 0.0
        %4920 = vmatprep.subr.mxu0 0.0
        %4921 = vmatpush1.msra.mxu0 0.0
        %4922 = vmatprep.subr.mxu0 0.0
        %4923 = vmatpush1.msra.mxu0 0.0
        %4924 = vmatprep.subr.mxu0 0.0
        %4925 = vmatpush1.msra.mxu0 0.0
        %4926 = vmatprep.subr.mxu0 0.0
        %4927 = vmatpush1.msra.mxu0 0.0
        %4928 = vmatprep.subr.mxu0 0.0
        %4929 = vmatpush1.msra.mxu0 0.0
        %4930 = vmatprep.subr.mxu0 0.0
        %4931 = vmatpush1.msra.mxu0 0.0
        %4932 = vmatprep.subr.mxu0 0.0
        %4933 = vmatpush1.msra.mxu0 0.0
        %4934 = vmatprep.subr.mxu0 0.0
        %4935 = vmatpush1.msra.mxu0 0.0
        %4936 = vmatprep.subr.mxu0 0.0
        %4937 = vmatpush1.msra.mxu0 0.0
        %4938 = vmatprep.subr.mxu0 0.0
        %4939 = vmatpush1.msra.mxu0 0.0
        %4940 = vmatprep.subr.mxu0 0.0
        %4941 = vmatpush1.msra.mxu0 0.0
        %4942 = vmatprep.subr.mxu0 0.0
        %4943 = vmatpush1.msra.mxu0 0.0
        %4944 = vmatprep.subr.mxu0 0.0
        %4945 = vmatpush1.msra.mxu0 0.0
        %4946 = vmatprep.subr.mxu0 0.0
        %4947 = vmatpush1.msra.mxu0 0.0
        %4948 = vmatprep.subr.mxu0 0.0
        %4949 = vmatpush1.msra.mxu0 0.0
        %4950 = vmatprep.subr.mxu0 0.0
        %4951 = vmatpush1.msra.mxu0 0.0
        %4952 = vmatprep.subr.mxu0 0.0
        %4953 = vmatpush1.msra.mxu0 0.0
        %4954 = vmatprep.mubr.f32.mxu0 0.0
        %4955 = vmatmul.mubr.f32.gmra.mrb[0].mxu0 %v4541
        %v4956 = vpop.f32.mrb[0].mxu0
        %v4957 = vadd.f32 0.0, %v4956
        %v4958 = vpop.f32.mrb[0].mxu0
        %4959 = vdwg.mxu0
        %v4960 = vadd.f32 %v4887, %v4957
        %v4961 = vxor.u32 %v4960, 2147483648
        %v4962 = vmul.f32 %v4961, 1.442695
        %v4963 = vpow.pop %v4962
        %v4964 = vadd.f32 %v4963, 1.0
        %v4965 = vrcp.pop %v4964
        %v4966 = vmul.f32 1.0, %v4965
        %v4967 = vadd.f32 %v4957, %v2186
        %4969 = vrot.lane.b32.xlu0 %v4967, 64
        %v4970 = vpop.permute.xlu0 %4969
        %v4972 = vmul.f32 %v4966, %v4970
        %4974 = vrot.lane.b32.xlu0 %v4972, 64
        %v4975 = vpop.permute.xlu0 %4974
        %v4977 = vadd.f32 %v4887, %v4975
        %v4978 = vtanh.pop %v4977
        %v4979 = vsub.f32 1.0, %v4966
        %4981 = vrot.lane.b32.xlu0 %v4978, 96
        %v4982 = vpop.permute.xlu0 %4981
        %v4984 = vmul.f32 %v4979, %v4982
        %v4985 = vmul.f32 %v4966, %v4537
        %v4986 = vadd.f32 %v4984, %v4985
        %4988 = vrot.lane.b32.xlu0 %v4986, 96
        %v4989 = vpop.permute.xlu0 %4988
        %v4990 = vsel %vm212, %v4989, 0
        %4992 = vmatprep.subr.mxu0 0.0
        %4993 = vmatpush1.msra.mxu0 %v2238
        %4994 = vmatprep.subr.mxu0 0.0
        %4995 = vmatpush1.msra.mxu0 %v2239
        %4996 = vmatprep.subr.mxu0 0.0
        %4997 = vmatpush1.msra.mxu0 %v2240
        %4998 = vmatprep.subr.mxu0 0.0
        %4999 = vmatpush1.msra.mxu0 %v2241
        %5000 = vmatprep.subr.mxu0 0.0
        %5001 = vmatpush1.msra.mxu0 0.0
        %5002 = vmatprep.subr.mxu0 0.0
        %5003 = vmatpush1.msra.mxu0 0.0
        %5004 = vmatprep.subr.mxu0 0.0
        %5005 = vmatpush1.msra.mxu0 0.0
        %5006 = vmatprep.subr.mxu0 0.0
        %5007 = vmatpush1.msra.mxu0 0.0
        %5008 = vmatprep.subr.mxu0 0.0
        %5009 = vmatpush1.msra.mxu0 0.0
        %5010 = vmatprep.subr.mxu0 0.0
        %5011 = vmatpush1.msra.mxu0 0.0
        %5012 = vmatprep.subr.mxu0 0.0
        %5013 = vmatpush1.msra.mxu0 0.0
        %5014 = vmatprep.subr.mxu0 0.0
        %5015 = vmatpush1.msra.mxu0 0.0
        %5016 = vmatprep.subr.mxu0 0.0
        %5017 = vmatpush1.msra.mxu0 0.0
        %5018 = vmatprep.subr.mxu0 0.0
        %5019 = vmatpush1.msra.mxu0 0.0
        %5020 = vmatprep.subr.mxu0 0.0
        %5021 = vmatpush1.msra.mxu0 0.0
        %5022 = vmatprep.subr.mxu0 0.0
        %5023 = vmatpush1.msra.mxu0 0.0
        %5024 = vmatprep.subr.mxu0 0.0
        %5025 = vmatpush1.msra.mxu0 0.0
        %5026 = vmatprep.subr.mxu0 0.0
        %5027 = vmatpush1.msra.mxu0 0.0
        %5028 = vmatprep.subr.mxu0 0.0
        %5029 = vmatpush1.msra.mxu0 0.0
        %5030 = vmatprep.subr.mxu0 0.0
        %5031 = vmatpush1.msra.mxu0 0.0
        %5032 = vmatprep.subr.mxu0 0.0
        %5033 = vmatpush1.msra.mxu0 0.0
        %5034 = vmatprep.subr.mxu0 0.0
        %5035 = vmatpush1.msra.mxu0 0.0
        %5036 = vmatprep.subr.mxu0 0.0
        %5037 = vmatpush1.msra.mxu0 0.0
        %5038 = vmatprep.subr.mxu0 0.0
        %5039 = vmatpush1.msra.mxu0 0.0
        %5040 = vmatprep.subr.mxu0 0.0
        %5041 = vmatpush1.msra.mxu0 0.0
        %5042 = vmatprep.subr.mxu0 0.0
        %5043 = vmatpush1.msra.mxu0 0.0
        %5044 = vmatprep.subr.mxu0 0.0
        %5045 = vmatpush1.msra.mxu0 0.0
        %5046 = vmatprep.subr.mxu0 0.0
        %5047 = vmatpush1.msra.mxu0 0.0
        %5048 = vmatprep.subr.mxu0 0.0
        %5049 = vmatpush1.msra.mxu0 0.0
        %5050 = vmatprep.subr.mxu0 0.0
        %5051 = vmatpush1.msra.mxu0 0.0
        %5052 = vmatprep.subr.mxu0 0.0
        %5053 = vmatpush1.msra.mxu0 0.0
        %5054 = vmatprep.subr.mxu0 0.0
        %5055 = vmatpush1.msra.mxu0 0.0
        %5056 = vmatprep.mubr.f32.mxu0 0.0
        %5057 = vmatmul.mubr.f32.gmra.mrb[0].mxu0 %v4990
        %v5058 = vpop.f32.mrb[0].mxu0
        %v5059 = vadd.f32 %v2251, %v5058
        %v5060 = vpop.f32.mrb[0].mxu0
        %5061 = vdwg.mxu0
        %5062 = vmatprep.subr.mxu0 0.0
        %5063 = vmatpush1.msra.mxu0 %v2345
        %5064 = vmatprep.subr.mxu0 0.0
        %5065 = vmatpush1.msra.mxu0 %v2346
        %5066 = vmatprep.subr.mxu0 0.0
        %5067 = vmatpush1.msra.mxu0 %v2347
        %5068 = vmatprep.subr.mxu0 0.0
        %5069 = vmatpush1.msra.mxu0 %v2348
        %5070 = vmatprep.subr.mxu0 0.0
        %5071 = vmatpush1.msra.mxu0 0.0
        %5072 = vmatprep.subr.mxu0 0.0
        %5073 = vmatpush1.msra.mxu0 0.0
        %5074 = vmatprep.subr.mxu0 0.0
        %5075 = vmatpush1.msra.mxu0 0.0
        %5076 = vmatprep.subr.mxu0 0.0
        %5077 = vmatpush1.msra.mxu0 0.0
        %5078 = vmatprep.subr.mxu0 0.0
        %5079 = vmatpush1.msra.mxu0 0.0
        %5080 = vmatprep.subr.mxu0 0.0
        %5081 = vmatpush1.msra.mxu0 0.0
        %5082 = vmatprep.subr.mxu0 0.0
        %5083 = vmatpush1.msra.mxu0 0.0
        %5084 = vmatprep.subr.mxu0 0.0
        %5085 = vmatpush1.msra.mxu0 0.0
        %5086 = vmatprep.subr.mxu0 0.0
        %5087 = vmatpush1.msra.mxu0 0.0
        %5088 = vmatprep.subr.mxu0 0.0
        %5089 = vmatpush1.msra.mxu0 0.0
        %5090 = vmatprep.subr.mxu0 0.0
        %5091 = vmatpush1.msra.mxu0 0.0
        %5092 = vmatprep.subr.mxu0 0.0
        %5093 = vmatpush1.msra.mxu0 0.0
        %5094 = vmatprep.subr.mxu0 0.0
        %5095 = vmatpush1.msra.mxu0 0.0
        %5096 = vmatprep.subr.mxu0 0.0
        %5097 = vmatpush1.msra.mxu0 0.0
        %5098 = vmatprep.subr.mxu0 0.0
        %5099 = vmatpush1.msra.mxu0 0.0
        %5100 = vmatprep.subr.mxu0 0.0
        %5101 = vmatpush1.msra.mxu0 0.0
        %5102 = vmatprep.subr.mxu0 0.0
        %5103 = vmatpush1.msra.mxu0 0.0
        %5104 = vmatprep.subr.mxu0 0.0
        %5105 = vmatpush1.msra.mxu0 0.0
        %5106 = vmatprep.subr.mxu0 0.0
        %5107 = vmatpush1.msra.mxu0 0.0
        %5108 = vmatprep.subr.mxu0 0.0
        %5109 = vmatpush1.msra.mxu0 0.0
        %5110 = vmatprep.subr.mxu0 0.0
        %5111 = vmatpush1.msra.mxu0 0.0
        %5112 = vmatprep.subr.mxu0 0.0
        %5113 = vmatpush1.msra.mxu0 0.0
        %5114 = vmatprep.subr.mxu0 0.0
        %5115 = vmatpush1.msra.mxu0 0.0
        %5116 = vmatprep.subr.mxu0 0.0
        %5117 = vmatpush1.msra.mxu0 0.0
        %5118 = vmatprep.subr.mxu0 0.0
        %5119 = vmatpush1.msra.mxu0 0.0
        %5120 = vmatprep.subr.mxu0 0.0
        %5121 = vmatpush1.msra.mxu0 0.0
        %5122 = vmatprep.subr.mxu0 0.0
        %5123 = vmatpush1.msra.mxu0 0.0
        %5124 = vmatprep.subr.mxu0 0.0
        %5125 = vmatpush1.msra.mxu0 0.0
        %5126 = vmatprep.mubr.f32.mxu0 0.0
        %5127 = vmatmul.mubr.f32.gmra.mrb[0].mxu0 %v4713
        %v5128 = vpop.f32.mrb[0].mxu0
        %v5129 = vadd.f32 0.0, %v5128
        %v5130 = vpop.f32.mrb[0].mxu0
        %5131 = vdwg.mxu0
        %v5132 = vadd.f32 %v5059, %v5129
        %v5133 = vxor.u32 %v5132, 2147483648
        %v5134 = vmul.f32 %v5133, 1.442695
        %v5135 = vpow.pop %v5134
        %v5136 = vadd.f32 %v5135, 1.0
        %v5137 = vrcp.pop %v5136
        %v5138 = vmul.f32 1.0, %v5137
        %v5139 = vadd.f32 %v5129, %v2431
        %5141 = vrot.lane.b32.xlu0 %v5139, 64
        %v5142 = vpop.permute.xlu0 %5141
        %v5144 = vmul.f32 %v5138, %v5142
        %5146 = vrot.lane.b32.xlu0 %v5144, 64
        %v5147 = vpop.permute.xlu0 %5146
        %v5149 = vadd.f32 %v5059, %v5147
        %v5150 = vtanh.pop %v5149
        %v5151 = vsub.f32 1.0, %v5138
        %5153 = vrot.lane.b32.xlu0 %v5150, 96
        %v5154 = vpop.permute.xlu0 %5153
        %v5156 = vmul.f32 %v5151, %v5154
        %v5157 = vmul.f32 %v5138, %v4709
        %v5158 = vadd.f32 %v5156, %v5157
        %5160 = vrot.lane.b32.xlu0 %v5158, 96
        %v5161 = vpop.permute.xlu0 %5160
        %v5162 = vsel %vm212, %v5161, 0
        %5164 = vmatprep.subr.mxu0 0.0
        %5165 = vmatpush1.msra.mxu0 %v2457
        %5166 = vmatprep.subr.mxu0 0.0
        %5167 = vmatpush1.msra.mxu0 %v2459
        %5168 = vmatprep.subr.mxu0 0.0
        %5169 = vmatpush1.msra.mxu0 %v2461
        %5170 = vmatprep.subr.mxu0 0.0
        %5171 = vmatpush1.msra.mxu0 %v2463
        %5172 = vmatprep.subr.mxu0 0.0
        %5173 = vmatpush1.msra.mxu0 0.0
        %5174 = vmatprep.subr.mxu0 0.0
        %5175 = vmatpush1.msra.mxu0 0.0
        %5176 = vmatprep.subr.mxu0 0.0
        %5177 = vmatpush1.msra.mxu0 0.0
        %5178 = vmatprep.subr.mxu0 0.0
        %5179 = vmatpush1.msra.mxu0 0.0
        %5180 = vmatprep.subr.mxu0 0.0
        %5181 = vmatpush1.msra.mxu0 0.0
        %5182 = vmatprep.subr.mxu0 0.0
        %5183 = vmatpush1.msra.mxu0 0.0
        %5184 = vmatprep.subr.mxu0 0.0
        %5185 = vmatpush1.msra.mxu0 0.0
        %5186 = vmatprep.subr.mxu0 0.0
        %5187 = vmatpush1.msra.mxu0 0.0
        %5188 = vmatprep.subr.mxu0 0.0
        %5189 = vmatpush1.msra.mxu0 0.0
        %5190 = vmatprep.subr.mxu0 0.0
        %5191 = vmatpush1.msra.mxu0 0.0
        %5192 = vmatprep.subr.mxu0 0.0
        %5193 = vmatpush1.msra.mxu0 0.0
        %5194 = vmatprep.subr.mxu0 0.0
        %5195 = vmatpush1.msra.mxu0 0.0
        %5196 = vmatprep.subr.mxu0 0.0
        %5197 = vmatpush1.msra.mxu0 0.0
        %5198 = vmatprep.subr.mxu0 0.0
        %5199 = vmatpush1.msra.mxu0 0.0
        %5200 = vmatprep.subr.mxu0 0.0
        %5201 = vmatpush1.msra.mxu0 0.0
        %5202 = vmatprep.subr.mxu0 0.0
        %5203 = vmatpush1.msra.mxu0 0.0
        %5204 = vmatprep.subr.mxu0 0.0
        %5205 = vmatpush1.msra.mxu0 0.0
        %5206 = vmatprep.subr.mxu0 0.0
        %5207 = vmatpush1.msra.mxu0 0.0
        %5208 = vmatprep.subr.mxu0 0.0
        %5209 = vmatpush1.msra.mxu0 0.0
        %5210 = vmatprep.subr.mxu0 0.0
        %5211 = vmatpush1.msra.mxu0 0.0
        %5212 = vmatprep.subr.mxu0 0.0
        %5213 = vmatpush1.msra.mxu0 0.0
        %5214 = vmatprep.subr.mxu0 0.0
        %5215 = vmatpush1.msra.mxu0 0.0
        %5216 = vmatprep.subr.mxu0 0.0
        %5217 = vmatpush1.msra.mxu0 0.0
        %5218 = vmatprep.subr.mxu0 0.0
        %5219 = vmatpush1.msra.mxu0 0.0
        %5220 = vmatprep.subr.mxu0 0.0
        %5221 = vmatpush1.msra.mxu0 0.0
        %5222 = vmatprep.subr.mxu0 0.0
        %5223 = vmatpush1.msra.mxu0 0.0
        %5224 = vmatprep.subr.mxu0 0.0
        %5225 = vmatpush1.msra.mxu0 0.0
        %5226 = vmatprep.subr.mxu0 0.0
        %5227 = vmatpush1.msra.mxu0 0.0
        %5228 = vmatprep.mubr.f32.mxu0 0.0
        %5229 = vmatmul.mubr.f32.gmra.mrb[0].mxu0 %v5162
        %v5230 = vpop.f32.mrb[0].mxu0
        %v5231 = vadd.f32 %v1945, %v5230
        %v5232 = vpop.f32.mrb[0].mxu0
        %5233 = vdwg.mxu0
        %v5234 = vsel %vm350, %v5231, -inf
        %5235 = vmax.xlane.f32.xlu0 %v5234
        %v5236 = vpop.xlane.xlu0 %5235
        %vm5237 = vcmp.eq.f32.partialorder %v5231, %v5236
        %v5238 = vsel %vm5237, %v194, 16
        %v5239 = vsel %vm350, %v5238, 2147483647
        %v5240 = vand.u32 %v5239, 65535
        %v5241 = vshra.s32 %v5239, 16
        %v5242 = vcvt.s32.f32 %v5240
        %v5243 = vcvt.s32.f32 %v5241
        %5244 = vmin.xlane.f32.xlu0 %v5243
        %v5245 = vpop.xlane.xlu0 %5244
        %vm5246 = vcmp.eq.f32.partialorder %v5243, %v5245
        %v5247 = vsel %vm5246, %v5242, inf
        %5248 = vmin.xlane.f32.xlu0 %v5247
        %v5249 = vpop.xlane.xlu0 %5248
        %v5250 = vcvt.f32.s32 %v5249
        %v5251 = vcvt.f32.s32 %v5245
        %v5252 = vshll.u32 %v5251, 16
        %v5253 = vadd.s32 %v5252, %v5250
        %vm5254 = vcmp.eq.s32.totalorder %v194, %v5253
        %v5255 = vsel %vm5254, 1, 0
        %v5256 = vcvt.s32.f32 %v5255
        %v5257 = vsub.f32 %v5231, %v5236
        %v5258 = vmul.f32 %v5257, 1.442695
        %v5259 = vpow.pop %v5258
        %v5260 = vsel %vm350, %v5259, 0.0
        %5261 = vadd.xlane.f32.xlu0 %v5260
        %v5262 = vpop.xlane.xlu0 %5261
        %v5263 = vlog2.pop %v5262
        %v5264 = vmul.f32 %v5263, 0.6931472
        %v5265 = vsub.f32 %v5257, %v5264
        %v5267 = vsel %vm350, %v5256, 0
        %5269 = vmatprep.subr.mxu0 0.0
        %5270 = vmatpush1.msra.mxu0 %v1760
        %5271 = vmatprep.subr.mxu0 0.0
        %5272 = vmatpush1.msra.mxu0 %v1765
        %5273 = vmatprep.subr.mxu0 0.0
        %5274 = vmatpush1.msra.mxu0 0.0
        %5275 = vmatprep.subr.mxu0 0.0
        %5276 = vmatpush1.msra.mxu0 0.0
        %5277 = vmatprep.subr.mxu0 0.0
        %5278 = vmatpush1.msra.mxu0 0.0
        %5279 = vmatprep.subr.mxu0 0.0
        %5280 = vmatpush1.msra.mxu0 0.0
        %5281 = vmatprep.subr.mxu0 0.0
        %5282 = vmatpush1.msra.mxu0 0.0
        %5283 = vmatprep.subr.mxu0 0.0
        %5284 = vmatpush1.msra.mxu0 0.0
        %5285 = vmatprep.subr.mxu0 0.0
        %5286 = vmatpush1.msra.mxu0 0.0
        %5287 = vmatprep.subr.mxu0 0.0
        %5288 = vmatpush1.msra.mxu0 0.0
        %5289 = vmatprep.subr.mxu0 0.0
        %5290 = vmatpush1.msra.mxu0 0.0
        %5291 = vmatprep.subr.mxu0 0.0
        %5292 = vmatpush1.msra.mxu0 0.0
        %5293 = vmatprep.subr.mxu0 0.0
        %5294 = vmatpush1.msra.mxu0 0.0
        %5295 = vmatprep.subr.mxu0 0.0
        %5296 = vmatpush1.msra.mxu0 0.0
        %5297 = vmatprep.subr.mxu0 0.0
        %5298 = vmatpush1.msra.mxu0 0.0
        %5299 = vmatprep.subr.mxu0 0.0
        %5300 = vmatpush1.msra.mxu0 0.0
        %5301 = vmatprep.subr.mxu0 0.0
        %5302 = vmatpush1.msra.mxu0 0.0
        %5303 = vmatprep.subr.mxu0 0.0
        %5304 = vmatpush1.msra.mxu0 0.0
        %5305 = vmatprep.subr.mxu0 0.0
        %5306 = vmatpush1.msra.mxu0 0.0
        %5307 = vmatprep.subr.mxu0 0.0
        %5308 = vmatpush1.msra.mxu0 0.0
        %5309 = vmatprep.subr.mxu0 0.0
        %5310 = vmatpush1.msra.mxu0 0.0
        %5311 = vmatprep.subr.mxu0 0.0
        %5312 = vmatpush1.msra.mxu0 0.0
        %5313 = vmatprep.subr.mxu0 0.0
        %5314 = vmatpush1.msra.mxu0 0.0
        %5315 = vmatprep.subr.mxu0 0.0
        %5316 = vmatpush1.msra.mxu0 0.0
        %5317 = vmatprep.subr.mxu0 0.0
        %5318 = vmatpush1.msra.mxu0 0.0
        %5319 = vmatprep.subr.mxu0 0.0
        %5320 = vmatpush1.msra.mxu0 0.0
        %5321 = vmatprep.subr.mxu0 0.0
        %5322 = vmatpush1.msra.mxu0 0.0
        %5323 = vmatprep.subr.mxu0 0.0
        %5324 = vmatpush1.msra.mxu0 0.0
        %5325 = vmatprep.subr.mxu0 0.0
        %5326 = vmatpush1.msra.mxu0 0.0
        %5327 = vmatprep.subr.mxu0 0.0
        %5328 = vmatpush1.msra.mxu0 0.0
        %5329 = vmatprep.subr.mxu0 0.0
        %5330 = vmatpush1.msra.mxu0 0.0
        %5331 = vmatprep.subr.mxu0 0.0
        %5332 = vmatpush1.msra.mxu0 0.0
        %5333 = vmatprep.mubr.f32.mxu0 0.0
        %5334 = vmatmul.mubr.f32.gmra.mrb[0].mxu0 %v5267
        %v5335 = vpop.f32.mrb[0].mxu0
        %v5336 = vadd.f32 %v1871, %v5335
        %v5337 = vpop.f32.mrb[0].mxu0
        %5338 = vdwg.mxu0
        %5339 = vmatprep.subr.mxu0 0.0
        %5340 = vmatpush1.msra.mxu0 %v1768
        %5341 = vmatprep.subr.mxu0 0.0
        %5342 = vmatpush1.msra.mxu0 %v1769
        %5343 = vmatprep.subr.mxu0 0.0
        %5344 = vmatpush1.msra.mxu0 %v1770
        %5345 = vmatprep.subr.mxu0 0.0
        %5346 = vmatpush1.msra.mxu0 %v1771
        %5347 = vmatprep.subr.mxu0 0.0
        %5348 = vmatpush1.msra.mxu0 0.0
        %5349 = vmatprep.subr.mxu0 0.0
        %5350 = vmatpush1.msra.mxu0 0.0
        %5351 = vmatprep.subr.mxu0 0.0
        %5352 = vmatpush1.msra.mxu0 0.0
        %5353 = vmatprep.subr.mxu0 0.0
        %5354 = vmatpush1.msra.mxu0 0.0
        %5355 = vmatprep.subr.mxu0 0.0
        %5356 = vmatpush1.msra.mxu0 0.0
        %5357 = vmatprep.subr.mxu0 0.0
        %5358 = vmatpush1.msra.mxu0 0.0
        %5359 = vmatprep.subr.mxu0 0.0
        %5360 = vmatpush1.msra.mxu0 0.0
        %5361 = vmatprep.subr.mxu0 0.0
        %5362 = vmatpush1.msra.mxu0 0.0
        %5363 = vmatprep.subr.mxu0 0.0
        %5364 = vmatpush1.msra.mxu0 0.0
        %5365 = vmatprep.subr.mxu0 0.0
        %5366 = vmatpush1.msra.mxu0 0.0
        %5367 = vmatprep.subr.mxu0 0.0
        %5368 = vmatpush1.msra.mxu0 0.0
        %5369 = vmatprep.subr.mxu0 0.0
        %5370 = vmatpush1.msra.mxu0 0.0
        %5371 = vmatprep.subr.mxu0 0.0
        %5372 = vmatpush1.msra.mxu0 0.0
        %5373 = vmatprep.subr.mxu0 0.0
        %5374 = vmatpush1.msra.mxu0 0.0
        %5375 = vmatprep.subr.mxu0 0.0
        %5376 = vmatpush1.msra.mxu0 0.0
        %5377 = vmatprep.subr.mxu0 0.0
        %5378 = vmatpush1.msra.mxu0 0.0
        %5379 = vmatprep.subr.mxu0 0.0
        %5380 = vmatpush1.msra.mxu0 0.0
        %5381 = vmatprep.subr.mxu0 0.0
        %5382 = vmatpush1.msra.mxu0 0.0
        %5383 = vmatprep.subr.mxu0 0.0
        %5384 = vmatpush1.msra.mxu0 0.0
        %5385 = vmatprep.subr.mxu0 0.0
        %5386 = vmatpush1.msra.mxu0 0.0
        %5387 = vmatprep.subr.mxu0 0.0
        %5388 = vmatpush1.msra.mxu0 0.0
        %5389 = vmatprep.subr.mxu0 0.0
        %5390 = vmatpush1.msra.mxu0 0.0
        %5391 = vmatprep.subr.mxu0 0.0
        %5392 = vmatpush1.msra.mxu0 0.0
        %5393 = vmatprep.subr.mxu0 0.0
        %5394 = vmatpush1.msra.mxu0 0.0
        %5395 = vmatprep.subr.mxu0 0.0
        %5396 = vmatpush1.msra.mxu0 0.0
        %5397 = vmatprep.subr.mxu0 0.0
        %5398 = vmatpush1.msra.mxu0 0.0
        %5399 = vmatprep.subr.mxu0 0.0
        %5400 = vmatpush1.msra.mxu0 0.0
        %5401 = vmatprep.subr.mxu0 0.0
        %5402 = vmatpush1.msra.mxu0 0.0
        %5403 = vmatprep.mubr.f32.mxu0 0.0
        %5404 = vmatmul.mubr.f32.gmra.mrb[0].mxu0 %v4990
        %v5405 = vpop.f32.mrb[0].mxu0
        %v5406 = vadd.f32 0.0, %v5405
        %v5407 = vpop.f32.mrb[0].mxu0
        %5408 = vdwg.mxu0
        %v5409 = vadd.f32 %v5336, %v5406
        %v5410 = vxor.u32 %v5409, 2147483648
        %v5411 = vmul.f32 %v5410, 1.442695
        %v5412 = vpow.pop %v5411
        %v5413 = vadd.f32 %v5412, 1.0
        %v5414 = vrcp.pop %v5413
        %v5415 = vmul.f32 1.0, %v5414
        %v5416 = vadd.f32 %v5406, %v2186
        %5418 = vrot.lane.b32.xlu0 %v5416, 64
        %v5419 = vpop.permute.xlu0 %5418
        %v5421 = vmul.f32 %v5415, %v5419
        %5423 = vrot.lane.b32.xlu0 %v5421, 64
        %v5424 = vpop.permute.xlu0 %5423
        %v5426 = vadd.f32 %v5336, %v5424
        %v5427 = vtanh.pop %v5426
        %v5428 = vsub.f32 1.0, %v5415
        %5430 = vrot.lane.b32.xlu0 %v5427, 96
        %v5431 = vpop.permute.xlu0 %5430
        %v5433 = vmul.f32 %v5428, %v5431
        %v5434 = vmul.f32 %v5415, %v4986
        %v5435 = vadd.f32 %v5433, %v5434
        %5437 = vrot.lane.b32.xlu0 %v5435, 96
        %v5438 = vpop.permute.xlu0 %5437
        %v5439 = vsel %vm212, %v5438, 0
        %5441 = vmatprep.subr.mxu0 0.0
        %5442 = vmatpush1.msra.mxu0 %v2238
        %5443 = vmatprep.subr.mxu0 0.0
        %5444 = vmatpush1.msra.mxu0 %v2239
        %5445 = vmatprep.subr.mxu0 0.0
        %5446 = vmatpush1.msra.mxu0 %v2240
        %5447 = vmatprep.subr.mxu0 0.0
        %5448 = vmatpush1.msra.mxu0 %v2241
        %5449 = vmatprep.subr.mxu0 0.0
        %5450 = vmatpush1.msra.mxu0 0.0
        %5451 = vmatprep.subr.mxu0 0.0
        %5452 = vmatpush1.msra.mxu0 0.0
        %5453 = vmatprep.subr.mxu0 0.0
        %5454 = vmatpush1.msra.mxu0 0.0
        %5455 = vmatprep.subr.mxu0 0.0
        %5456 = vmatpush1.msra.mxu0 0.0
        %5457 = vmatprep.subr.mxu0 0.0
        %5458 = vmatpush1.msra.mxu0 0.0
        %5459 = vmatprep.subr.mxu0 0.0
        %5460 = vmatpush1.msra.mxu0 0.0
        %5461 = vmatprep.subr.mxu0 0.0
        %5462 = vmatpush1.msra.mxu0 0.0
        %5463 = vmatprep.subr.mxu0 0.0
        %5464 = vmatpush1.msra.mxu0 0.0
        %5465 = vmatprep.subr.mxu0 0.0
        %5466 = vmatpush1.msra.mxu0 0.0
        %5467 = vmatprep.subr.mxu0 0.0
        %5468 = vmatpush1.msra.mxu0 0.0
        %5469 = vmatprep.subr.mxu0 0.0
        %5470 = vmatpush1.msra.mxu0 0.0
        %5471 = vmatprep.subr.mxu0 0.0
        %5472 = vmatpush1.msra.mxu0 0.0
        %5473 = vmatprep.subr.mxu0 0.0
        %5474 = vmatpush1.msra.mxu0 0.0
        %5475 = vmatprep.subr.mxu0 0.0
        %5476 = vmatpush1.msra.mxu0 0.0
        %5477 = vmatprep.subr.mxu0 0.0
        %5478 = vmatpush1.msra.mxu0 0.0
        %5479 = vmatprep.subr.mxu0 0.0
        %5480 = vmatpush1.msra.mxu0 0.0
        %5481 = vmatprep.subr.mxu0 0.0
        %5482 = vmatpush1.msra.mxu0 0.0
        %5483 = vmatprep.subr.mxu0 0.0
        %5484 = vmatpush1.msra.mxu0 0.0
        %5485 = vmatprep.subr.mxu0 0.0
        %5486 = vmatpush1.msra.mxu0 0.0
        %5487 = vmatprep.subr.mxu0 0.0
        %5488 = vmatpush1.msra.mxu0 0.0
        %5489 = vmatprep.subr.mxu0 0.0
        %5490 = vmatpush1.msra.mxu0 0.0
        %5491 = vmatprep.subr.mxu0 0.0
        %5492 = vmatpush1.msra.mxu0 0.0
        %5493 = vmatprep.subr.mxu0 0.0
        %5494 = vmatpush1.msra.mxu0 0.0
        %5495 = vmatprep.subr.mxu0 0.0
        %5496 = vmatpush1.msra.mxu0 0.0
        %5497 = vmatprep.subr.mxu0 0.0
        %5498 = vmatpush1.msra.mxu0 0.0
        %5499 = vmatprep.subr.mxu0 0.0
        %5500 = vmatpush1.msra.mxu0 0.0
        %5501 = vmatprep.subr.mxu0 0.0
        %5502 = vmatpush1.msra.mxu0 0.0
        %5503 = vmatprep.subr.mxu0 0.0
        %5504 = vmatpush1.msra.mxu0 0.0
        %5505 = vmatprep.mubr.f32.mxu0 0.0
        %5506 = vmatmul.mubr.f32.gmra.mrb[0].mxu0 %v5439
        %v5507 = vpop.f32.mrb[0].mxu0
        %v5508 = vadd.f32 %v2251, %v5507
        %v5509 = vpop.f32.mrb[0].mxu0
        %5510 = vdwg.mxu0
        %5511 = vmatprep.subr.mxu0 0.0
        %5512 = vmatpush1.msra.mxu0 %v2345
        %5513 = vmatprep.subr.mxu0 0.0
        %5514 = vmatpush1.msra.mxu0 %v2346
        %5515 = vmatprep.subr.mxu0 0.0
        %5516 = vmatpush1.msra.mxu0 %v2347
        %5517 = vmatprep.subr.mxu0 0.0
        %5518 = vmatpush1.msra.mxu0 %v2348
        %5519 = vmatprep.subr.mxu0 0.0
        %5520 = vmatpush1.msra.mxu0 0.0
        %5521 = vmatprep.subr.mxu0 0.0
        %5522 = vmatpush1.msra.mxu0 0.0
        %5523 = vmatprep.subr.mxu0 0.0
        %5524 = vmatpush1.msra.mxu0 0.0
        %5525 = vmatprep.subr.mxu0 0.0
        %5526 = vmatpush1.msra.mxu0 0.0
        %5527 = vmatprep.subr.mxu0 0.0
        %5528 = vmatpush1.msra.mxu0 0.0
        %5529 = vmatprep.subr.mxu0 0.0
        %5530 = vmatpush1.msra.mxu0 0.0
        %5531 = vmatprep.subr.mxu0 0.0
        %5532 = vmatpush1.msra.mxu0 0.0
        %5533 = vmatprep.subr.mxu0 0.0
        %5534 = vmatpush1.msra.mxu0 0.0
        %5535 = vmatprep.subr.mxu0 0.0
        %5536 = vmatpush1.msra.mxu0 0.0
        %5537 = vmatprep.subr.mxu0 0.0
        %5538 = vmatpush1.msra.mxu0 0.0
        %5539 = vmatprep.subr.mxu0 0.0
        %5540 = vmatpush1.msra.mxu0 0.0
        %5541 = vmatprep.subr.mxu0 0.0
        %5542 = vmatpush1.msra.mxu0 0.0
        %5543 = vmatprep.subr.mxu0 0.0
        %5544 = vmatpush1.msra.mxu0 0.0
        %5545 = vmatprep.subr.mxu0 0.0
        %5546 = vmatpush1.msra.mxu0 0.0
        %5547 = vmatprep.subr.mxu0 0.0
        %5548 = vmatpush1.msra.mxu0 0.0
        %5549 = vmatprep.subr.mxu0 0.0
        %5550 = vmatpush1.msra.mxu0 0.0
        %5551 = vmatprep.subr.mxu0 0.0
        %5552 = vmatpush1.msra.mxu0 0.0
        %5553 = vmatprep.subr.mxu0 0.0
        %5554 = vmatpush1.msra.mxu0 0.0
        %5555 = vmatprep.subr.mxu0 0.0
        %5556 = vmatpush1.msra.mxu0 0.0
        %5557 = vmatprep.subr.mxu0 0.0
        %5558 = vmatpush1.msra.mxu0 0.0
        %5559 = vmatprep.subr.mxu0 0.0
        %5560 = vmatpush1.msra.mxu0 0.0
        %5561 = vmatprep.subr.mxu0 0.0
        %5562 = vmatpush1.msra.mxu0 0.0
        %5563 = vmatprep.subr.mxu0 0.0
        %5564 = vmatpush1.msra.mxu0 0.0
        %5565 = vmatprep.subr.mxu0 0.0
        %5566 = vmatpush1.msra.mxu0 0.0
        %5567 = vmatprep.subr.mxu0 0.0
        %5568 = vmatpush1.msra.mxu0 0.0
        %5569 = vmatprep.subr.mxu0 0.0
        %5570 = vmatpush1.msra.mxu0 0.0
        %5571 = vmatprep.subr.mxu0 0.0
        %5572 = vmatpush1.msra.mxu0 0.0
        %5573 = vmatprep.subr.mxu0 0.0
        %5574 = vmatpush1.msra.mxu0 0.0
        %5575 = vmatprep.mubr.f32.mxu0 0.0
        %5576 = vmatmul.mubr.f32.gmra.mrb[0].mxu0 %v5162
        %v5577 = vpop.f32.mrb[0].mxu0
        %v5578 = vadd.f32 0.0, %v5577
        %v5579 = vpop.f32.mrb[0].mxu0
        %5580 = vdwg.mxu0
        %v5581 = vadd.f32 %v5508, %v5578
        %v5582 = vxor.u32 %v5581, 2147483648
        %v5583 = vmul.f32 %v5582, 1.442695
        %v5584 = vpow.pop %v5583
        %v5585 = vadd.f32 %v5584, 1.0
        %v5586 = vrcp.pop %v5585
        %v5587 = vmul.f32 1.0, %v5586
        %v5588 = vadd.f32 %v5578, %v2431
        %5590 = vrot.lane.b32.xlu0 %v5588, 64
        %v5591 = vpop.permute.xlu0 %5590
        %v5593 = vmul.f32 %v5587, %v5591
        %5595 = vrot.lane.b32.xlu0 %v5593, 64
        %v5596 = vpop.permute.xlu0 %5595
        %v5598 = vadd.f32 %v5508, %v5596
        %v5599 = vtanh.pop %v5598
        %v5600 = vsub.f32 1.0, %v5587
        %5602 = vrot.lane.b32.xlu0 %v5599, 96
        %v5603 = vpop.permute.xlu0 %5602
        %v5605 = vmul.f32 %v5600, %v5603
        %v5606 = vmul.f32 %v5587, %v5158
        %v5607 = vadd.f32 %v5605, %v5606
        %5609 = vrot.lane.b32.xlu0 %v5607, 96
        %v5610 = vpop.permute.xlu0 %5609
        %v5611 = vsel %vm212, %v5610, 0
        %5613 = vmatprep.subr.mxu0 0.0
        %5614 = vmatpush1.msra.mxu0 %v2457
        %5615 = vmatprep.subr.mxu0 0.0
        %5616 = vmatpush1.msra.mxu0 %v2459
        %5617 = vmatprep.subr.mxu0 0.0
        %5618 = vmatpush1.msra.mxu0 %v2461
        %5619 = vmatprep.subr.mxu0 0.0
        %5620 = vmatpush1.msra.mxu0 %v2463
        %5621 = vmatprep.subr.mxu0 0.0
        %5622 = vmatpush1.msra.mxu0 0.0
        %5623 = vmatprep.subr.mxu0 0.0
        %5624 = vmatpush1.msra.mxu0 0.0
        %5625 = vmatprep.subr.mxu0 0.0
        %5626 = vmatpush1.msra.mxu0 0.0
        %5627 = vmatprep.subr.mxu0 0.0
        %5628 = vmatpush1.msra.mxu0 0.0
        %5629 = vmatprep.subr.mxu0 0.0
        %5630 = vmatpush1.msra.mxu0 0.0
        %5631 = vmatprep.subr.mxu0 0.0
        %5632 = vmatpush1.msra.mxu0 0.0
        %5633 = vmatprep.subr.mxu0 0.0
        %5634 = vmatpush1.msra.mxu0 0.0
        %5635 = vmatprep.subr.mxu0 0.0
        %5636 = vmatpush1.msra.mxu0 0.0
        %5637 = vmatprep.subr.mxu0 0.0
        %5638 = vmatpush1.msra.mxu0 0.0
        %5639 = vmatprep.subr.mxu0 0.0
        %5640 = vmatpush1.msra.mxu0 0.0
        %5641 = vmatprep.subr.mxu0 0.0
        %5642 = vmatpush1.msra.mxu0 0.0
        %5643 = vmatprep.subr.mxu0 0.0
        %5644 = vmatpush1.msra.mxu0 0.0
        %5645 = vmatprep.subr.mxu0 0.0
        %5646 = vmatpush1.msra.mxu0 0.0
        %5647 = vmatprep.subr.mxu0 0.0
        %5648 = vmatpush1.msra.mxu0 0.0
        %5649 = vmatprep.subr.mxu0 0.0
        %5650 = vmatpush1.msra.mxu0 0.0
        %5651 = vmatprep.subr.mxu0 0.0
        %5652 = vmatpush1.msra.mxu0 0.0
        %5653 = vmatprep.subr.mxu0 0.0
        %5654 = vmatpush1.msra.mxu0 0.0
        %5655 = vmatprep.subr.mxu0 0.0
        %5656 = vmatpush1.msra.mxu0 0.0
        %5657 = vmatprep.subr.mxu0 0.0
        %5658 = vmatpush1.msra.mxu0 0.0
        %5659 = vmatprep.subr.mxu0 0.0
        %5660 = vmatpush1.msra.mxu0 0.0
        %5661 = vmatprep.subr.mxu0 0.0
        %5662 = vmatpush1.msra.mxu0 0.0
        %5663 = vmatprep.subr.mxu0 0.0
        %5664 = vmatpush1.msra.mxu0 0.0
        %5665 = vmatprep.subr.mxu0 0.0
        %5666 = vmatpush1.msra.mxu0 0.0
        %5667 = vmatprep.subr.mxu0 0.0
        %5668 = vmatpush1.msra.mxu0 0.0
        %5669 = vmatprep.subr.mxu0 0.0
        %5670 = vmatpush1.msra.mxu0 0.0
        %5671 = vmatprep.subr.mxu0 0.0
        %5672 = vmatpush1.msra.mxu0 0.0
        %5673 = vmatprep.subr.mxu0 0.0
        %5674 = vmatpush1.msra.mxu0 0.0
        %5675 = vmatprep.subr.mxu0 0.0
        %5676 = vmatpush1.msra.mxu0 0.0
        %5677 = vmatprep.mubr.f32.mxu0 0.0
        %5678 = vmatmul.mubr.f32.gmra.mrb[0].mxu0 %v5611
        %v5679 = vpop.f32.mrb[0].mxu0
        %v5680 = vadd.f32 %v1945, %v5679
        %v5681 = vpop.f32.mrb[0].mxu0
        %5682 = vdwg.mxu0
        %v5683 = vsel %vm350, %v5680, -inf
        %5684 = vmax.xlane.f32.xlu0 %v5683
        %v5685 = vpop.xlane.xlu0 %5684
        %v5686 = vsub.f32 %v5680, %v5685
        %v5687 = vmul.f32 %v5686, 1.442695
        %v5688 = vpow.pop %v5687
        %v5689 = vsel %vm350, %v5688, 0.0
        %5690 = vadd.xlane.f32.xlu0 %v5689
        %v5691 = vpop.xlane.xlu0 %5690
        %v5692 = vlog2.pop %v5691
        %v5693 = vmul.f32 %v5692, 0.6931472
        %v5694 = vsub.f32 %v5686, %v5693
        %5696 = vrot.lane.b32.xlu0 %v3020, 16
        %v5697 = vpop.permute.xlu0 %5696
        %5700 = vrot.lane.b32.xlu0 %v3469, 32
        %v5701 = vpop.permute.xlu0 %5700
        %5704 = vrot.lane.b32.xlu0 %v3918, 48
        %v5705 = vpop.permute.xlu0 %5704
        %5708 = vrot.lane.b32.xlu0 %v4367, 64
        %v5709 = vpop.permute.xlu0 %5708
        %5712 = vrot.lane.b32.xlu0 %v4816, 80
        %v5713 = vpop.permute.xlu0 %5712
        %5716 = vrot.lane.b32.xlu0 %v5265, 96
        %v5717 = vpop.permute.xlu0 %5716
        %5720 = vrot.lane.b32.xlu0 %v5694, 112
        %v5721 = vpop.permute.xlu0 %5720
        %v5723 = vsel %vm350, %v2571, %v5697
        %v5724 = vsel %vm212, %v5723, %v5701
        %v5725 = vsel %vm209, %v5724, %v5705
        %v5726 = vsel %vm1433, %v5725, %v5709
        %vm5727 = vcmask 654336
        %v5728 = vsel %vm5727, %v5726, %v5713
        %vm5729 = vcmask 785408
        %v5730 = vsel %vm5729, %v5728, %v5717
        %vm5731 = vcmask 916480
        %v5732 = vsel %vm5731, %v5730, %v5721
        %5733 = vst [vmem:[%s180] sm:$0xff] %v5732
        %s5734 = sand.u32 %s77, 1
        %s5735 = scalar_lea.sflag [#allocation4], %s5734
        %s5736 = sand.u32 %s77, 1
        %s5737 = smul.addr %s5736, 8
        %s5738 = scalar_lea.vmem [#allocation5], %s5737
        %s5739 = sand.u32 %s103, 1
        %s5740 = scalar_lea.sflag [#allocation7], %s5739
        %s5741 = sand.u32 %s103, 1
        %s5742 = smul.addr %s5741, 8
        %s5743 = scalar_lea.vmem [#allocation6], %s5742
        // Predicated region
        $region33: #{tpu_custom_call.1} parent=27 // pred_check
          %p5744 = pneg %p87
        $region34: #{tpu_custom_call.1} parent=27 // pred_check_branch
          %5746 = sbr.rel (%p5744) target = $region36
        $region35: #{tpu_custom_call.1} parent=27 // pred_region
          %s5748 = ssub.s32 128, 128
          %5749 = vsyncadd %s5735, %s5748
          %s5750 = smul.addr %s22, 128
          %s5751 = scalar_lea.hbm %s2, %s5750
          %s5753 = sshll.u32 %s5738, 4
          %s5754 = int_to_ptr.vmem [resolvable:$true] %s5753
          %5756 = dma.vmem_to_hbm [thread:$0]  %s5754, 128, %s5751, %s5735
        $region36: #{tpu_custom_call.1} parent=27 // pred_fallthru
          _
        // Predicated region
        $region37: #{tpu_custom_call.1} parent=27 // pred_check
          %p5757 = pneg %p113
        $region38: #{tpu_custom_call.1} parent=27 // pred_check_branch
          %5759 = sbr.rel (%p5757) target = $region40
        $region39: #{tpu_custom_call.1} parent=27 // pred_region
          %s5761 = ssub.s32 128, 128
          %5762 = vsyncadd %s5740, %s5761
          %s5763 = smul.addr %s22, 128
          %s5764 = scalar_lea.hbm %s3, %s5763
          %s5766 = sshll.u32 %s5743, 4
          %s5767 = int_to_ptr.vmem [resolvable:$true] %s5766
          %5769 = dma.vmem_to_hbm [thread:$0]  %s5767, 128, %s5764, %s5740
        $region40: #{tpu_custom_call.1} parent=27 // pred_fallthru
          _
      $region28: #{tpu_custom_call.1} parent=5 // pred_fallthru
        _
      %p5770 = scmp.le.s32.totalorder 2, %s17
      // Predicated region
      $region41: #{tpu_custom_call.1} parent=5 // pred_check
        %p5771 = pneg %p5770
      $region42: #{tpu_custom_call.1} parent=5 // pred_check_branch
        %5773 = sbr.rel (%p5771) target = $region44
      $region43: #{tpu_custom_call.1} parent=5 // pred_region
        %s5774 = ssub.s32 %s17, 2
        // Predicated region
        $region45: #{tpu_custom_call.1} parent=43 // pred_check
          %p5775 = pneg %p93
        $region46: #{tpu_custom_call.1} parent=43 // pred_check_branch
          %5777 = sbr.rel (%p5775) target = $region48
        $region47: #{tpu_custom_call.1} parent=43 // pred_region
          %s5778 = sand.u32 %s78, 1
          %s5779 = scalar_lea.sflag [#allocation4], %s5778
          %s5780 = sand.u32 %s78, 1
          %s5781 = smul.addr %s5780, 8
          %s5782 = scalar_lea.vmem [#allocation5], %s5781
          %5783 = dma.done %s5779, 128
        $region48: #{tpu_custom_call.1} parent=43 // pred_fallthru
          _
        // Predicated region
        $region49: #{tpu_custom_call.1} parent=43 // pred_check
          %p5784 = pneg %p119
        $region50: #{tpu_custom_call.1} parent=43 // pred_check_branch
          %5786 = sbr.rel (%p5784) target = $region52
        $region51: #{tpu_custom_call.1} parent=43 // pred_region
          %s5787 = sand.u32 %s104, 1
          %s5788 = scalar_lea.sflag [#allocation7], %s5787
          %s5789 = sand.u32 %s104, 1
          %s5790 = smul.addr %s5789, 8
          %s5791 = scalar_lea.vmem [#allocation6], %s5790
          %5792 = dma.done %s5788, 128
        $region52: #{tpu_custom_call.1} parent=43 // pred_fallthru
          _
      $region44: #{tpu_custom_call.1} parent=5 // pred_fallthru
        _
    $region6: #{tpu_custom_call.1} parent=1 // loop_footer
      %s21 = sadd.s32 1, %s17
    $region7: #{tpu_custom_call.1} parent=1 // loop_footer_branch
      %16 = sbr.rel target = $region3
    $region8: #{tpu_custom_call.1} parent=1 // loop_exit
      _
    %5793 = vsyncpa [#allocation3], 1
    %s5794 = scalar_lea.sflag [#allocation3], 1
    %5795 = vsyncpa %s5794, 1
    %5796 = vsyncpa [#allocation4], 1
    %s5797 = scalar_lea.sflag [#allocation4], 1
    %5798 = vsyncpa %s5797, 1
    %5799 = vsyncpa [#allocation7], 1
    %s5800 = scalar_lea.sflag [#allocation7], 1
    %5801 = vsyncpa %s5800, 1

</llo_original>
